<compile_context>
chip_gen: v5e
topology: v5e:2x2
jax: 0.10.0
libtpu: 0.0.40
codegen_flags: <defaults>
</compile_context>

<pallas_src>
import jax
import jax.numpy as jnp
from jax.experimental import pallas as pl
from jax.experimental.pallas import tpu as pltpu


def subgraph_pool_kernel(node_ref, size_ref, h_ref, wslab_ref, vslab_ref, out_ref):
    T, N, Fd = node_ref.shape

    node = node_ref[...].astype(jnp.float32)        # (T, N, F)  bf16 -> f32 (v5e: no bf16 VPU)
    h = h_ref[...]                                  # (T, F) f32  GRU hidden == subgraph feats
    sizes = size_ref[...]                           # (T, 1) int32

    vslab = vslab_ref[...]                          # (8, 4F) f32 packed small weights/biases
    w_lsg  = vslab[0:1, :Fd]                        # (1, F)   logits weight, subgraph half
    w_lnd  = vslab[1:2, :Fd]                        # (1, F)   logits weight, node half
    b_proj = vslab[2:3, :Fd]                        # (1, F)
    bh     = vslab[2:3, Fd:]                        # (1, 3F)  hidden-side GRU bias (fused)
    bi     = vslab[3:4, Fd:]                        # (1, 3F)  input-side GRU bias (fused)
    b_l    = vslab[4:5, 0:1]                        # (1, 1)   logits bias

    # Rebuild the node-validity mask from per-subgraph sizes (no (SG, N) mask DMA stream).
    iota_n = jax.lax.broadcasted_iota(jnp.int32, (T, N), 1)
    valid = iota_n < sizes                          # (T, N) bool
    maskf = valid.astype(jnp.float32)

    # compute_logits(cat([broadcast_nodes(relu(subgraph_feats)), node_feats])):
    # Linear(2F -> 1) split into subgraph / node halves, then LeakyReLU(0.01).
    sg_relu = jnp.maximum(h, 0.0)
    z_sg = jnp.sum(sg_relu * w_lsg, axis=-1, keepdims=True)        # (T, 1)
    z_nd = jnp.sum(node * w_lnd, axis=-1)                          # (T, N)
    pre = z_sg + z_nd + b_l                                        # (T, N)
    z = jnp.where(pre >= 0.0, pre, 0.01 * pre)

    # softmax_nodes: masked softmax over the node axis.
    neg = jnp.float32(-1e30)
    zm = jnp.where(valid, z, neg)
    zmax = jnp.max(zm, axis=-1, keepdims=True)
    e = jnp.exp(zm - zmax) * maskf
    denom = jnp.maximum(jnp.sum(e, axis=-1, keepdims=True), jnp.float32(1e-30))
    a = e * pl.reciprocal(denom, approx=True)                      # (T, N)
    asum = jnp.sum(a, axis=-1, keepdims=True)                      # (T, 1): ~1, exactly 0 if empty

    # project_nodes (Dropout = identity in eval, Linear F->F) folded through the
    # attention-weighted sum:  sum_n a_n (x_n W + b) = (sum_n a_n x_n) W + (sum_n a_n) b.
    # TODO(synk): dropout is an identity here (inference mode); no stochastic mask.
    wsum = jnp.sum(a[:, :, None] * node, axis=1)                   # (T, F)

    # Merged MXU chain: [wsum | h] @ blockdiag(W_proj, W_h) -> [g_repr_raw | gh_raw].
    xin = jnp.concatenate([wsum, h], axis=1).astype(jnp.bfloat16)  # (T, 2F) bf16 MXU operand
    big = jnp.dot(xin, wslab_ref[:, 0:4 * Fd],
                  preferred_element_type=jnp.float32)              # (T, 4F) f32
    g_repr = big[:, :Fd] + asum * b_proj                           # (T, F)
    gh = big[:, Fd:] + bh                                          # (T, 3F)

    # context = ELU(g_repr)
    context = jnp.where(g_repr > 0.0, g_repr,
                        jnp.exp(jnp.minimum(g_repr, 0.0)) - 1.0)

    # GRUCell(context, h): input-side fused (F, 3F) matmul; hidden side already in `gh`.
    gi = jnp.dot(context.astype(jnp.bfloat16), wslab_ref[0:Fd, 4 * Fd:],
                 preferred_element_type=jnp.float32) + bi          # (T, 3F)

    r  = jax.nn.sigmoid(gi[:, :Fd] + gh[:, :Fd])
    zg = jax.nn.sigmoid(gi[:, Fd:2 * Fd] + gh[:, Fd:2 * Fd])
    n  = jnp.tanh(gi[:, 2 * Fd:] + r * gh[:, 2 * Fd:])
    out_ref[...] = (1.0 - zg) * n + zg * h


def _pack_weight_slabs(params, Fd):
    """Collapse the 12 small weight/bias tensors into one bf16 MXU slab + one f32 vector slab."""
    w_proj = params['w_proj']
    wi = jnp.concatenate([params['w_ir'], params['w_iz'], params['w_in']], axis=1)   # (F, 3F)
    wh = jnp.concatenate([params['w_hr'], params['w_hz'], params['w_hn']], axis=1)   # (F, 3F)
    zf = jnp.zeros((Fd, Fd), jnp.float32)
    z3 = jnp.zeros((Fd, 3 * Fd), jnp.float32)
    # wslab[:, 0:4F]   = blockdiag(W_proj, W_h)   (cols [0:F] -> proj, cols [F:4F] -> hidden GRU)
    # wslab[0:F, 4F:]  = W_i (input-side GRU)
    wslab = jnp.concatenate([
        jnp.concatenate([w_proj, z3, wi], axis=1),
        jnp.concatenate([zf, wh, z3], axis=1),
    ], axis=0).astype(jnp.bfloat16)                                                   # (2F, 7F)

    bi = jnp.concatenate([params['b_ir'], params['b_iz'], params['b_in']], axis=1)    # (1, 3F)
    bh = jnp.concatenate([params['b_hr'], params['b_hz'], params['b_hn']], axis=1)    # (1, 3F)
    vslab = jnp.zeros((8, 4 * Fd), jnp.float32)
    vslab = vslab.at[0, :Fd].set(params['w_lsg'][0])
    vslab = vslab.at[1, :Fd].set(params['w_lnd'][0])
    vslab = vslab.at[2, :Fd].set(params['b_proj'][0])
    vslab = vslab.at[2, Fd:].set(bh[0])
    vslab = vslab.at[3, Fd:].set(bi[0])
    vslab = vslab.at[4, 0].set(params['b_l'][0, 0])
    return wslab, vslab


def _choose_sg_tile(sg_total, requested):
    """Largest tile <= requested that divides SG and keeps sublane alignment."""
    t = min(requested, sg_total)
    while t > 1:
        if sg_total % t == 0 and (t == sg_total or t % 8 == 0):
            return t
        t -= 1
    return sg_total


def _vmem_limit_bytes(sg_tile, N, Fd):
    node_blk = sg_tile * N * Fd * 2            # bf16
    h_blk = sg_tile * Fd * 4
    out_blk = sg_tile * Fd * 4
    size_blk = sg_tile * 4
    wslab = (2 * Fd) * (7 * Fd) * 2            # bf16
    vslab = 8 * (4 * Fd) * 4
    pipelined = 2 * (node_blk + h_blk + out_blk + size_blk + wslab + vslab)  # double-buffered
    temps = sg_tile * N * Fd * 4 + 10 * sg_tile * Fd * 4   # f32 node upcast + tail intermediates
    limit = pipelined + temps + (8 << 20)
    # floor at 32 MiB; cap at 48 MiB so the same budget stays safe on v7x's 64 MiB VMEM.
    return int(min(max(limit, 32 << 20), 48 << 20))


def subgraph_pool(node_feats, sizes, subgraph_feats, params, *, sg_tile=256):
    """node_feats: (SG, N_max, F) bf16 zero-padded; sizes: (SG,) int32; subgraph_feats: (SG, F) f32."""
    SG, N, Fd = node_feats.shape
    sg_tile = _choose_sg_tile(SG, sg_tile)
    grid = (SG // sg_tile,)

    wslab, vslab = _pack_weight_slabs(params, Fd)
    sizes_2d = sizes.reshape(SG, 1).astype(jnp.int32)

    in_specs = [
        # streamed per-subgraph tiles (double-buffered by the pipeline)
        pl.BlockSpec((sg_tile, N, Fd), lambda i: (i, 0, 0)),     # node_feats (bf16)
        pl.BlockSpec((sg_tile, 1),     lambda i: (i, 0)),        # sizes (int32)
        pl.BlockSpec((sg_tile, Fd),    lambda i: (i, 0)),        # subgraph_feats / GRU hidden
        # resident weights: constant block index -> fetched once, stay in VMEM
        pl.BlockSpec((2 * Fd, 7 * Fd), lambda i: (0, 0)),        # wslab (bf16 MXU weights)
        pl.BlockSpec((8, 4 * Fd),      lambda i: (0, 0)),        # vslab (f32 small weights/biases)
    ]
    out_spec = pl.BlockSpec((sg_tile, Fd), lambda i: (i, 0))

    return pl.pallas_call(
        subgraph_pool_kernel,
        out_shape=jax.ShapeDtypeStruct((SG, Fd), jnp.float32),
        grid=grid,
        in_specs=in_specs,
        out_specs=out_spec,
        compiler_params=pltpu.CompilerParams(
            dimension_semantics=("parallel",),                   # v7x: shards tiles over 2 TCs
            vmem_limit_bytes=_vmem_limit_bytes(sg_tile, N, Fd),
        ),
    )(node_feats, sizes_2d, subgraph_feats, wslab, vslab)


def subgraph_pool_reference(node_feats, node_mask, subgraph_feats, p):
    """Pure-JAX f32 reference with the original (unfolded) SubgraphPool semantics."""
    node_feats = node_feats.astype(jnp.float32)
    h = subgraph_feats
    sg_relu = jnp.maximum(h, 0.0)
    z_sg = jnp.sum(sg_relu * p['w_lsg'], axis=-1, keepdims=True)
    z_nd = jnp.sum(node_feats * p['w_lnd'], axis=-1)
    pre = z_sg + z_nd + p['b_l']
    z = jnp.where(pre >= 0.0, pre, 0.01 * pre)
    zm = jnp.where(node_mask > 0.0, z, -1e30)
    zm = zm - jnp.max(zm, axis=-1, keepdims=True)
    e = jnp.exp(zm) * node_mask
    a = e / jnp.sum(e, axis=-1, keepdims=True)
    hv = jnp.einsum('snf,fg->sng', node_feats, p['w_proj']) + p['b_proj']
    g_repr = jnp.sum(a[:, :, None] * hv, axis=1)
    context = jnp.where(g_repr > 0.0, g_repr, jnp.exp(jnp.minimum(g_repr, 0.0)) - 1.0)
    x = context
    r = jax.nn.sigmoid(x @ p['w_ir'] + p['b_ir'] + h @ p['w_hr'] + p['b_hr'])
    zg = jax.nn.sigmoid(x @ p['w_iz'] + p['b_iz'] + h @ p['w_hz'] + p['b_hz'])
    n = jnp.tanh(x @ p['w_in'] + p['b_in'] + r * (h @ p['w_hn'] + p['b_hn']))
    return (1.0 - zg) * n + zg * h


def init_params(key, F):
    keys = jax.random.split(key, 20)
    s = 1.0 / jnp.sqrt(jnp.float32(F))

    def u(k, shape):
        return jax.random.uniform(k, shape, jnp.float32, -s, s)

    return {
        # compute_logits: Linear(2F -> 1), split into subgraph/node halves (stored (1, F))
        'w_lsg': u(keys[0], (1, F)),
        'w_lnd': u(keys[1], (1, F)),
        'b_l': u(keys[2], (1, 1)),
        # project_nodes: Linear(F -> F), stored as (in, out) so y = x @ W + b
        'w_proj': u(keys[3], (F, F)),
        'b_proj': u(keys[4], (1, F)),
        # GRUCell(F, F): input->hidden and hidden->hidden weights, stored (in, out)
        'w_ir': u(keys[5], (F, F)), 'w_iz': u(keys[6], (F, F)), 'w_in': u(keys[7], (F, F)),
        'w_hr': u(keys[8], (F, F)), 'w_hz': u(keys[9], (F, F)), 'w_hn': u(keys[10], (F, F)),
        'b_ir': u(keys[11], (1, F)), 'b_iz': u(keys[12], (1, F)), 'b_in': u(keys[13], (1, F)),
        'b_hr': u(keys[14], (1, F)), 'b_hz': u(keys[15], (1, F)), 'b_hn': u(keys[16], (1, F)),
    }


if __name__ == "__main__":
    # SG chosen so the default sg_tile=256 gives grid=(2,) (even -> balanced on v7x's 2 TCs);
    # F=128 keeps the output and all (T, F)/(T, 3F) intermediates lane-dense.
    SG, N, F = 512, 8, 128

    key = jax.random.PRNGKey(0)
    k_node, k_sg, k_size, k_param = jax.random.split(key, 4)

    node_feats = jax.random.normal(k_node, (SG, N, F), jnp.float32)
    subgraph_feats = jax.random.normal(k_sg, (SG, F), jnp.float32)
    sizes = jax.random.randint(k_size, (SG,), 1, N + 1).astype(jnp.int32)  # >=1 real node each
    node_mask = (jnp.arange(N)[None, :] < sizes[:, None]).astype(jnp.float32)
    # zero out padded node rows (matches a real batched graph with no padding nodes)
    node_feats = node_feats * node_mask[:, :, None]
    # bf16 storage for the dominant streamed input; kernel upcasts to f32 internally.
    node_feats_bf16 = node_feats.astype(jnp.bfloat16)

    params = init_params(k_param, F)

    out = subgraph_pool(node_feats_bf16, sizes, subgraph_feats, params, sg_tile=256)
    out = jax.block_until_ready(out)

    ref = subgraph_pool_reference(node_feats_bf16, node_mask, subgraph_feats, params)
    assert out.shape == (SG, F)
    # Tolerance reflects bf16 MXU operands (wsum/h/context and all matmul weights) plus the
    # approximate softmax reciprocal; structural bugs would produce errors far above this.
    assert jnp.allclose(out, ref, atol=3e-2, rtol=3e-2), "mismatch vs reference"

    print("KERNEL_OK")
</pallas_src>

<mosaic_0001>
module attributes {stable_mosaic.version = 11 : i64} {
  func.func @subgraph_pool_kernel(%arg0: i32, %arg1: memref<256x8x128xbf16, #tpu.memory_space<vmem>>, %arg2: memref<256x1xi32, #tpu.memory_space<vmem>>, %arg3: memref<256x128xf32, #tpu.memory_space<vmem>>, %arg4: memref<256x896xbf16, #tpu.memory_space<vmem>>, %arg5: memref<8x512xf32, #tpu.memory_space<vmem>>, %arg6: memref<256x128xf32, #tpu.memory_space<vmem>>) attributes {dimension_semantics = [#tpu.dimension_semantics<parallel>], iteration_bounds = array<i64: 2>, scalar_prefetch = 0 : i64, scratch_operands = 0 : i64, tpu.core_type = #tpu.core_type<tc>, window_params = [{transform_indices = @transform_0, window_bounds = array<i64: 256, 8, 128>}, {transform_indices = @transform_1, window_bounds = array<i64: 256, 1>}, {transform_indices = @transform_2, window_bounds = array<i64: 256, 128>}, {pipeline_mode = #tpu.pipeline_mode<synchronous>, transform_indices = @transform_3, window_bounds = array<i64: 256, 896>}, {pipeline_mode = #tpu.pipeline_mode<synchronous>, transform_indices = @transform_4, window_bounds = array<i64: 8, 512>}, {transform_indices = @transform_5, window_bounds = array<i64: 256, 128>}]} {
    %c0 = arith.constant 0 : index
    %c0_0 = arith.constant 0 : index
    %c0_1 = arith.constant 0 : index
    %0 = vector.load %arg1[%c0, %c0_0, %c0_1] : memref<256x8x128xbf16, #tpu.memory_space<vmem>>, vector<256x8x128xbf16>
    %1 = arith.extf %0 : vector<256x8x128xbf16> to vector<256x8x128xf32>
    %c0_2 = arith.constant 0 : index
    %c0_3 = arith.constant 0 : index
    %2 = vector.load %arg3[%c0_2, %c0_3] : memref<256x128xf32, #tpu.memory_space<vmem>>, vector<256x128xf32>
    %c0_4 = arith.constant 0 : index
    %c0_5 = arith.constant 0 : index
    %3 = vector.load %arg2[%c0_4, %c0_5] : memref<256x1xi32, #tpu.memory_space<vmem>>, vector<256x1xi32>
    %c0_6 = arith.constant 0 : index
    %c0_7 = arith.constant 0 : index
    %4 = vector.load %arg5[%c0_6, %c0_7] : memref<8x512xf32, #tpu.memory_space<vmem>>, vector<8x512xf32>
    %5 = vector.extract_strided_slice %4 {offsets = [0, 0], sizes = [1, 128], strides = [1, 1]} : vector<8x512xf32> to vector<1x128xf32>
    %6 = vector.extract_strided_slice %4 {offsets = [1, 0], sizes = [1, 128], strides = [1, 1]} : vector<8x512xf32> to vector<1x128xf32>
    %7 = vector.extract_strided_slice %4 {offsets = [2, 0], sizes = [1, 128], strides = [1, 1]} : vector<8x512xf32> to vector<1x128xf32>
    %8 = vector.extract_strided_slice %4 {offsets = [2, 128], sizes = [1, 384], strides = [1, 1]} : vector<8x512xf32> to vector<1x384xf32>
    %9 = vector.extract_strided_slice %4 {offsets = [3, 128], sizes = [1, 384], strides = [1, 1]} : vector<8x512xf32> to vector<1x384xf32>
    %10 = vector.extract_strided_slice %4 {offsets = [4, 0], sizes = [1, 1], strides = [1, 1]} : vector<8x512xf32> to vector<1x1xf32>
    %11 = tpu.iota {dimensions = array<i32: 1>} : vector<256x8xi32>
    %12 = vector.broadcast %3 : vector<256x1xi32> to vector<256x8xi32>
    %13 = arith.cmpi slt, %11, %12 : vector<256x8xi32>
    %14 = arith.extui %13 : vector<256x8xi1> to vector<256x8xi32>
    %15 = arith.sitofp %14 : vector<256x8xi32> to vector<256x8xf32>
    %cst = arith.constant 0.000000e+00 : f32
    %16 = vector.broadcast %cst : f32 to vector<256x128xf32>
    %17 = arith.maximumf %2, %16 : vector<256x128xf32>
    %18 = vector.broadcast %5 : vector<1x128xf32> to vector<256x128xf32>
    %19 = arith.mulf %17, %18 : vector<256x128xf32>
    %cst_8 = arith.constant dense<0.000000e+00> : vector<256xf32>
    %20 = vector.multi_reduction <add>, %19, %cst_8 [1] : vector<256x128xf32> to vector<256xf32>
    %21 = vector.shape_cast %20 : vector<256xf32> to vector<256x1xf32>
    %22 = vector.shape_cast %6 : vector<1x128xf32> to vector<1x1x128xf32>
    %23 = vector.broadcast %22 : vector<1x1x128xf32> to vector<256x8x128xf32>
    %24 = arith.mulf %1, %23 : vector<256x8x128xf32>
    %cst_9 = arith.constant dense<0.000000e+00> : vector<256x8xf32>
    %25 = vector.multi_reduction <add>, %24, %cst_9 [2] : vector<256x8x128xf32> to vector<256x8xf32>
    %26 = vector.broadcast %21 : vector<256x1xf32> to vector<256x8xf32>
    %27 = arith.addf %26, %25 : vector<256x8xf32>
    %28 = vector.broadcast %10 : vector<1x1xf32> to vector<256x8xf32>
    %29 = arith.addf %27, %28 : vector<256x8xf32>
    %cst_10 = arith.constant 0.000000e+00 : f32
    %30 = vector.broadcast %cst_10 : f32 to vector<256x8xf32>
    %31 = arith.cmpf oge, %29, %30 : vector<256x8xf32>
    %cst_11 = arith.constant 0.00999999977 : f32
    %32 = vector.broadcast %cst_11 : f32 to vector<256x8xf32>
    %33 = arith.mulf %32, %29 : vector<256x8xf32>
    %34 = arith.select %31, %29, %33 : vector<256x8xi1>, vector<256x8xf32>
    %cst_12 = arith.constant -1.000000e+30 : f32
    %35 = vector.broadcast %cst_12 : f32 to vector<256x8xf32>
    %36 = arith.select %13, %34, %35 : vector<256x8xi1>, vector<256x8xf32>
    %cst_13 = arith.constant dense<0xFF800000> : vector<256xf32>
    %37 = vector.multi_reduction <maximumf>, %36, %cst_13 [1] : vector<256x8xf32> to vector<256xf32>
    %38 = vector.shape_cast %37 : vector<256xf32> to vector<256x1xf32>
    %39 = vector.broadcast %38 : vector<256x1xf32> to vector<256x8xf32>
    %40 = arith.subf %36, %39 : vector<256x8xf32>
    %41 = math.exp %40 : vector<256x8xf32>
    %42 = arith.mulf %41, %15 : vector<256x8xf32>
    %cst_14 = arith.constant dense<0.000000e+00> : vector<256xf32>
    %43 = vector.multi_reduction <add>, %42, %cst_14 [1] : vector<256x8xf32> to vector<256xf32>
    %44 = vector.shape_cast %43 : vector<256xf32> to vector<256x1xf32>
    %cst_15 = arith.constant 1.000000e-30 : f32
    %45 = vector.broadcast %cst_15 : f32 to vector<256x1xf32>
    %46 = arith.maximumf %44, %45 : vector<256x1xf32>
    %47 = tpu.reciprocal %46 {approx = true} : vector<256x1xf32> -> vector<256x1xf32>
    %48 = vector.broadcast %47 : vector<256x1xf32> to vector<256x8xf32>
    %49 = arith.mulf %42, %48 : vector<256x8xf32>
    %cst_16 = arith.constant dense<0.000000e+00> : vector<256xf32>
    %50 = vector.multi_reduction <add>, %49, %cst_16 [1] : vector<256x8xf32> to vector<256xf32>
    %51 = vector.shape_cast %50 : vector<256xf32> to vector<256x1xf32>
    %52 = vector.shape_cast %49 : vector<256x8xf32> to vector<256x8x1xf32>
    %53 = vector.broadcast %52 : vector<256x8x1xf32> to vector<256x8x128xf32>
    %54 = arith.mulf %53, %1 : vector<256x8x128xf32>
    %cst_17 = arith.constant dense<0.000000e+00> : vector<256x128xf32>
    %55 = vector.multi_reduction <add>, %54, %cst_17 [1] : vector<256x8x128xf32> to vector<256x128xf32>
    %56 = tpu.concatenate %55, %2 in 1 : vector<256x128xf32>, vector<256x128xf32> -> vector<256x256xf32>
    %57 = arith.truncf %56 : vector<256x256xf32> to vector<256x256xbf16>
    %c0_18 = arith.constant 0 : index
    %c0_19 = arith.constant 0 : index
    %58 = vector.load %arg4[%c0_18, %c0_19] : memref<256x896xbf16, #tpu.memory_space<vmem>>, vector<256x512xbf16>
    %cst_20 = arith.constant dense<0.000000e+00> : vector<256x512xf32>
    %59 = tpu.matmul %57, %58, %cst_20 {dimension_numbers = #tpu.dot_dimension_numbers<[1], [0], [0], [1], [0, 0, 1, 1], [], []>} : vector<256x256xbf16>, vector<256x512xbf16>, vector<256x512xf32> -> vector<256x512xf32>
    %60 = vector.extract_strided_slice %59 {offsets = [0, 0], sizes = [256, 128], strides = [1, 1]} : vector<256x512xf32> to vector<256x128xf32>
    %61 = vector.broadcast %51 : vector<256x1xf32> to vector<256x128xf32>
    %62 = vector.broadcast %7 : vector<1x128xf32> to vector<256x128xf32>
    %63 = arith.mulf %61, %62 : vector<256x128xf32>
    %64 = arith.addf %60, %63 : vector<256x128xf32>
    %65 = vector.extract_strided_slice %59 {offsets = [0, 128], sizes = [256, 384], strides = [1, 1]} : vector<256x512xf32> to vector<256x384xf32>
    %66 = vector.broadcast %8 : vector<1x384xf32> to vector<256x384xf32>
    %67 = arith.addf %65, %66 : vector<256x384xf32>
    %cst_21 = arith.constant 0.000000e+00 : f32
    %68 = vector.broadcast %cst_21 : f32 to vector<256x128xf32>
    %69 = arith.cmpf ogt, %64, %68 : vector<256x128xf32>
    %cst_22 = arith.constant 0.000000e+00 : f32
    %70 = vector.broadcast %cst_22 : f32 to vector<256x128xf32>
    %71 = arith.minimumf %64, %70 : vector<256x128xf32>
    %72 = math.exp %71 : vector<256x128xf32>
    %cst_23 = arith.constant 1.000000e+00 : f32
    %73 = vector.broadcast %cst_23 : f32 to vector<256x128xf32>
    %74 = arith.subf %72, %73 : vector<256x128xf32>
    %75 = arith.select %69, %64, %74 : vector<256x128xi1>, vector<256x128xf32>
    %76 = arith.truncf %75 : vector<256x128xf32> to vector<256x128xbf16>
    %c0_24 = arith.constant 0 : index
    %c512 = arith.constant 512 : index
    %77 = vector.load %arg4[%c0_24, %c512] : memref<256x896xbf16, #tpu.memory_space<vmem>>, vector<128x384xbf16>
    %cst_25 = arith.constant dense<0.000000e+00> : vector<256x384xf32>
    %78 = tpu.matmul %76, %77, %cst_25 {dimension_numbers = #tpu.dot_dimension_numbers<[1], [0], [0], [1], [0, 0, 1, 1], [], []>} : vector<256x128xbf16>, vector<128x384xbf16>, vector<256x384xf32> -> vector<256x384xf32>
    %79 = vector.broadcast %9 : vector<1x384xf32> to vector<256x384xf32>
    %80 = arith.addf %78, %79 : vector<256x384xf32>
    %81 = vector.extract_strided_slice %80 {offsets = [0, 0], sizes = [256, 128], strides = [1, 1]} : vector<256x384xf32> to vector<256x128xf32>
    %82 = vector.extract_strided_slice %67 {offsets = [0, 0], sizes = [256, 128], strides = [1, 1]} : vector<256x384xf32> to vector<256x128xf32>
    %83 = arith.addf %81, %82 : vector<256x128xf32>
    %84 = arith.negf %83 : vector<256x128xf32>
    %85 = math.exp %84 : vector<256x128xf32>
    %cst_26 = arith.constant 1.000000e+00 : f32
    %86 = vector.broadcast %cst_26 : f32 to vector<256x128xf32>
    %87 = arith.addf %86, %85 : vector<256x128xf32>
    %88 = arith.divf %86, %87 : vector<256x128xf32>
    %89 = vector.extract_strided_slice %80 {offsets = [0, 128], sizes = [256, 128], strides = [1, 1]} : vector<256x384xf32> to vector<256x128xf32>
    %90 = vector.extract_strided_slice %67 {offsets = [0, 128], sizes = [256, 128], strides = [1, 1]} : vector<256x384xf32> to vector<256x128xf32>
    %91 = arith.addf %89, %90 : vector<256x128xf32>
    %92 = arith.negf %91 : vector<256x128xf32>
    %93 = math.exp %92 : vector<256x128xf32>
    %cst_27 = arith.constant 1.000000e+00 : f32
    %94 = vector.broadcast %cst_27 : f32 to vector<256x128xf32>
    %95 = arith.addf %94, %93 : vector<256x128xf32>
    %96 = arith.divf %94, %95 : vector<256x128xf32>
    %97 = vector.extract_strided_slice %80 {offsets = [0, 256], sizes = [256, 128], strides = [1, 1]} : vector<256x384xf32> to vector<256x128xf32>
    %98 = vector.extract_strided_slice %67 {offsets = [0, 256], sizes = [256, 128], strides = [1, 1]} : vector<256x384xf32> to vector<256x128xf32>
    %99 = arith.mulf %88, %98 : vector<256x128xf32>
    %100 = arith.addf %97, %99 : vector<256x128xf32>
    %101 = math.tanh %100 : vector<256x128xf32>
    %cst_28 = arith.constant 1.000000e+00 : f32
    %102 = vector.broadcast %cst_28 : f32 to vector<256x128xf32>
    %103 = arith.subf %102, %96 : vector<256x128xf32>
    %104 = arith.mulf %103, %101 : vector<256x128xf32>
    %105 = arith.mulf %96, %2 : vector<256x128xf32>
    %106 = arith.addf %104, %105 : vector<256x128xf32>
    %c0_29 = arith.constant 0 : index
    %c0_30 = arith.constant 0 : index
    %107 = vector.load %arg6[%c0_29, %c0_30] : memref<256x128xf32, #tpu.memory_space<vmem>>, vector<256x128xf32>
    tpu.vector_store %arg6[%c0_29, %c0_30], %106 {strides = array<i32>} : memref<256x128xf32, #tpu.memory_space<vmem>>, vector<256x128xf32>,
    return
  }
  func.func @transform_0(%arg0: i32) -> (i32, i32, i32) {
    %c0_i32 = arith.constant 0 : i32
    %c0_i32_0 = arith.constant 0 : i32
    %c0_i32_1 = arith.constant 0 : i32
    return %arg0, %c0_i32, %c0_i32_0 : i32, i32, i32
  }
  func.func @transform_1(%arg0: i32) -> (i32, i32) {
    %c0_i32 = arith.constant 0 : i32
    %c0_i32_0 = arith.constant 0 : i32
    return %arg0, %c0_i32 : i32, i32
  }
  func.func @transform_2(%arg0: i32) -> (i32, i32) {
    %c0_i32 = arith.constant 0 : i32
    %c0_i32_0 = arith.constant 0 : i32
    return %arg0, %c0_i32 : i32, i32
  }
  func.func @transform_3(%arg0: i32) -> (i32, i32) {
    %c0_i32 = arith.constant 0 : i32
    %c0_i32_0 = arith.constant 0 : i32
    %c0_i32_1 = arith.constant 0 : i32
    return %c0_i32, %c0_i32_0 : i32, i32
  }
  func.func @transform_4(%arg0: i32) -> (i32, i32) {
    %c0_i32 = arith.constant 0 : i32
    %c0_i32_0 = arith.constant 0 : i32
    %c0_i32_1 = arith.constant 0 : i32
    return %c0_i32, %c0_i32_0 : i32, i32
  }
  func.func @transform_5(%arg0: i32) -> (i32, i32) {
    %c0_i32 = arith.constant 0 : i32
    %c0_i32_0 = arith.constant 0 : i32
    return %arg0, %c0_i32 : i32, i32
  }
}

</mosaic_0001>

<llo_original>
// kernel: tpu_custom_call.1
$region0: #{tpu_custom_call.1}
  #allocation0 [shape = 'u32[]', space=smem, size = 0x4, offset = 0x4, fixed_abs, tag = 'smem constant byte address 0x4 - core index']
  #allocation1 [shape = 'u32[72,128]{1,0:T(1,128)}', space=vmem, size = 0x9000, scoped, tag = 'internal scratch']
  %s0 = inlined_call_operand.hbm [shape: bf16[512,8,128], index: 0, kind: input, shape index: {}]
  %s1 = inlined_call_operand.vmem [shape: s32[512,1], index: 1, kind: input, shape index: {}]
  %s2 = inlined_call_operand.vmem [shape: f32[512,128], index: 2, kind: input, shape index: {}]
  %s3 = inlined_call_operand.hbm [shape: bf16[256,896], index: 3, kind: input, shape index: {}]
  %s4 = inlined_call_operand.hbm [shape: f32[8,512], index: 4, kind: input, shape index: {}]
  %s5 = inlined_call_operand.hbm [shape: f32[512,128], index: 5, kind: output, shape index: {}]
  %s6 = sld [smem:[#allocation0]]
  $region65: #{tpu_custom_call.1} parent=0
    _
  %s8 = ssub.s32 1, %s6
  %s9 = scalar_select 0, %s8, %s6
  $region1: #{tpu_custom_call.1} parent=0
    #allocation2 [shape = 'u8[1048576]{0}', space=vmem, size = 0x100000, scoped, tag = 'input window, operand 0']
    #allocation3 [shape = 's32[2]{0}', space=sflag, size = 0x8, scoped, tag = 'scoped memory for tpu_custom_call.1']
    #allocation4 [shape = 's32[2]{0}', space=sflag, size = 0x8, scoped, tag = 'scoped memory for tpu_custom_call.1']
    #allocation5 [shape = 'u8[458752]{0}', space=vmem, size = 0x70000, scoped, tag = 'input window, operand 3, single buffered']
    #allocation6 [shape = 's32[1]{0}', space=sflag, size = 0x4, scoped, tag = 'scoped memory for tpu_custom_call.1']
    #allocation7 [shape = 'u8[16384]{0}', space=vmem, size = 0x4000, scoped, tag = 'input window, operand 4, single buffered']
    #allocation8 [shape = 'u8[262144]{0}', space=vmem, size = 0x40000, scoped, tag = 'output window, operand 0']
    %10 = vsyncpa [#allocation3], 0
    %s11 = scalar_lea.sflag [#allocation3], 1
    %12 = vsyncpa %s11, 0
    %13 = vsyncpa [#allocation6], 0
    %14 = vsyncpa [#allocation4], 0
    %s15 = scalar_lea.sflag [#allocation4], 1
    %16 = vsyncpa %s15, 0
    loop: start=0, step=1, limit=4
    $region2: #{tpu_custom_call.1} parent=1 // loop_pre_header
      _
    $region3: #{tpu_custom_call.1} parent=1 // loop_header
      %s18 = sphi 0, %s22
      %p19 = scmp.ge.s32.totalorder %s18, 4
      %s28 = sphi 0, %s30
      %s31 = sphi 0, %s28
      %s32 = sphi 0, %s31
      %s48 = sphi 0, %s32
      %s54 = sphi 0, %s56
      %s57 = sphi 0, %s54
      %s58 = sphi 0, %s57
      %s74 = sphi 0, %s58
      %s80 = sphi 0, %s82
      %s83 = sphi 0, %s80
      %s84 = sphi 0, %s83
      %s100 = sphi 0, %s84
      %s104 = sphi 0, %s104
      %s106 = sphi 0, %s104
      %s107 = sphi 0, %s106
      %s121 = sphi 0, %s107
      %s125 = sphi 0, %s125
      %s127 = sphi 0, %s125
      %s128 = sphi 0, %s127
      %s142 = sphi 0, %s128
      %s148 = sphi 0, %s150
      %s151 = sphi 0, %s148
      %s152 = sphi 0, %s151
      %s168 = sphi 0, %s152
    $region4: #{tpu_custom_call.1} parent=1 // loop_header_branch
      %21 = sbr.rel (%p19) target = $region8
    $region5: #{tpu_custom_call.1} parent=1 // loop_body
      %s23 = ssub.s32 %s18, 1
      %s24 = ssub.s32 %s18, 2
      %s25 = sadd.s32 %s18, 1
      %s26 = ssub.s32 %s18, %s25
      %p27 = scmp.eq.s32.totalorder %s26, 0
      %s29 = sadd.s32 %s28, 1
      %s30 = scalar_select %p27, %s28, %s29
      %p33 = pneg %p27
      %p34 = scmp.eq.s32.totalorder %s18, 1
      %p35 = por %p33, %p34
      %p36 = scmp.ne.s32.totalorder %s28, %s31
      %p37 = scmp.eq.s32.totalorder %s18, 0
      %p38 = por %p36, %p37
      %p39 = scmp.ne.s32.totalorder %s28, %s31
      %p40 = scmp.eq.s32.totalorder %s23, 1
      %p41 = por %p39, %p40
      %p42 = scmp.ne.s32.totalorder %s31, %s32
      %p43 = scmp.eq.s32.totalorder %s23, 0
      %p44 = por %p42, %p43
      %p45 = scmp.ne.s32.totalorder %s31, %s32
      %p46 = scmp.eq.s32.totalorder %s24, 1
      %p47 = por %p45, %p46
      %p49 = scmp.ne.s32.totalorder %s32, %s48
      %p50 = scmp.eq.s32.totalorder %s24, 0
      %p51 = por %p49, %p50
      %s52 = ssub.s32 %s18, %s25
      %p53 = scmp.eq.s32.totalorder %s52, 0
      %s55 = sadd.s32 %s54, 1
      %s56 = scalar_select %p53, %s54, %s55
      %p59 = pneg %p53
      %p60 = scmp.eq.s32.totalorder %s18, 1
      %p61 = por %p59, %p60
      %p62 = scmp.ne.s32.totalorder %s54, %s57
      %p63 = scmp.eq.s32.totalorder %s18, 0
      %p64 = por %p62, %p63
      %p65 = scmp.ne.s32.totalorder %s54, %s57
      %p66 = scmp.eq.s32.totalorder %s23, 1
      %p67 = por %p65, %p66
      %p68 = scmp.ne.s32.totalorder %s57, %s58
      %p69 = scmp.eq.s32.totalorder %s23, 0
      %p70 = por %p68, %p69
      %p71 = scmp.ne.s32.totalorder %s57, %s58
      %p72 = scmp.eq.s32.totalorder %s24, 1
      %p73 = por %p71, %p72
      %p75 = scmp.ne.s32.totalorder %s58, %s74
      %p76 = scmp.eq.s32.totalorder %s24, 0
      %p77 = por %p75, %p76
      %s78 = ssub.s32 %s18, %s25
      %p79 = scmp.eq.s32.totalorder %s78, 0
      %s81 = sadd.s32 %s80, 1
      %s82 = scalar_select %p79, %s80, %s81
      %p85 = pneg %p79
      %p86 = scmp.eq.s32.totalorder %s18, 1
      %p87 = por %p85, %p86
      %p88 = scmp.ne.s32.totalorder %s80, %s83
      %p89 = scmp.eq.s32.totalorder %s18, 0
      %p90 = por %p88, %p89
      %p91 = scmp.ne.s32.totalorder %s80, %s83
      %p92 = scmp.eq.s32.totalorder %s23, 1
      %p93 = por %p91, %p92
      %p94 = scmp.ne.s32.totalorder %s83, %s84
      %p95 = scmp.eq.s32.totalorder %s23, 0
      %p96 = por %p94, %p95
      %p97 = scmp.ne.s32.totalorder %s83, %s84
      %p98 = scmp.eq.s32.totalorder %s24, 1
      %p99 = por %p97, %p98
      %p101 = scmp.ne.s32.totalorder %s84, %s100
      %p102 = scmp.eq.s32.totalorder %s24, 0
      %p103 = por %p101, %p102
      %s105 = sadd.s32 %s104, 1
      %p108 = scmp.eq.s32.totalorder %s18, 1
      %p109 = scmp.ne.s32.totalorder %s104, %s106
      %p110 = scmp.eq.s32.totalorder %s18, 0
      %p111 = por %p109, %p110
      %p112 = scmp.ne.s32.totalorder %s104, %s106
      %p113 = scmp.eq.s32.totalorder %s23, 1
      %p114 = por %p112, %p113
      %p115 = scmp.ne.s32.totalorder %s106, %s107
      %p116 = scmp.eq.s32.totalorder %s23, 0
      %p117 = por %p115, %p116
      %p118 = scmp.ne.s32.totalorder %s106, %s107
      %p119 = scmp.eq.s32.totalorder %s24, 1
      %p120 = por %p118, %p119
      %p122 = scmp.ne.s32.totalorder %s107, %s121
      %p123 = scmp.eq.s32.totalorder %s24, 0
      %p124 = por %p122, %p123
      %s126 = sadd.s32 %s125, 1
      %p129 = scmp.eq.s32.totalorder %s18, 1
      %p130 = scmp.ne.s32.totalorder %s125, %s127
      %p131 = scmp.eq.s32.totalorder %s18, 0
      %p132 = por %p130, %p131
      %p133 = scmp.ne.s32.totalorder %s125, %s127
      %p134 = scmp.eq.s32.totalorder %s23, 1
      %p135 = por %p133, %p134
      %p136 = scmp.ne.s32.totalorder %s127, %s128
      %p137 = scmp.eq.s32.totalorder %s23, 0
      %p138 = por %p136, %p137
      %p139 = scmp.ne.s32.totalorder %s127, %s128
      %p140 = scmp.eq.s32.totalorder %s24, 1
      %p141 = por %p139, %p140
      %p143 = scmp.ne.s32.totalorder %s128, %s142
      %p144 = scmp.eq.s32.totalorder %s24, 0
      %p145 = por %p143, %p144
      %s146 = ssub.s32 %s18, %s25
      %p147 = scmp.eq.s32.totalorder %s146, 0
      %s149 = sadd.s32 %s148, 1
      %s150 = scalar_select %p147, %s148, %s149
      %p153 = pneg %p147
      %p154 = scmp.eq.s32.totalorder %s18, 1
      %p155 = por %p153, %p154
      %p156 = scmp.ne.s32.totalorder %s148, %s151
      %p157 = scmp.eq.s32.totalorder %s18, 0
      %p158 = por %p156, %p157
      %p159 = scmp.ne.s32.totalorder %s148, %s151
      %p160 = scmp.eq.s32.totalorder %s23, 1
      %p161 = por %p159, %p160
      %p162 = scmp.ne.s32.totalorder %s151, %s152
      %p163 = scmp.eq.s32.totalorder %s23, 0
      %p164 = por %p162, %p163
      %p165 = scmp.ne.s32.totalorder %s151, %s152
      %p166 = scmp.eq.s32.totalorder %s24, 1
      %p167 = por %p165, %p166
      %p169 = scmp.ne.s32.totalorder %s152, %s168
      %p170 = scmp.eq.s32.totalorder %s24, 0
      %p171 = por %p169, %p170
      %p172 = scmp.le.s32.totalorder 1, %s18
      %p173 = scmp.lt.s32.totalorder %s18, 3
      %p174 = pnand %p172, %p173
      %p175 = pneg %p174
      // Predicated region
      $region9: #{tpu_custom_call.1} parent=5 // pred_check
        _
      $region10: #{tpu_custom_call.1} parent=5 // pred_check_branch
        %177 = sbr.rel (%p174) target = $region12
      $region11: #{tpu_custom_call.1} parent=5 // pred_region
        %s178 = ssub.s32 %s18, 1
        // Predicated region
        $region13: #{tpu_custom_call.1} parent=11 // pred_check
          %p179 = pneg %p117
        $region14: #{tpu_custom_call.1} parent=11 // pred_check_branch
          %181 = sbr.rel (%p179) target = $region16
        $region15: #{tpu_custom_call.1} parent=11 // pred_region
          %183 = vsyncadd [#allocation6], 0
          %s184 = sshll.u32 %s3, 4
          %s185 = int_to_ptr.hbm [resolvable:$true] %s184
          %s186 = sshll.u32 [#allocation5], 4
          %s187 = int_to_ptr.vmem [resolvable:$true] %s186
          %192 = dma.hbm_to_vmem [thread:$0]  %s185, 14336, %s187, [#allocation6], 448, 448, 28
        $region16: #{tpu_custom_call.1} parent=11 // pred_fallthru
          _
        // Predicated region
        $region17: #{tpu_custom_call.1} parent=11 // pred_check
          %p193 = pneg %p138
        $region18: #{tpu_custom_call.1} parent=11 // pred_check_branch
          %195 = sbr.rel (%p193) target = $region20
        $region19: #{tpu_custom_call.1} parent=11 // pred_region
          %197 = vsyncadd [#allocation6], 0
          %s199 = sshll.u32 %s4, 4
          %s200 = int_to_ptr.hbm [resolvable:$true] %s199
          %s201 = sshll.u32 [#allocation7], 4
          %s202 = int_to_ptr.vmem [resolvable:$true] %s201
          %204 = dma.hbm_to_vmem [thread:$0]  %s200, 512, %s202, [#allocation6]
        $region20: #{tpu_custom_call.1} parent=11 // pred_fallthru
          _
      $region12: #{tpu_custom_call.1} parent=5 // pred_fallthru
        _
      %p205 = scmp.lt.s32.totalorder %s18, 2
      // Predicated region
      $region21: #{tpu_custom_call.1} parent=5 // pred_check
        %p206 = pneg %p205
      $region22: #{tpu_custom_call.1} parent=5 // pred_check_branch
        %208 = sbr.rel (%p206) target = $region24
      $region23: #{tpu_custom_call.1} parent=5 // pred_region
        // Predicated region
        $region25: #{tpu_custom_call.1} parent=23 // pred_check
          %p209 = pneg %p38
        $region26: #{tpu_custom_call.1} parent=23 // pred_check_branch
          %211 = sbr.rel (%p209) target = $region28
        $region27: #{tpu_custom_call.1} parent=23 // pred_region
          %s212 = sand.u32 %s28, 1
          %s213 = scalar_lea.sflag [#allocation3], %s212
          %s214 = sand.u32 %s28, 1
          %s215 = smul.addr %s214, 1024
          %s216 = scalar_lea.vmem [#allocation2], %s215
          %s217 = smul.u32 256, %s18
          %219 = vsyncadd %s213, 0
          %s220 = smul.addr %s217, 4
          %s221 = scalar_lea.hbm %s0, %s220
          %s222 = sshll.u32 %s221, 4
          %s223 = int_to_ptr.hbm [resolvable:$true] %s222
          %s224 = sshll.u32 %s216, 4
          %s225 = int_to_ptr.vmem [resolvable:$true] %s224
          %230 = dma.hbm_to_vmem [thread:$0]  %s223, 16384, %s225, %s213, 64, 64, 4
        $region28: #{tpu_custom_call.1} parent=23 // pred_fallthru
          _
        // Predicated region
        $region29: #{tpu_custom_call.1} parent=23 // pred_check
          %p231 = pneg %p64
        $region30: #{tpu_custom_call.1} parent=23 // pred_check_branch
          %233 = sbr.rel (%p231) target = $region32
        $region31: #{tpu_custom_call.1} parent=23 // pred_region
          %s234 = smul.u32 32, %s18
          %p235 = scmp.lt.s32.totalorder %s234, 63
          %s236 = scalar_select %p235, %s234, 63
          %s237 = smul.addr %s236, 8
          %s238 = scalar_lea.vmem %s1, %s237
          %s239 = smul.u32 32, %s18
        $region32: #{tpu_custom_call.1} parent=23 // pred_fallthru
          _
        // Predicated region
        $region33: #{tpu_custom_call.1} parent=23 // pred_check
          %p240 = pneg %p90
        $region34: #{tpu_custom_call.1} parent=23 // pred_check_branch
          %242 = sbr.rel (%p240) target = $region36
        $region35: #{tpu_custom_call.1} parent=23 // pred_region
          %s243 = smul.u32 32, %s18
          %p244 = scmp.lt.s32.totalorder %s243, 63
          %s245 = scalar_select %p244, %s243, 63
          %s246 = smul.addr %s245, 8
          %s247 = scalar_lea.vmem %s2, %s246
          %s248 = smul.u32 32, %s18
        $region36: #{tpu_custom_call.1} parent=23 // pred_fallthru
          _
      $region24: #{tpu_custom_call.1} parent=5 // pred_fallthru
        _
      %p249 = scmp.le.s32.totalorder 1, %s18
      %p250 = scmp.lt.s32.totalorder %s18, 3
      %p251 = pnand %p249, %p250
      %p252 = pneg %p251
      // Predicated region
      $region37: #{tpu_custom_call.1} parent=5 // pred_check
        _
      $region38: #{tpu_custom_call.1} parent=5 // pred_check_branch
        %254 = sbr.rel (%p251) target = $region40
      $region39: #{tpu_custom_call.1} parent=5 // pred_region
        %s255 = ssub.s32 %s18, 1
        %s256 = sand.u32 %s31, 1
        %s257 = scalar_lea.sflag [#allocation3], %s256
        %s258 = sand.u32 %s31, 1
        %s259 = smul.addr %s258, 1024
        %s260 = scalar_lea.vmem [#allocation2], %s259
        // Predicated region
        $region41: #{tpu_custom_call.1} parent=39 // pred_check
          %p261 = pneg %p44
        $region42: #{tpu_custom_call.1} parent=39 // pred_check_branch
          %263 = sbr.rel (%p261) target = $region44
        $region43: #{tpu_custom_call.1} parent=39 // pred_region
          %265 = dma.done %s257, 16384
        $region44: #{tpu_custom_call.1} parent=39 // pred_fallthru
          _
        // Predicated region
        $region45: #{tpu_custom_call.1} parent=39 // pred_check
          %p266 = pneg %p117
        $region46: #{tpu_custom_call.1} parent=39 // pred_check_branch
          %268 = sbr.rel (%p266) target = $region48
        $region47: #{tpu_custom_call.1} parent=39 // pred_region
          %270 = dma.done [#allocation6], 14336
        $region48: #{tpu_custom_call.1} parent=39 // pred_fallthru
          _
        // Predicated region
        $region49: #{tpu_custom_call.1} parent=39 // pred_check
          %p271 = pneg %p138
        $region50: #{tpu_custom_call.1} parent=39 // pred_check_branch
          %273 = sbr.rel (%p271) target = $region52
        $region51: #{tpu_custom_call.1} parent=39 // pred_region
          %275 = dma.done [#allocation6], 512
        $region52: #{tpu_custom_call.1} parent=39 // pred_fallthru
          _
        %s276 = sand.u32 %s31, 1
        %s277 = scalar_lea.sflag [#allocation3], %s276
        %s278 = sand.u32 %s31, 1
        %s279 = smul.addr %s278, 1024
        %s280 = scalar_lea.vmem [#allocation2], %s279
        %p281 = pneg %p44
        %p282 = pneg %p41
        %s283 = smul.u32 32, %s23
        %p284 = scmp.lt.s32.totalorder %s283, 63
        %s285 = scalar_select %p284, %s283, 63
        %s286 = smul.addr %s285, 8
        %s287 = scalar_lea.vmem %s1, %s286
        %p288 = pneg %p70
        %p289 = pneg %p67
        %s290 = smul.u32 32, %s23
        %p291 = scmp.lt.s32.totalorder %s290, 63
        %s292 = scalar_select %p291, %s290, 63
        %s293 = smul.addr %s292, 8
        %s294 = scalar_lea.vmem %s2, %s293
        %p295 = pneg %p96
        %p296 = pneg %p93
        %p297 = pneg %p117
        %p298 = pneg %p114
        %p299 = pneg %p138
        %p300 = pneg %p135
        %p301 = pneg %p164
        %p302 = pneg %p161
        %s303 = sand.u32 %s151, 1
        %s304 = scalar_lea.sflag [#allocation4], %s303
        %s305 = sand.u32 %s151, 1
        %s306 = smul.addr %s305, 256
        %s307 = scalar_lea.vmem [#allocation8], %s306
        %s308 = smul.u32 256, %s23
        %s309 = smul.u32 32, %s23
        %p310 = scmp.lt.s32.totalorder %s309, 63
        %s311 = scalar_select %p310, %s309, 63
        %s312 = smul.addr %s311, 8
        %s313 = scalar_lea.vmem %s1, %s312
        %s314 = smul.u32 32, %s23
        %s315 = smul.u32 32, %s23
        %p316 = scmp.lt.s32.totalorder %s315, 63
        %s317 = scalar_select %p316, %s315, 63
        %s318 = smul.addr %s317, 8
        %s319 = scalar_lea.vmem %s2, %s318
        %s320 = smul.u32 32, %s23
        %s321 = smul.u32 32, %s23
        %v322 = vld [vmem:[%s260] sm:$0xf]
        %v323 = vld [vmem:[%s260 + $0x4] sm:$0xf]
        %v324 = vld [vmem:[%s260 + $0x8] sm:$0xf]
        %v325 = vld [vmem:[%s260 + $0xc] sm:$0xf]
        %v326 = vld [vmem:[%s260 + $0x10] sm:$0xf]
        %v327 = vld [vmem:[%s260 + $0x14] sm:$0xf]
        %v328 = vld [vmem:[%s260 + $0x18] sm:$0xf]
        %v329 = vld [vmem:[%s260 + $0x1c] sm:$0xf]
        %v330 = vld [vmem:[%s260 + $0x20] sm:$0xf]
        %v331 = vld [vmem:[%s260 + $0x24] sm:$0xf]
        %v332 = vld [vmem:[%s260 + $0x28] sm:$0xf]
        %v333 = vld [vmem:[%s260 + $0x2c] sm:$0xf]
        %v334 = vld [vmem:[%s260 + $0x30] sm:$0xf]
        %v335 = vld [vmem:[%s260 + $0x34] sm:$0xf]
        %v336 = vld [vmem:[%s260 + $0x38] sm:$0xf]
        %v337 = vld [vmem:[%s260 + $0x3c] sm:$0xf]
        %v338 = vld [vmem:[%s260 + $0x40] sm:$0xf]
        %v339 = vld [vmem:[%s260 + $0x44] sm:$0xf]
        %v340 = vld [vmem:[%s260 + $0x48] sm:$0xf]
        %v341 = vld [vmem:[%s260 + $0x4c] sm:$0xf]
        %v342 = vld [vmem:[%s260 + $0x50] sm:$0xf]
        %v343 = vld [vmem:[%s260 + $0x54] sm:$0xf]
        %v344 = vld [vmem:[%s260 + $0x58] sm:$0xf]
        %v345 = vld [vmem:[%s260 + $0x5c] sm:$0xf]
        %v346 = vld [vmem:[%s260 + $0x60] sm:$0xf]
        %v347 = vld [vmem:[%s260 + $0x64] sm:$0xf]
        %v348 = vld [vmem:[%s260 + $0x68] sm:$0xf]
        %v349 = vld [vmem:[%s260 + $0x6c] sm:$0xf]
        %v350 = vld [vmem:[%s260 + $0x70] sm:$0xf]
        %v351 = vld [vmem:[%s260 + $0x74] sm:$0xf]
        %v352 = vld [vmem:[%s260 + $0x78] sm:$0xf]
        %v353 = vld [vmem:[%s260 + $0x7c] sm:$0xf]
        %v354 = vld [vmem:[%s260 + $0x80] sm:$0xf]
        %v355 = vld [vmem:[%s260 + $0x84] sm:$0xf]
        %v356 = vld [vmem:[%s260 + $0x88] sm:$0xf]
        %v357 = vld [vmem:[%s260 + $0x8c] sm:$0xf]
        %v358 = vld [vmem:[%s260 + $0x90] sm:$0xf]
        %v359 = vld [vmem:[%s260 + $0x94] sm:$0xf]
        %v360 = vld [vmem:[%s260 + $0x98] sm:$0xf]
        %v361 = vld [vmem:[%s260 + $0x9c] sm:$0xf]
        %v362 = vld [vmem:[%s260 + $0xa0] sm:$0xf]
        %v363 = vld [vmem:[%s260 + $0xa4] sm:$0xf]
        %v364 = vld [vmem:[%s260 + $0xa8] sm:$0xf]
        %v365 = vld [vmem:[%s260 + $0xac] sm:$0xf]
        %v366 = vld [vmem:[%s260 + $0xb0] sm:$0xf]
        %v367 = vld [vmem:[%s260 + $0xb4] sm:$0xf]
        %v368 = vld [vmem:[%s260 + $0xb8] sm:$0xf]
        %v369 = vld [vmem:[%s260 + $0xbc] sm:$0xf]
        %v370 = vld [vmem:[%s260 + $0xc0] sm:$0xf]
        %v371 = vld [vmem:[%s260 + $0xc4] sm:$0xf]
        %v372 = vld [vmem:[%s260 + $0xc8] sm:$0xf]
        %v373 = vld [vmem:[%s260 + $0xcc] sm:$0xf]
        %v374 = vld [vmem:[%s260 + $0xd0] sm:$0xf]
        %v375 = vld [vmem:[%s260 + $0xd4] sm:$0xf]
        %v376 = vld [vmem:[%s260 + $0xd8] sm:$0xf]
        %v377 = vld [vmem:[%s260 + $0xdc] sm:$0xf]
        %v378 = vld [vmem:[%s260 + $0xe0] sm:$0xf]
        %v379 = vld [vmem:[%s260 + $0xe4] sm:$0xf]
        %v380 = vld [vmem:[%s260 + $0xe8] sm:$0xf]
        %v381 = vld [vmem:[%s260 + $0xec] sm:$0xf]
        %v382 = vld [vmem:[%s260 + $0xf0] sm:$0xf]
        %v383 = vld [vmem:[%s260 + $0xf4] sm:$0xf]
        %v384 = vld [vmem:[%s260 + $0xf8] sm:$0xf]
        %v385 = vld [vmem:[%s260 + $0xfc] sm:$0xf]
        %v386 = vld [vmem:[%s260 + $0x100] sm:$0xf]
        %v387 = vld [vmem:[%s260 + $0x104] sm:$0xf]
        %v388 = vld [vmem:[%s260 + $0x108] sm:$0xf]
        %v389 = vld [vmem:[%s260 + $0x10c] sm:$0xf]
        %v390 = vld [vmem:[%s260 + $0x110] sm:$0xf]
        %v391 = vld [vmem:[%s260 + $0x114] sm:$0xf]
        %v392 = vld [vmem:[%s260 + $0x118] sm:$0xf]
        %v393 = vld [vmem:[%s260 + $0x11c] sm:$0xf]
        %v394 = vld [vmem:[%s260 + $0x120] sm:$0xf]
        %v395 = vld [vmem:[%s260 + $0x124] sm:$0xf]
        %v396 = vld [vmem:[%s260 + $0x128] sm:$0xf]
        %v397 = vld [vmem:[%s260 + $0x12c] sm:$0xf]
        %v398 = vld [vmem:[%s260 + $0x130] sm:$0xf]
        %v399 = vld [vmem:[%s260 + $0x134] sm:$0xf]
        %v400 = vld [vmem:[%s260 + $0x138] sm:$0xf]
        %v401 = vld [vmem:[%s260 + $0x13c] sm:$0xf]
        %v402 = vld [vmem:[%s260 + $0x140] sm:$0xf]
        %v403 = vld [vmem:[%s260 + $0x144] sm:$0xf]
        %v404 = vld [vmem:[%s260 + $0x148] sm:$0xf]
        %v405 = vld [vmem:[%s260 + $0x14c] sm:$0xf]
        %v406 = vld [vmem:[%s260 + $0x150] sm:$0xf]
        %v407 = vld [vmem:[%s260 + $0x154] sm:$0xf]
        %v408 = vld [vmem:[%s260 + $0x158] sm:$0xf]
        %v409 = vld [vmem:[%s260 + $0x15c] sm:$0xf]
        %v410 = vld [vmem:[%s260 + $0x160] sm:$0xf]
        %v411 = vld [vmem:[%s260 + $0x164] sm:$0xf]
        %v412 = vld [vmem:[%s260 + $0x168] sm:$0xf]
        %v413 = vld [vmem:[%s260 + $0x16c] sm:$0xf]
        %v414 = vld [vmem:[%s260 + $0x170] sm:$0xf]
        %v415 = vld [vmem:[%s260 + $0x174] sm:$0xf]
        %v416 = vld [vmem:[%s260 + $0x178] sm:$0xf]
        %v417 = vld [vmem:[%s260 + $0x17c] sm:$0xf]
        %v418 = vld [vmem:[%s260 + $0x180] sm:$0xf]
        %v419 = vld [vmem:[%s260 + $0x184] sm:$0xf]
        %v420 = vld [vmem:[%s260 + $0x188] sm:$0xf]
        %v421 = vld [vmem:[%s260 + $0x18c] sm:$0xf]
        %v422 = vld [vmem:[%s260 + $0x190] sm:$0xf]
        %v423 = vld [vmem:[%s260 + $0x194] sm:$0xf]
        %v424 = vld [vmem:[%s260 + $0x198] sm:$0xf]
        %v425 = vld [vmem:[%s260 + $0x19c] sm:$0xf]
        %v426 = vld [vmem:[%s260 + $0x1a0] sm:$0xf]
        %v427 = vld [vmem:[%s260 + $0x1a4] sm:$0xf]
        %v428 = vld [vmem:[%s260 + $0x1a8] sm:$0xf]
        %v429 = vld [vmem:[%s260 + $0x1ac] sm:$0xf]
        %v430 = vld [vmem:[%s260 + $0x1b0] sm:$0xf]
        %v431 = vld [vmem:[%s260 + $0x1b4] sm:$0xf]
        %v432 = vld [vmem:[%s260 + $0x1b8] sm:$0xf]
        %v433 = vld [vmem:[%s260 + $0x1bc] sm:$0xf]
        %v434 = vld [vmem:[%s260 + $0x1c0] sm:$0xf]
        %v435 = vld [vmem:[%s260 + $0x1c4] sm:$0xf]
        %v436 = vld [vmem:[%s260 + $0x1c8] sm:$0xf]
        %v437 = vld [vmem:[%s260 + $0x1cc] sm:$0xf]
        %v438 = vld [vmem:[%s260 + $0x1d0] sm:$0xf]
        %v439 = vld [vmem:[%s260 + $0x1d4] sm:$0xf]
        %v440 = vld [vmem:[%s260 + $0x1d8] sm:$0xf]
        %v441 = vld [vmem:[%s260 + $0x1dc] sm:$0xf]
        %v442 = vld [vmem:[%s260 + $0x1e0] sm:$0xf]
        %v443 = vld [vmem:[%s260 + $0x1e4] sm:$0xf]
        %v444 = vld [vmem:[%s260 + $0x1e8] sm:$0xf]
        %v445 = vld [vmem:[%s260 + $0x1ec] sm:$0xf]
        %v446 = vld [vmem:[%s260 + $0x1f0] sm:$0xf]
        %v447 = vld [vmem:[%s260 + $0x1f4] sm:$0xf]
        %v448 = vld [vmem:[%s260 + $0x1f8] sm:$0xf]
        %v449 = vld [vmem:[%s260 + $0x1fc] sm:$0xf]
        %v450 = vld [vmem:[%s260 + $0x200] sm:$0xf]
        %v451 = vld [vmem:[%s260 + $0x204] sm:$0xf]
        %v452 = vld [vmem:[%s260 + $0x208] sm:$0xf]
        %v453 = vld [vmem:[%s260 + $0x20c] sm:$0xf]
        %v454 = vld [vmem:[%s260 + $0x210] sm:$0xf]
        %v455 = vld [vmem:[%s260 + $0x214] sm:$0xf]
        %v456 = vld [vmem:[%s260 + $0x218] sm:$0xf]
        %v457 = vld [vmem:[%s260 + $0x21c] sm:$0xf]
        %v458 = vld [vmem:[%s260 + $0x220] sm:$0xf]
        %v459 = vld [vmem:[%s260 + $0x224] sm:$0xf]
        %v460 = vld [vmem:[%s260 + $0x228] sm:$0xf]
        %v461 = vld [vmem:[%s260 + $0x22c] sm:$0xf]
        %v462 = vld [vmem:[%s260 + $0x230] sm:$0xf]
        %v463 = vld [vmem:[%s260 + $0x234] sm:$0xf]
        %v464 = vld [vmem:[%s260 + $0x238] sm:$0xf]
        %v465 = vld [vmem:[%s260 + $0x23c] sm:$0xf]
        %v466 = vld [vmem:[%s260 + $0x240] sm:$0xf]
        %v467 = vld [vmem:[%s260 + $0x244] sm:$0xf]
        %v468 = vld [vmem:[%s260 + $0x248] sm:$0xf]
        %v469 = vld [vmem:[%s260 + $0x24c] sm:$0xf]
        %v470 = vld [vmem:[%s260 + $0x250] sm:$0xf]
        %v471 = vld [vmem:[%s260 + $0x254] sm:$0xf]
        %v472 = vld [vmem:[%s260 + $0x258] sm:$0xf]
        %v473 = vld [vmem:[%s260 + $0x25c] sm:$0xf]
        %v474 = vld [vmem:[%s260 + $0x260] sm:$0xf]
        %v475 = vld [vmem:[%s260 + $0x264] sm:$0xf]
        %v476 = vld [vmem:[%s260 + $0x268] sm:$0xf]
        %v477 = vld [vmem:[%s260 + $0x26c] sm:$0xf]
        %v478 = vld [vmem:[%s260 + $0x270] sm:$0xf]
        %v479 = vld [vmem:[%s260 + $0x274] sm:$0xf]
        %v480 = vld [vmem:[%s260 + $0x278] sm:$0xf]
        %v481 = vld [vmem:[%s260 + $0x27c] sm:$0xf]
        %v482 = vld [vmem:[%s260 + $0x280] sm:$0xf]
        %v483 = vld [vmem:[%s260 + $0x284] sm:$0xf]
        %v484 = vld [vmem:[%s260 + $0x288] sm:$0xf]
        %v485 = vld [vmem:[%s260 + $0x28c] sm:$0xf]
        %v486 = vld [vmem:[%s260 + $0x290] sm:$0xf]
        %v487 = vld [vmem:[%s260 + $0x294] sm:$0xf]
        %v488 = vld [vmem:[%s260 + $0x298] sm:$0xf]
        %v489 = vld [vmem:[%s260 + $0x29c] sm:$0xf]
        %v490 = vld [vmem:[%s260 + $0x2a0] sm:$0xf]
        %v491 = vld [vmem:[%s260 + $0x2a4] sm:$0xf]
        %v492 = vld [vmem:[%s260 + $0x2a8] sm:$0xf]
        %v493 = vld [vmem:[%s260 + $0x2ac] sm:$0xf]
        %v494 = vld [vmem:[%s260 + $0x2b0] sm:$0xf]
        %v495 = vld [vmem:[%s260 + $0x2b4] sm:$0xf]
        %v496 = vld [vmem:[%s260 + $0x2b8] sm:$0xf]
        %v497 = vld [vmem:[%s260 + $0x2bc] sm:$0xf]
        %v498 = vld [vmem:[%s260 + $0x2c0] sm:$0xf]
        %v499 = vld [vmem:[%s260 + $0x2c4] sm:$0xf]
        %v500 = vld [vmem:[%s260 + $0x2c8] sm:$0xf]
        %v501 = vld [vmem:[%s260 + $0x2cc] sm:$0xf]
        %v502 = vld [vmem:[%s260 + $0x2d0] sm:$0xf]
        %v503 = vld [vmem:[%s260 + $0x2d4] sm:$0xf]
        %v504 = vld [vmem:[%s260 + $0x2d8] sm:$0xf]
        %v505 = vld [vmem:[%s260 + $0x2dc] sm:$0xf]
        %v506 = vld [vmem:[%s260 + $0x2e0] sm:$0xf]
        %v507 = vld [vmem:[%s260 + $0x2e4] sm:$0xf]
        %v508 = vld [vmem:[%s260 + $0x2e8] sm:$0xf]
        %v509 = vld [vmem:[%s260 + $0x2ec] sm:$0xf]
        %v510 = vld [vmem:[%s260 + $0x2f0] sm:$0xf]
        %v511 = vld [vmem:[%s260 + $0x2f4] sm:$0xf]
        %v512 = vld [vmem:[%s260 + $0x2f8] sm:$0xf]
        %v513 = vld [vmem:[%s260 + $0x2fc] sm:$0xf]
        %v514 = vld [vmem:[%s260 + $0x300] sm:$0xf]
        %v515 = vld [vmem:[%s260 + $0x304] sm:$0xf]
        %v516 = vld [vmem:[%s260 + $0x308] sm:$0xf]
        %v517 = vld [vmem:[%s260 + $0x30c] sm:$0xf]
        %v518 = vld [vmem:[%s260 + $0x310] sm:$0xf]
        %v519 = vld [vmem:[%s260 + $0x314] sm:$0xf]
        %v520 = vld [vmem:[%s260 + $0x318] sm:$0xf]
        %v521 = vld [vmem:[%s260 + $0x31c] sm:$0xf]
        %v522 = vld [vmem:[%s260 + $0x320] sm:$0xf]
        %v523 = vld [vmem:[%s260 + $0x324] sm:$0xf]
        %v524 = vld [vmem:[%s260 + $0x328] sm:$0xf]
        %v525 = vld [vmem:[%s260 + $0x32c] sm:$0xf]
        %v526 = vld [vmem:[%s260 + $0x330] sm:$0xf]
        %v527 = vld [vmem:[%s260 + $0x334] sm:$0xf]
        %v528 = vld [vmem:[%s260 + $0x338] sm:$0xf]
        %v529 = vld [vmem:[%s260 + $0x33c] sm:$0xf]
        %v530 = vld [vmem:[%s260 + $0x340] sm:$0xf]
        %v531 = vld [vmem:[%s260 + $0x344] sm:$0xf]
        %v532 = vld [vmem:[%s260 + $0x348] sm:$0xf]
        %v533 = vld [vmem:[%s260 + $0x34c] sm:$0xf]
        %v534 = vld [vmem:[%s260 + $0x350] sm:$0xf]
        %v535 = vld [vmem:[%s260 + $0x354] sm:$0xf]
        %v536 = vld [vmem:[%s260 + $0x358] sm:$0xf]
        %v537 = vld [vmem:[%s260 + $0x35c] sm:$0xf]
        %v538 = vld [vmem:[%s260 + $0x360] sm:$0xf]
        %v539 = vld [vmem:[%s260 + $0x364] sm:$0xf]
        %v540 = vld [vmem:[%s260 + $0x368] sm:$0xf]
        %v541 = vld [vmem:[%s260 + $0x36c] sm:$0xf]
        %v542 = vld [vmem:[%s260 + $0x370] sm:$0xf]
        %v543 = vld [vmem:[%s260 + $0x374] sm:$0xf]
        %v544 = vld [vmem:[%s260 + $0x378] sm:$0xf]
        %v545 = vld [vmem:[%s260 + $0x37c] sm:$0xf]
        %v546 = vld [vmem:[%s260 + $0x380] sm:$0xf]
        %v547 = vld [vmem:[%s260 + $0x384] sm:$0xf]
        %v548 = vld [vmem:[%s260 + $0x388] sm:$0xf]
        %v549 = vld [vmem:[%s260 + $0x38c] sm:$0xf]
        %v550 = vld [vmem:[%s260 + $0x390] sm:$0xf]
        %v551 = vld [vmem:[%s260 + $0x394] sm:$0xf]
        %v552 = vld [vmem:[%s260 + $0x398] sm:$0xf]
        %v553 = vld [vmem:[%s260 + $0x39c] sm:$0xf]
        %v554 = vld [vmem:[%s260 + $0x3a0] sm:$0xf]
        %v555 = vld [vmem:[%s260 + $0x3a4] sm:$0xf]
        %v556 = vld [vmem:[%s260 + $0x3a8] sm:$0xf]
        %v557 = vld [vmem:[%s260 + $0x3ac] sm:$0xf]
        %v558 = vld [vmem:[%s260 + $0x3b0] sm:$0xf]
        %v559 = vld [vmem:[%s260 + $0x3b4] sm:$0xf]
        %v560 = vld [vmem:[%s260 + $0x3b8] sm:$0xf]
        %v561 = vld [vmem:[%s260 + $0x3bc] sm:$0xf]
        %v562 = vld [vmem:[%s260 + $0x3c0] sm:$0xf]
        %v563 = vld [vmem:[%s260 + $0x3c4] sm:$0xf]
        %v564 = vld [vmem:[%s260 + $0x3c8] sm:$0xf]
        %v565 = vld [vmem:[%s260 + $0x3cc] sm:$0xf]
        %v566 = vld [vmem:[%s260 + $0x3d0] sm:$0xf]
        %v567 = vld [vmem:[%s260 + $0x3d4] sm:$0xf]
        %v568 = vld [vmem:[%s260 + $0x3d8] sm:$0xf]
        %v569 = vld [vmem:[%s260 + $0x3dc] sm:$0xf]
        %v570 = vld [vmem:[%s260 + $0x3e0] sm:$0xf]
        %v571 = vld [vmem:[%s260 + $0x3e4] sm:$0xf]
        %v572 = vld [vmem:[%s260 + $0x3e8] sm:$0xf]
        %v573 = vld [vmem:[%s260 + $0x3ec] sm:$0xf]
        %v574 = vld [vmem:[%s260 + $0x3f0] sm:$0xf]
        %v575 = vld [vmem:[%s260 + $0x3f4] sm:$0xf]
        %v576 = vld [vmem:[%s260 + $0x3f8] sm:$0xf]
        %v577 = vld [vmem:[%s260 + $0x3fc] sm:$0xf]
        %v578 = vunpack.c.l.bf16 %v322
        %v579 = vunpack.c.l.bf16 %v323
        %v580 = vunpack.c.l.bf16 %v324
        %v581 = vunpack.c.l.bf16 %v325
        %v582 = vunpack.c.l.bf16 %v326
        %v583 = vunpack.c.l.bf16 %v327
        %v584 = vunpack.c.l.bf16 %v328
        %v585 = vunpack.c.l.bf16 %v329
        %v586 = vunpack.c.l.bf16 %v330
        %v587 = vunpack.c.l.bf16 %v331
        %v588 = vunpack.c.l.bf16 %v332
        %v589 = vunpack.c.l.bf16 %v333
        %v590 = vunpack.c.l.bf16 %v334
        %v591 = vunpack.c.l.bf16 %v335
        %v592 = vunpack.c.l.bf16 %v336
        %v593 = vunpack.c.l.bf16 %v337
        %v594 = vunpack.c.l.bf16 %v338
        %v595 = vunpack.c.l.bf16 %v339
        %v596 = vunpack.c.l.bf16 %v340
        %v597 = vunpack.c.l.bf16 %v341
        %v598 = vunpack.c.l.bf16 %v342
        %v599 = vunpack.c.l.bf16 %v343
        %v600 = vunpack.c.l.bf16 %v344
        %v601 = vunpack.c.l.bf16 %v345
        %v602 = vunpack.c.l.bf16 %v346
        %v603 = vunpack.c.l.bf16 %v347
        %v604 = vunpack.c.l.bf16 %v348
        %v605 = vunpack.c.l.bf16 %v349
        %v606 = vunpack.c.l.bf16 %v350
        %v607 = vunpack.c.l.bf16 %v351
        %v608 = vunpack.c.l.bf16 %v352
        %v609 = vunpack.c.l.bf16 %v353
        %v610 = vunpack.c.l.bf16 %v354
        %v611 = vunpack.c.l.bf16 %v355
        %v612 = vunpack.c.l.bf16 %v356
        %v613 = vunpack.c.l.bf16 %v357
        %v614 = vunpack.c.l.bf16 %v358
        %v615 = vunpack.c.l.bf16 %v359
        %v616 = vunpack.c.l.bf16 %v360
        %v617 = vunpack.c.l.bf16 %v361
        %v618 = vunpack.c.l.bf16 %v362
        %v619 = vunpack.c.l.bf16 %v363
        %v620 = vunpack.c.l.bf16 %v364
        %v621 = vunpack.c.l.bf16 %v365
        %v622 = vunpack.c.l.bf16 %v366
        %v623 = vunpack.c.l.bf16 %v367
        %v624 = vunpack.c.l.bf16 %v368
        %v625 = vunpack.c.l.bf16 %v369
        %v626 = vunpack.c.l.bf16 %v370
        %v627 = vunpack.c.l.bf16 %v371
        %v628 = vunpack.c.l.bf16 %v372
        %v629 = vunpack.c.l.bf16 %v373
        %v630 = vunpack.c.l.bf16 %v374
        %v631 = vunpack.c.l.bf16 %v375
        %v632 = vunpack.c.l.bf16 %v376
        %v633 = vunpack.c.l.bf16 %v377
        %v634 = vunpack.c.l.bf16 %v378
        %v635 = vunpack.c.l.bf16 %v379
        %v636 = vunpack.c.l.bf16 %v380
        %v637 = vunpack.c.l.bf16 %v381
        %v638 = vunpack.c.l.bf16 %v382
        %v639 = vunpack.c.l.bf16 %v383
        %v640 = vunpack.c.l.bf16 %v384
        %v641 = vunpack.c.l.bf16 %v385
        %v642 = vunpack.c.l.bf16 %v386
        %v643 = vunpack.c.l.bf16 %v387
        %v644 = vunpack.c.l.bf16 %v388
        %v645 = vunpack.c.l.bf16 %v389
        %v646 = vunpack.c.l.bf16 %v390
        %v647 = vunpack.c.l.bf16 %v391
        %v648 = vunpack.c.l.bf16 %v392
        %v649 = vunpack.c.l.bf16 %v393
        %v650 = vunpack.c.l.bf16 %v394
        %v651 = vunpack.c.l.bf16 %v395
        %v652 = vunpack.c.l.bf16 %v396
        %v653 = vunpack.c.l.bf16 %v397
        %v654 = vunpack.c.l.bf16 %v398
        %v655 = vunpack.c.l.bf16 %v399
        %v656 = vunpack.c.l.bf16 %v400
        %v657 = vunpack.c.l.bf16 %v401
        %v658 = vunpack.c.l.bf16 %v402
        %v659 = vunpack.c.l.bf16 %v403
        %v660 = vunpack.c.l.bf16 %v404
        %v661 = vunpack.c.l.bf16 %v405
        %v662 = vunpack.c.l.bf16 %v406
        %v663 = vunpack.c.l.bf16 %v407
        %v664 = vunpack.c.l.bf16 %v408
        %v665 = vunpack.c.l.bf16 %v409
        %v666 = vunpack.c.l.bf16 %v410
        %v667 = vunpack.c.l.bf16 %v411
        %v668 = vunpack.c.l.bf16 %v412
        %v669 = vunpack.c.l.bf16 %v413
        %v670 = vunpack.c.l.bf16 %v414
        %v671 = vunpack.c.l.bf16 %v415
        %v672 = vunpack.c.l.bf16 %v416
        %v673 = vunpack.c.l.bf16 %v417
        %v674 = vunpack.c.l.bf16 %v418
        %v675 = vunpack.c.l.bf16 %v419
        %v676 = vunpack.c.l.bf16 %v420
        %v677 = vunpack.c.l.bf16 %v421
        %v678 = vunpack.c.l.bf16 %v422
        %v679 = vunpack.c.l.bf16 %v423
        %v680 = vunpack.c.l.bf16 %v424
        %v681 = vunpack.c.l.bf16 %v425
        %v682 = vunpack.c.l.bf16 %v426
        %v683 = vunpack.c.l.bf16 %v427
        %v684 = vunpack.c.l.bf16 %v428
        %v685 = vunpack.c.l.bf16 %v429
        %v686 = vunpack.c.l.bf16 %v430
        %v687 = vunpack.c.l.bf16 %v431
        %v688 = vunpack.c.l.bf16 %v432
        %v689 = vunpack.c.l.bf16 %v433
        %v690 = vunpack.c.l.bf16 %v434
        %v691 = vunpack.c.l.bf16 %v435
        %v692 = vunpack.c.l.bf16 %v436
        %v693 = vunpack.c.l.bf16 %v437
        %v694 = vunpack.c.l.bf16 %v438
        %v695 = vunpack.c.l.bf16 %v439
        %v696 = vunpack.c.l.bf16 %v440
        %v697 = vunpack.c.l.bf16 %v441
        %v698 = vunpack.c.l.bf16 %v442
        %v699 = vunpack.c.l.bf16 %v443
        %v700 = vunpack.c.l.bf16 %v444
        %v701 = vunpack.c.l.bf16 %v445
        %v702 = vunpack.c.l.bf16 %v446
        %v703 = vunpack.c.l.bf16 %v447
        %v704 = vunpack.c.l.bf16 %v448
        %v705 = vunpack.c.l.bf16 %v449
        %v706 = vunpack.c.l.bf16 %v450
        %v707 = vunpack.c.l.bf16 %v451
        %v708 = vunpack.c.l.bf16 %v452
        %v709 = vunpack.c.l.bf16 %v453
        %v710 = vunpack.c.l.bf16 %v454
        %v711 = vunpack.c.l.bf16 %v455
        %v712 = vunpack.c.l.bf16 %v456
        %v713 = vunpack.c.l.bf16 %v457
        %v714 = vunpack.c.l.bf16 %v458
        %v715 = vunpack.c.l.bf16 %v459
        %v716 = vunpack.c.l.bf16 %v460
        %v717 = vunpack.c.l.bf16 %v461
        %v718 = vunpack.c.l.bf16 %v462
        %v719 = vunpack.c.l.bf16 %v463
        %v720 = vunpack.c.l.bf16 %v464
        %v721 = vunpack.c.l.bf16 %v465
        %v722 = vunpack.c.l.bf16 %v466
        %v723 = vunpack.c.l.bf16 %v467
        %v724 = vunpack.c.l.bf16 %v468
        %v725 = vunpack.c.l.bf16 %v469
        %v726 = vunpack.c.l.bf16 %v470
        %v727 = vunpack.c.l.bf16 %v471
        %v728 = vunpack.c.l.bf16 %v472
        %v729 = vunpack.c.l.bf16 %v473
        %v730 = vunpack.c.l.bf16 %v474
        %v731 = vunpack.c.l.bf16 %v475
        %v732 = vunpack.c.l.bf16 %v476
        %v733 = vunpack.c.l.bf16 %v477
        %v734 = vunpack.c.l.bf16 %v478
        %v735 = vunpack.c.l.bf16 %v479
        %v736 = vunpack.c.l.bf16 %v480
        %v737 = vunpack.c.l.bf16 %v481
        %v738 = vunpack.c.l.bf16 %v482
        %v739 = vunpack.c.l.bf16 %v483
        %v740 = vunpack.c.l.bf16 %v484
        %v741 = vunpack.c.l.bf16 %v485
        %v742 = vunpack.c.l.bf16 %v486
        %v743 = vunpack.c.l.bf16 %v487
        %v744 = vunpack.c.l.bf16 %v488
        %v745 = vunpack.c.l.bf16 %v489
        %v746 = vunpack.c.l.bf16 %v490
        %v747 = vunpack.c.l.bf16 %v491
        %v748 = vunpack.c.l.bf16 %v492
        %v749 = vunpack.c.l.bf16 %v493
        %v750 = vunpack.c.l.bf16 %v494
        %v751 = vunpack.c.l.bf16 %v495
        %v752 = vunpack.c.l.bf16 %v496
        %v753 = vunpack.c.l.bf16 %v497
        %v754 = vunpack.c.l.bf16 %v498
        %v755 = vunpack.c.l.bf16 %v499
        %v756 = vunpack.c.l.bf16 %v500
        %v757 = vunpack.c.l.bf16 %v501
        %v758 = vunpack.c.l.bf16 %v502
        %v759 = vunpack.c.l.bf16 %v503
        %v760 = vunpack.c.l.bf16 %v504
        %v761 = vunpack.c.l.bf16 %v505
        %v762 = vunpack.c.l.bf16 %v506
        %v763 = vunpack.c.l.bf16 %v507
        %v764 = vunpack.c.l.bf16 %v508
        %v765 = vunpack.c.l.bf16 %v509
        %v766 = vunpack.c.l.bf16 %v510
        %v767 = vunpack.c.l.bf16 %v511
        %v768 = vunpack.c.l.bf16 %v512
        %v769 = vunpack.c.l.bf16 %v513
        %v770 = vunpack.c.l.bf16 %v514
        %v771 = vunpack.c.l.bf16 %v515
        %v772 = vunpack.c.l.bf16 %v516
        %v773 = vunpack.c.l.bf16 %v517
        %v774 = vunpack.c.l.bf16 %v518
        %v775 = vunpack.c.l.bf16 %v519
        %v776 = vunpack.c.l.bf16 %v520
        %v777 = vunpack.c.l.bf16 %v521
        %v778 = vunpack.c.l.bf16 %v522
        %v779 = vunpack.c.l.bf16 %v523
        %v780 = vunpack.c.l.bf16 %v524
        %v781 = vunpack.c.l.bf16 %v525
        %v782 = vunpack.c.l.bf16 %v526
        %v783 = vunpack.c.l.bf16 %v527
        %v784 = vunpack.c.l.bf16 %v528
        %v785 = vunpack.c.l.bf16 %v529
        %v786 = vunpack.c.l.bf16 %v530
        %v787 = vunpack.c.l.bf16 %v531
        %v788 = vunpack.c.l.bf16 %v532
        %v789 = vunpack.c.l.bf16 %v533
        %v790 = vunpack.c.l.bf16 %v534
        %v791 = vunpack.c.l.bf16 %v535
        %v792 = vunpack.c.l.bf16 %v536
        %v793 = vunpack.c.l.bf16 %v537
        %v794 = vunpack.c.l.bf16 %v538
        %v795 = vunpack.c.l.bf16 %v539
        %v796 = vunpack.c.l.bf16 %v540
        %v797 = vunpack.c.l.bf16 %v541
        %v798 = vunpack.c.l.bf16 %v542
        %v799 = vunpack.c.l.bf16 %v543
        %v800 = vunpack.c.l.bf16 %v544
        %v801 = vunpack.c.l.bf16 %v545
        %v802 = vunpack.c.l.bf16 %v546
        %v803 = vunpack.c.l.bf16 %v547
        %v804 = vunpack.c.l.bf16 %v548
        %v805 = vunpack.c.l.bf16 %v549
        %v806 = vunpack.c.l.bf16 %v550
        %v807 = vunpack.c.l.bf16 %v551
        %v808 = vunpack.c.l.bf16 %v552
        %v809 = vunpack.c.l.bf16 %v553
        %v810 = vunpack.c.l.bf16 %v554
        %v811 = vunpack.c.l.bf16 %v555
        %v812 = vunpack.c.l.bf16 %v556
        %v813 = vunpack.c.l.bf16 %v557
        %v814 = vunpack.c.l.bf16 %v558
        %v815 = vunpack.c.l.bf16 %v559
        %v816 = vunpack.c.l.bf16 %v560
        %v817 = vunpack.c.l.bf16 %v561
        %v818 = vunpack.c.l.bf16 %v562
        %v819 = vunpack.c.l.bf16 %v563
        %v820 = vunpack.c.l.bf16 %v564
        %v821 = vunpack.c.l.bf16 %v565
        %v822 = vunpack.c.l.bf16 %v566
        %v823 = vunpack.c.l.bf16 %v567
        %v824 = vunpack.c.l.bf16 %v568
        %v825 = vunpack.c.l.bf16 %v569
        %v826 = vunpack.c.l.bf16 %v570
        %v827 = vunpack.c.l.bf16 %v571
        %v828 = vunpack.c.l.bf16 %v572
        %v829 = vunpack.c.l.bf16 %v573
        %v830 = vunpack.c.l.bf16 %v574
        %v831 = vunpack.c.l.bf16 %v575
        %v832 = vunpack.c.l.bf16 %v576
        %v833 = vunpack.c.l.bf16 %v577
        %v834 = vld [vmem:[%s319] sm:$0xff]
        %v835 = vld [vmem:[%s319 + $0x8] sm:$0xff]
        %v836 = vld [vmem:[%s319 + $0x10] sm:$0xff]
        %v837 = vld [vmem:[%s319 + $0x18] sm:$0xff]
        %v838 = vld [vmem:[%s319 + $0x20] sm:$0xff]
        %v839 = vld [vmem:[%s319 + $0x28] sm:$0xff]
        %v840 = vld [vmem:[%s319 + $0x30] sm:$0xff]
        %v841 = vld [vmem:[%s319 + $0x38] sm:$0xff]
        %v842 = vld [vmem:[%s319 + $0x40] sm:$0xff]
        %v843 = vld [vmem:[%s319 + $0x48] sm:$0xff]
        %v844 = vld [vmem:[%s319 + $0x50] sm:$0xff]
        %v845 = vld [vmem:[%s319 + $0x58] sm:$0xff]
        %v846 = vld [vmem:[%s319 + $0x60] sm:$0xff]
        %v847 = vld [vmem:[%s319 + $0x68] sm:$0xff]
        %v848 = vld [vmem:[%s319 + $0x70] sm:$0xff]
        %v849 = vld [vmem:[%s319 + $0x78] sm:$0xff]
        %v850 = vld [vmem:[%s319 + $0x80] sm:$0xff]
        %v851 = vld [vmem:[%s319 + $0x88] sm:$0xff]
        %v852 = vld [vmem:[%s319 + $0x90] sm:$0xff]
        %v853 = vld [vmem:[%s319 + $0x98] sm:$0xff]
        %v854 = vld [vmem:[%s319 + $0xa0] sm:$0xff]
        %v855 = vld [vmem:[%s319 + $0xa8] sm:$0xff]
        %v856 = vld [vmem:[%s319 + $0xb0] sm:$0xff]
        %v857 = vld [vmem:[%s319 + $0xb8] sm:$0xff]
        %v858 = vld [vmem:[%s319 + $0xc0] sm:$0xff]
        %v859 = vld [vmem:[%s319 + $0xc8] sm:$0xff]
        %v860 = vld [vmem:[%s319 + $0xd0] sm:$0xff]
        %v861 = vld [vmem:[%s319 + $0xd8] sm:$0xff]
        %v862 = vld [vmem:[%s319 + $0xe0] sm:$0xff]
        %v863 = vld [vmem:[%s319 + $0xe8] sm:$0xff]
        %v864 = vld [vmem:[%s319 + $0xf0] sm:$0xff]
        %v865 = vld [vmem:[%s319 + $0xf8] sm:$0xff]
        %v866 = vld [vmem:[%s313] sm:$0xff]
        %v867 = vld [vmem:[%s313 + $0x8] sm:$0xff]
        %v868 = vld [vmem:[%s313 + $0x10] sm:$0xff]
        %v869 = vld [vmem:[%s313 + $0x18] sm:$0xff]
        %v870 = vld [vmem:[%s313 + $0x20] sm:$0xff]
        %v871 = vld [vmem:[%s313 + $0x28] sm:$0xff]
        %v872 = vld [vmem:[%s313 + $0x30] sm:$0xff]
        %v873 = vld [vmem:[%s313 + $0x38] sm:$0xff]
        %v874 = vld [vmem:[%s313 + $0x40] sm:$0xff]
        %v875 = vld [vmem:[%s313 + $0x48] sm:$0xff]
        %v876 = vld [vmem:[%s313 + $0x50] sm:$0xff]
        %v877 = vld [vmem:[%s313 + $0x58] sm:$0xff]
        %v878 = vld [vmem:[%s313 + $0x60] sm:$0xff]
        %v879 = vld [vmem:[%s313 + $0x68] sm:$0xff]
        %v880 = vld [vmem:[%s313 + $0x70] sm:$0xff]
        %v881 = vld [vmem:[%s313 + $0x78] sm:$0xff]
        %v882 = vld [vmem:[%s313 + $0x80] sm:$0xff]
        %v883 = vld [vmem:[%s313 + $0x88] sm:$0xff]
        %v884 = vld [vmem:[%s313 + $0x90] sm:$0xff]
        %v885 = vld [vmem:[%s313 + $0x98] sm:$0xff]
        %v886 = vld [vmem:[%s313 + $0xa0] sm:$0xff]
        %v887 = vld [vmem:[%s313 + $0xa8] sm:$0xff]
        %v888 = vld [vmem:[%s313 + $0xb0] sm:$0xff]
        %v889 = vld [vmem:[%s313 + $0xb8] sm:$0xff]
        %v890 = vld [vmem:[%s313 + $0xc0] sm:$0xff]
        %v891 = vld [vmem:[%s313 + $0xc8] sm:$0xff]
        %v892 = vld [vmem:[%s313 + $0xd0] sm:$0xff]
        %v893 = vld [vmem:[%s313 + $0xd8] sm:$0xff]
        %v894 = vld [vmem:[%s313 + $0xe0] sm:$0xff]
        %v895 = vld [vmem:[%s313 + $0xe8] sm:$0xff]
        %v896 = vld [vmem:[%s313 + $0xf0] sm:$0xff]
        %v897 = vld [vmem:[%s313 + $0xf8] sm:$0xff]
        %v898 = vld [vmem:[#allocation7] sm:$0xff]
        %v899 = vld [vmem:[#allocation7 + $0x8] sm:$0xff]
        %v900 = vld [vmem:[#allocation7 + $0x10] sm:$0xff]
        %v901 = vld [vmem:[#allocation7 + $0x18] sm:$0xff]
        %v902 = vlaneseq
        %v903 = vand.u32 %v902, 127
        %904 = vset.pattern.permute.xlu0 0
        %905 = vperm.xlu0 %904, %v866
        %v906 = vpop.permute.xlu0 %905
        %907 = vset.pattern.permute.xlu0 0
        %908 = vperm.xlu0 %907, %v867
        %v909 = vpop.permute.xlu0 %908
        %910 = vset.pattern.permute.xlu0 0
        %911 = vperm.xlu0 %910, %v868
        %v912 = vpop.permute.xlu0 %911
        %913 = vset.pattern.permute.xlu0 0
        %914 = vperm.xlu0 %913, %v869
        %v915 = vpop.permute.xlu0 %914
        %916 = vset.pattern.permute.xlu0 0
        %917 = vperm.xlu0 %916, %v870
        %v918 = vpop.permute.xlu0 %917
        %919 = vset.pattern.permute.xlu0 0
        %920 = vperm.xlu0 %919, %v871
        %v921 = vpop.permute.xlu0 %920
        %922 = vset.pattern.permute.xlu0 0
        %923 = vperm.xlu0 %922, %v872
        %v924 = vpop.permute.xlu0 %923
        %925 = vset.pattern.permute.xlu0 0
        %926 = vperm.xlu0 %925, %v873
        %v927 = vpop.permute.xlu0 %926
        %928 = vset.pattern.permute.xlu0 0
        %929 = vperm.xlu0 %928, %v874
        %v930 = vpop.permute.xlu0 %929
        %931 = vset.pattern.permute.xlu0 0
        %932 = vperm.xlu0 %931, %v875
        %v933 = vpop.permute.xlu0 %932
        %934 = vset.pattern.permute.xlu0 0
        %935 = vperm.xlu0 %934, %v876
        %v936 = vpop.permute.xlu0 %935
        %937 = vset.pattern.permute.xlu0 0
        %938 = vperm.xlu0 %937, %v877
        %v939 = vpop.permute.xlu0 %938
        %940 = vset.pattern.permute.xlu0 0
        %941 = vperm.xlu0 %940, %v878
        %v942 = vpop.permute.xlu0 %941
        %943 = vset.pattern.permute.xlu0 0
        %944 = vperm.xlu0 %943, %v879
        %v945 = vpop.permute.xlu0 %944
        %946 = vset.pattern.permute.xlu0 0
        %947 = vperm.xlu0 %946, %v880
        %v948 = vpop.permute.xlu0 %947
        %949 = vset.pattern.permute.xlu0 0
        %950 = vperm.xlu0 %949, %v881
        %v951 = vpop.permute.xlu0 %950
        %952 = vset.pattern.permute.xlu0 0
        %953 = vperm.xlu0 %952, %v882
        %v954 = vpop.permute.xlu0 %953
        %955 = vset.pattern.permute.xlu0 0
        %956 = vperm.xlu0 %955, %v883
        %v957 = vpop.permute.xlu0 %956
        %958 = vset.pattern.permute.xlu0 0
        %959 = vperm.xlu0 %958, %v884
        %v960 = vpop.permute.xlu0 %959
        %961 = vset.pattern.permute.xlu0 0
        %962 = vperm.xlu0 %961, %v885
        %v963 = vpop.permute.xlu0 %962
        %964 = vset.pattern.permute.xlu0 0
        %965 = vperm.xlu0 %964, %v886
        %v966 = vpop.permute.xlu0 %965
        %967 = vset.pattern.permute.xlu0 0
        %968 = vperm.xlu0 %967, %v887
        %v969 = vpop.permute.xlu0 %968
        %970 = vset.pattern.permute.xlu0 0
        %971 = vperm.xlu0 %970, %v888
        %v972 = vpop.permute.xlu0 %971
        %973 = vset.pattern.permute.xlu0 0
        %974 = vperm.xlu0 %973, %v889
        %v975 = vpop.permute.xlu0 %974
        %976 = vset.pattern.permute.xlu0 0
        %977 = vperm.xlu0 %976, %v890
        %v978 = vpop.permute.xlu0 %977
        %979 = vset.pattern.permute.xlu0 0
        %980 = vperm.xlu0 %979, %v891
        %v981 = vpop.permute.xlu0 %980
        %982 = vset.pattern.permute.xlu0 0
        %983 = vperm.xlu0 %982, %v892
        %v984 = vpop.permute.xlu0 %983
        %985 = vset.pattern.permute.xlu0 0
        %986 = vperm.xlu0 %985, %v893
        %v987 = vpop.permute.xlu0 %986
        %988 = vset.pattern.permute.xlu0 0
        %989 = vperm.xlu0 %988, %v894
        %v990 = vpop.permute.xlu0 %989
        %991 = vset.pattern.permute.xlu0 0
        %992 = vperm.xlu0 %991, %v895
        %v993 = vpop.permute.xlu0 %992
        %994 = vset.pattern.permute.xlu0 0
        %995 = vperm.xlu0 %994, %v896
        %v996 = vpop.permute.xlu0 %995
        %997 = vset.pattern.permute.xlu0 0
        %998 = vperm.xlu0 %997, %v897
        %v999 = vpop.permute.xlu0 %998
        %vm1000 = vcmp.lt.s32.totalorder %v903, %v906
        %vm1001 = vcmp.lt.s32.totalorder %v903, %v909
        %vm1002 = vcmp.lt.s32.totalorder %v903, %v912
        %vm1003 = vcmp.lt.s32.totalorder %v903, %v915
        %vm1004 = vcmp.lt.s32.totalorder %v903, %v918
        %vm1005 = vcmp.lt.s32.totalorder %v903, %v921
        %vm1006 = vcmp.lt.s32.totalorder %v903, %v924
        %vm1007 = vcmp.lt.s32.totalorder %v903, %v927
        %vm1008 = vcmp.lt.s32.totalorder %v903, %v930
        %vm1009 = vcmp.lt.s32.totalorder %v903, %v933
        %vm1010 = vcmp.lt.s32.totalorder %v903, %v936
        %vm1011 = vcmp.lt.s32.totalorder %v903, %v939
        %vm1012 = vcmp.lt.s32.totalorder %v903, %v942
        %vm1013 = vcmp.lt.s32.totalorder %v903, %v945
        %vm1014 = vcmp.lt.s32.totalorder %v903, %v948
        %vm1015 = vcmp.lt.s32.totalorder %v903, %v951
        %vm1016 = vcmp.lt.s32.totalorder %v903, %v954
        %vm1017 = vcmp.lt.s32.totalorder %v903, %v957
        %vm1018 = vcmp.lt.s32.totalorder %v903, %v960
        %vm1019 = vcmp.lt.s32.totalorder %v903, %v963
        %vm1020 = vcmp.lt.s32.totalorder %v903, %v966
        %vm1021 = vcmp.lt.s32.totalorder %v903, %v969
        %vm1022 = vcmp.lt.s32.totalorder %v903, %v972
        %vm1023 = vcmp.lt.s32.totalorder %v903, %v975
        %vm1024 = vcmp.lt.s32.totalorder %v903, %v978
        %vm1025 = vcmp.lt.s32.totalorder %v903, %v981
        %vm1026 = vcmp.lt.s32.totalorder %v903, %v984
        %vm1027 = vcmp.lt.s32.totalorder %v903, %v987
        %vm1028 = vcmp.lt.s32.totalorder %v903, %v990
        %vm1029 = vcmp.lt.s32.totalorder %v903, %v993
        %vm1030 = vcmp.lt.s32.totalorder %v903, %v996
        %vm1031 = vcmp.lt.s32.totalorder %v903, %v999
        %v1032 = vsel %vm1000, 1, 0
        %v1033 = vsel %vm1001, 1, 0
        %v1034 = vsel %vm1002, 1, 0
        %v1035 = vsel %vm1003, 1, 0
        %v1036 = vsel %vm1004, 1, 0
        %v1037 = vsel %vm1005, 1, 0
        %v1038 = vsel %vm1006, 1, 0
        %v1039 = vsel %vm1007, 1, 0
        %v1040 = vsel %vm1008, 1, 0
        %v1041 = vsel %vm1009, 1, 0
        %v1042 = vsel %vm1010, 1, 0
        %v1043 = vsel %vm1011, 1, 0
        %v1044 = vsel %vm1012, 1, 0
        %v1045 = vsel %vm1013, 1, 0
        %v1046 = vsel %vm1014, 1, 0
        %v1047 = vsel %vm1015, 1, 0
        %v1048 = vsel %vm1016, 1, 0
        %v1049 = vsel %vm1017, 1, 0
        %v1050 = vsel %vm1018, 1, 0
        %v1051 = vsel %vm1019, 1, 0
        %v1052 = vsel %vm1020, 1, 0
        %v1053 = vsel %vm1021, 1, 0
        %v1054 = vsel %vm1022, 1, 0
        %v1055 = vsel %vm1023, 1, 0
        %v1056 = vsel %vm1024, 1, 0
        %v1057 = vsel %vm1025, 1, 0
        %v1058 = vsel %vm1026, 1, 0
        %v1059 = vsel %vm1027, 1, 0
        %v1060 = vsel %vm1028, 1, 0
        %v1061 = vsel %vm1029, 1, 0
        %v1062 = vsel %vm1030, 1, 0
        %v1063 = vsel %vm1031, 1, 0
        %v1064 = vcvt.s32.f32 %v1032
        %v1065 = vcvt.s32.f32 %v1033
        %v1066 = vcvt.s32.f32 %v1034
        %v1067 = vcvt.s32.f32 %v1035
        %v1068 = vcvt.s32.f32 %v1036
        %v1069 = vcvt.s32.f32 %v1037
        %v1070 = vcvt.s32.f32 %v1038
        %v1071 = vcvt.s32.f32 %v1039
        %v1072 = vcvt.s32.f32 %v1040
        %v1073 = vcvt.s32.f32 %v1041
        %v1074 = vcvt.s32.f32 %v1042
        %v1075 = vcvt.s32.f32 %v1043
        %v1076 = vcvt.s32.f32 %v1044
        %v1077 = vcvt.s32.f32 %v1045
        %v1078 = vcvt.s32.f32 %v1046
        %v1079 = vcvt.s32.f32 %v1047
        %v1080 = vcvt.s32.f32 %v1048
        %v1081 = vcvt.s32.f32 %v1049
        %v1082 = vcvt.s32.f32 %v1050
        %v1083 = vcvt.s32.f32 %v1051
        %v1084 = vcvt.s32.f32 %v1052
        %v1085 = vcvt.s32.f32 %v1053
        %v1086 = vcvt.s32.f32 %v1054
        %v1087 = vcvt.s32.f32 %v1055
        %v1088 = vcvt.s32.f32 %v1056
        %v1089 = vcvt.s32.f32 %v1057
        %v1090 = vcvt.s32.f32 %v1058
        %v1091 = vcvt.s32.f32 %v1059
        %v1092 = vcvt.s32.f32 %v1060
        %v1093 = vcvt.s32.f32 %v1061
        %v1094 = vcvt.s32.f32 %v1062
        %v1095 = vcvt.s32.f32 %v1063
        %v1096 = vmax.f32 %v834, 0.0
        %v1097 = vmax.f32 %v835, 0.0
        %v1098 = vmax.f32 %v836, 0.0
        %v1099 = vmax.f32 %v837, 0.0
        %v1100 = vmax.f32 %v838, 0.0
        %v1101 = vmax.f32 %v839, 0.0
        %v1102 = vmax.f32 %v840, 0.0
        %v1103 = vmax.f32 %v841, 0.0
        %v1104 = vmax.f32 %v842, 0.0
        %v1105 = vmax.f32 %v843, 0.0
        %v1106 = vmax.f32 %v844, 0.0
        %v1107 = vmax.f32 %v845, 0.0
        %v1108 = vmax.f32 %v846, 0.0
        %v1109 = vmax.f32 %v847, 0.0
        %v1110 = vmax.f32 %v848, 0.0
        %v1111 = vmax.f32 %v849, 0.0
        %v1112 = vmax.f32 %v850, 0.0
        %v1113 = vmax.f32 %v851, 0.0
        %v1114 = vmax.f32 %v852, 0.0
        %v1115 = vmax.f32 %v853, 0.0
        %v1116 = vmax.f32 %v854, 0.0
        %v1117 = vmax.f32 %v855, 0.0
        %v1118 = vmax.f32 %v856, 0.0
        %v1119 = vmax.f32 %v857, 0.0
        %v1120 = vmax.f32 %v858, 0.0
        %v1121 = vmax.f32 %v859, 0.0
        %v1122 = vmax.f32 %v860, 0.0
        %v1123 = vmax.f32 %v861, 0.0
        %v1124 = vmax.f32 %v862, 0.0
        %v1125 = vmax.f32 %v863, 0.0
        %v1126 = vmax.f32 %v864, 0.0
        %v1127 = vmax.f32 %v865, 0.0
        %v1128 = vperm.slane %v898, 0
        %v1129 = vmul.f32 %v1096, %v1128
        %v1130 = vmul.f32 %v1097, %v1128
        %v1131 = vmul.f32 %v1098, %v1128
        %v1132 = vmul.f32 %v1099, %v1128
        %v1133 = vmul.f32 %v1100, %v1128
        %v1134 = vmul.f32 %v1101, %v1128
        %v1135 = vmul.f32 %v1102, %v1128
        %v1136 = vmul.f32 %v1103, %v1128
        %v1137 = vmul.f32 %v1104, %v1128
        %v1138 = vmul.f32 %v1105, %v1128
        %v1139 = vmul.f32 %v1106, %v1128
        %v1140 = vmul.f32 %v1107, %v1128
        %v1141 = vmul.f32 %v1108, %v1128
        %v1142 = vmul.f32 %v1109, %v1128
        %v1143 = vmul.f32 %v1110, %v1128
        %v1144 = vmul.f32 %v1111, %v1128
        %v1145 = vmul.f32 %v1112, %v1128
        %v1146 = vmul.f32 %v1113, %v1128
        %v1147 = vmul.f32 %v1114, %v1128
        %v1148 = vmul.f32 %v1115, %v1128
        %v1149 = vmul.f32 %v1116, %v1128
        %v1150 = vmul.f32 %v1117, %v1128
        %v1151 = vmul.f32 %v1118, %v1128
        %v1152 = vmul.f32 %v1119, %v1128
        %v1153 = vmul.f32 %v1120, %v1128
        %v1154 = vmul.f32 %v1121, %v1128
        %v1155 = vmul.f32 %v1122, %v1128
        %v1156 = vmul.f32 %v1123, %v1128
        %v1157 = vmul.f32 %v1124, %v1128
        %v1158 = vmul.f32 %v1125, %v1128
        %v1159 = vmul.f32 %v1126, %v1128
        %v1160 = vmul.f32 %v1127, %v1128
        %1161 = vadd.xlane.f32.xlu0 %v1129
        %v1162 = vpop.xlane.xlu0 %1161
        %1163 = vadd.xlane.f32.xlu0 %v1130
        %v1164 = vpop.xlane.xlu0 %1163
        %1165 = vadd.xlane.f32.xlu0 %v1131
        %v1166 = vpop.xlane.xlu0 %1165
        %1167 = vadd.xlane.f32.xlu0 %v1132
        %v1168 = vpop.xlane.xlu0 %1167
        %1169 = vadd.xlane.f32.xlu0 %v1133
        %v1170 = vpop.xlane.xlu0 %1169
        %1171 = vadd.xlane.f32.xlu0 %v1134
        %v1172 = vpop.xlane.xlu0 %1171
        %1173 = vadd.xlane.f32.xlu0 %v1135
        %v1174 = vpop.xlane.xlu0 %1173
        %1175 = vadd.xlane.f32.xlu0 %v1136
        %v1176 = vpop.xlane.xlu0 %1175
        %1177 = vadd.xlane.f32.xlu0 %v1137
        %v1178 = vpop.xlane.xlu0 %1177
        %1179 = vadd.xlane.f32.xlu0 %v1138
        %v1180 = vpop.xlane.xlu0 %1179
        %1181 = vadd.xlane.f32.xlu0 %v1139
        %v1182 = vpop.xlane.xlu0 %1181
        %1183 = vadd.xlane.f32.xlu0 %v1140
        %v1184 = vpop.xlane.xlu0 %1183
        %1185 = vadd.xlane.f32.xlu0 %v1141
        %v1186 = vpop.xlane.xlu0 %1185
        %1187 = vadd.xlane.f32.xlu0 %v1142
        %v1188 = vpop.xlane.xlu0 %1187
        %1189 = vadd.xlane.f32.xlu0 %v1143
        %v1190 = vpop.xlane.xlu0 %1189
        %1191 = vadd.xlane.f32.xlu0 %v1144
        %v1192 = vpop.xlane.xlu0 %1191
        %1193 = vadd.xlane.f32.xlu0 %v1145
        %v1194 = vpop.xlane.xlu0 %1193
        %1195 = vadd.xlane.f32.xlu0 %v1146
        %v1196 = vpop.xlane.xlu0 %1195
        %1197 = vadd.xlane.f32.xlu0 %v1147
        %v1198 = vpop.xlane.xlu0 %1197
        %1199 = vadd.xlane.f32.xlu0 %v1148
        %v1200 = vpop.xlane.xlu0 %1199
        %1201 = vadd.xlane.f32.xlu0 %v1149
        %v1202 = vpop.xlane.xlu0 %1201
        %1203 = vadd.xlane.f32.xlu0 %v1150
        %v1204 = vpop.xlane.xlu0 %1203
        %1205 = vadd.xlane.f32.xlu0 %v1151
        %v1206 = vpop.xlane.xlu0 %1205
        %1207 = vadd.xlane.f32.xlu0 %v1152
        %v1208 = vpop.xlane.xlu0 %1207
        %1209 = vadd.xlane.f32.xlu0 %v1153
        %v1210 = vpop.xlane.xlu0 %1209
        %1211 = vadd.xlane.f32.xlu0 %v1154
        %v1212 = vpop.xlane.xlu0 %1211
        %1213 = vadd.xlane.f32.xlu0 %v1155
        %v1214 = vpop.xlane.xlu0 %1213
        %1215 = vadd.xlane.f32.xlu0 %v1156
        %v1216 = vpop.xlane.xlu0 %1215
        %1217 = vadd.xlane.f32.xlu0 %v1157
        %v1218 = vpop.xlane.xlu0 %1217
        %1219 = vadd.xlane.f32.xlu0 %v1158
        %v1220 = vpop.xlane.xlu0 %1219
        %1221 = vadd.xlane.f32.xlu0 %v1159
        %v1222 = vpop.xlane.xlu0 %1221
        %1223 = vadd.xlane.f32.xlu0 %v1160
        %v1224 = vpop.xlane.xlu0 %1223
        %v1225 = vperm.slane %v898, 1
        %v1226 = vmul.f32 %v578, %v1225
        %v1227 = vmul.f32 %v579, %v1225
        %v1228 = vmul.f32 %v580, %v1225
        %v1229 = vmul.f32 %v581, %v1225
        %v1230 = vmul.f32 %v582, %v1225
        %v1231 = vmul.f32 %v583, %v1225
        %v1232 = vmul.f32 %v584, %v1225
        %v1233 = vmul.f32 %v585, %v1225
        %v1234 = vmul.f32 %v586, %v1225
        %v1235 = vmul.f32 %v587, %v1225
        %v1236 = vmul.f32 %v588, %v1225
        %v1237 = vmul.f32 %v589, %v1225
        %v1238 = vmul.f32 %v590, %v1225
        %v1239 = vmul.f32 %v591, %v1225
        %v1240 = vmul.f32 %v592, %v1225
        %v1241 = vmul.f32 %v593, %v1225
        %v1242 = vmul.f32 %v594, %v1225
        %v1243 = vmul.f32 %v595, %v1225
        %v1244 = vmul.f32 %v596, %v1225
        %v1245 = vmul.f32 %v597, %v1225
        %v1246 = vmul.f32 %v598, %v1225
        %v1247 = vmul.f32 %v599, %v1225
        %v1248 = vmul.f32 %v600, %v1225
        %v1249 = vmul.f32 %v601, %v1225
        %v1250 = vmul.f32 %v602, %v1225
        %v1251 = vmul.f32 %v603, %v1225
        %v1252 = vmul.f32 %v604, %v1225
        %v1253 = vmul.f32 %v605, %v1225
        %v1254 = vmul.f32 %v606, %v1225
        %v1255 = vmul.f32 %v607, %v1225
        %v1256 = vmul.f32 %v608, %v1225
        %v1257 = vmul.f32 %v609, %v1225
        %v1258 = vmul.f32 %v610, %v1225
        %v1259 = vmul.f32 %v611, %v1225
        %v1260 = vmul.f32 %v612, %v1225
        %v1261 = vmul.f32 %v613, %v1225
        %v1262 = vmul.f32 %v614, %v1225
        %v1263 = vmul.f32 %v615, %v1225
        %v1264 = vmul.f32 %v616, %v1225
        %v1265 = vmul.f32 %v617, %v1225
        %v1266 = vmul.f32 %v618, %v1225
        %v1267 = vmul.f32 %v619, %v1225
        %v1268 = vmul.f32 %v620, %v1225
        %v1269 = vmul.f32 %v621, %v1225
        %v1270 = vmul.f32 %v622, %v1225
        %v1271 = vmul.f32 %v623, %v1225
        %v1272 = vmul.f32 %v624, %v1225
        %v1273 = vmul.f32 %v625, %v1225
        %v1274 = vmul.f32 %v626, %v1225
        %v1275 = vmul.f32 %v627, %v1225
        %v1276 = vmul.f32 %v628, %v1225
        %v1277 = vmul.f32 %v629, %v1225
        %v1278 = vmul.f32 %v630, %v1225
        %v1279 = vmul.f32 %v631, %v1225
        %v1280 = vmul.f32 %v632, %v1225
        %v1281 = vmul.f32 %v633, %v1225
        %v1282 = vmul.f32 %v634, %v1225
        %v1283 = vmul.f32 %v635, %v1225
        %v1284 = vmul.f32 %v636, %v1225
        %v1285 = vmul.f32 %v637, %v1225
        %v1286 = vmul.f32 %v638, %v1225
        %v1287 = vmul.f32 %v639, %v1225
        %v1288 = vmul.f32 %v640, %v1225
        %v1289 = vmul.f32 %v641, %v1225
        %v1290 = vmul.f32 %v642, %v1225
        %v1291 = vmul.f32 %v643, %v1225
        %v1292 = vmul.f32 %v644, %v1225
        %v1293 = vmul.f32 %v645, %v1225
        %v1294 = vmul.f32 %v646, %v1225
        %v1295 = vmul.f32 %v647, %v1225
        %v1296 = vmul.f32 %v648, %v1225
        %v1297 = vmul.f32 %v649, %v1225
        %v1298 = vmul.f32 %v650, %v1225
        %v1299 = vmul.f32 %v651, %v1225
        %v1300 = vmul.f32 %v652, %v1225
        %v1301 = vmul.f32 %v653, %v1225
        %v1302 = vmul.f32 %v654, %v1225
        %v1303 = vmul.f32 %v655, %v1225
        %v1304 = vmul.f32 %v656, %v1225
        %v1305 = vmul.f32 %v657, %v1225
        %v1306 = vmul.f32 %v658, %v1225
        %v1307 = vmul.f32 %v659, %v1225
        %v1308 = vmul.f32 %v660, %v1225
        %v1309 = vmul.f32 %v661, %v1225
        %v1310 = vmul.f32 %v662, %v1225
        %v1311 = vmul.f32 %v663, %v1225
        %v1312 = vmul.f32 %v664, %v1225
        %v1313 = vmul.f32 %v665, %v1225
        %v1314 = vmul.f32 %v666, %v1225
        %v1315 = vmul.f32 %v667, %v1225
        %v1316 = vmul.f32 %v668, %v1225
        %v1317 = vmul.f32 %v669, %v1225
        %v1318 = vmul.f32 %v670, %v1225
        %v1319 = vmul.f32 %v671, %v1225
        %v1320 = vmul.f32 %v672, %v1225
        %v1321 = vmul.f32 %v673, %v1225
        %v1322 = vmul.f32 %v674, %v1225
        %v1323 = vmul.f32 %v675, %v1225
        %v1324 = vmul.f32 %v676, %v1225
        %v1325 = vmul.f32 %v677, %v1225
        %v1326 = vmul.f32 %v678, %v1225
        %v1327 = vmul.f32 %v679, %v1225
        %v1328 = vmul.f32 %v680, %v1225
        %v1329 = vmul.f32 %v681, %v1225
        %v1330 = vmul.f32 %v682, %v1225
        %v1331 = vmul.f32 %v683, %v1225
        %v1332 = vmul.f32 %v684, %v1225
        %v1333 = vmul.f32 %v685, %v1225
        %v1334 = vmul.f32 %v686, %v1225
        %v1335 = vmul.f32 %v687, %v1225
        %v1336 = vmul.f32 %v688, %v1225
        %v1337 = vmul.f32 %v689, %v1225
        %v1338 = vmul.f32 %v690, %v1225
        %v1339 = vmul.f32 %v691, %v1225
        %v1340 = vmul.f32 %v692, %v1225
        %v1341 = vmul.f32 %v693, %v1225
        %v1342 = vmul.f32 %v694, %v1225
        %v1343 = vmul.f32 %v695, %v1225
        %v1344 = vmul.f32 %v696, %v1225
        %v1345 = vmul.f32 %v697, %v1225
        %v1346 = vmul.f32 %v698, %v1225
        %v1347 = vmul.f32 %v699, %v1225
        %v1348 = vmul.f32 %v700, %v1225
        %v1349 = vmul.f32 %v701, %v1225
        %v1350 = vmul.f32 %v702, %v1225
        %v1351 = vmul.f32 %v703, %v1225
        %v1352 = vmul.f32 %v704, %v1225
        %v1353 = vmul.f32 %v705, %v1225
        %v1354 = vmul.f32 %v706, %v1225
        %v1355 = vmul.f32 %v707, %v1225
        %v1356 = vmul.f32 %v708, %v1225
        %v1357 = vmul.f32 %v709, %v1225
        %v1358 = vmul.f32 %v710, %v1225
        %v1359 = vmul.f32 %v711, %v1225
        %v1360 = vmul.f32 %v712, %v1225
        %v1361 = vmul.f32 %v713, %v1225
        %v1362 = vmul.f32 %v714, %v1225
        %v1363 = vmul.f32 %v715, %v1225
        %v1364 = vmul.f32 %v716, %v1225
        %v1365 = vmul.f32 %v717, %v1225
        %v1366 = vmul.f32 %v718, %v1225
        %v1367 = vmul.f32 %v719, %v1225
        %v1368 = vmul.f32 %v720, %v1225
        %v1369 = vmul.f32 %v721, %v1225
        %v1370 = vmul.f32 %v722, %v1225
        %v1371 = vmul.f32 %v723, %v1225
        %v1372 = vmul.f32 %v724, %v1225
        %v1373 = vmul.f32 %v725, %v1225
        %v1374 = vmul.f32 %v726, %v1225
        %v1375 = vmul.f32 %v727, %v1225
        %v1376 = vmul.f32 %v728, %v1225
        %v1377 = vmul.f32 %v729, %v1225
        %v1378 = vmul.f32 %v730, %v1225
        %v1379 = vmul.f32 %v731, %v1225
        %v1380 = vmul.f32 %v732, %v1225
        %v1381 = vmul.f32 %v733, %v1225
        %v1382 = vmul.f32 %v734, %v1225
        %v1383 = vmul.f32 %v735, %v1225
        %v1384 = vmul.f32 %v736, %v1225
        %v1385 = vmul.f32 %v737, %v1225
        %v1386 = vmul.f32 %v738, %v1225
        %v1387 = vmul.f32 %v739, %v1225
        %v1388 = vmul.f32 %v740, %v1225
        %v1389 = vmul.f32 %v741, %v1225
        %v1390 = vmul.f32 %v742, %v1225
        %v1391 = vmul.f32 %v743, %v1225
        %v1392 = vmul.f32 %v744, %v1225
        %v1393 = vmul.f32 %v745, %v1225
        %v1394 = vmul.f32 %v746, %v1225
        %v1395 = vmul.f32 %v747, %v1225
        %v1396 = vmul.f32 %v748, %v1225
        %v1397 = vmul.f32 %v749, %v1225
        %v1398 = vmul.f32 %v750, %v1225
        %v1399 = vmul.f32 %v751, %v1225
        %v1400 = vmul.f32 %v752, %v1225
        %v1401 = vmul.f32 %v753, %v1225
        %v1402 = vmul.f32 %v754, %v1225
        %v1403 = vmul.f32 %v755, %v1225
        %v1404 = vmul.f32 %v756, %v1225
        %v1405 = vmul.f32 %v757, %v1225
        %v1406 = vmul.f32 %v758, %v1225
        %v1407 = vmul.f32 %v759, %v1225
        %v1408 = vmul.f32 %v760, %v1225
        %v1409 = vmul.f32 %v761, %v1225
        %v1410 = vmul.f32 %v762, %v1225
        %v1411 = vmul.f32 %v763, %v1225
        %v1412 = vmul.f32 %v764, %v1225
        %v1413 = vmul.f32 %v765, %v1225
        %v1414 = vmul.f32 %v766, %v1225
        %v1415 = vmul.f32 %v767, %v1225
        %v1416 = vmul.f32 %v768, %v1225
        %v1417 = vmul.f32 %v769, %v1225
        %v1418 = vmul.f32 %v770, %v1225
        %v1419 = vmul.f32 %v771, %v1225
        %v1420 = vmul.f32 %v772, %v1225
        %v1421 = vmul.f32 %v773, %v1225
        %v1422 = vmul.f32 %v774, %v1225
        %v1423 = vmul.f32 %v775, %v1225
        %v1424 = vmul.f32 %v776, %v1225
        %v1425 = vmul.f32 %v777, %v1225
        %v1426 = vmul.f32 %v778, %v1225
        %v1427 = vmul.f32 %v779, %v1225
        %v1428 = vmul.f32 %v780, %v1225
        %v1429 = vmul.f32 %v781, %v1225
        %v1430 = vmul.f32 %v782, %v1225
        %v1431 = vmul.f32 %v783, %v1225
        %v1432 = vmul.f32 %v784, %v1225
        %v1433 = vmul.f32 %v785, %v1225
        %v1434 = vmul.f32 %v786, %v1225
        %v1435 = vmul.f32 %v787, %v1225
        %v1436 = vmul.f32 %v788, %v1225
        %v1437 = vmul.f32 %v789, %v1225
        %v1438 = vmul.f32 %v790, %v1225
        %v1439 = vmul.f32 %v791, %v1225
        %v1440 = vmul.f32 %v792, %v1225
        %v1441 = vmul.f32 %v793, %v1225
        %v1442 = vmul.f32 %v794, %v1225
        %v1443 = vmul.f32 %v795, %v1225
        %v1444 = vmul.f32 %v796, %v1225
        %v1445 = vmul.f32 %v797, %v1225
        %v1446 = vmul.f32 %v798, %v1225
        %v1447 = vmul.f32 %v799, %v1225
        %v1448 = vmul.f32 %v800, %v1225
        %v1449 = vmul.f32 %v801, %v1225
        %v1450 = vmul.f32 %v802, %v1225
        %v1451 = vmul.f32 %v803, %v1225
        %v1452 = vmul.f32 %v804, %v1225
        %v1453 = vmul.f32 %v805, %v1225
        %v1454 = vmul.f32 %v806, %v1225
        %v1455 = vmul.f32 %v807, %v1225
        %v1456 = vmul.f32 %v808, %v1225
        %v1457 = vmul.f32 %v809, %v1225
        %v1458 = vmul.f32 %v810, %v1225
        %v1459 = vmul.f32 %v811, %v1225
        %v1460 = vmul.f32 %v812, %v1225
        %v1461 = vmul.f32 %v813, %v1225
        %v1462 = vmul.f32 %v814, %v1225
        %v1463 = vmul.f32 %v815, %v1225
        %v1464 = vmul.f32 %v816, %v1225
        %v1465 = vmul.f32 %v817, %v1225
        %v1466 = vmul.f32 %v818, %v1225
        %v1467 = vmul.f32 %v819, %v1225
        %v1468 = vmul.f32 %v820, %v1225
        %v1469 = vmul.f32 %v821, %v1225
        %v1470 = vmul.f32 %v822, %v1225
        %v1471 = vmul.f32 %v823, %v1225
        %v1472 = vmul.f32 %v824, %v1225
        %v1473 = vmul.f32 %v825, %v1225
        %v1474 = vmul.f32 %v826, %v1225
        %v1475 = vmul.f32 %v827, %v1225
        %v1476 = vmul.f32 %v828, %v1225
        %v1477 = vmul.f32 %v829, %v1225
        %v1478 = vmul.f32 %v830, %v1225
        %v1479 = vmul.f32 %v831, %v1225
        %v1480 = vmul.f32 %v832, %v1225
        %v1481 = vmul.f32 %v833, %v1225
        %1482 = vadd.xlane.f32.xlu0 %v1226
        %v1483 = vpop.xlane.xlu0 %1482
        %1484 = vadd.xlane.f32.xlu0 %v1227
        %v1485 = vpop.xlane.xlu0 %1484
        %1486 = vadd.xlane.f32.xlu0 %v1228
        %v1487 = vpop.xlane.xlu0 %1486
        %1488 = vadd.xlane.f32.xlu0 %v1229
        %v1489 = vpop.xlane.xlu0 %1488
        %1490 = vadd.xlane.f32.xlu0 %v1230
        %v1491 = vpop.xlane.xlu0 %1490
        %1492 = vadd.xlane.f32.xlu0 %v1231
        %v1493 = vpop.xlane.xlu0 %1492
        %1494 = vadd.xlane.f32.xlu0 %v1232
        %v1495 = vpop.xlane.xlu0 %1494
        %1496 = vadd.xlane.f32.xlu0 %v1233
        %v1497 = vpop.xlane.xlu0 %1496
        %1498 = vadd.xlane.f32.xlu0 %v1234
        %v1499 = vpop.xlane.xlu0 %1498
        %1500 = vadd.xlane.f32.xlu0 %v1235
        %v1501 = vpop.xlane.xlu0 %1500
        %1502 = vadd.xlane.f32.xlu0 %v1236
        %v1503 = vpop.xlane.xlu0 %1502
        %1504 = vadd.xlane.f32.xlu0 %v1237
        %v1505 = vpop.xlane.xlu0 %1504
        %1506 = vadd.xlane.f32.xlu0 %v1238
        %v1507 = vpop.xlane.xlu0 %1506
        %1508 = vadd.xlane.f32.xlu0 %v1239
        %v1509 = vpop.xlane.xlu0 %1508
        %1510 = vadd.xlane.f32.xlu0 %v1240
        %v1511 = vpop.xlane.xlu0 %1510
        %1512 = vadd.xlane.f32.xlu0 %v1241
        %v1513 = vpop.xlane.xlu0 %1512
        %1514 = vadd.xlane.f32.xlu0 %v1242
        %v1515 = vpop.xlane.xlu0 %1514
        %1516 = vadd.xlane.f32.xlu0 %v1243
        %v1517 = vpop.xlane.xlu0 %1516
        %1518 = vadd.xlane.f32.xlu0 %v1244
        %v1519 = vpop.xlane.xlu0 %1518
        %1520 = vadd.xlane.f32.xlu0 %v1245
        %v1521 = vpop.xlane.xlu0 %1520
        %1522 = vadd.xlane.f32.xlu0 %v1246
        %v1523 = vpop.xlane.xlu0 %1522
        %1524 = vadd.xlane.f32.xlu0 %v1247
        %v1525 = vpop.xlane.xlu0 %1524
        %1526 = vadd.xlane.f32.xlu0 %v1248
        %v1527 = vpop.xlane.xlu0 %1526
        %1528 = vadd.xlane.f32.xlu0 %v1249
        %v1529 = vpop.xlane.xlu0 %1528
        %1530 = vadd.xlane.f32.xlu0 %v1250
        %v1531 = vpop.xlane.xlu0 %1530
        %1532 = vadd.xlane.f32.xlu0 %v1251
        %v1533 = vpop.xlane.xlu0 %1532
        %1534 = vadd.xlane.f32.xlu0 %v1252
        %v1535 = vpop.xlane.xlu0 %1534
        %1536 = vadd.xlane.f32.xlu0 %v1253
        %v1537 = vpop.xlane.xlu0 %1536
        %1538 = vadd.xlane.f32.xlu0 %v1254
        %v1539 = vpop.xlane.xlu0 %1538
        %1540 = vadd.xlane.f32.xlu0 %v1255
        %v1541 = vpop.xlane.xlu0 %1540
        %1542 = vadd.xlane.f32.xlu0 %v1256
        %v1543 = vpop.xlane.xlu0 %1542
        %1544 = vadd.xlane.f32.xlu0 %v1257
        %v1545 = vpop.xlane.xlu0 %1544
        %1546 = vadd.xlane.f32.xlu0 %v1258
        %v1547 = vpop.xlane.xlu0 %1546
        %1548 = vadd.xlane.f32.xlu0 %v1259
        %v1549 = vpop.xlane.xlu0 %1548
        %1550 = vadd.xlane.f32.xlu0 %v1260
        %v1551 = vpop.xlane.xlu0 %1550
        %1552 = vadd.xlane.f32.xlu0 %v1261
        %v1553 = vpop.xlane.xlu0 %1552
        %1554 = vadd.xlane.f32.xlu0 %v1262
        %v1555 = vpop.xlane.xlu0 %1554
        %1556 = vadd.xlane.f32.xlu0 %v1263
        %v1557 = vpop.xlane.xlu0 %1556
        %1558 = vadd.xlane.f32.xlu0 %v1264
        %v1559 = vpop.xlane.xlu0 %1558
        %1560 = vadd.xlane.f32.xlu0 %v1265
        %v1561 = vpop.xlane.xlu0 %1560
        %1562 = vadd.xlane.f32.xlu0 %v1266
        %v1563 = vpop.xlane.xlu0 %1562
        %1564 = vadd.xlane.f32.xlu0 %v1267
        %v1565 = vpop.xlane.xlu0 %1564
        %1566 = vadd.xlane.f32.xlu0 %v1268
        %v1567 = vpop.xlane.xlu0 %1566
        %1568 = vadd.xlane.f32.xlu0 %v1269
        %v1569 = vpop.xlane.xlu0 %1568
        %1570 = vadd.xlane.f32.xlu0 %v1270
        %v1571 = vpop.xlane.xlu0 %1570
        %1572 = vadd.xlane.f32.xlu0 %v1271
        %v1573 = vpop.xlane.xlu0 %1572
        %1574 = vadd.xlane.f32.xlu0 %v1272
        %v1575 = vpop.xlane.xlu0 %1574
        %1576 = vadd.xlane.f32.xlu0 %v1273
        %v1577 = vpop.xlane.xlu0 %1576
        %1578 = vadd.xlane.f32.xlu0 %v1274
        %v1579 = vpop.xlane.xlu0 %1578
        %1580 = vadd.xlane.f32.xlu0 %v1275
        %v1581 = vpop.xlane.xlu0 %1580
        %1582 = vadd.xlane.f32.xlu0 %v1276
        %v1583 = vpop.xlane.xlu0 %1582
        %1584 = vadd.xlane.f32.xlu0 %v1277
        %v1585 = vpop.xlane.xlu0 %1584
        %1586 = vadd.xlane.f32.xlu0 %v1278
        %v1587 = vpop.xlane.xlu0 %1586
        %1588 = vadd.xlane.f32.xlu0 %v1279
        %v1589 = vpop.xlane.xlu0 %1588
        %1590 = vadd.xlane.f32.xlu0 %v1280
        %v1591 = vpop.xlane.xlu0 %1590
        %1592 = vadd.xlane.f32.xlu0 %v1281
        %v1593 = vpop.xlane.xlu0 %1592
        %1594 = vadd.xlane.f32.xlu0 %v1282
        %v1595 = vpop.xlane.xlu0 %1594
        %1596 = vadd.xlane.f32.xlu0 %v1283
        %v1597 = vpop.xlane.xlu0 %1596
        %1598 = vadd.xlane.f32.xlu0 %v1284
        %v1599 = vpop.xlane.xlu0 %1598
        %1600 = vadd.xlane.f32.xlu0 %v1285
        %v1601 = vpop.xlane.xlu0 %1600
        %1602 = vadd.xlane.f32.xlu0 %v1286
        %v1603 = vpop.xlane.xlu0 %1602
        %1604 = vadd.xlane.f32.xlu0 %v1287
        %v1605 = vpop.xlane.xlu0 %1604
        %1606 = vadd.xlane.f32.xlu0 %v1288
        %v1607 = vpop.xlane.xlu0 %1606
        %1608 = vadd.xlane.f32.xlu0 %v1289
        %v1609 = vpop.xlane.xlu0 %1608
        %1610 = vadd.xlane.f32.xlu0 %v1290
        %v1611 = vpop.xlane.xlu0 %1610
        %1612 = vadd.xlane.f32.xlu0 %v1291
        %v1613 = vpop.xlane.xlu0 %1612
        %1614 = vadd.xlane.f32.xlu0 %v1292
        %v1615 = vpop.xlane.xlu0 %1614
        %1616 = vadd.xlane.f32.xlu0 %v1293
        %v1617 = vpop.xlane.xlu0 %1616
        %1618 = vadd.xlane.f32.xlu0 %v1294
        %v1619 = vpop.xlane.xlu0 %1618
        %1620 = vadd.xlane.f32.xlu0 %v1295
        %v1621 = vpop.xlane.xlu0 %1620
        %1622 = vadd.xlane.f32.xlu0 %v1296
        %v1623 = vpop.xlane.xlu0 %1622
        %1624 = vadd.xlane.f32.xlu0 %v1297
        %v1625 = vpop.xlane.xlu0 %1624
        %1626 = vadd.xlane.f32.xlu0 %v1298
        %v1627 = vpop.xlane.xlu0 %1626
        %1628 = vadd.xlane.f32.xlu0 %v1299
        %v1629 = vpop.xlane.xlu0 %1628
        %1630 = vadd.xlane.f32.xlu0 %v1300
        %v1631 = vpop.xlane.xlu0 %1630
        %1632 = vadd.xlane.f32.xlu0 %v1301
        %v1633 = vpop.xlane.xlu0 %1632
        %1634 = vadd.xlane.f32.xlu0 %v1302
        %v1635 = vpop.xlane.xlu0 %1634
        %1636 = vadd.xlane.f32.xlu0 %v1303
        %v1637 = vpop.xlane.xlu0 %1636
        %1638 = vadd.xlane.f32.xlu0 %v1304
        %v1639 = vpop.xlane.xlu0 %1638
        %1640 = vadd.xlane.f32.xlu0 %v1305
        %v1641 = vpop.xlane.xlu0 %1640
        %1642 = vadd.xlane.f32.xlu0 %v1306
        %v1643 = vpop.xlane.xlu0 %1642
        %1644 = vadd.xlane.f32.xlu0 %v1307
        %v1645 = vpop.xlane.xlu0 %1644
        %1646 = vadd.xlane.f32.xlu0 %v1308
        %v1647 = vpop.xlane.xlu0 %1646
        %1648 = vadd.xlane.f32.xlu0 %v1309
        %v1649 = vpop.xlane.xlu0 %1648
        %1650 = vadd.xlane.f32.xlu0 %v1310
        %v1651 = vpop.xlane.xlu0 %1650
        %1652 = vadd.xlane.f32.xlu0 %v1311
        %v1653 = vpop.xlane.xlu0 %1652
        %1654 = vadd.xlane.f32.xlu0 %v1312
        %v1655 = vpop.xlane.xlu0 %1654
        %1656 = vadd.xlane.f32.xlu0 %v1313
        %v1657 = vpop.xlane.xlu0 %1656
        %1658 = vadd.xlane.f32.xlu0 %v1314
        %v1659 = vpop.xlane.xlu0 %1658
        %1660 = vadd.xlane.f32.xlu0 %v1315
        %v1661 = vpop.xlane.xlu0 %1660
        %1662 = vadd.xlane.f32.xlu0 %v1316
        %v1663 = vpop.xlane.xlu0 %1662
        %1664 = vadd.xlane.f32.xlu0 %v1317
        %v1665 = vpop.xlane.xlu0 %1664
        %1666 = vadd.xlane.f32.xlu0 %v1318
        %v1667 = vpop.xlane.xlu0 %1666
        %1668 = vadd.xlane.f32.xlu0 %v1319
        %v1669 = vpop.xlane.xlu0 %1668
        %1670 = vadd.xlane.f32.xlu0 %v1320
        %v1671 = vpop.xlane.xlu0 %1670
        %1672 = vadd.xlane.f32.xlu0 %v1321
        %v1673 = vpop.xlane.xlu0 %1672
        %1674 = vadd.xlane.f32.xlu0 %v1322
        %v1675 = vpop.xlane.xlu0 %1674
        %1676 = vadd.xlane.f32.xlu0 %v1323
        %v1677 = vpop.xlane.xlu0 %1676
        %1678 = vadd.xlane.f32.xlu0 %v1324
        %v1679 = vpop.xlane.xlu0 %1678
        %1680 = vadd.xlane.f32.xlu0 %v1325
        %v1681 = vpop.xlane.xlu0 %1680
        %1682 = vadd.xlane.f32.xlu0 %v1326
        %v1683 = vpop.xlane.xlu0 %1682
        %1684 = vadd.xlane.f32.xlu0 %v1327
        %v1685 = vpop.xlane.xlu0 %1684
        %1686 = vadd.xlane.f32.xlu0 %v1328
        %v1687 = vpop.xlane.xlu0 %1686
        %1688 = vadd.xlane.f32.xlu0 %v1329
        %v1689 = vpop.xlane.xlu0 %1688
        %1690 = vadd.xlane.f32.xlu0 %v1330
        %v1691 = vpop.xlane.xlu0 %1690
        %1692 = vadd.xlane.f32.xlu0 %v1331
        %v1693 = vpop.xlane.xlu0 %1692
        %1694 = vadd.xlane.f32.xlu0 %v1332
        %v1695 = vpop.xlane.xlu0 %1694
        %1696 = vadd.xlane.f32.xlu0 %v1333
        %v1697 = vpop.xlane.xlu0 %1696
        %1698 = vadd.xlane.f32.xlu0 %v1334
        %v1699 = vpop.xlane.xlu0 %1698
        %1700 = vadd.xlane.f32.xlu0 %v1335
        %v1701 = vpop.xlane.xlu0 %1700
        %1702 = vadd.xlane.f32.xlu0 %v1336
        %v1703 = vpop.xlane.xlu0 %1702
        %1704 = vadd.xlane.f32.xlu0 %v1337
        %v1705 = vpop.xlane.xlu0 %1704
        %1706 = vadd.xlane.f32.xlu0 %v1338
        %v1707 = vpop.xlane.xlu0 %1706
        %1708 = vadd.xlane.f32.xlu0 %v1339
        %v1709 = vpop.xlane.xlu0 %1708
        %1710 = vadd.xlane.f32.xlu0 %v1340
        %v1711 = vpop.xlane.xlu0 %1710
        %1712 = vadd.xlane.f32.xlu0 %v1341
        %v1713 = vpop.xlane.xlu0 %1712
        %1714 = vadd.xlane.f32.xlu0 %v1342
        %v1715 = vpop.xlane.xlu0 %1714
        %1716 = vadd.xlane.f32.xlu0 %v1343
        %v1717 = vpop.xlane.xlu0 %1716
        %1718 = vadd.xlane.f32.xlu0 %v1344
        %v1719 = vpop.xlane.xlu0 %1718
        %1720 = vadd.xlane.f32.xlu0 %v1345
        %v1721 = vpop.xlane.xlu0 %1720
        %1722 = vadd.xlane.f32.xlu0 %v1346
        %v1723 = vpop.xlane.xlu0 %1722
        %1724 = vadd.xlane.f32.xlu0 %v1347
        %v1725 = vpop.xlane.xlu0 %1724
        %1726 = vadd.xlane.f32.xlu0 %v1348
        %v1727 = vpop.xlane.xlu0 %1726
        %1728 = vadd.xlane.f32.xlu0 %v1349
        %v1729 = vpop.xlane.xlu0 %1728
        %1730 = vadd.xlane.f32.xlu0 %v1350
        %v1731 = vpop.xlane.xlu0 %1730
        %1732 = vadd.xlane.f32.xlu0 %v1351
        %v1733 = vpop.xlane.xlu0 %1732
        %1734 = vadd.xlane.f32.xlu0 %v1352
        %v1735 = vpop.xlane.xlu0 %1734
        %1736 = vadd.xlane.f32.xlu0 %v1353
        %v1737 = vpop.xlane.xlu0 %1736
        %1738 = vadd.xlane.f32.xlu0 %v1354
        %v1739 = vpop.xlane.xlu0 %1738
        %1740 = vadd.xlane.f32.xlu0 %v1355
        %v1741 = vpop.xlane.xlu0 %1740
        %1742 = vadd.xlane.f32.xlu0 %v1356
        %v1743 = vpop.xlane.xlu0 %1742
        %1744 = vadd.xlane.f32.xlu0 %v1357
        %v1745 = vpop.xlane.xlu0 %1744
        %1746 = vadd.xlane.f32.xlu0 %v1358
        %v1747 = vpop.xlane.xlu0 %1746
        %1748 = vadd.xlane.f32.xlu0 %v1359
        %v1749 = vpop.xlane.xlu0 %1748
        %1750 = vadd.xlane.f32.xlu0 %v1360
        %v1751 = vpop.xlane.xlu0 %1750
        %1752 = vadd.xlane.f32.xlu0 %v1361
        %v1753 = vpop.xlane.xlu0 %1752
        %1754 = vadd.xlane.f32.xlu0 %v1362
        %v1755 = vpop.xlane.xlu0 %1754
        %1756 = vadd.xlane.f32.xlu0 %v1363
        %v1757 = vpop.xlane.xlu0 %1756
        %1758 = vadd.xlane.f32.xlu0 %v1364
        %v1759 = vpop.xlane.xlu0 %1758
        %1760 = vadd.xlane.f32.xlu0 %v1365
        %v1761 = vpop.xlane.xlu0 %1760
        %1762 = vadd.xlane.f32.xlu0 %v1366
        %v1763 = vpop.xlane.xlu0 %1762
        %1764 = vadd.xlane.f32.xlu0 %v1367
        %v1765 = vpop.xlane.xlu0 %1764
        %1766 = vadd.xlane.f32.xlu0 %v1368
        %v1767 = vpop.xlane.xlu0 %1766
        %1768 = vadd.xlane.f32.xlu0 %v1369
        %v1769 = vpop.xlane.xlu0 %1768
        %1770 = vadd.xlane.f32.xlu0 %v1370
        %v1771 = vpop.xlane.xlu0 %1770
        %1772 = vadd.xlane.f32.xlu0 %v1371
        %v1773 = vpop.xlane.xlu0 %1772
        %1774 = vadd.xlane.f32.xlu0 %v1372
        %v1775 = vpop.xlane.xlu0 %1774
        %1776 = vadd.xlane.f32.xlu0 %v1373
        %v1777 = vpop.xlane.xlu0 %1776
        %1778 = vadd.xlane.f32.xlu0 %v1374
        %v1779 = vpop.xlane.xlu0 %1778
        %1780 = vadd.xlane.f32.xlu0 %v1375
        %v1781 = vpop.xlane.xlu0 %1780
        %1782 = vadd.xlane.f32.xlu0 %v1376
        %v1783 = vpop.xlane.xlu0 %1782
        %1784 = vadd.xlane.f32.xlu0 %v1377
        %v1785 = vpop.xlane.xlu0 %1784
        %1786 = vadd.xlane.f32.xlu0 %v1378
        %v1787 = vpop.xlane.xlu0 %1786
        %1788 = vadd.xlane.f32.xlu0 %v1379
        %v1789 = vpop.xlane.xlu0 %1788
        %1790 = vadd.xlane.f32.xlu0 %v1380
        %v1791 = vpop.xlane.xlu0 %1790
        %1792 = vadd.xlane.f32.xlu0 %v1381
        %v1793 = vpop.xlane.xlu0 %1792
        %1794 = vadd.xlane.f32.xlu0 %v1382
        %v1795 = vpop.xlane.xlu0 %1794
        %1796 = vadd.xlane.f32.xlu0 %v1383
        %v1797 = vpop.xlane.xlu0 %1796
        %1798 = vadd.xlane.f32.xlu0 %v1384
        %v1799 = vpop.xlane.xlu0 %1798
        %1800 = vadd.xlane.f32.xlu0 %v1385
        %v1801 = vpop.xlane.xlu0 %1800
        %1802 = vadd.xlane.f32.xlu0 %v1386
        %v1803 = vpop.xlane.xlu0 %1802
        %1804 = vadd.xlane.f32.xlu0 %v1387
        %v1805 = vpop.xlane.xlu0 %1804
        %1806 = vadd.xlane.f32.xlu0 %v1388
        %v1807 = vpop.xlane.xlu0 %1806
        %1808 = vadd.xlane.f32.xlu0 %v1389
        %v1809 = vpop.xlane.xlu0 %1808
        %1810 = vadd.xlane.f32.xlu0 %v1390
        %v1811 = vpop.xlane.xlu0 %1810
        %1812 = vadd.xlane.f32.xlu0 %v1391
        %v1813 = vpop.xlane.xlu0 %1812
        %1814 = vadd.xlane.f32.xlu0 %v1392
        %v1815 = vpop.xlane.xlu0 %1814
        %1816 = vadd.xlane.f32.xlu0 %v1393
        %v1817 = vpop.xlane.xlu0 %1816
        %1818 = vadd.xlane.f32.xlu0 %v1394
        %v1819 = vpop.xlane.xlu0 %1818
        %1820 = vadd.xlane.f32.xlu0 %v1395
        %v1821 = vpop.xlane.xlu0 %1820
        %1822 = vadd.xlane.f32.xlu0 %v1396
        %v1823 = vpop.xlane.xlu0 %1822
        %1824 = vadd.xlane.f32.xlu0 %v1397
        %v1825 = vpop.xlane.xlu0 %1824
        %1826 = vadd.xlane.f32.xlu0 %v1398
        %v1827 = vpop.xlane.xlu0 %1826
        %1828 = vadd.xlane.f32.xlu0 %v1399
        %v1829 = vpop.xlane.xlu0 %1828
        %1830 = vadd.xlane.f32.xlu0 %v1400
        %v1831 = vpop.xlane.xlu0 %1830
        %1832 = vadd.xlane.f32.xlu0 %v1401
        %v1833 = vpop.xlane.xlu0 %1832
        %1834 = vadd.xlane.f32.xlu0 %v1402
        %v1835 = vpop.xlane.xlu0 %1834
        %1836 = vadd.xlane.f32.xlu0 %v1403
        %v1837 = vpop.xlane.xlu0 %1836
        %1838 = vadd.xlane.f32.xlu0 %v1404
        %v1839 = vpop.xlane.xlu0 %1838
        %1840 = vadd.xlane.f32.xlu0 %v1405
        %v1841 = vpop.xlane.xlu0 %1840
        %1842 = vadd.xlane.f32.xlu0 %v1406
        %v1843 = vpop.xlane.xlu0 %1842
        %1844 = vadd.xlane.f32.xlu0 %v1407
        %v1845 = vpop.xlane.xlu0 %1844
        %1846 = vadd.xlane.f32.xlu0 %v1408
        %v1847 = vpop.xlane.xlu0 %1846
        %1848 = vadd.xlane.f32.xlu0 %v1409
        %v1849 = vpop.xlane.xlu0 %1848
        %1850 = vadd.xlane.f32.xlu0 %v1410
        %v1851 = vpop.xlane.xlu0 %1850
        %1852 = vadd.xlane.f32.xlu0 %v1411
        %v1853 = vpop.xlane.xlu0 %1852
        %1854 = vadd.xlane.f32.xlu0 %v1412
        %v1855 = vpop.xlane.xlu0 %1854
        %1856 = vadd.xlane.f32.xlu0 %v1413
        %v1857 = vpop.xlane.xlu0 %1856
        %1858 = vadd.xlane.f32.xlu0 %v1414
        %v1859 = vpop.xlane.xlu0 %1858
        %1860 = vadd.xlane.f32.xlu0 %v1415
        %v1861 = vpop.xlane.xlu0 %1860
        %1862 = vadd.xlane.f32.xlu0 %v1416
        %v1863 = vpop.xlane.xlu0 %1862
        %1864 = vadd.xlane.f32.xlu0 %v1417
        %v1865 = vpop.xlane.xlu0 %1864
        %1866 = vadd.xlane.f32.xlu0 %v1418
        %v1867 = vpop.xlane.xlu0 %1866
        %1868 = vadd.xlane.f32.xlu0 %v1419
        %v1869 = vpop.xlane.xlu0 %1868
        %1870 = vadd.xlane.f32.xlu0 %v1420
        %v1871 = vpop.xlane.xlu0 %1870
        %1872 = vadd.xlane.f32.xlu0 %v1421
        %v1873 = vpop.xlane.xlu0 %1872
        %1874 = vadd.xlane.f32.xlu0 %v1422
        %v1875 = vpop.xlane.xlu0 %1874
        %1876 = vadd.xlane.f32.xlu0 %v1423
        %v1877 = vpop.xlane.xlu0 %1876
        %1878 = vadd.xlane.f32.xlu0 %v1424
        %v1879 = vpop.xlane.xlu0 %1878
        %1880 = vadd.xlane.f32.xlu0 %v1425
        %v1881 = vpop.xlane.xlu0 %1880
        %1882 = vadd.xlane.f32.xlu0 %v1426
        %v1883 = vpop.xlane.xlu0 %1882
        %1884 = vadd.xlane.f32.xlu0 %v1427
        %v1885 = vpop.xlane.xlu0 %1884
        %1886 = vadd.xlane.f32.xlu0 %v1428
        %v1887 = vpop.xlane.xlu0 %1886
        %1888 = vadd.xlane.f32.xlu0 %v1429
        %v1889 = vpop.xlane.xlu0 %1888
        %1890 = vadd.xlane.f32.xlu0 %v1430
        %v1891 = vpop.xlane.xlu0 %1890
        %1892 = vadd.xlane.f32.xlu0 %v1431
        %v1893 = vpop.xlane.xlu0 %1892
        %1894 = vadd.xlane.f32.xlu0 %v1432
        %v1895 = vpop.xlane.xlu0 %1894
        %1896 = vadd.xlane.f32.xlu0 %v1433
        %v1897 = vpop.xlane.xlu0 %1896
        %1898 = vadd.xlane.f32.xlu0 %v1434
        %v1899 = vpop.xlane.xlu0 %1898
        %1900 = vadd.xlane.f32.xlu0 %v1435
        %v1901 = vpop.xlane.xlu0 %1900
        %1902 = vadd.xlane.f32.xlu0 %v1436
        %v1903 = vpop.xlane.xlu0 %1902
        %1904 = vadd.xlane.f32.xlu0 %v1437
        %v1905 = vpop.xlane.xlu0 %1904
        %1906 = vadd.xlane.f32.xlu0 %v1438
        %v1907 = vpop.xlane.xlu0 %1906
        %1908 = vadd.xlane.f32.xlu0 %v1439
        %v1909 = vpop.xlane.xlu0 %1908
        %1910 = vadd.xlane.f32.xlu0 %v1440
        %v1911 = vpop.xlane.xlu0 %1910
        %1912 = vadd.xlane.f32.xlu0 %v1441
        %v1913 = vpop.xlane.xlu0 %1912
        %1914 = vadd.xlane.f32.xlu0 %v1442
        %v1915 = vpop.xlane.xlu0 %1914
        %1916 = vadd.xlane.f32.xlu0 %v1443
        %v1917 = vpop.xlane.xlu0 %1916
        %1918 = vadd.xlane.f32.xlu0 %v1444
        %v1919 = vpop.xlane.xlu0 %1918
        %1920 = vadd.xlane.f32.xlu0 %v1445
        %v1921 = vpop.xlane.xlu0 %1920
        %1922 = vadd.xlane.f32.xlu0 %v1446
        %v1923 = vpop.xlane.xlu0 %1922
        %1924 = vadd.xlane.f32.xlu0 %v1447
        %v1925 = vpop.xlane.xlu0 %1924
        %1926 = vadd.xlane.f32.xlu0 %v1448
        %v1927 = vpop.xlane.xlu0 %1926
        %1928 = vadd.xlane.f32.xlu0 %v1449
        %v1929 = vpop.xlane.xlu0 %1928
        %1930 = vadd.xlane.f32.xlu0 %v1450
        %v1931 = vpop.xlane.xlu0 %1930
        %1932 = vadd.xlane.f32.xlu0 %v1451
        %v1933 = vpop.xlane.xlu0 %1932
        %1934 = vadd.xlane.f32.xlu0 %v1452
        %v1935 = vpop.xlane.xlu0 %1934
        %1936 = vadd.xlane.f32.xlu0 %v1453
        %v1937 = vpop.xlane.xlu0 %1936
        %1938 = vadd.xlane.f32.xlu0 %v1454
        %v1939 = vpop.xlane.xlu0 %1938
        %1940 = vadd.xlane.f32.xlu0 %v1455
        %v1941 = vpop.xlane.xlu0 %1940
        %1942 = vadd.xlane.f32.xlu0 %v1456
        %v1943 = vpop.xlane.xlu0 %1942
        %1944 = vadd.xlane.f32.xlu0 %v1457
        %v1945 = vpop.xlane.xlu0 %1944
        %1946 = vadd.xlane.f32.xlu0 %v1458
        %v1947 = vpop.xlane.xlu0 %1946
        %1948 = vadd.xlane.f32.xlu0 %v1459
        %v1949 = vpop.xlane.xlu0 %1948
        %1950 = vadd.xlane.f32.xlu0 %v1460
        %v1951 = vpop.xlane.xlu0 %1950
        %1952 = vadd.xlane.f32.xlu0 %v1461
        %v1953 = vpop.xlane.xlu0 %1952
        %1954 = vadd.xlane.f32.xlu0 %v1462
        %v1955 = vpop.xlane.xlu0 %1954
        %1956 = vadd.xlane.f32.xlu0 %v1463
        %v1957 = vpop.xlane.xlu0 %1956
        %1958 = vadd.xlane.f32.xlu0 %v1464
        %v1959 = vpop.xlane.xlu0 %1958
        %1960 = vadd.xlane.f32.xlu0 %v1465
        %v1961 = vpop.xlane.xlu0 %1960
        %1962 = vadd.xlane.f32.xlu0 %v1466
        %v1963 = vpop.xlane.xlu0 %1962
        %1964 = vadd.xlane.f32.xlu0 %v1467
        %v1965 = vpop.xlane.xlu0 %1964
        %1966 = vadd.xlane.f32.xlu0 %v1468
        %v1967 = vpop.xlane.xlu0 %1966
        %1968 = vadd.xlane.f32.xlu0 %v1469
        %v1969 = vpop.xlane.xlu0 %1968
        %1970 = vadd.xlane.f32.xlu0 %v1470
        %v1971 = vpop.xlane.xlu0 %1970
        %1972 = vadd.xlane.f32.xlu0 %v1471
        %v1973 = vpop.xlane.xlu0 %1972
        %1974 = vadd.xlane.f32.xlu0 %v1472
        %v1975 = vpop.xlane.xlu0 %1974
        %1976 = vadd.xlane.f32.xlu0 %v1473
        %v1977 = vpop.xlane.xlu0 %1976
        %1978 = vadd.xlane.f32.xlu0 %v1474
        %v1979 = vpop.xlane.xlu0 %1978
        %1980 = vadd.xlane.f32.xlu0 %v1475
        %v1981 = vpop.xlane.xlu0 %1980
        %1982 = vadd.xlane.f32.xlu0 %v1476
        %v1983 = vpop.xlane.xlu0 %1982
        %1984 = vadd.xlane.f32.xlu0 %v1477
        %v1985 = vpop.xlane.xlu0 %1984
        %1986 = vadd.xlane.f32.xlu0 %v1478
        %v1987 = vpop.xlane.xlu0 %1986
        %1988 = vadd.xlane.f32.xlu0 %v1479
        %v1989 = vpop.xlane.xlu0 %1988
        %1990 = vadd.xlane.f32.xlu0 %v1480
        %v1991 = vpop.xlane.xlu0 %1990
        %1992 = vadd.xlane.f32.xlu0 %v1481
        %v1993 = vpop.xlane.xlu0 %1992
        %v2250 = vperm.slane %v1483, %v903
        %v2251 = vperm.slane %v1485, %v903
        %v2252 = vperm.slane %v1487, %v903
        %v2253 = vperm.slane %v1489, %v903
        %v2254 = vperm.slane %v1491, %v903
        %v2255 = vperm.slane %v1493, %v903
        %v2256 = vperm.slane %v1495, %v903
        %v2257 = vperm.slane %v1497, %v903
        %v2258 = vperm.slane %v1499, %v903
        %v2259 = vperm.slane %v1501, %v903
        %v2260 = vperm.slane %v1503, %v903
        %v2261 = vperm.slane %v1505, %v903
        %v2262 = vperm.slane %v1507, %v903
        %v2263 = vperm.slane %v1509, %v903
        %v2264 = vperm.slane %v1511, %v903
        %v2265 = vperm.slane %v1513, %v903
        %v2266 = vperm.slane %v1515, %v903
        %v2267 = vperm.slane %v1517, %v903
        %v2268 = vperm.slane %v1519, %v903
        %v2269 = vperm.slane %v1521, %v903
        %v2270 = vperm.slane %v1523, %v903
        %v2271 = vperm.slane %v1525, %v903
        %v2272 = vperm.slane %v1527, %v903
        %v2273 = vperm.slane %v1529, %v903
        %v2274 = vperm.slane %v1531, %v903
        %v2275 = vperm.slane %v1533, %v903
        %v2276 = vperm.slane %v1535, %v903
        %v2277 = vperm.slane %v1537, %v903
        %v2278 = vperm.slane %v1539, %v903
        %v2279 = vperm.slane %v1541, %v903
        %v2280 = vperm.slane %v1543, %v903
        %v2281 = vperm.slane %v1545, %v903
        %v2282 = vperm.slane %v1547, %v903
        %v2283 = vperm.slane %v1549, %v903
        %v2284 = vperm.slane %v1551, %v903
        %v2285 = vperm.slane %v1553, %v903
        %v2286 = vperm.slane %v1555, %v903
        %v2287 = vperm.slane %v1557, %v903
        %v2288 = vperm.slane %v1559, %v903
        %v2289 = vperm.slane %v1561, %v903
        %v2290 = vperm.slane %v1563, %v903
        %v2291 = vperm.slane %v1565, %v903
        %v2292 = vperm.slane %v1567, %v903
        %v2293 = vperm.slane %v1569, %v903
        %v2294 = vperm.slane %v1571, %v903
        %v2295 = vperm.slane %v1573, %v903
        %v2296 = vperm.slane %v1575, %v903
        %v2297 = vperm.slane %v1577, %v903
        %v2298 = vperm.slane %v1579, %v903
        %v2299 = vperm.slane %v1581, %v903
        %v2300 = vperm.slane %v1583, %v903
        %v2301 = vperm.slane %v1585, %v903
        %v2302 = vperm.slane %v1587, %v903
        %v2303 = vperm.slane %v1589, %v903
        %v2304 = vperm.slane %v1591, %v903
        %v2305 = vperm.slane %v1593, %v903
        %v2306 = vperm.slane %v1595, %v903
        %v2307 = vperm.slane %v1597, %v903
        %v2308 = vperm.slane %v1599, %v903
        %v2309 = vperm.slane %v1601, %v903
        %v2310 = vperm.slane %v1603, %v903
        %v2311 = vperm.slane %v1605, %v903
        %v2312 = vperm.slane %v1607, %v903
        %v2313 = vperm.slane %v1609, %v903
        %v2314 = vperm.slane %v1611, %v903
        %v2315 = vperm.slane %v1613, %v903
        %v2316 = vperm.slane %v1615, %v903
        %v2317 = vperm.slane %v1617, %v903
        %v2318 = vperm.slane %v1619, %v903
        %v2319 = vperm.slane %v1621, %v903
        %v2320 = vperm.slane %v1623, %v903
        %v2321 = vperm.slane %v1625, %v903
        %v2322 = vperm.slane %v1627, %v903
        %v2323 = vperm.slane %v1629, %v903
        %v2324 = vperm.slane %v1631, %v903
        %v2325 = vperm.slane %v1633, %v903
        %v2326 = vperm.slane %v1635, %v903
        %v2327 = vperm.slane %v1637, %v903
        %v2328 = vperm.slane %v1639, %v903
        %v2329 = vperm.slane %v1641, %v903
        %v2330 = vperm.slane %v1643, %v903
        %v2331 = vperm.slane %v1645, %v903
        %v2332 = vperm.slane %v1647, %v903
        %v2333 = vperm.slane %v1649, %v903
        %v2334 = vperm.slane %v1651, %v903
        %v2335 = vperm.slane %v1653, %v903
        %v2336 = vperm.slane %v1655, %v903
        %v2337 = vperm.slane %v1657, %v903
        %v2338 = vperm.slane %v1659, %v903
        %v2339 = vperm.slane %v1661, %v903
        %v2340 = vperm.slane %v1663, %v903
        %v2341 = vperm.slane %v1665, %v903
        %v2342 = vperm.slane %v1667, %v903
        %v2343 = vperm.slane %v1669, %v903
        %v2344 = vperm.slane %v1671, %v903
        %v2345 = vperm.slane %v1673, %v903
        %v2346 = vperm.slane %v1675, %v903
        %v2347 = vperm.slane %v1677, %v903
        %v2348 = vperm.slane %v1679, %v903
        %v2349 = vperm.slane %v1681, %v903
        %v2350 = vperm.slane %v1683, %v903
        %v2351 = vperm.slane %v1685, %v903
        %v2352 = vperm.slane %v1687, %v903
        %v2353 = vperm.slane %v1689, %v903
        %v2354 = vperm.slane %v1691, %v903
        %v2355 = vperm.slane %v1693, %v903
        %v2356 = vperm.slane %v1695, %v903
        %v2357 = vperm.slane %v1697, %v903
        %v2358 = vperm.slane %v1699, %v903
        %v2359 = vperm.slane %v1701, %v903
        %v2360 = vperm.slane %v1703, %v903
        %v2361 = vperm.slane %v1705, %v903
        %v2362 = vperm.slane %v1707, %v903
        %v2363 = vperm.slane %v1709, %v903
        %v2364 = vperm.slane %v1711, %v903
        %v2365 = vperm.slane %v1713, %v903
        %v2366 = vperm.slane %v1715, %v903
        %v2367 = vperm.slane %v1717, %v903
        %v2368 = vperm.slane %v1719, %v903
        %v2369 = vperm.slane %v1721, %v903
        %v2370 = vperm.slane %v1723, %v903
        %v2371 = vperm.slane %v1725, %v903
        %v2372 = vperm.slane %v1727, %v903
        %v2373 = vperm.slane %v1729, %v903
        %v2374 = vperm.slane %v1731, %v903
        %v2375 = vperm.slane %v1733, %v903
        %v2376 = vperm.slane %v1735, %v903
        %v2377 = vperm.slane %v1737, %v903
        %v2378 = vperm.slane %v1739, %v903
        %v2379 = vperm.slane %v1741, %v903
        %v2380 = vperm.slane %v1743, %v903
        %v2381 = vperm.slane %v1745, %v903
        %v2382 = vperm.slane %v1747, %v903
        %v2383 = vperm.slane %v1749, %v903
        %v2384 = vperm.slane %v1751, %v903
        %v2385 = vperm.slane %v1753, %v903
        %v2386 = vperm.slane %v1755, %v903
        %v2387 = vperm.slane %v1757, %v903
        %v2388 = vperm.slane %v1759, %v903
        %v2389 = vperm.slane %v1761, %v903
        %v2390 = vperm.slane %v1763, %v903
        %v2391 = vperm.slane %v1765, %v903
        %v2392 = vperm.slane %v1767, %v903
        %v2393 = vperm.slane %v1769, %v903
        %v2394 = vperm.slane %v1771, %v903
        %v2395 = vperm.slane %v1773, %v903
        %v2396 = vperm.slane %v1775, %v903
        %v2397 = vperm.slane %v1777, %v903
        %v2398 = vperm.slane %v1779, %v903
        %v2399 = vperm.slane %v1781, %v903
        %v2400 = vperm.slane %v1783, %v903
        %v2401 = vperm.slane %v1785, %v903
        %v2402 = vperm.slane %v1787, %v903
        %v2403 = vperm.slane %v1789, %v903
        %v2404 = vperm.slane %v1791, %v903
        %v2405 = vperm.slane %v1793, %v903
        %v2406 = vperm.slane %v1795, %v903
        %v2407 = vperm.slane %v1797, %v903
        %v2408 = vperm.slane %v1799, %v903
        %v2409 = vperm.slane %v1801, %v903
        %v2410 = vperm.slane %v1803, %v903
        %v2411 = vperm.slane %v1805, %v903
        %v2412 = vperm.slane %v1807, %v903
        %v2413 = vperm.slane %v1809, %v903
        %v2414 = vperm.slane %v1811, %v903
        %v2415 = vperm.slane %v1813, %v903
        %v2416 = vperm.slane %v1815, %v903
        %v2417 = vperm.slane %v1817, %v903
        %v2418 = vperm.slane %v1819, %v903
        %v2419 = vperm.slane %v1821, %v903
        %v2420 = vperm.slane %v1823, %v903
        %v2421 = vperm.slane %v1825, %v903
        %v2422 = vperm.slane %v1827, %v903
        %v2423 = vperm.slane %v1829, %v903
        %v2424 = vperm.slane %v1831, %v903
        %v2425 = vperm.slane %v1833, %v903
        %v2426 = vperm.slane %v1835, %v903
        %v2427 = vperm.slane %v1837, %v903
        %v2428 = vperm.slane %v1839, %v903
        %v2429 = vperm.slane %v1841, %v903
        %v2430 = vperm.slane %v1843, %v903
        %v2431 = vperm.slane %v1845, %v903
        %v2432 = vperm.slane %v1847, %v903
        %v2433 = vperm.slane %v1849, %v903
        %v2434 = vperm.slane %v1851, %v903
        %v2435 = vperm.slane %v1853, %v903
        %v2436 = vperm.slane %v1855, %v903
        %v2437 = vperm.slane %v1857, %v903
        %v2438 = vperm.slane %v1859, %v903
        %v2439 = vperm.slane %v1861, %v903
        %v2440 = vperm.slane %v1863, %v903
        %v2441 = vperm.slane %v1865, %v903
        %v2442 = vperm.slane %v1867, %v903
        %v2443 = vperm.slane %v1869, %v903
        %v2444 = vperm.slane %v1871, %v903
        %v2445 = vperm.slane %v1873, %v903
        %v2446 = vperm.slane %v1875, %v903
        %v2447 = vperm.slane %v1877, %v903
        %v2448 = vperm.slane %v1879, %v903
        %v2449 = vperm.slane %v1881, %v903
        %v2450 = vperm.slane %v1883, %v903
        %v2451 = vperm.slane %v1885, %v903
        %v2452 = vperm.slane %v1887, %v903
        %v2453 = vperm.slane %v1889, %v903
        %v2454 = vperm.slane %v1891, %v903
        %v2455 = vperm.slane %v1893, %v903
        %v2456 = vperm.slane %v1895, %v903
        %v2457 = vperm.slane %v1897, %v903
        %v2458 = vperm.slane %v1899, %v903
        %v2459 = vperm.slane %v1901, %v903
        %v2460 = vperm.slane %v1903, %v903
        %v2461 = vperm.slane %v1905, %v903
        %v2462 = vperm.slane %v1907, %v903
        %v2463 = vperm.slane %v1909, %v903
        %v2464 = vperm.slane %v1911, %v903
        %v2465 = vperm.slane %v1913, %v903
        %v2466 = vperm.slane %v1915, %v903
        %v2467 = vperm.slane %v1917, %v903
        %v2468 = vperm.slane %v1919, %v903
        %v2469 = vperm.slane %v1921, %v903
        %v2470 = vperm.slane %v1923, %v903
        %v2471 = vperm.slane %v1925, %v903
        %v2472 = vperm.slane %v1927, %v903
        %v2473 = vperm.slane %v1929, %v903
        %v2474 = vperm.slane %v1931, %v903
        %v2475 = vperm.slane %v1933, %v903
        %v2476 = vperm.slane %v1935, %v903
        %v2477 = vperm.slane %v1937, %v903
        %v2478 = vperm.slane %v1939, %v903
        %v2479 = vperm.slane %v1941, %v903
        %v2480 = vperm.slane %v1943, %v903
        %v2481 = vperm.slane %v1945, %v903
        %v2482 = vperm.slane %v1947, %v903
        %v2483 = vperm.slane %v1949, %v903
        %v2484 = vperm.slane %v1951, %v903
        %v2485 = vperm.slane %v1953, %v903
        %v2486 = vperm.slane %v1955, %v903
        %v2487 = vperm.slane %v1957, %v903
        %v2488 = vperm.slane %v1959, %v903
        %v2489 = vperm.slane %v1961, %v903
        %v2490 = vperm.slane %v1963, %v903
        %v2491 = vperm.slane %v1965, %v903
        %v2492 = vperm.slane %v1967, %v903
        %v2493 = vperm.slane %v1969, %v903
        %v2494 = vperm.slane %v1971, %v903
        %v2495 = vperm.slane %v1973, %v903
        %v2496 = vperm.slane %v1975, %v903
        %v2497 = vperm.slane %v1977, %v903
        %v2498 = vperm.slane %v1979, %v903
        %v2499 = vperm.slane %v1981, %v903
        %v2500 = vperm.slane %v1983, %v903
        %v2501 = vperm.slane %v1985, %v903
        %v2502 = vperm.slane %v1987, %v903
        %v2503 = vperm.slane %v1989, %v903
        %v2504 = vperm.slane %v1991, %v903
        %v2505 = vperm.slane %v1993, %v903
        %vm2506 = vcmask 1041409
        %v2507 = vsel %vm2506, %v2251, %v2250
        %vm2508 = vcmask 1042434
        %v2509 = vsel %vm2508, %v2252, %v2507
        %vm2510 = vcmask 1043459
        %v2511 = vsel %vm2510, %v2253, %v2509
        %vm2512 = vcmask 1044484
        %v2513 = vsel %vm2512, %v2254, %v2511
        %vm2514 = vcmask 1045509
        %v2515 = vsel %vm2514, %v2255, %v2513
        %vm2516 = vcmask 1046534
        %v2517 = vsel %vm2516, %v2256, %v2515
        %vm2518 = vcmask 1047559
        %v2519 = vsel %vm2518, %v2257, %v2517
        %v2520 = vsel %vm2506, %v2259, %v2258
        %v2521 = vsel %vm2508, %v2260, %v2520
        %v2522 = vsel %vm2510, %v2261, %v2521
        %v2523 = vsel %vm2512, %v2262, %v2522
        %v2524 = vsel %vm2514, %v2263, %v2523
        %v2525 = vsel %vm2516, %v2264, %v2524
        %v2526 = vsel %vm2518, %v2265, %v2525
        %v2527 = vsel %vm2506, %v2267, %v2266
        %v2528 = vsel %vm2508, %v2268, %v2527
        %v2529 = vsel %vm2510, %v2269, %v2528
        %v2530 = vsel %vm2512, %v2270, %v2529
        %v2531 = vsel %vm2514, %v2271, %v2530
        %v2532 = vsel %vm2516, %v2272, %v2531
        %v2533 = vsel %vm2518, %v2273, %v2532
        %v2534 = vsel %vm2506, %v2275, %v2274
        %v2535 = vsel %vm2508, %v2276, %v2534
        %v2536 = vsel %vm2510, %v2277, %v2535
        %v2537 = vsel %vm2512, %v2278, %v2536
        %v2538 = vsel %vm2514, %v2279, %v2537
        %v2539 = vsel %vm2516, %v2280, %v2538
        %v2540 = vsel %vm2518, %v2281, %v2539
        %v2541 = vsel %vm2506, %v2283, %v2282
        %v2542 = vsel %vm2508, %v2284, %v2541
        %v2543 = vsel %vm2510, %v2285, %v2542
        %v2544 = vsel %vm2512, %v2286, %v2543
        %v2545 = vsel %vm2514, %v2287, %v2544
        %v2546 = vsel %vm2516, %v2288, %v2545
        %v2547 = vsel %vm2518, %v2289, %v2546
        %v2548 = vsel %vm2506, %v2291, %v2290
        %v2549 = vsel %vm2508, %v2292, %v2548
        %v2550 = vsel %vm2510, %v2293, %v2549
        %v2551 = vsel %vm2512, %v2294, %v2550
        %v2552 = vsel %vm2514, %v2295, %v2551
        %v2553 = vsel %vm2516, %v2296, %v2552
        %v2554 = vsel %vm2518, %v2297, %v2553
        %v2555 = vsel %vm2506, %v2299, %v2298
        %v2556 = vsel %vm2508, %v2300, %v2555
        %v2557 = vsel %vm2510, %v2301, %v2556
        %v2558 = vsel %vm2512, %v2302, %v2557
        %v2559 = vsel %vm2514, %v2303, %v2558
        %v2560 = vsel %vm2516, %v2304, %v2559
        %v2561 = vsel %vm2518, %v2305, %v2560
        %v2562 = vsel %vm2506, %v2307, %v2306
        %v2563 = vsel %vm2508, %v2308, %v2562
        %v2564 = vsel %vm2510, %v2309, %v2563
        %v2565 = vsel %vm2512, %v2310, %v2564
        %v2566 = vsel %vm2514, %v2311, %v2565
        %v2567 = vsel %vm2516, %v2312, %v2566
        %v2568 = vsel %vm2518, %v2313, %v2567
        %v2569 = vsel %vm2506, %v2315, %v2314
        %v2570 = vsel %vm2508, %v2316, %v2569
        %v2571 = vsel %vm2510, %v2317, %v2570
        %v2572 = vsel %vm2512, %v2318, %v2571
        %v2573 = vsel %vm2514, %v2319, %v2572
        %v2574 = vsel %vm2516, %v2320, %v2573
        %v2575 = vsel %vm2518, %v2321, %v2574
        %v2576 = vsel %vm2506, %v2323, %v2322
        %v2577 = vsel %vm2508, %v2324, %v2576
        %v2578 = vsel %vm2510, %v2325, %v2577
        %v2579 = vsel %vm2512, %v2326, %v2578
        %v2580 = vsel %vm2514, %v2327, %v2579
        %v2581 = vsel %vm2516, %v2328, %v2580
        %v2582 = vsel %vm2518, %v2329, %v2581
        %v2583 = vsel %vm2506, %v2331, %v2330
        %v2584 = vsel %vm2508, %v2332, %v2583
        %v2585 = vsel %vm2510, %v2333, %v2584
        %v2586 = vsel %vm2512, %v2334, %v2585
        %v2587 = vsel %vm2514, %v2335, %v2586
        %v2588 = vsel %vm2516, %v2336, %v2587
        %v2589 = vsel %vm2518, %v2337, %v2588
        %v2590 = vsel %vm2506, %v2339, %v2338
        %v2591 = vsel %vm2508, %v2340, %v2590
        %v2592 = vsel %vm2510, %v2341, %v2591
        %v2593 = vsel %vm2512, %v2342, %v2592
        %v2594 = vsel %vm2514, %v2343, %v2593
        %v2595 = vsel %vm2516, %v2344, %v2594
        %v2596 = vsel %vm2518, %v2345, %v2595
        %v2597 = vsel %vm2506, %v2347, %v2346
        %v2598 = vsel %vm2508, %v2348, %v2597
        %v2599 = vsel %vm2510, %v2349, %v2598
        %v2600 = vsel %vm2512, %v2350, %v2599
        %v2601 = vsel %vm2514, %v2351, %v2600
        %v2602 = vsel %vm2516, %v2352, %v2601
        %v2603 = vsel %vm2518, %v2353, %v2602
        %v2604 = vsel %vm2506, %v2355, %v2354
        %v2605 = vsel %vm2508, %v2356, %v2604
        %v2606 = vsel %vm2510, %v2357, %v2605
        %v2607 = vsel %vm2512, %v2358, %v2606
        %v2608 = vsel %vm2514, %v2359, %v2607
        %v2609 = vsel %vm2516, %v2360, %v2608
        %v2610 = vsel %vm2518, %v2361, %v2609
        %v2611 = vsel %vm2506, %v2363, %v2362
        %v2612 = vsel %vm2508, %v2364, %v2611
        %v2613 = vsel %vm2510, %v2365, %v2612
        %v2614 = vsel %vm2512, %v2366, %v2613
        %v2615 = vsel %vm2514, %v2367, %v2614
        %v2616 = vsel %vm2516, %v2368, %v2615
        %v2617 = vsel %vm2518, %v2369, %v2616
        %v2618 = vsel %vm2506, %v2371, %v2370
        %v2619 = vsel %vm2508, %v2372, %v2618
        %v2620 = vsel %vm2510, %v2373, %v2619
        %v2621 = vsel %vm2512, %v2374, %v2620
        %v2622 = vsel %vm2514, %v2375, %v2621
        %v2623 = vsel %vm2516, %v2376, %v2622
        %v2624 = vsel %vm2518, %v2377, %v2623
        %v2625 = vsel %vm2506, %v2379, %v2378
        %v2626 = vsel %vm2508, %v2380, %v2625
        %v2627 = vsel %vm2510, %v2381, %v2626
        %v2628 = vsel %vm2512, %v2382, %v2627
        %v2629 = vsel %vm2514, %v2383, %v2628
        %v2630 = vsel %vm2516, %v2384, %v2629
        %v2631 = vsel %vm2518, %v2385, %v2630
        %v2632 = vsel %vm2506, %v2387, %v2386
        %v2633 = vsel %vm2508, %v2388, %v2632
        %v2634 = vsel %vm2510, %v2389, %v2633
        %v2635 = vsel %vm2512, %v2390, %v2634
        %v2636 = vsel %vm2514, %v2391, %v2635
        %v2637 = vsel %vm2516, %v2392, %v2636
        %v2638 = vsel %vm2518, %v2393, %v2637
        %v2639 = vsel %vm2506, %v2395, %v2394
        %v2640 = vsel %vm2508, %v2396, %v2639
        %v2641 = vsel %vm2510, %v2397, %v2640
        %v2642 = vsel %vm2512, %v2398, %v2641
        %v2643 = vsel %vm2514, %v2399, %v2642
        %v2644 = vsel %vm2516, %v2400, %v2643
        %v2645 = vsel %vm2518, %v2401, %v2644
        %v2646 = vsel %vm2506, %v2403, %v2402
        %v2647 = vsel %vm2508, %v2404, %v2646
        %v2648 = vsel %vm2510, %v2405, %v2647
        %v2649 = vsel %vm2512, %v2406, %v2648
        %v2650 = vsel %vm2514, %v2407, %v2649
        %v2651 = vsel %vm2516, %v2408, %v2650
        %v2652 = vsel %vm2518, %v2409, %v2651
        %v2653 = vsel %vm2506, %v2411, %v2410
        %v2654 = vsel %vm2508, %v2412, %v2653
        %v2655 = vsel %vm2510, %v2413, %v2654
        %v2656 = vsel %vm2512, %v2414, %v2655
        %v2657 = vsel %vm2514, %v2415, %v2656
        %v2658 = vsel %vm2516, %v2416, %v2657
        %v2659 = vsel %vm2518, %v2417, %v2658
        %v2660 = vsel %vm2506, %v2419, %v2418
        %v2661 = vsel %vm2508, %v2420, %v2660
        %v2662 = vsel %vm2510, %v2421, %v2661
        %v2663 = vsel %vm2512, %v2422, %v2662
        %v2664 = vsel %vm2514, %v2423, %v2663
        %v2665 = vsel %vm2516, %v2424, %v2664
        %v2666 = vsel %vm2518, %v2425, %v2665
        %v2667 = vsel %vm2506, %v2427, %v2426
        %v2668 = vsel %vm2508, %v2428, %v2667
        %v2669 = vsel %vm2510, %v2429, %v2668
        %v2670 = vsel %vm2512, %v2430, %v2669
        %v2671 = vsel %vm2514, %v2431, %v2670
        %v2672 = vsel %vm2516, %v2432, %v2671
        %v2673 = vsel %vm2518, %v2433, %v2672
        %v2674 = vsel %vm2506, %v2435, %v2434
        %v2675 = vsel %vm2508, %v2436, %v2674
        %v2676 = vsel %vm2510, %v2437, %v2675
        %v2677 = vsel %vm2512, %v2438, %v2676
        %v2678 = vsel %vm2514, %v2439, %v2677
        %v2679 = vsel %vm2516, %v2440, %v2678
        %v2680 = vsel %vm2518, %v2441, %v2679
        %v2681 = vsel %vm2506, %v2443, %v2442
        %v2682 = vsel %vm2508, %v2444, %v2681
        %v2683 = vsel %vm2510, %v2445, %v2682
        %v2684 = vsel %vm2512, %v2446, %v2683
        %v2685 = vsel %vm2514, %v2447, %v2684
        %v2686 = vsel %vm2516, %v2448, %v2685
        %v2687 = vsel %vm2518, %v2449, %v2686
        %v2688 = vsel %vm2506, %v2451, %v2450
        %v2689 = vsel %vm2508, %v2452, %v2688
        %v2690 = vsel %vm2510, %v2453, %v2689
        %v2691 = vsel %vm2512, %v2454, %v2690
        %v2692 = vsel %vm2514, %v2455, %v2691
        %v2693 = vsel %vm2516, %v2456, %v2692
        %v2694 = vsel %vm2518, %v2457, %v2693
        %v2695 = vsel %vm2506, %v2459, %v2458
        %v2696 = vsel %vm2508, %v2460, %v2695
        %v2697 = vsel %vm2510, %v2461, %v2696
        %v2698 = vsel %vm2512, %v2462, %v2697
        %v2699 = vsel %vm2514, %v2463, %v2698
        %v2700 = vsel %vm2516, %v2464, %v2699
        %v2701 = vsel %vm2518, %v2465, %v2700
        %v2702 = vsel %vm2506, %v2467, %v2466
        %v2703 = vsel %vm2508, %v2468, %v2702
        %v2704 = vsel %vm2510, %v2469, %v2703
        %v2705 = vsel %vm2512, %v2470, %v2704
        %v2706 = vsel %vm2514, %v2471, %v2705
        %v2707 = vsel %vm2516, %v2472, %v2706
        %v2708 = vsel %vm2518, %v2473, %v2707
        %v2709 = vsel %vm2506, %v2475, %v2474
        %v2710 = vsel %vm2508, %v2476, %v2709
        %v2711 = vsel %vm2510, %v2477, %v2710
        %v2712 = vsel %vm2512, %v2478, %v2711
        %v2713 = vsel %vm2514, %v2479, %v2712
        %v2714 = vsel %vm2516, %v2480, %v2713
        %v2715 = vsel %vm2518, %v2481, %v2714
        %v2716 = vsel %vm2506, %v2483, %v2482
        %v2717 = vsel %vm2508, %v2484, %v2716
        %v2718 = vsel %vm2510, %v2485, %v2717
        %v2719 = vsel %vm2512, %v2486, %v2718
        %v2720 = vsel %vm2514, %v2487, %v2719
        %v2721 = vsel %vm2516, %v2488, %v2720
        %v2722 = vsel %vm2518, %v2489, %v2721
        %v2723 = vsel %vm2506, %v2491, %v2490
        %v2724 = vsel %vm2508, %v2492, %v2723
        %v2725 = vsel %vm2510, %v2493, %v2724
        %v2726 = vsel %vm2512, %v2494, %v2725
        %v2727 = vsel %vm2514, %v2495, %v2726
        %v2728 = vsel %vm2516, %v2496, %v2727
        %v2729 = vsel %vm2518, %v2497, %v2728
        %v2730 = vsel %vm2506, %v2499, %v2498
        %v2731 = vsel %vm2508, %v2500, %v2730
        %v2732 = vsel %vm2510, %v2501, %v2731
        %v2733 = vsel %vm2512, %v2502, %v2732
        %v2734 = vsel %vm2514, %v2503, %v2733
        %v2735 = vsel %vm2516, %v2504, %v2734
        %v2736 = vsel %vm2518, %v2505, %v2735
        %v2769 = vadd.f32 %v1162, %v2519
        %v2770 = vadd.f32 %v1164, %v2526
        %v2771 = vadd.f32 %v1166, %v2533
        %v2772 = vadd.f32 %v1168, %v2540
        %v2773 = vadd.f32 %v1170, %v2547
        %v2774 = vadd.f32 %v1172, %v2554
        %v2775 = vadd.f32 %v1174, %v2561
        %v2776 = vadd.f32 %v1176, %v2568
        %v2777 = vadd.f32 %v1178, %v2575
        %v2778 = vadd.f32 %v1180, %v2582
        %v2779 = vadd.f32 %v1182, %v2589
        %v2780 = vadd.f32 %v1184, %v2596
        %v2781 = vadd.f32 %v1186, %v2603
        %v2782 = vadd.f32 %v1188, %v2610
        %v2783 = vadd.f32 %v1190, %v2617
        %v2784 = vadd.f32 %v1192, %v2624
        %v2785 = vadd.f32 %v1194, %v2631
        %v2786 = vadd.f32 %v1196, %v2638
        %v2787 = vadd.f32 %v1198, %v2645
        %v2788 = vadd.f32 %v1200, %v2652
        %v2789 = vadd.f32 %v1202, %v2659
        %v2790 = vadd.f32 %v1204, %v2666
        %v2791 = vadd.f32 %v1206, %v2673
        %v2792 = vadd.f32 %v1208, %v2680
        %v2793 = vadd.f32 %v1210, %v2687
        %v2794 = vadd.f32 %v1212, %v2694
        %v2795 = vadd.f32 %v1214, %v2701
        %v2796 = vadd.f32 %v1216, %v2708
        %v2797 = vadd.f32 %v1218, %v2715
        %v2798 = vadd.f32 %v1220, %v2722
        %v2799 = vadd.f32 %v1222, %v2729
        %v2800 = vadd.f32 %v1224, %v2736
        %v2802 = vrot.slane %v898, 4
        %s2803 = vtos %v2802
        %v2804 = vstv %s2803
        %v2806 = vadd.f32 %v2769, %v2804
        %v2807 = vadd.f32 %v2770, %v2804
        %v2808 = vadd.f32 %v2771, %v2804
        %v2809 = vadd.f32 %v2772, %v2804
        %v2810 = vadd.f32 %v2773, %v2804
        %v2811 = vadd.f32 %v2774, %v2804
        %v2812 = vadd.f32 %v2775, %v2804
        %v2813 = vadd.f32 %v2776, %v2804
        %v2814 = vadd.f32 %v2777, %v2804
        %v2815 = vadd.f32 %v2778, %v2804
        %v2816 = vadd.f32 %v2779, %v2804
        %v2817 = vadd.f32 %v2780, %v2804
        %v2818 = vadd.f32 %v2781, %v2804
        %v2819 = vadd.f32 %v2782, %v2804
        %v2820 = vadd.f32 %v2783, %v2804
        %v2821 = vadd.f32 %v2784, %v2804
        %v2822 = vadd.f32 %v2785, %v2804
        %v2823 = vadd.f32 %v2786, %v2804
        %v2824 = vadd.f32 %v2787, %v2804
        %v2825 = vadd.f32 %v2788, %v2804
        %v2826 = vadd.f32 %v2789, %v2804
        %v2827 = vadd.f32 %v2790, %v2804
        %v2828 = vadd.f32 %v2791, %v2804
        %v2829 = vadd.f32 %v2792, %v2804
        %v2830 = vadd.f32 %v2793, %v2804
        %v2831 = vadd.f32 %v2794, %v2804
        %v2832 = vadd.f32 %v2795, %v2804
        %v2833 = vadd.f32 %v2796, %v2804
        %v2834 = vadd.f32 %v2797, %v2804
        %v2835 = vadd.f32 %v2798, %v2804
        %v2836 = vadd.f32 %v2799, %v2804
        %v2837 = vadd.f32 %v2800, %v2804
        %vm2838 = vcmp.ge.f32.partialorder %v2806, 0.0
        %vm2839 = vcmp.ge.f32.partialorder %v2807, 0.0
        %vm2840 = vcmp.ge.f32.partialorder %v2808, 0.0
        %vm2841 = vcmp.ge.f32.partialorder %v2809, 0.0
        %vm2842 = vcmp.ge.f32.partialorder %v2810, 0.0
        %vm2843 = vcmp.ge.f32.partialorder %v2811, 0.0
        %vm2844 = vcmp.ge.f32.partialorder %v2812, 0.0
        %vm2845 = vcmp.ge.f32.partialorder %v2813, 0.0
        %vm2846 = vcmp.ge.f32.partialorder %v2814, 0.0
        %vm2847 = vcmp.ge.f32.partialorder %v2815, 0.0
        %vm2848 = vcmp.ge.f32.partialorder %v2816, 0.0
        %vm2849 = vcmp.ge.f32.partialorder %v2817, 0.0
        %vm2850 = vcmp.ge.f32.partialorder %v2818, 0.0
        %vm2851 = vcmp.ge.f32.partialorder %v2819, 0.0
        %vm2852 = vcmp.ge.f32.partialorder %v2820, 0.0
        %vm2853 = vcmp.ge.f32.partialorder %v2821, 0.0
        %vm2854 = vcmp.ge.f32.partialorder %v2822, 0.0
        %vm2855 = vcmp.ge.f32.partialorder %v2823, 0.0
        %vm2856 = vcmp.ge.f32.partialorder %v2824, 0.0
        %vm2857 = vcmp.ge.f32.partialorder %v2825, 0.0
        %vm2858 = vcmp.ge.f32.partialorder %v2826, 0.0
        %vm2859 = vcmp.ge.f32.partialorder %v2827, 0.0
        %vm2860 = vcmp.ge.f32.partialorder %v2828, 0.0
        %vm2861 = vcmp.ge.f32.partialorder %v2829, 0.0
        %vm2862 = vcmp.ge.f32.partialorder %v2830, 0.0
        %vm2863 = vcmp.ge.f32.partialorder %v2831, 0.0
        %vm2864 = vcmp.ge.f32.partialorder %v2832, 0.0
        %vm2865 = vcmp.ge.f32.partialorder %v2833, 0.0
        %vm2866 = vcmp.ge.f32.partialorder %v2834, 0.0
        %vm2867 = vcmp.ge.f32.partialorder %v2835, 0.0
        %vm2868 = vcmp.ge.f32.partialorder %v2836, 0.0
        %vm2869 = vcmp.ge.f32.partialorder %v2837, 0.0
        %v2870 = vmul.f32 %v2806, 0.01
        %v2871 = vmul.f32 %v2807, 0.01
        %v2872 = vmul.f32 %v2808, 0.01
        %v2873 = vmul.f32 %v2809, 0.01
        %v2874 = vmul.f32 %v2810, 0.01
        %v2875 = vmul.f32 %v2811, 0.01
        %v2876 = vmul.f32 %v2812, 0.01
        %v2877 = vmul.f32 %v2813, 0.01
        %v2878 = vmul.f32 %v2814, 0.01
        %v2879 = vmul.f32 %v2815, 0.01
        %v2880 = vmul.f32 %v2816, 0.01
        %v2881 = vmul.f32 %v2817, 0.01
        %v2882 = vmul.f32 %v2818, 0.01
        %v2883 = vmul.f32 %v2819, 0.01
        %v2884 = vmul.f32 %v2820, 0.01
        %v2885 = vmul.f32 %v2821, 0.01
        %v2886 = vmul.f32 %v2822, 0.01
        %v2887 = vmul.f32 %v2823, 0.01
        %v2888 = vmul.f32 %v2824, 0.01
        %v2889 = vmul.f32 %v2825, 0.01
        %v2890 = vmul.f32 %v2826, 0.01
        %v2891 = vmul.f32 %v2827, 0.01
        %v2892 = vmul.f32 %v2828, 0.01
        %v2893 = vmul.f32 %v2829, 0.01
        %v2894 = vmul.f32 %v2830, 0.01
        %v2895 = vmul.f32 %v2831, 0.01
        %v2896 = vmul.f32 %v2832, 0.01
        %v2897 = vmul.f32 %v2833, 0.01
        %v2898 = vmul.f32 %v2834, 0.01
        %v2899 = vmul.f32 %v2835, 0.01
        %v2900 = vmul.f32 %v2836, 0.01
        %v2901 = vmul.f32 %v2837, 0.01
        %v2902 = vsel %vm2838, %v2806, %v2870
        %v2903 = vsel %vm2839, %v2807, %v2871
        %v2904 = vsel %vm2840, %v2808, %v2872
        %v2905 = vsel %vm2841, %v2809, %v2873
        %v2906 = vsel %vm2842, %v2810, %v2874
        %v2907 = vsel %vm2843, %v2811, %v2875
        %v2908 = vsel %vm2844, %v2812, %v2876
        %v2909 = vsel %vm2845, %v2813, %v2877
        %v2910 = vsel %vm2846, %v2814, %v2878
        %v2911 = vsel %vm2847, %v2815, %v2879
        %v2912 = vsel %vm2848, %v2816, %v2880
        %v2913 = vsel %vm2849, %v2817, %v2881
        %v2914 = vsel %vm2850, %v2818, %v2882
        %v2915 = vsel %vm2851, %v2819, %v2883
        %v2916 = vsel %vm2852, %v2820, %v2884
        %v2917 = vsel %vm2853, %v2821, %v2885
        %v2918 = vsel %vm2854, %v2822, %v2886
        %v2919 = vsel %vm2855, %v2823, %v2887
        %v2920 = vsel %vm2856, %v2824, %v2888
        %v2921 = vsel %vm2857, %v2825, %v2889
        %v2922 = vsel %vm2858, %v2826, %v2890
        %v2923 = vsel %vm2859, %v2827, %v2891
        %v2924 = vsel %vm2860, %v2828, %v2892
        %v2925 = vsel %vm2861, %v2829, %v2893
        %v2926 = vsel %vm2862, %v2830, %v2894
        %v2927 = vsel %vm2863, %v2831, %v2895
        %v2928 = vsel %vm2864, %v2832, %v2896
        %v2929 = vsel %vm2865, %v2833, %v2897
        %v2930 = vsel %vm2866, %v2834, %v2898
        %v2931 = vsel %vm2867, %v2835, %v2899
        %v2932 = vsel %vm2868, %v2836, %v2900
        %v2933 = vsel %vm2869, %v2837, %v2901
        %v2934 = vsel %vm1000, %v2902, -1e+30
        %v2935 = vsel %vm1001, %v2903, -1e+30
        %v2936 = vsel %vm1002, %v2904, -1e+30
        %v2937 = vsel %vm1003, %v2905, -1e+30
        %v2938 = vsel %vm1004, %v2906, -1e+30
        %v2939 = vsel %vm1005, %v2907, -1e+30
        %v2940 = vsel %vm1006, %v2908, -1e+30
        %v2941 = vsel %vm1007, %v2909, -1e+30
        %v2942 = vsel %vm1008, %v2910, -1e+30
        %v2943 = vsel %vm1009, %v2911, -1e+30
        %v2944 = vsel %vm1010, %v2912, -1e+30
        %v2945 = vsel %vm1011, %v2913, -1e+30
        %v2946 = vsel %vm1012, %v2914, -1e+30
        %v2947 = vsel %vm1013, %v2915, -1e+30
        %v2948 = vsel %vm1014, %v2916, -1e+30
        %v2949 = vsel %vm1015, %v2917, -1e+30
        %v2950 = vsel %vm1016, %v2918, -1e+30
        %v2951 = vsel %vm1017, %v2919, -1e+30
        %v2952 = vsel %vm1018, %v2920, -1e+30
        %v2953 = vsel %vm1019, %v2921, -1e+30
        %v2954 = vsel %vm1020, %v2922, -1e+30
        %v2955 = vsel %vm1021, %v2923, -1e+30
        %v2956 = vsel %vm1022, %v2924, -1e+30
        %v2957 = vsel %vm1023, %v2925, -1e+30
        %v2958 = vsel %vm1024, %v2926, -1e+30
        %v2959 = vsel %vm1025, %v2927, -1e+30
        %v2960 = vsel %vm1026, %v2928, -1e+30
        %v2961 = vsel %vm1027, %v2929, -1e+30
        %v2962 = vsel %vm1028, %v2930, -1e+30
        %v2963 = vsel %vm1029, %v2931, -1e+30
        %v2964 = vsel %vm1030, %v2932, -1e+30
        %v2965 = vsel %vm1031, %v2933, -1e+30
        %vm2966 = vcmask 64512
        %v2967 = vsel %vm2966, %v2934, -inf
        %2968 = vmax.xlane.f32.xlu0 %v2967
        %v2969 = vpop.xlane.xlu0 %2968
        %v2970 = vsel %vm2966, %v2935, -inf
        %2971 = vmax.xlane.f32.xlu0 %v2970
        %v2972 = vpop.xlane.xlu0 %2971
        %v2973 = vsel %vm2966, %v2936, -inf
        %2974 = vmax.xlane.f32.xlu0 %v2973
        %v2975 = vpop.xlane.xlu0 %2974
        %v2976 = vsel %vm2966, %v2937, -inf
        %2977 = vmax.xlane.f32.xlu0 %v2976
        %v2978 = vpop.xlane.xlu0 %2977
        %v2979 = vsel %vm2966, %v2938, -inf
        %2980 = vmax.xlane.f32.xlu0 %v2979
        %v2981 = vpop.xlane.xlu0 %2980
        %v2982 = vsel %vm2966, %v2939, -inf
        %2983 = vmax.xlane.f32.xlu0 %v2982
        %v2984 = vpop.xlane.xlu0 %2983
        %v2985 = vsel %vm2966, %v2940, -inf
        %2986 = vmax.xlane.f32.xlu0 %v2985
        %v2987 = vpop.xlane.xlu0 %2986
        %v2988 = vsel %vm2966, %v2941, -inf
        %2989 = vmax.xlane.f32.xlu0 %v2988
        %v2990 = vpop.xlane.xlu0 %2989
        %v2991 = vsel %vm2966, %v2942, -inf
        %2992 = vmax.xlane.f32.xlu0 %v2991
        %v2993 = vpop.xlane.xlu0 %2992
        %v2994 = vsel %vm2966, %v2943, -inf
        %2995 = vmax.xlane.f32.xlu0 %v2994
        %v2996 = vpop.xlane.xlu0 %2995
        %v2997 = vsel %vm2966, %v2944, -inf
        %2998 = vmax.xlane.f32.xlu0 %v2997
        %v2999 = vpop.xlane.xlu0 %2998
        %v3000 = vsel %vm2966, %v2945, -inf
        %3001 = vmax.xlane.f32.xlu0 %v3000
        %v3002 = vpop.xlane.xlu0 %3001
        %v3003 = vsel %vm2966, %v2946, -inf
        %3004 = vmax.xlane.f32.xlu0 %v3003
        %v3005 = vpop.xlane.xlu0 %3004
        %v3006 = vsel %vm2966, %v2947, -inf
        %3007 = vmax.xlane.f32.xlu0 %v3006
        %v3008 = vpop.xlane.xlu0 %3007
        %v3009 = vsel %vm2966, %v2948, -inf
        %3010 = vmax.xlane.f32.xlu0 %v3009
        %v3011 = vpop.xlane.xlu0 %3010
        %v3012 = vsel %vm2966, %v2949, -inf
        %3013 = vmax.xlane.f32.xlu0 %v3012
        %v3014 = vpop.xlane.xlu0 %3013
        %v3015 = vsel %vm2966, %v2950, -inf
        %3016 = vmax.xlane.f32.xlu0 %v3015
        %v3017 = vpop.xlane.xlu0 %3016
        %v3018 = vsel %vm2966, %v2951, -inf
        %3019 = vmax.xlane.f32.xlu0 %v3018
        %v3020 = vpop.xlane.xlu0 %3019
        %v3021 = vsel %vm2966, %v2952, -inf
        %3022 = vmax.xlane.f32.xlu0 %v3021
        %v3023 = vpop.xlane.xlu0 %3022
        %v3024 = vsel %vm2966, %v2953, -inf
        %3025 = vmax.xlane.f32.xlu0 %v3024
        %v3026 = vpop.xlane.xlu0 %3025
        %v3027 = vsel %vm2966, %v2954, -inf
        %3028 = vmax.xlane.f32.xlu0 %v3027
        %v3029 = vpop.xlane.xlu0 %3028
        %v3030 = vsel %vm2966, %v2955, -inf
        %3031 = vmax.xlane.f32.xlu0 %v3030
        %v3032 = vpop.xlane.xlu0 %3031
        %v3033 = vsel %vm2966, %v2956, -inf
        %3034 = vmax.xlane.f32.xlu0 %v3033
        %v3035 = vpop.xlane.xlu0 %3034
        %v3036 = vsel %vm2966, %v2957, -inf
        %3037 = vmax.xlane.f32.xlu0 %v3036
        %v3038 = vpop.xlane.xlu0 %3037
        %v3039 = vsel %vm2966, %v2958, -inf
        %3040 = vmax.xlane.f32.xlu0 %v3039
        %v3041 = vpop.xlane.xlu0 %3040
        %v3042 = vsel %vm2966, %v2959, -inf
        %3043 = vmax.xlane.f32.xlu0 %v3042
        %v3044 = vpop.xlane.xlu0 %3043
        %v3045 = vsel %vm2966, %v2960, -inf
        %3046 = vmax.xlane.f32.xlu0 %v3045
        %v3047 = vpop.xlane.xlu0 %3046
        %v3048 = vsel %vm2966, %v2961, -inf
        %3049 = vmax.xlane.f32.xlu0 %v3048
        %v3050 = vpop.xlane.xlu0 %3049
        %v3051 = vsel %vm2966, %v2962, -inf
        %3052 = vmax.xlane.f32.xlu0 %v3051
        %v3053 = vpop.xlane.xlu0 %3052
        %v3054 = vsel %vm2966, %v2963, -inf
        %3055 = vmax.xlane.f32.xlu0 %v3054
        %v3056 = vpop.xlane.xlu0 %3055
        %v3057 = vsel %vm2966, %v2964, -inf
        %3058 = vmax.xlane.f32.xlu0 %v3057
        %v3059 = vpop.xlane.xlu0 %3058
        %v3060 = vsel %vm2966, %v2965, -inf
        %3061 = vmax.xlane.f32.xlu0 %v3060
        %v3062 = vpop.xlane.xlu0 %3061
        %v3063 = vsub.f32 %v2934, %v2969
        %v3064 = vsub.f32 %v2935, %v2972
        %v3065 = vsub.f32 %v2936, %v2975
        %v3066 = vsub.f32 %v2937, %v2978
        %v3067 = vsub.f32 %v2938, %v2981
        %v3068 = vsub.f32 %v2939, %v2984
        %v3069 = vsub.f32 %v2940, %v2987
        %v3070 = vsub.f32 %v2941, %v2990
        %v3071 = vsub.f32 %v2942, %v2993
        %v3072 = vsub.f32 %v2943, %v2996
        %v3073 = vsub.f32 %v2944, %v2999
        %v3074 = vsub.f32 %v2945, %v3002
        %v3075 = vsub.f32 %v2946, %v3005
        %v3076 = vsub.f32 %v2947, %v3008
        %v3077 = vsub.f32 %v2948, %v3011
        %v3078 = vsub.f32 %v2949, %v3014
        %v3079 = vsub.f32 %v2950, %v3017
        %v3080 = vsub.f32 %v2951, %v3020
        %v3081 = vsub.f32 %v2952, %v3023
        %v3082 = vsub.f32 %v2953, %v3026
        %v3083 = vsub.f32 %v2954, %v3029
        %v3084 = vsub.f32 %v2955, %v3032
        %v3085 = vsub.f32 %v2956, %v3035
        %v3086 = vsub.f32 %v2957, %v3038
        %v3087 = vsub.f32 %v2958, %v3041
        %v3088 = vsub.f32 %v2959, %v3044
        %v3089 = vsub.f32 %v2960, %v3047
        %v3090 = vsub.f32 %v2961, %v3050
        %v3091 = vsub.f32 %v2962, %v3053
        %v3092 = vsub.f32 %v2963, %v3056
        %v3093 = vsub.f32 %v2964, %v3059
        %v3094 = vsub.f32 %v2965, %v3062
        %v3095 = vmul.f32 %v3063, 1.442695
        %v3096 = vpow.pop %v3095
        %v3097 = vmul.f32 %v3064, 1.442695
        %v3098 = vpow.pop %v3097
        %v3099 = vmul.f32 %v3065, 1.442695
        %v3100 = vpow.pop %v3099
        %v3101 = vmul.f32 %v3066, 1.442695
        %v3102 = vpow.pop %v3101
        %v3103 = vmul.f32 %v3067, 1.442695
        %v3104 = vpow.pop %v3103
        %v3105 = vmul.f32 %v3068, 1.442695
        %v3106 = vpow.pop %v3105
        %v3107 = vmul.f32 %v3069, 1.442695
        %v3108 = vpow.pop %v3107
        %v3109 = vmul.f32 %v3070, 1.442695
        %v3110 = vpow.pop %v3109
        %v3111 = vmul.f32 %v3071, 1.442695
        %v3112 = vpow.pop %v3111
        %v3113 = vmul.f32 %v3072, 1.442695
        %v3114 = vpow.pop %v3113
        %v3115 = vmul.f32 %v3073, 1.442695
        %v3116 = vpow.pop %v3115
        %v3117 = vmul.f32 %v3074, 1.442695
        %v3118 = vpow.pop %v3117
        %v3119 = vmul.f32 %v3075, 1.442695
        %v3120 = vpow.pop %v3119
        %v3121 = vmul.f32 %v3076, 1.442695
        %v3122 = vpow.pop %v3121
        %v3123 = vmul.f32 %v3077, 1.442695
        %v3124 = vpow.pop %v3123
        %v3125 = vmul.f32 %v3078, 1.442695
        %v3126 = vpow.pop %v3125
        %v3127 = vmul.f32 %v3079, 1.442695
        %v3128 = vpow.pop %v3127
        %v3129 = vmul.f32 %v3080, 1.442695
        %v3130 = vpow.pop %v3129
        %v3131 = vmul.f32 %v3081, 1.442695
        %v3132 = vpow.pop %v3131
        %v3133 = vmul.f32 %v3082, 1.442695
        %v3134 = vpow.pop %v3133
        %v3135 = vmul.f32 %v3083, 1.442695
        %v3136 = vpow.pop %v3135
        %v3137 = vmul.f32 %v3084, 1.442695
        %v3138 = vpow.pop %v3137
        %v3139 = vmul.f32 %v3085, 1.442695
        %v3140 = vpow.pop %v3139
        %v3141 = vmul.f32 %v3086, 1.442695
        %v3142 = vpow.pop %v3141
        %v3143 = vmul.f32 %v3087, 1.442695
        %v3144 = vpow.pop %v3143
        %v3145 = vmul.f32 %v3088, 1.442695
        %v3146 = vpow.pop %v3145
        %v3147 = vmul.f32 %v3089, 1.442695
        %v3148 = vpow.pop %v3147
        %v3149 = vmul.f32 %v3090, 1.442695
        %v3150 = vpow.pop %v3149
        %v3151 = vmul.f32 %v3091, 1.442695
        %v3152 = vpow.pop %v3151
        %v3153 = vmul.f32 %v3092, 1.442695
        %v3154 = vpow.pop %v3153
        %v3155 = vmul.f32 %v3093, 1.442695
        %v3156 = vpow.pop %v3155
        %v3157 = vmul.f32 %v3094, 1.442695
        %v3158 = vpow.pop %v3157
        %v3159 = vmul.f32 %v3096, %v1064
        %v3160 = vmul.f32 %v3098, %v1065
        %v3161 = vmul.f32 %v3100, %v1066
        %v3162 = vmul.f32 %v3102, %v1067
        %v3163 = vmul.f32 %v3104, %v1068
        %v3164 = vmul.f32 %v3106, %v1069
        %v3165 = vmul.f32 %v3108, %v1070
        %v3166 = vmul.f32 %v3110, %v1071
        %v3167 = vmul.f32 %v3112, %v1072
        %v3168 = vmul.f32 %v3114, %v1073
        %v3169 = vmul.f32 %v3116, %v1074
        %v3170 = vmul.f32 %v3118, %v1075
        %v3171 = vmul.f32 %v3120, %v1076
        %v3172 = vmul.f32 %v3122, %v1077
        %v3173 = vmul.f32 %v3124, %v1078
        %v3174 = vmul.f32 %v3126, %v1079
        %v3175 = vmul.f32 %v3128, %v1080
        %v3176 = vmul.f32 %v3130, %v1081
        %v3177 = vmul.f32 %v3132, %v1082
        %v3178 = vmul.f32 %v3134, %v1083
        %v3179 = vmul.f32 %v3136, %v1084
        %v3180 = vmul.f32 %v3138, %v1085
        %v3181 = vmul.f32 %v3140, %v1086
        %v3182 = vmul.f32 %v3142, %v1087
        %v3183 = vmul.f32 %v3144, %v1088
        %v3184 = vmul.f32 %v3146, %v1089
        %v3185 = vmul.f32 %v3148, %v1090
        %v3186 = vmul.f32 %v3150, %v1091
        %v3187 = vmul.f32 %v3152, %v1092
        %v3188 = vmul.f32 %v3154, %v1093
        %v3189 = vmul.f32 %v3156, %v1094
        %v3190 = vmul.f32 %v3158, %v1095
        %v3191 = vsel %vm2966, %v3159, 0.0
        %3192 = vadd.xlane.f32.xlu0 %v3191
        %v3193 = vpop.xlane.xlu0 %3192
        %v3194 = vsel %vm2966, %v3160, 0.0
        %3195 = vadd.xlane.f32.xlu0 %v3194
        %v3196 = vpop.xlane.xlu0 %3195
        %v3197 = vsel %vm2966, %v3161, 0.0
        %3198 = vadd.xlane.f32.xlu0 %v3197
        %v3199 = vpop.xlane.xlu0 %3198
        %v3200 = vsel %vm2966, %v3162, 0.0
        %3201 = vadd.xlane.f32.xlu0 %v3200
        %v3202 = vpop.xlane.xlu0 %3201
        %v3203 = vsel %vm2966, %v3163, 0.0
        %3204 = vadd.xlane.f32.xlu0 %v3203
        %v3205 = vpop.xlane.xlu0 %3204
        %v3206 = vsel %vm2966, %v3164, 0.0
        %3207 = vadd.xlane.f32.xlu0 %v3206
        %v3208 = vpop.xlane.xlu0 %3207
        %v3209 = vsel %vm2966, %v3165, 0.0
        %3210 = vadd.xlane.f32.xlu0 %v3209
        %v3211 = vpop.xlane.xlu0 %3210
        %v3212 = vsel %vm2966, %v3166, 0.0
        %3213 = vadd.xlane.f32.xlu0 %v3212
        %v3214 = vpop.xlane.xlu0 %3213
        %v3215 = vsel %vm2966, %v3167, 0.0
        %3216 = vadd.xlane.f32.xlu0 %v3215
        %v3217 = vpop.xlane.xlu0 %3216
        %v3218 = vsel %vm2966, %v3168, 0.0
        %3219 = vadd.xlane.f32.xlu0 %v3218
        %v3220 = vpop.xlane.xlu0 %3219
        %v3221 = vsel %vm2966, %v3169, 0.0
        %3222 = vadd.xlane.f32.xlu0 %v3221
        %v3223 = vpop.xlane.xlu0 %3222
        %v3224 = vsel %vm2966, %v3170, 0.0
        %3225 = vadd.xlane.f32.xlu0 %v3224
        %v3226 = vpop.xlane.xlu0 %3225
        %v3227 = vsel %vm2966, %v3171, 0.0
        %3228 = vadd.xlane.f32.xlu0 %v3227
        %v3229 = vpop.xlane.xlu0 %3228
        %v3230 = vsel %vm2966, %v3172, 0.0
        %3231 = vadd.xlane.f32.xlu0 %v3230
        %v3232 = vpop.xlane.xlu0 %3231
        %v3233 = vsel %vm2966, %v3173, 0.0
        %3234 = vadd.xlane.f32.xlu0 %v3233
        %v3235 = vpop.xlane.xlu0 %3234
        %v3236 = vsel %vm2966, %v3174, 0.0
        %3237 = vadd.xlane.f32.xlu0 %v3236
        %v3238 = vpop.xlane.xlu0 %3237
        %v3239 = vsel %vm2966, %v3175, 0.0
        %3240 = vadd.xlane.f32.xlu0 %v3239
        %v3241 = vpop.xlane.xlu0 %3240
        %v3242 = vsel %vm2966, %v3176, 0.0
        %3243 = vadd.xlane.f32.xlu0 %v3242
        %v3244 = vpop.xlane.xlu0 %3243
        %v3245 = vsel %vm2966, %v3177, 0.0
        %3246 = vadd.xlane.f32.xlu0 %v3245
        %v3247 = vpop.xlane.xlu0 %3246
        %v3248 = vsel %vm2966, %v3178, 0.0
        %3249 = vadd.xlane.f32.xlu0 %v3248
        %v3250 = vpop.xlane.xlu0 %3249
        %v3251 = vsel %vm2966, %v3179, 0.0
        %3252 = vadd.xlane.f32.xlu0 %v3251
        %v3253 = vpop.xlane.xlu0 %3252
        %v3254 = vsel %vm2966, %v3180, 0.0
        %3255 = vadd.xlane.f32.xlu0 %v3254
        %v3256 = vpop.xlane.xlu0 %3255
        %v3257 = vsel %vm2966, %v3181, 0.0
        %3258 = vadd.xlane.f32.xlu0 %v3257
        %v3259 = vpop.xlane.xlu0 %3258
        %v3260 = vsel %vm2966, %v3182, 0.0
        %3261 = vadd.xlane.f32.xlu0 %v3260
        %v3262 = vpop.xlane.xlu0 %3261
        %v3263 = vsel %vm2966, %v3183, 0.0
        %3264 = vadd.xlane.f32.xlu0 %v3263
        %v3265 = vpop.xlane.xlu0 %3264
        %v3266 = vsel %vm2966, %v3184, 0.0
        %3267 = vadd.xlane.f32.xlu0 %v3266
        %v3268 = vpop.xlane.xlu0 %3267
        %v3269 = vsel %vm2966, %v3185, 0.0
        %3270 = vadd.xlane.f32.xlu0 %v3269
        %v3271 = vpop.xlane.xlu0 %3270
        %v3272 = vsel %vm2966, %v3186, 0.0
        %3273 = vadd.xlane.f32.xlu0 %v3272
        %v3274 = vpop.xlane.xlu0 %3273
        %v3275 = vsel %vm2966, %v3187, 0.0
        %3276 = vadd.xlane.f32.xlu0 %v3275
        %v3277 = vpop.xlane.xlu0 %3276
        %v3278 = vsel %vm2966, %v3188, 0.0
        %3279 = vadd.xlane.f32.xlu0 %v3278
        %v3280 = vpop.xlane.xlu0 %3279
        %v3281 = vsel %vm2966, %v3189, 0.0
        %3282 = vadd.xlane.f32.xlu0 %v3281
        %v3283 = vpop.xlane.xlu0 %3282
        %v3284 = vsel %vm2966, %v3190, 0.0
        %3285 = vadd.xlane.f32.xlu0 %v3284
        %v3286 = vpop.xlane.xlu0 %3285
        %v3287 = vmax.f32 %v3193, 1e-30
        %v3288 = vmax.f32 %v3196, 1e-30
        %v3289 = vmax.f32 %v3199, 1e-30
        %v3290 = vmax.f32 %v3202, 1e-30
        %v3291 = vmax.f32 %v3205, 1e-30
        %v3292 = vmax.f32 %v3208, 1e-30
        %v3293 = vmax.f32 %v3211, 1e-30
        %v3294 = vmax.f32 %v3214, 1e-30
        %v3295 = vmax.f32 %v3217, 1e-30
        %v3296 = vmax.f32 %v3220, 1e-30
        %v3297 = vmax.f32 %v3223, 1e-30
        %v3298 = vmax.f32 %v3226, 1e-30
        %v3299 = vmax.f32 %v3229, 1e-30
        %v3300 = vmax.f32 %v3232, 1e-30
        %v3301 = vmax.f32 %v3235, 1e-30
        %v3302 = vmax.f32 %v3238, 1e-30
        %v3303 = vmax.f32 %v3241, 1e-30
        %v3304 = vmax.f32 %v3244, 1e-30
        %v3305 = vmax.f32 %v3247, 1e-30
        %v3306 = vmax.f32 %v3250, 1e-30
        %v3307 = vmax.f32 %v3253, 1e-30
        %v3308 = vmax.f32 %v3256, 1e-30
        %v3309 = vmax.f32 %v3259, 1e-30
        %v3310 = vmax.f32 %v3262, 1e-30
        %v3311 = vmax.f32 %v3265, 1e-30
        %v3312 = vmax.f32 %v3268, 1e-30
        %v3313 = vmax.f32 %v3271, 1e-30
        %v3314 = vmax.f32 %v3274, 1e-30
        %v3315 = vmax.f32 %v3277, 1e-30
        %v3316 = vmax.f32 %v3280, 1e-30
        %v3317 = vmax.f32 %v3283, 1e-30
        %v3318 = vmax.f32 %v3286, 1e-30
        %v3319 = vrcp.pop %v3287
        %v3320 = vrcp.pop %v3288
        %v3321 = vrcp.pop %v3289
        %v3322 = vrcp.pop %v3290
        %v3323 = vrcp.pop %v3291
        %v3324 = vrcp.pop %v3292
        %v3325 = vrcp.pop %v3293
        %v3326 = vrcp.pop %v3294
        %v3327 = vrcp.pop %v3295
        %v3328 = vrcp.pop %v3296
        %v3329 = vrcp.pop %v3297
        %v3330 = vrcp.pop %v3298
        %v3331 = vrcp.pop %v3299
        %v3332 = vrcp.pop %v3300
        %v3333 = vrcp.pop %v3301
        %v3334 = vrcp.pop %v3302
        %v3335 = vrcp.pop %v3303
        %v3336 = vrcp.pop %v3304
        %v3337 = vrcp.pop %v3305
        %v3338 = vrcp.pop %v3306
        %v3339 = vrcp.pop %v3307
        %v3340 = vrcp.pop %v3308
        %v3341 = vrcp.pop %v3309
        %v3342 = vrcp.pop %v3310
        %v3343 = vrcp.pop %v3311
        %v3344 = vrcp.pop %v3312
        %v3345 = vrcp.pop %v3313
        %v3346 = vrcp.pop %v3314
        %v3347 = vrcp.pop %v3315
        %v3348 = vrcp.pop %v3316
        %v3349 = vrcp.pop %v3317
        %v3350 = vrcp.pop %v3318
        %v3351 = vmul.f32 %v3159, %v3319
        %v3352 = vmul.f32 %v3160, %v3320
        %v3353 = vmul.f32 %v3161, %v3321
        %v3354 = vmul.f32 %v3162, %v3322
        %v3355 = vmul.f32 %v3163, %v3323
        %v3356 = vmul.f32 %v3164, %v3324
        %v3357 = vmul.f32 %v3165, %v3325
        %v3358 = vmul.f32 %v3166, %v3326
        %v3359 = vmul.f32 %v3167, %v3327
        %v3360 = vmul.f32 %v3168, %v3328
        %v3361 = vmul.f32 %v3169, %v3329
        %v3362 = vmul.f32 %v3170, %v3330
        %v3363 = vmul.f32 %v3171, %v3331
        %v3364 = vmul.f32 %v3172, %v3332
        %v3365 = vmul.f32 %v3173, %v3333
        %v3366 = vmul.f32 %v3174, %v3334
        %v3367 = vmul.f32 %v3175, %v3335
        %v3368 = vmul.f32 %v3176, %v3336
        %v3369 = vmul.f32 %v3177, %v3337
        %v3370 = vmul.f32 %v3178, %v3338
        %v3371 = vmul.f32 %v3179, %v3339
        %v3372 = vmul.f32 %v3180, %v3340
        %v3373 = vmul.f32 %v3181, %v3341
        %v3374 = vmul.f32 %v3182, %v3342
        %v3375 = vmul.f32 %v3183, %v3343
        %v3376 = vmul.f32 %v3184, %v3344
        %v3377 = vmul.f32 %v3185, %v3345
        %v3378 = vmul.f32 %v3186, %v3346
        %v3379 = vmul.f32 %v3187, %v3347
        %v3380 = vmul.f32 %v3188, %v3348
        %v3381 = vmul.f32 %v3189, %v3349
        %v3382 = vmul.f32 %v3190, %v3350
        %v3383 = vsel %vm2966, %v3351, 0.0
        %3384 = vadd.xlane.f32.xlu0 %v3383
        %v3385 = vpop.xlane.xlu0 %3384
        %v3386 = vsel %vm2966, %v3352, 0.0
        %3387 = vadd.xlane.f32.xlu0 %v3386
        %v3388 = vpop.xlane.xlu0 %3387
        %v3389 = vsel %vm2966, %v3353, 0.0
        %3390 = vadd.xlane.f32.xlu0 %v3389
        %v3391 = vpop.xlane.xlu0 %3390
        %v3392 = vsel %vm2966, %v3354, 0.0
        %3393 = vadd.xlane.f32.xlu0 %v3392
        %v3394 = vpop.xlane.xlu0 %3393
        %v3395 = vsel %vm2966, %v3355, 0.0
        %3396 = vadd.xlane.f32.xlu0 %v3395
        %v3397 = vpop.xlane.xlu0 %3396
        %v3398 = vsel %vm2966, %v3356, 0.0
        %3399 = vadd.xlane.f32.xlu0 %v3398
        %v3400 = vpop.xlane.xlu0 %3399
        %v3401 = vsel %vm2966, %v3357, 0.0
        %3402 = vadd.xlane.f32.xlu0 %v3401
        %v3403 = vpop.xlane.xlu0 %3402
        %v3404 = vsel %vm2966, %v3358, 0.0
        %3405 = vadd.xlane.f32.xlu0 %v3404
        %v3406 = vpop.xlane.xlu0 %3405
        %v3407 = vsel %vm2966, %v3359, 0.0
        %3408 = vadd.xlane.f32.xlu0 %v3407
        %v3409 = vpop.xlane.xlu0 %3408
        %v3410 = vsel %vm2966, %v3360, 0.0
        %3411 = vadd.xlane.f32.xlu0 %v3410
        %v3412 = vpop.xlane.xlu0 %3411
        %v3413 = vsel %vm2966, %v3361, 0.0
        %3414 = vadd.xlane.f32.xlu0 %v3413
        %v3415 = vpop.xlane.xlu0 %3414
        %v3416 = vsel %vm2966, %v3362, 0.0
        %3417 = vadd.xlane.f32.xlu0 %v3416
        %v3418 = vpop.xlane.xlu0 %3417
        %v3419 = vsel %vm2966, %v3363, 0.0
        %3420 = vadd.xlane.f32.xlu0 %v3419
        %v3421 = vpop.xlane.xlu0 %3420
        %v3422 = vsel %vm2966, %v3364, 0.0
        %3423 = vadd.xlane.f32.xlu0 %v3422
        %v3424 = vpop.xlane.xlu0 %3423
        %v3425 = vsel %vm2966, %v3365, 0.0
        %3426 = vadd.xlane.f32.xlu0 %v3425
        %v3427 = vpop.xlane.xlu0 %3426
        %v3428 = vsel %vm2966, %v3366, 0.0
        %3429 = vadd.xlane.f32.xlu0 %v3428
        %v3430 = vpop.xlane.xlu0 %3429
        %v3431 = vsel %vm2966, %v3367, 0.0
        %3432 = vadd.xlane.f32.xlu0 %v3431
        %v3433 = vpop.xlane.xlu0 %3432
        %v3434 = vsel %vm2966, %v3368, 0.0
        %3435 = vadd.xlane.f32.xlu0 %v3434
        %v3436 = vpop.xlane.xlu0 %3435
        %v3437 = vsel %vm2966, %v3369, 0.0
        %3438 = vadd.xlane.f32.xlu0 %v3437
        %v3439 = vpop.xlane.xlu0 %3438
        %v3440 = vsel %vm2966, %v3370, 0.0
        %3441 = vadd.xlane.f32.xlu0 %v3440
        %v3442 = vpop.xlane.xlu0 %3441
        %v3443 = vsel %vm2966, %v3371, 0.0
        %3444 = vadd.xlane.f32.xlu0 %v3443
        %v3445 = vpop.xlane.xlu0 %3444
        %v3446 = vsel %vm2966, %v3372, 0.0
        %3447 = vadd.xlane.f32.xlu0 %v3446
        %v3448 = vpop.xlane.xlu0 %3447
        %v3449 = vsel %vm2966, %v3373, 0.0
        %3450 = vadd.xlane.f32.xlu0 %v3449
        %v3451 = vpop.xlane.xlu0 %3450
        %v3452 = vsel %vm2966, %v3374, 0.0
        %3453 = vadd.xlane.f32.xlu0 %v3452
        %v3454 = vpop.xlane.xlu0 %3453
        %v3455 = vsel %vm2966, %v3375, 0.0
        %3456 = vadd.xlane.f32.xlu0 %v3455
        %v3457 = vpop.xlane.xlu0 %3456
        %v3458 = vsel %vm2966, %v3376, 0.0
        %3459 = vadd.xlane.f32.xlu0 %v3458
        %v3460 = vpop.xlane.xlu0 %3459
        %v3461 = vsel %vm2966, %v3377, 0.0
        %3462 = vadd.xlane.f32.xlu0 %v3461
        %v3463 = vpop.xlane.xlu0 %3462
        %v3464 = vsel %vm2966, %v3378, 0.0
        %3465 = vadd.xlane.f32.xlu0 %v3464
        %v3466 = vpop.xlane.xlu0 %3465
        %v3467 = vsel %vm2966, %v3379, 0.0
        %3468 = vadd.xlane.f32.xlu0 %v3467
        %v3469 = vpop.xlane.xlu0 %3468
        %v3470 = vsel %vm2966, %v3380, 0.0
        %3471 = vadd.xlane.f32.xlu0 %v3470
        %v3472 = vpop.xlane.xlu0 %3471
        %v3473 = vsel %vm2966, %v3381, 0.0
        %3474 = vadd.xlane.f32.xlu0 %v3473
        %v3475 = vpop.xlane.xlu0 %3474
        %v3476 = vsel %vm2966, %v3382, 0.0
        %3477 = vadd.xlane.f32.xlu0 %v3476
        %v3478 = vpop.xlane.xlu0 %3477
        %v3479 = vperm.slane %v3351, 0
        %v3480 = vlaneseq
        %v3481 = vshrl.u32 %v3480, 7
        %3483 = vset.pattern.permute.xlu0 %v3481
        %3484 = vperm.xlu0 %3483, %v3479
        %v3485 = vpop.permute.xlu0 %3484
        %v3486 = vperm.slane %v3351, 1
        %v3487 = vlaneseq
        %v3488 = vshrl.u32 %v3487, 7
        %3490 = vset.pattern.permute.xlu0 %v3488
        %3491 = vperm.xlu0 %3490, %v3486
        %v3492 = vpop.permute.xlu0 %3491
        %v3493 = vperm.slane %v3351, 2
        %v3494 = vlaneseq
        %v3495 = vshrl.u32 %v3494, 7
        %3497 = vset.pattern.permute.xlu0 %v3495
        %3498 = vperm.xlu0 %3497, %v3493
        %v3499 = vpop.permute.xlu0 %3498
        %v3500 = vperm.slane %v3351, 3
        %v3501 = vlaneseq
        %v3502 = vshrl.u32 %v3501, 7
        %3504 = vset.pattern.permute.xlu0 %v3502
        %3505 = vperm.xlu0 %3504, %v3500
        %v3506 = vpop.permute.xlu0 %3505
        %v3507 = vperm.slane %v3351, 4
        %v3508 = vlaneseq
        %v3509 = vshrl.u32 %v3508, 7
        %3511 = vset.pattern.permute.xlu0 %v3509
        %3512 = vperm.xlu0 %3511, %v3507
        %v3513 = vpop.permute.xlu0 %3512
        %v3514 = vperm.slane %v3351, 5
        %v3515 = vlaneseq
        %v3516 = vshrl.u32 %v3515, 7
        %3518 = vset.pattern.permute.xlu0 %v3516
        %3519 = vperm.xlu0 %3518, %v3514
        %v3520 = vpop.permute.xlu0 %3519
        %v3521 = vperm.slane %v3351, 6
        %v3522 = vlaneseq
        %v3523 = vshrl.u32 %v3522, 7
        %3525 = vset.pattern.permute.xlu0 %v3523
        %3526 = vperm.xlu0 %3525, %v3521
        %v3527 = vpop.permute.xlu0 %3526
        %v3528 = vperm.slane %v3351, 7
        %v3529 = vlaneseq
        %v3530 = vshrl.u32 %v3529, 7
        %3532 = vset.pattern.permute.xlu0 %v3530
        %3533 = vperm.xlu0 %3532, %v3528
        %v3534 = vpop.permute.xlu0 %3533
        %v3535 = vperm.slane %v3352, 0
        %v3536 = vlaneseq
        %v3537 = vshrl.u32 %v3536, 7
        %3539 = vset.pattern.permute.xlu0 %v3537
        %3540 = vperm.xlu0 %3539, %v3535
        %v3541 = vpop.permute.xlu0 %3540
        %v3542 = vperm.slane %v3352, 1
        %v3543 = vlaneseq
        %v3544 = vshrl.u32 %v3543, 7
        %3546 = vset.pattern.permute.xlu0 %v3544
        %3547 = vperm.xlu0 %3546, %v3542
        %v3548 = vpop.permute.xlu0 %3547
        %v3549 = vperm.slane %v3352, 2
        %v3550 = vlaneseq
        %v3551 = vshrl.u32 %v3550, 7
        %3553 = vset.pattern.permute.xlu0 %v3551
        %3554 = vperm.xlu0 %3553, %v3549
        %v3555 = vpop.permute.xlu0 %3554
        %v3556 = vperm.slane %v3352, 3
        %v3557 = vlaneseq
        %v3558 = vshrl.u32 %v3557, 7
        %3560 = vset.pattern.permute.xlu0 %v3558
        %3561 = vperm.xlu0 %3560, %v3556
        %v3562 = vpop.permute.xlu0 %3561
        %v3563 = vperm.slane %v3352, 4
        %v3564 = vlaneseq
        %v3565 = vshrl.u32 %v3564, 7
        %3567 = vset.pattern.permute.xlu0 %v3565
        %3568 = vperm.xlu0 %3567, %v3563
        %v3569 = vpop.permute.xlu0 %3568
        %v3570 = vperm.slane %v3352, 5
        %v3571 = vlaneseq
        %v3572 = vshrl.u32 %v3571, 7
        %3574 = vset.pattern.permute.xlu0 %v3572
        %3575 = vperm.xlu0 %3574, %v3570
        %v3576 = vpop.permute.xlu0 %3575
        %v3577 = vperm.slane %v3352, 6
        %v3578 = vlaneseq
        %v3579 = vshrl.u32 %v3578, 7
        %3581 = vset.pattern.permute.xlu0 %v3579
        %3582 = vperm.xlu0 %3581, %v3577
        %v3583 = vpop.permute.xlu0 %3582
        %v3584 = vperm.slane %v3352, 7
        %v3585 = vlaneseq
        %v3586 = vshrl.u32 %v3585, 7
        %3588 = vset.pattern.permute.xlu0 %v3586
        %3589 = vperm.xlu0 %3588, %v3584
        %v3590 = vpop.permute.xlu0 %3589
        %v3591 = vperm.slane %v3353, 0
        %v3592 = vlaneseq
        %v3593 = vshrl.u32 %v3592, 7
        %3595 = vset.pattern.permute.xlu0 %v3593
        %3596 = vperm.xlu0 %3595, %v3591
        %v3597 = vpop.permute.xlu0 %3596
        %v3598 = vperm.slane %v3353, 1
        %v3599 = vlaneseq
        %v3600 = vshrl.u32 %v3599, 7
        %3602 = vset.pattern.permute.xlu0 %v3600
        %3603 = vperm.xlu0 %3602, %v3598
        %v3604 = vpop.permute.xlu0 %3603
        %v3605 = vperm.slane %v3353, 2
        %v3606 = vlaneseq
        %v3607 = vshrl.u32 %v3606, 7
        %3609 = vset.pattern.permute.xlu0 %v3607
        %3610 = vperm.xlu0 %3609, %v3605
        %v3611 = vpop.permute.xlu0 %3610
        %v3612 = vperm.slane %v3353, 3
        %v3613 = vlaneseq
        %v3614 = vshrl.u32 %v3613, 7
        %3616 = vset.pattern.permute.xlu0 %v3614
        %3617 = vperm.xlu0 %3616, %v3612
        %v3618 = vpop.permute.xlu0 %3617
        %v3619 = vperm.slane %v3353, 4
        %v3620 = vlaneseq
        %v3621 = vshrl.u32 %v3620, 7
        %3623 = vset.pattern.permute.xlu0 %v3621
        %3624 = vperm.xlu0 %3623, %v3619
        %v3625 = vpop.permute.xlu0 %3624
        %v3626 = vperm.slane %v3353, 5
        %v3627 = vlaneseq
        %v3628 = vshrl.u32 %v3627, 7
        %3630 = vset.pattern.permute.xlu0 %v3628
        %3631 = vperm.xlu0 %3630, %v3626
        %v3632 = vpop.permute.xlu0 %3631
        %v3633 = vperm.slane %v3353, 6
        %v3634 = vlaneseq
        %v3635 = vshrl.u32 %v3634, 7
        %3637 = vset.pattern.permute.xlu0 %v3635
        %3638 = vperm.xlu0 %3637, %v3633
        %v3639 = vpop.permute.xlu0 %3638
        %v3640 = vperm.slane %v3353, 7
        %v3641 = vlaneseq
        %v3642 = vshrl.u32 %v3641, 7
        %3644 = vset.pattern.permute.xlu0 %v3642
        %3645 = vperm.xlu0 %3644, %v3640
        %v3646 = vpop.permute.xlu0 %3645
        %v3647 = vperm.slane %v3354, 0
        %v3648 = vlaneseq
        %v3649 = vshrl.u32 %v3648, 7
        %3651 = vset.pattern.permute.xlu0 %v3649
        %3652 = vperm.xlu0 %3651, %v3647
        %v3653 = vpop.permute.xlu0 %3652
        %v3654 = vperm.slane %v3354, 1
        %v3655 = vlaneseq
        %v3656 = vshrl.u32 %v3655, 7
        %3658 = vset.pattern.permute.xlu0 %v3656
        %3659 = vperm.xlu0 %3658, %v3654
        %v3660 = vpop.permute.xlu0 %3659
        %v3661 = vperm.slane %v3354, 2
        %v3662 = vlaneseq
        %v3663 = vshrl.u32 %v3662, 7
        %3665 = vset.pattern.permute.xlu0 %v3663
        %3666 = vperm.xlu0 %3665, %v3661
        %v3667 = vpop.permute.xlu0 %3666
        %v3668 = vperm.slane %v3354, 3
        %v3669 = vlaneseq
        %v3670 = vshrl.u32 %v3669, 7
        %3672 = vset.pattern.permute.xlu0 %v3670
        %3673 = vperm.xlu0 %3672, %v3668
        %v3674 = vpop.permute.xlu0 %3673
        %v3675 = vperm.slane %v3354, 4
        %v3676 = vlaneseq
        %v3677 = vshrl.u32 %v3676, 7
        %3679 = vset.pattern.permute.xlu0 %v3677
        %3680 = vperm.xlu0 %3679, %v3675
        %v3681 = vpop.permute.xlu0 %3680
        %v3682 = vperm.slane %v3354, 5
        %v3683 = vlaneseq
        %v3684 = vshrl.u32 %v3683, 7
        %3686 = vset.pattern.permute.xlu0 %v3684
        %3687 = vperm.xlu0 %3686, %v3682
        %v3688 = vpop.permute.xlu0 %3687
        %v3689 = vperm.slane %v3354, 6
        %v3690 = vlaneseq
        %v3691 = vshrl.u32 %v3690, 7
        %3693 = vset.pattern.permute.xlu0 %v3691
        %3694 = vperm.xlu0 %3693, %v3689
        %v3695 = vpop.permute.xlu0 %3694
        %v3696 = vperm.slane %v3354, 7
        %v3697 = vlaneseq
        %v3698 = vshrl.u32 %v3697, 7
        %3700 = vset.pattern.permute.xlu0 %v3698
        %3701 = vperm.xlu0 %3700, %v3696
        %v3702 = vpop.permute.xlu0 %3701
        %v3703 = vperm.slane %v3355, 0
        %v3704 = vlaneseq
        %v3705 = vshrl.u32 %v3704, 7
        %3707 = vset.pattern.permute.xlu0 %v3705
        %3708 = vperm.xlu0 %3707, %v3703
        %v3709 = vpop.permute.xlu0 %3708
        %v3710 = vperm.slane %v3355, 1
        %v3711 = vlaneseq
        %v3712 = vshrl.u32 %v3711, 7
        %3714 = vset.pattern.permute.xlu0 %v3712
        %3715 = vperm.xlu0 %3714, %v3710
        %v3716 = vpop.permute.xlu0 %3715
        %v3717 = vperm.slane %v3355, 2
        %v3718 = vlaneseq
        %v3719 = vshrl.u32 %v3718, 7
        %3721 = vset.pattern.permute.xlu0 %v3719
        %3722 = vperm.xlu0 %3721, %v3717
        %v3723 = vpop.permute.xlu0 %3722
        %v3724 = vperm.slane %v3355, 3
        %v3725 = vlaneseq
        %v3726 = vshrl.u32 %v3725, 7
        %3728 = vset.pattern.permute.xlu0 %v3726
        %3729 = vperm.xlu0 %3728, %v3724
        %v3730 = vpop.permute.xlu0 %3729
        %v3731 = vperm.slane %v3355, 4
        %v3732 = vlaneseq
        %v3733 = vshrl.u32 %v3732, 7
        %3735 = vset.pattern.permute.xlu0 %v3733
        %3736 = vperm.xlu0 %3735, %v3731
        %v3737 = vpop.permute.xlu0 %3736
        %v3738 = vperm.slane %v3355, 5
        %v3739 = vlaneseq
        %v3740 = vshrl.u32 %v3739, 7
        %3742 = vset.pattern.permute.xlu0 %v3740
        %3743 = vperm.xlu0 %3742, %v3738
        %v3744 = vpop.permute.xlu0 %3743
        %v3745 = vperm.slane %v3355, 6
        %v3746 = vlaneseq
        %v3747 = vshrl.u32 %v3746, 7
        %3749 = vset.pattern.permute.xlu0 %v3747
        %3750 = vperm.xlu0 %3749, %v3745
        %v3751 = vpop.permute.xlu0 %3750
        %v3752 = vperm.slane %v3355, 7
        %v3753 = vlaneseq
        %v3754 = vshrl.u32 %v3753, 7
        %3756 = vset.pattern.permute.xlu0 %v3754
        %3757 = vperm.xlu0 %3756, %v3752
        %v3758 = vpop.permute.xlu0 %3757
        %v3759 = vperm.slane %v3356, 0
        %v3760 = vlaneseq
        %v3761 = vshrl.u32 %v3760, 7
        %3763 = vset.pattern.permute.xlu0 %v3761
        %3764 = vperm.xlu0 %3763, %v3759
        %v3765 = vpop.permute.xlu0 %3764
        %v3766 = vperm.slane %v3356, 1
        %v3767 = vlaneseq
        %v3768 = vshrl.u32 %v3767, 7
        %3770 = vset.pattern.permute.xlu0 %v3768
        %3771 = vperm.xlu0 %3770, %v3766
        %v3772 = vpop.permute.xlu0 %3771
        %v3773 = vperm.slane %v3356, 2
        %v3774 = vlaneseq
        %v3775 = vshrl.u32 %v3774, 7
        %3777 = vset.pattern.permute.xlu0 %v3775
        %3778 = vperm.xlu0 %3777, %v3773
        %v3779 = vpop.permute.xlu0 %3778
        %v3780 = vperm.slane %v3356, 3
        %v3781 = vlaneseq
        %v3782 = vshrl.u32 %v3781, 7
        %3784 = vset.pattern.permute.xlu0 %v3782
        %3785 = vperm.xlu0 %3784, %v3780
        %v3786 = vpop.permute.xlu0 %3785
        %v3787 = vperm.slane %v3356, 4
        %v3788 = vlaneseq
        %v3789 = vshrl.u32 %v3788, 7
        %3791 = vset.pattern.permute.xlu0 %v3789
        %3792 = vperm.xlu0 %3791, %v3787
        %v3793 = vpop.permute.xlu0 %3792
        %v3794 = vperm.slane %v3356, 5
        %v3795 = vlaneseq
        %v3796 = vshrl.u32 %v3795, 7
        %3798 = vset.pattern.permute.xlu0 %v3796
        %3799 = vperm.xlu0 %3798, %v3794
        %v3800 = vpop.permute.xlu0 %3799
        %v3801 = vperm.slane %v3356, 6
        %v3802 = vlaneseq
        %v3803 = vshrl.u32 %v3802, 7
        %3805 = vset.pattern.permute.xlu0 %v3803
        %3806 = vperm.xlu0 %3805, %v3801
        %v3807 = vpop.permute.xlu0 %3806
        %v3808 = vperm.slane %v3356, 7
        %v3809 = vlaneseq
        %v3810 = vshrl.u32 %v3809, 7
        %3812 = vset.pattern.permute.xlu0 %v3810
        %3813 = vperm.xlu0 %3812, %v3808
        %v3814 = vpop.permute.xlu0 %3813
        %v3815 = vperm.slane %v3357, 0
        %v3816 = vlaneseq
        %v3817 = vshrl.u32 %v3816, 7
        %3819 = vset.pattern.permute.xlu0 %v3817
        %3820 = vperm.xlu0 %3819, %v3815
        %v3821 = vpop.permute.xlu0 %3820
        %v3822 = vperm.slane %v3357, 1
        %v3823 = vlaneseq
        %v3824 = vshrl.u32 %v3823, 7
        %3826 = vset.pattern.permute.xlu0 %v3824
        %3827 = vperm.xlu0 %3826, %v3822
        %v3828 = vpop.permute.xlu0 %3827
        %v3829 = vperm.slane %v3357, 2
        %v3830 = vlaneseq
        %v3831 = vshrl.u32 %v3830, 7
        %3833 = vset.pattern.permute.xlu0 %v3831
        %3834 = vperm.xlu0 %3833, %v3829
        %v3835 = vpop.permute.xlu0 %3834
        %v3836 = vperm.slane %v3357, 3
        %v3837 = vlaneseq
        %v3838 = vshrl.u32 %v3837, 7
        %3840 = vset.pattern.permute.xlu0 %v3838
        %3841 = vperm.xlu0 %3840, %v3836
        %v3842 = vpop.permute.xlu0 %3841
        %v3843 = vperm.slane %v3357, 4
        %v3844 = vlaneseq
        %v3845 = vshrl.u32 %v3844, 7
        %3847 = vset.pattern.permute.xlu0 %v3845
        %3848 = vperm.xlu0 %3847, %v3843
        %v3849 = vpop.permute.xlu0 %3848
        %v3850 = vperm.slane %v3357, 5
        %v3851 = vlaneseq
        %v3852 = vshrl.u32 %v3851, 7
        %3854 = vset.pattern.permute.xlu0 %v3852
        %3855 = vperm.xlu0 %3854, %v3850
        %v3856 = vpop.permute.xlu0 %3855
        %v3857 = vperm.slane %v3357, 6
        %v3858 = vlaneseq
        %v3859 = vshrl.u32 %v3858, 7
        %3861 = vset.pattern.permute.xlu0 %v3859
        %3862 = vperm.xlu0 %3861, %v3857
        %v3863 = vpop.permute.xlu0 %3862
        %v3864 = vperm.slane %v3357, 7
        %v3865 = vlaneseq
        %v3866 = vshrl.u32 %v3865, 7
        %3868 = vset.pattern.permute.xlu0 %v3866
        %3869 = vperm.xlu0 %3868, %v3864
        %v3870 = vpop.permute.xlu0 %3869
        %v3871 = vperm.slane %v3358, 0
        %v3872 = vlaneseq
        %v3873 = vshrl.u32 %v3872, 7
        %3875 = vset.pattern.permute.xlu0 %v3873
        %3876 = vperm.xlu0 %3875, %v3871
        %v3877 = vpop.permute.xlu0 %3876
        %v3878 = vperm.slane %v3358, 1
        %v3879 = vlaneseq
        %v3880 = vshrl.u32 %v3879, 7
        %3882 = vset.pattern.permute.xlu0 %v3880
        %3883 = vperm.xlu0 %3882, %v3878
        %v3884 = vpop.permute.xlu0 %3883
        %v3885 = vperm.slane %v3358, 2
        %v3886 = vlaneseq
        %v3887 = vshrl.u32 %v3886, 7
        %3889 = vset.pattern.permute.xlu0 %v3887
        %3890 = vperm.xlu0 %3889, %v3885
        %v3891 = vpop.permute.xlu0 %3890
        %v3892 = vperm.slane %v3358, 3
        %v3893 = vlaneseq
        %v3894 = vshrl.u32 %v3893, 7
        %3896 = vset.pattern.permute.xlu0 %v3894
        %3897 = vperm.xlu0 %3896, %v3892
        %v3898 = vpop.permute.xlu0 %3897
        %v3899 = vperm.slane %v3358, 4
        %v3900 = vlaneseq
        %v3901 = vshrl.u32 %v3900, 7
        %3903 = vset.pattern.permute.xlu0 %v3901
        %3904 = vperm.xlu0 %3903, %v3899
        %v3905 = vpop.permute.xlu0 %3904
        %v3906 = vperm.slane %v3358, 5
        %v3907 = vlaneseq
        %v3908 = vshrl.u32 %v3907, 7
        %3910 = vset.pattern.permute.xlu0 %v3908
        %3911 = vperm.xlu0 %3910, %v3906
        %v3912 = vpop.permute.xlu0 %3911
        %v3913 = vperm.slane %v3358, 6
        %v3914 = vlaneseq
        %v3915 = vshrl.u32 %v3914, 7
        %3917 = vset.pattern.permute.xlu0 %v3915
        %3918 = vperm.xlu0 %3917, %v3913
        %v3919 = vpop.permute.xlu0 %3918
        %v3920 = vperm.slane %v3358, 7
        %v3921 = vlaneseq
        %v3922 = vshrl.u32 %v3921, 7
        %3924 = vset.pattern.permute.xlu0 %v3922
        %3925 = vperm.xlu0 %3924, %v3920
        %v3926 = vpop.permute.xlu0 %3925
        %v3927 = vperm.slane %v3359, 0
        %v3928 = vlaneseq
        %v3929 = vshrl.u32 %v3928, 7
        %3931 = vset.pattern.permute.xlu0 %v3929
        %3932 = vperm.xlu0 %3931, %v3927
        %v3933 = vpop.permute.xlu0 %3932
        %v3934 = vperm.slane %v3359, 1
        %v3935 = vlaneseq
        %v3936 = vshrl.u32 %v3935, 7
        %3938 = vset.pattern.permute.xlu0 %v3936
        %3939 = vperm.xlu0 %3938, %v3934
        %v3940 = vpop.permute.xlu0 %3939
        %v3941 = vperm.slane %v3359, 2
        %v3942 = vlaneseq
        %v3943 = vshrl.u32 %v3942, 7
        %3945 = vset.pattern.permute.xlu0 %v3943
        %3946 = vperm.xlu0 %3945, %v3941
        %v3947 = vpop.permute.xlu0 %3946
        %v3948 = vperm.slane %v3359, 3
        %v3949 = vlaneseq
        %v3950 = vshrl.u32 %v3949, 7
        %3952 = vset.pattern.permute.xlu0 %v3950
        %3953 = vperm.xlu0 %3952, %v3948
        %v3954 = vpop.permute.xlu0 %3953
        %v3955 = vperm.slane %v3359, 4
        %v3956 = vlaneseq
        %v3957 = vshrl.u32 %v3956, 7
        %3959 = vset.pattern.permute.xlu0 %v3957
        %3960 = vperm.xlu0 %3959, %v3955
        %v3961 = vpop.permute.xlu0 %3960
        %v3962 = vperm.slane %v3359, 5
        %v3963 = vlaneseq
        %v3964 = vshrl.u32 %v3963, 7
        %3966 = vset.pattern.permute.xlu0 %v3964
        %3967 = vperm.xlu0 %3966, %v3962
        %v3968 = vpop.permute.xlu0 %3967
        %v3969 = vperm.slane %v3359, 6
        %v3970 = vlaneseq
        %v3971 = vshrl.u32 %v3970, 7
        %3973 = vset.pattern.permute.xlu0 %v3971
        %3974 = vperm.xlu0 %3973, %v3969
        %v3975 = vpop.permute.xlu0 %3974
        %v3976 = vperm.slane %v3359, 7
        %v3977 = vlaneseq
        %v3978 = vshrl.u32 %v3977, 7
        %3980 = vset.pattern.permute.xlu0 %v3978
        %3981 = vperm.xlu0 %3980, %v3976
        %v3982 = vpop.permute.xlu0 %3981
        %v3983 = vperm.slane %v3360, 0
        %v3984 = vlaneseq
        %v3985 = vshrl.u32 %v3984, 7
        %3987 = vset.pattern.permute.xlu0 %v3985
        %3988 = vperm.xlu0 %3987, %v3983
        %v3989 = vpop.permute.xlu0 %3988
        %v3990 = vperm.slane %v3360, 1
        %v3991 = vlaneseq
        %v3992 = vshrl.u32 %v3991, 7
        %3994 = vset.pattern.permute.xlu0 %v3992
        %3995 = vperm.xlu0 %3994, %v3990
        %v3996 = vpop.permute.xlu0 %3995
        %v3997 = vperm.slane %v3360, 2
        %v3998 = vlaneseq
        %v3999 = vshrl.u32 %v3998, 7
        %4001 = vset.pattern.permute.xlu0 %v3999
        %4002 = vperm.xlu0 %4001, %v3997
        %v4003 = vpop.permute.xlu0 %4002
        %v4004 = vperm.slane %v3360, 3
        %v4005 = vlaneseq
        %v4006 = vshrl.u32 %v4005, 7
        %4008 = vset.pattern.permute.xlu0 %v4006
        %4009 = vperm.xlu0 %4008, %v4004
        %v4010 = vpop.permute.xlu0 %4009
        %v4011 = vperm.slane %v3360, 4
        %v4012 = vlaneseq
        %v4013 = vshrl.u32 %v4012, 7
        %4015 = vset.pattern.permute.xlu0 %v4013
        %4016 = vperm.xlu0 %4015, %v4011
        %v4017 = vpop.permute.xlu0 %4016
        %v4018 = vperm.slane %v3360, 5
        %v4019 = vlaneseq
        %v4020 = vshrl.u32 %v4019, 7
        %4022 = vset.pattern.permute.xlu0 %v4020
        %4023 = vperm.xlu0 %4022, %v4018
        %v4024 = vpop.permute.xlu0 %4023
        %v4025 = vperm.slane %v3360, 6
        %v4026 = vlaneseq
        %v4027 = vshrl.u32 %v4026, 7
        %4029 = vset.pattern.permute.xlu0 %v4027
        %4030 = vperm.xlu0 %4029, %v4025
        %v4031 = vpop.permute.xlu0 %4030
        %v4032 = vperm.slane %v3360, 7
        %v4033 = vlaneseq
        %v4034 = vshrl.u32 %v4033, 7
        %4036 = vset.pattern.permute.xlu0 %v4034
        %4037 = vperm.xlu0 %4036, %v4032
        %v4038 = vpop.permute.xlu0 %4037
        %v4039 = vperm.slane %v3361, 0
        %v4040 = vlaneseq
        %v4041 = vshrl.u32 %v4040, 7
        %4043 = vset.pattern.permute.xlu0 %v4041
        %4044 = vperm.xlu0 %4043, %v4039
        %v4045 = vpop.permute.xlu0 %4044
        %v4046 = vperm.slane %v3361, 1
        %v4047 = vlaneseq
        %v4048 = vshrl.u32 %v4047, 7
        %4050 = vset.pattern.permute.xlu0 %v4048
        %4051 = vperm.xlu0 %4050, %v4046
        %v4052 = vpop.permute.xlu0 %4051
        %v4053 = vperm.slane %v3361, 2
        %v4054 = vlaneseq
        %v4055 = vshrl.u32 %v4054, 7
        %4057 = vset.pattern.permute.xlu0 %v4055
        %4058 = vperm.xlu0 %4057, %v4053
        %v4059 = vpop.permute.xlu0 %4058
        %v4060 = vperm.slane %v3361, 3
        %v4061 = vlaneseq
        %v4062 = vshrl.u32 %v4061, 7
        %4064 = vset.pattern.permute.xlu0 %v4062
        %4065 = vperm.xlu0 %4064, %v4060
        %v4066 = vpop.permute.xlu0 %4065
        %v4067 = vperm.slane %v3361, 4
        %v4068 = vlaneseq
        %v4069 = vshrl.u32 %v4068, 7
        %4071 = vset.pattern.permute.xlu0 %v4069
        %4072 = vperm.xlu0 %4071, %v4067
        %v4073 = vpop.permute.xlu0 %4072
        %v4074 = vperm.slane %v3361, 5
        %v4075 = vlaneseq
        %v4076 = vshrl.u32 %v4075, 7
        %4078 = vset.pattern.permute.xlu0 %v4076
        %4079 = vperm.xlu0 %4078, %v4074
        %v4080 = vpop.permute.xlu0 %4079
        %v4081 = vperm.slane %v3361, 6
        %v4082 = vlaneseq
        %v4083 = vshrl.u32 %v4082, 7
        %4085 = vset.pattern.permute.xlu0 %v4083
        %4086 = vperm.xlu0 %4085, %v4081
        %v4087 = vpop.permute.xlu0 %4086
        %v4088 = vperm.slane %v3361, 7
        %v4089 = vlaneseq
        %v4090 = vshrl.u32 %v4089, 7
        %4092 = vset.pattern.permute.xlu0 %v4090
        %4093 = vperm.xlu0 %4092, %v4088
        %v4094 = vpop.permute.xlu0 %4093
        %v4095 = vperm.slane %v3362, 0
        %v4096 = vlaneseq
        %v4097 = vshrl.u32 %v4096, 7
        %4099 = vset.pattern.permute.xlu0 %v4097
        %4100 = vperm.xlu0 %4099, %v4095
        %v4101 = vpop.permute.xlu0 %4100
        %v4102 = vperm.slane %v3362, 1
        %v4103 = vlaneseq
        %v4104 = vshrl.u32 %v4103, 7
        %4106 = vset.pattern.permute.xlu0 %v4104
        %4107 = vperm.xlu0 %4106, %v4102
        %v4108 = vpop.permute.xlu0 %4107
        %v4109 = vperm.slane %v3362, 2
        %v4110 = vlaneseq
        %v4111 = vshrl.u32 %v4110, 7
        %4113 = vset.pattern.permute.xlu0 %v4111
        %4114 = vperm.xlu0 %4113, %v4109
        %v4115 = vpop.permute.xlu0 %4114
        %v4116 = vperm.slane %v3362, 3
        %v4117 = vlaneseq
        %v4118 = vshrl.u32 %v4117, 7
        %4120 = vset.pattern.permute.xlu0 %v4118
        %4121 = vperm.xlu0 %4120, %v4116
        %v4122 = vpop.permute.xlu0 %4121
        %v4123 = vperm.slane %v3362, 4
        %v4124 = vlaneseq
        %v4125 = vshrl.u32 %v4124, 7
        %4127 = vset.pattern.permute.xlu0 %v4125
        %4128 = vperm.xlu0 %4127, %v4123
        %v4129 = vpop.permute.xlu0 %4128
        %v4130 = vperm.slane %v3362, 5
        %v4131 = vlaneseq
        %v4132 = vshrl.u32 %v4131, 7
        %4134 = vset.pattern.permute.xlu0 %v4132
        %4135 = vperm.xlu0 %4134, %v4130
        %v4136 = vpop.permute.xlu0 %4135
        %v4137 = vperm.slane %v3362, 6
        %v4138 = vlaneseq
        %v4139 = vshrl.u32 %v4138, 7
        %4141 = vset.pattern.permute.xlu0 %v4139
        %4142 = vperm.xlu0 %4141, %v4137
        %v4143 = vpop.permute.xlu0 %4142
        %v4144 = vperm.slane %v3362, 7
        %v4145 = vlaneseq
        %v4146 = vshrl.u32 %v4145, 7
        %4148 = vset.pattern.permute.xlu0 %v4146
        %4149 = vperm.xlu0 %4148, %v4144
        %v4150 = vpop.permute.xlu0 %4149
        %v4151 = vperm.slane %v3363, 0
        %v4152 = vlaneseq
        %v4153 = vshrl.u32 %v4152, 7
        %4155 = vset.pattern.permute.xlu0 %v4153
        %4156 = vperm.xlu0 %4155, %v4151
        %v4157 = vpop.permute.xlu0 %4156
        %v4158 = vperm.slane %v3363, 1
        %v4159 = vlaneseq
        %v4160 = vshrl.u32 %v4159, 7
        %4162 = vset.pattern.permute.xlu0 %v4160
        %4163 = vperm.xlu0 %4162, %v4158
        %v4164 = vpop.permute.xlu0 %4163
        %v4165 = vperm.slane %v3363, 2
        %v4166 = vlaneseq
        %v4167 = vshrl.u32 %v4166, 7
        %4169 = vset.pattern.permute.xlu0 %v4167
        %4170 = vperm.xlu0 %4169, %v4165
        %v4171 = vpop.permute.xlu0 %4170
        %v4172 = vperm.slane %v3363, 3
        %v4173 = vlaneseq
        %v4174 = vshrl.u32 %v4173, 7
        %4176 = vset.pattern.permute.xlu0 %v4174
        %4177 = vperm.xlu0 %4176, %v4172
        %v4178 = vpop.permute.xlu0 %4177
        %v4179 = vperm.slane %v3363, 4
        %v4180 = vlaneseq
        %v4181 = vshrl.u32 %v4180, 7
        %4183 = vset.pattern.permute.xlu0 %v4181
        %4184 = vperm.xlu0 %4183, %v4179
        %v4185 = vpop.permute.xlu0 %4184
        %v4186 = vperm.slane %v3363, 5
        %v4187 = vlaneseq
        %v4188 = vshrl.u32 %v4187, 7
        %4190 = vset.pattern.permute.xlu0 %v4188
        %4191 = vperm.xlu0 %4190, %v4186
        %v4192 = vpop.permute.xlu0 %4191
        %v4193 = vperm.slane %v3363, 6
        %v4194 = vlaneseq
        %v4195 = vshrl.u32 %v4194, 7
        %4197 = vset.pattern.permute.xlu0 %v4195
        %4198 = vperm.xlu0 %4197, %v4193
        %v4199 = vpop.permute.xlu0 %4198
        %v4200 = vperm.slane %v3363, 7
        %v4201 = vlaneseq
        %v4202 = vshrl.u32 %v4201, 7
        %4204 = vset.pattern.permute.xlu0 %v4202
        %4205 = vperm.xlu0 %4204, %v4200
        %v4206 = vpop.permute.xlu0 %4205
        %v4207 = vperm.slane %v3364, 0
        %v4208 = vlaneseq
        %v4209 = vshrl.u32 %v4208, 7
        %4211 = vset.pattern.permute.xlu0 %v4209
        %4212 = vperm.xlu0 %4211, %v4207
        %v4213 = vpop.permute.xlu0 %4212
        %v4214 = vperm.slane %v3364, 1
        %v4215 = vlaneseq
        %v4216 = vshrl.u32 %v4215, 7
        %4218 = vset.pattern.permute.xlu0 %v4216
        %4219 = vperm.xlu0 %4218, %v4214
        %v4220 = vpop.permute.xlu0 %4219
        %v4221 = vperm.slane %v3364, 2
        %v4222 = vlaneseq
        %v4223 = vshrl.u32 %v4222, 7
        %4225 = vset.pattern.permute.xlu0 %v4223
        %4226 = vperm.xlu0 %4225, %v4221
        %v4227 = vpop.permute.xlu0 %4226
        %v4228 = vperm.slane %v3364, 3
        %v4229 = vlaneseq
        %v4230 = vshrl.u32 %v4229, 7
        %4232 = vset.pattern.permute.xlu0 %v4230
        %4233 = vperm.xlu0 %4232, %v4228
        %v4234 = vpop.permute.xlu0 %4233
        %v4235 = vperm.slane %v3364, 4
        %v4236 = vlaneseq
        %v4237 = vshrl.u32 %v4236, 7
        %4239 = vset.pattern.permute.xlu0 %v4237
        %4240 = vperm.xlu0 %4239, %v4235
        %v4241 = vpop.permute.xlu0 %4240
        %v4242 = vperm.slane %v3364, 5
        %v4243 = vlaneseq
        %v4244 = vshrl.u32 %v4243, 7
        %4246 = vset.pattern.permute.xlu0 %v4244
        %4247 = vperm.xlu0 %4246, %v4242
        %v4248 = vpop.permute.xlu0 %4247
        %v4249 = vperm.slane %v3364, 6
        %v4250 = vlaneseq
        %v4251 = vshrl.u32 %v4250, 7
        %4253 = vset.pattern.permute.xlu0 %v4251
        %4254 = vperm.xlu0 %4253, %v4249
        %v4255 = vpop.permute.xlu0 %4254
        %v4256 = vperm.slane %v3364, 7
        %v4257 = vlaneseq
        %v4258 = vshrl.u32 %v4257, 7
        %4260 = vset.pattern.permute.xlu0 %v4258
        %4261 = vperm.xlu0 %4260, %v4256
        %v4262 = vpop.permute.xlu0 %4261
        %v4263 = vperm.slane %v3365, 0
        %v4264 = vlaneseq
        %v4265 = vshrl.u32 %v4264, 7
        %4267 = vset.pattern.permute.xlu0 %v4265
        %4268 = vperm.xlu0 %4267, %v4263
        %v4269 = vpop.permute.xlu0 %4268
        %v4270 = vperm.slane %v3365, 1
        %v4271 = vlaneseq
        %v4272 = vshrl.u32 %v4271, 7
        %4274 = vset.pattern.permute.xlu0 %v4272
        %4275 = vperm.xlu0 %4274, %v4270
        %v4276 = vpop.permute.xlu0 %4275
        %v4277 = vperm.slane %v3365, 2
        %v4278 = vlaneseq
        %v4279 = vshrl.u32 %v4278, 7
        %4281 = vset.pattern.permute.xlu0 %v4279
        %4282 = vperm.xlu0 %4281, %v4277
        %v4283 = vpop.permute.xlu0 %4282
        %v4284 = vperm.slane %v3365, 3
        %v4285 = vlaneseq
        %v4286 = vshrl.u32 %v4285, 7
        %4288 = vset.pattern.permute.xlu0 %v4286
        %4289 = vperm.xlu0 %4288, %v4284
        %v4290 = vpop.permute.xlu0 %4289
        %v4291 = vperm.slane %v3365, 4
        %v4292 = vlaneseq
        %v4293 = vshrl.u32 %v4292, 7
        %4295 = vset.pattern.permute.xlu0 %v4293
        %4296 = vperm.xlu0 %4295, %v4291
        %v4297 = vpop.permute.xlu0 %4296
        %v4298 = vperm.slane %v3365, 5
        %v4299 = vlaneseq
        %v4300 = vshrl.u32 %v4299, 7
        %4302 = vset.pattern.permute.xlu0 %v4300
        %4303 = vperm.xlu0 %4302, %v4298
        %v4304 = vpop.permute.xlu0 %4303
        %v4305 = vperm.slane %v3365, 6
        %v4306 = vlaneseq
        %v4307 = vshrl.u32 %v4306, 7
        %4309 = vset.pattern.permute.xlu0 %v4307
        %4310 = vperm.xlu0 %4309, %v4305
        %v4311 = vpop.permute.xlu0 %4310
        %v4312 = vperm.slane %v3365, 7
        %v4313 = vlaneseq
        %v4314 = vshrl.u32 %v4313, 7
        %4316 = vset.pattern.permute.xlu0 %v4314
        %4317 = vperm.xlu0 %4316, %v4312
        %v4318 = vpop.permute.xlu0 %4317
        %v4319 = vperm.slane %v3366, 0
        %v4320 = vlaneseq
        %v4321 = vshrl.u32 %v4320, 7
        %4323 = vset.pattern.permute.xlu0 %v4321
        %4324 = vperm.xlu0 %4323, %v4319
        %v4325 = vpop.permute.xlu0 %4324
        %v4326 = vperm.slane %v3366, 1
        %v4327 = vlaneseq
        %v4328 = vshrl.u32 %v4327, 7
        %4330 = vset.pattern.permute.xlu0 %v4328
        %4331 = vperm.xlu0 %4330, %v4326
        %v4332 = vpop.permute.xlu0 %4331
        %v4333 = vperm.slane %v3366, 2
        %v4334 = vlaneseq
        %v4335 = vshrl.u32 %v4334, 7
        %4337 = vset.pattern.permute.xlu0 %v4335
        %4338 = vperm.xlu0 %4337, %v4333
        %v4339 = vpop.permute.xlu0 %4338
        %v4340 = vperm.slane %v3366, 3
        %v4341 = vlaneseq
        %v4342 = vshrl.u32 %v4341, 7
        %4344 = vset.pattern.permute.xlu0 %v4342
        %4345 = vperm.xlu0 %4344, %v4340
        %v4346 = vpop.permute.xlu0 %4345
        %v4347 = vperm.slane %v3366, 4
        %v4348 = vlaneseq
        %v4349 = vshrl.u32 %v4348, 7
        %4351 = vset.pattern.permute.xlu0 %v4349
        %4352 = vperm.xlu0 %4351, %v4347
        %v4353 = vpop.permute.xlu0 %4352
        %v4354 = vperm.slane %v3366, 5
        %v4355 = vlaneseq
        %v4356 = vshrl.u32 %v4355, 7
        %4358 = vset.pattern.permute.xlu0 %v4356
        %4359 = vperm.xlu0 %4358, %v4354
        %v4360 = vpop.permute.xlu0 %4359
        %v4361 = vperm.slane %v3366, 6
        %v4362 = vlaneseq
        %v4363 = vshrl.u32 %v4362, 7
        %4365 = vset.pattern.permute.xlu0 %v4363
        %4366 = vperm.xlu0 %4365, %v4361
        %v4367 = vpop.permute.xlu0 %4366
        %v4368 = vperm.slane %v3366, 7
        %v4369 = vlaneseq
        %v4370 = vshrl.u32 %v4369, 7
        %4372 = vset.pattern.permute.xlu0 %v4370
        %4373 = vperm.xlu0 %4372, %v4368
        %v4374 = vpop.permute.xlu0 %4373
        %v4375 = vperm.slane %v3367, 0
        %v4376 = vlaneseq
        %v4377 = vshrl.u32 %v4376, 7
        %4379 = vset.pattern.permute.xlu0 %v4377
        %4380 = vperm.xlu0 %4379, %v4375
        %v4381 = vpop.permute.xlu0 %4380
        %v4382 = vperm.slane %v3367, 1
        %v4383 = vlaneseq
        %v4384 = vshrl.u32 %v4383, 7
        %4386 = vset.pattern.permute.xlu0 %v4384
        %4387 = vperm.xlu0 %4386, %v4382
        %v4388 = vpop.permute.xlu0 %4387
        %v4389 = vperm.slane %v3367, 2
        %v4390 = vlaneseq
        %v4391 = vshrl.u32 %v4390, 7
        %4393 = vset.pattern.permute.xlu0 %v4391
        %4394 = vperm.xlu0 %4393, %v4389
        %v4395 = vpop.permute.xlu0 %4394
        %v4396 = vperm.slane %v3367, 3
        %v4397 = vlaneseq
        %v4398 = vshrl.u32 %v4397, 7
        %4400 = vset.pattern.permute.xlu0 %v4398
        %4401 = vperm.xlu0 %4400, %v4396
        %v4402 = vpop.permute.xlu0 %4401
        %v4403 = vperm.slane %v3367, 4
        %v4404 = vlaneseq
        %v4405 = vshrl.u32 %v4404, 7
        %4407 = vset.pattern.permute.xlu0 %v4405
        %4408 = vperm.xlu0 %4407, %v4403
        %v4409 = vpop.permute.xlu0 %4408
        %v4410 = vperm.slane %v3367, 5
        %v4411 = vlaneseq
        %v4412 = vshrl.u32 %v4411, 7
        %4414 = vset.pattern.permute.xlu0 %v4412
        %4415 = vperm.xlu0 %4414, %v4410
        %v4416 = vpop.permute.xlu0 %4415
        %v4417 = vperm.slane %v3367, 6
        %v4418 = vlaneseq
        %v4419 = vshrl.u32 %v4418, 7
        %4421 = vset.pattern.permute.xlu0 %v4419
        %4422 = vperm.xlu0 %4421, %v4417
        %v4423 = vpop.permute.xlu0 %4422
        %v4424 = vperm.slane %v3367, 7
        %v4425 = vlaneseq
        %v4426 = vshrl.u32 %v4425, 7
        %4428 = vset.pattern.permute.xlu0 %v4426
        %4429 = vperm.xlu0 %4428, %v4424
        %v4430 = vpop.permute.xlu0 %4429
        %v4431 = vperm.slane %v3368, 0
        %v4432 = vlaneseq
        %v4433 = vshrl.u32 %v4432, 7
        %4435 = vset.pattern.permute.xlu0 %v4433
        %4436 = vperm.xlu0 %4435, %v4431
        %v4437 = vpop.permute.xlu0 %4436
        %v4438 = vperm.slane %v3368, 1
        %v4439 = vlaneseq
        %v4440 = vshrl.u32 %v4439, 7
        %4442 = vset.pattern.permute.xlu0 %v4440
        %4443 = vperm.xlu0 %4442, %v4438
        %v4444 = vpop.permute.xlu0 %4443
        %v4445 = vperm.slane %v3368, 2
        %v4446 = vlaneseq
        %v4447 = vshrl.u32 %v4446, 7
        %4449 = vset.pattern.permute.xlu0 %v4447
        %4450 = vperm.xlu0 %4449, %v4445
        %v4451 = vpop.permute.xlu0 %4450
        %v4452 = vperm.slane %v3368, 3
        %v4453 = vlaneseq
        %v4454 = vshrl.u32 %v4453, 7
        %4456 = vset.pattern.permute.xlu0 %v4454
        %4457 = vperm.xlu0 %4456, %v4452
        %v4458 = vpop.permute.xlu0 %4457
        %v4459 = vperm.slane %v3368, 4
        %v4460 = vlaneseq
        %v4461 = vshrl.u32 %v4460, 7
        %4463 = vset.pattern.permute.xlu0 %v4461
        %4464 = vperm.xlu0 %4463, %v4459
        %v4465 = vpop.permute.xlu0 %4464
        %v4466 = vperm.slane %v3368, 5
        %v4467 = vlaneseq
        %v4468 = vshrl.u32 %v4467, 7
        %4470 = vset.pattern.permute.xlu0 %v4468
        %4471 = vperm.xlu0 %4470, %v4466
        %v4472 = vpop.permute.xlu0 %4471
        %v4473 = vperm.slane %v3368, 6
        %v4474 = vlaneseq
        %v4475 = vshrl.u32 %v4474, 7
        %4477 = vset.pattern.permute.xlu0 %v4475
        %4478 = vperm.xlu0 %4477, %v4473
        %v4479 = vpop.permute.xlu0 %4478
        %v4480 = vperm.slane %v3368, 7
        %v4481 = vlaneseq
        %v4482 = vshrl.u32 %v4481, 7
        %4484 = vset.pattern.permute.xlu0 %v4482
        %4485 = vperm.xlu0 %4484, %v4480
        %v4486 = vpop.permute.xlu0 %4485
        %v4487 = vperm.slane %v3369, 0
        %v4488 = vlaneseq
        %v4489 = vshrl.u32 %v4488, 7
        %4491 = vset.pattern.permute.xlu0 %v4489
        %4492 = vperm.xlu0 %4491, %v4487
        %v4493 = vpop.permute.xlu0 %4492
        %v4494 = vperm.slane %v3369, 1
        %v4495 = vlaneseq
        %v4496 = vshrl.u32 %v4495, 7
        %4498 = vset.pattern.permute.xlu0 %v4496
        %4499 = vperm.xlu0 %4498, %v4494
        %v4500 = vpop.permute.xlu0 %4499
        %v4501 = vperm.slane %v3369, 2
        %v4502 = vlaneseq
        %v4503 = vshrl.u32 %v4502, 7
        %4505 = vset.pattern.permute.xlu0 %v4503
        %4506 = vperm.xlu0 %4505, %v4501
        %v4507 = vpop.permute.xlu0 %4506
        %v4508 = vperm.slane %v3369, 3
        %v4509 = vlaneseq
        %v4510 = vshrl.u32 %v4509, 7
        %4512 = vset.pattern.permute.xlu0 %v4510
        %4513 = vperm.xlu0 %4512, %v4508
        %v4514 = vpop.permute.xlu0 %4513
        %v4515 = vperm.slane %v3369, 4
        %v4516 = vlaneseq
        %v4517 = vshrl.u32 %v4516, 7
        %4519 = vset.pattern.permute.xlu0 %v4517
        %4520 = vperm.xlu0 %4519, %v4515
        %v4521 = vpop.permute.xlu0 %4520
        %v4522 = vperm.slane %v3369, 5
        %v4523 = vlaneseq
        %v4524 = vshrl.u32 %v4523, 7
        %4526 = vset.pattern.permute.xlu0 %v4524
        %4527 = vperm.xlu0 %4526, %v4522
        %v4528 = vpop.permute.xlu0 %4527
        %v4529 = vperm.slane %v3369, 6
        %v4530 = vlaneseq
        %v4531 = vshrl.u32 %v4530, 7
        %4533 = vset.pattern.permute.xlu0 %v4531
        %4534 = vperm.xlu0 %4533, %v4529
        %v4535 = vpop.permute.xlu0 %4534
        %v4536 = vperm.slane %v3369, 7
        %v4537 = vlaneseq
        %v4538 = vshrl.u32 %v4537, 7
        %4540 = vset.pattern.permute.xlu0 %v4538
        %4541 = vperm.xlu0 %4540, %v4536
        %v4542 = vpop.permute.xlu0 %4541
        %v4543 = vperm.slane %v3370, 0
        %v4544 = vlaneseq
        %v4545 = vshrl.u32 %v4544, 7
        %4547 = vset.pattern.permute.xlu0 %v4545
        %4548 = vperm.xlu0 %4547, %v4543
        %v4549 = vpop.permute.xlu0 %4548
        %v4550 = vperm.slane %v3370, 1
        %v4551 = vlaneseq
        %v4552 = vshrl.u32 %v4551, 7
        %4554 = vset.pattern.permute.xlu0 %v4552
        %4555 = vperm.xlu0 %4554, %v4550
        %v4556 = vpop.permute.xlu0 %4555
        %v4557 = vperm.slane %v3370, 2
        %v4558 = vlaneseq
        %v4559 = vshrl.u32 %v4558, 7
        %4561 = vset.pattern.permute.xlu0 %v4559
        %4562 = vperm.xlu0 %4561, %v4557
        %v4563 = vpop.permute.xlu0 %4562
        %v4564 = vperm.slane %v3370, 3
        %v4565 = vlaneseq
        %v4566 = vshrl.u32 %v4565, 7
        %4568 = vset.pattern.permute.xlu0 %v4566
        %4569 = vperm.xlu0 %4568, %v4564
        %v4570 = vpop.permute.xlu0 %4569
        %v4571 = vperm.slane %v3370, 4
        %v4572 = vlaneseq
        %v4573 = vshrl.u32 %v4572, 7
        %4575 = vset.pattern.permute.xlu0 %v4573
        %4576 = vperm.xlu0 %4575, %v4571
        %v4577 = vpop.permute.xlu0 %4576
        %v4578 = vperm.slane %v3370, 5
        %v4579 = vlaneseq
        %v4580 = vshrl.u32 %v4579, 7
        %4582 = vset.pattern.permute.xlu0 %v4580
        %4583 = vperm.xlu0 %4582, %v4578
        %v4584 = vpop.permute.xlu0 %4583
        %v4585 = vperm.slane %v3370, 6
        %v4586 = vlaneseq
        %v4587 = vshrl.u32 %v4586, 7
        %4589 = vset.pattern.permute.xlu0 %v4587
        %4590 = vperm.xlu0 %4589, %v4585
        %v4591 = vpop.permute.xlu0 %4590
        %v4592 = vperm.slane %v3370, 7
        %v4593 = vlaneseq
        %v4594 = vshrl.u32 %v4593, 7
        %4596 = vset.pattern.permute.xlu0 %v4594
        %4597 = vperm.xlu0 %4596, %v4592
        %v4598 = vpop.permute.xlu0 %4597
        %v4599 = vperm.slane %v3371, 0
        %v4600 = vlaneseq
        %v4601 = vshrl.u32 %v4600, 7
        %4603 = vset.pattern.permute.xlu0 %v4601
        %4604 = vperm.xlu0 %4603, %v4599
        %v4605 = vpop.permute.xlu0 %4604
        %v4606 = vperm.slane %v3371, 1
        %v4607 = vlaneseq
        %v4608 = vshrl.u32 %v4607, 7
        %4610 = vset.pattern.permute.xlu0 %v4608
        %4611 = vperm.xlu0 %4610, %v4606
        %v4612 = vpop.permute.xlu0 %4611
        %v4613 = vperm.slane %v3371, 2
        %v4614 = vlaneseq
        %v4615 = vshrl.u32 %v4614, 7
        %4617 = vset.pattern.permute.xlu0 %v4615
        %4618 = vperm.xlu0 %4617, %v4613
        %v4619 = vpop.permute.xlu0 %4618
        %v4620 = vperm.slane %v3371, 3
        %v4621 = vlaneseq
        %v4622 = vshrl.u32 %v4621, 7
        %4624 = vset.pattern.permute.xlu0 %v4622
        %4625 = vperm.xlu0 %4624, %v4620
        %v4626 = vpop.permute.xlu0 %4625
        %v4627 = vperm.slane %v3371, 4
        %v4628 = vlaneseq
        %v4629 = vshrl.u32 %v4628, 7
        %4631 = vset.pattern.permute.xlu0 %v4629
        %4632 = vperm.xlu0 %4631, %v4627
        %v4633 = vpop.permute.xlu0 %4632
        %v4634 = vperm.slane %v3371, 5
        %v4635 = vlaneseq
        %v4636 = vshrl.u32 %v4635, 7
        %4638 = vset.pattern.permute.xlu0 %v4636
        %4639 = vperm.xlu0 %4638, %v4634
        %v4640 = vpop.permute.xlu0 %4639
        %v4641 = vperm.slane %v3371, 6
        %v4642 = vlaneseq
        %v4643 = vshrl.u32 %v4642, 7
        %4645 = vset.pattern.permute.xlu0 %v4643
        %4646 = vperm.xlu0 %4645, %v4641
        %v4647 = vpop.permute.xlu0 %4646
        %v4648 = vperm.slane %v3371, 7
        %v4649 = vlaneseq
        %v4650 = vshrl.u32 %v4649, 7
        %4652 = vset.pattern.permute.xlu0 %v4650
        %4653 = vperm.xlu0 %4652, %v4648
        %v4654 = vpop.permute.xlu0 %4653
        %v4655 = vperm.slane %v3372, 0
        %v4656 = vlaneseq
        %v4657 = vshrl.u32 %v4656, 7
        %4659 = vset.pattern.permute.xlu0 %v4657
        %4660 = vperm.xlu0 %4659, %v4655
        %v4661 = vpop.permute.xlu0 %4660
        %v4662 = vperm.slane %v3372, 1
        %v4663 = vlaneseq
        %v4664 = vshrl.u32 %v4663, 7
        %4666 = vset.pattern.permute.xlu0 %v4664
        %4667 = vperm.xlu0 %4666, %v4662
        %v4668 = vpop.permute.xlu0 %4667
        %v4669 = vperm.slane %v3372, 2
        %v4670 = vlaneseq
        %v4671 = vshrl.u32 %v4670, 7
        %4673 = vset.pattern.permute.xlu0 %v4671
        %4674 = vperm.xlu0 %4673, %v4669
        %v4675 = vpop.permute.xlu0 %4674
        %v4676 = vperm.slane %v3372, 3
        %v4677 = vlaneseq
        %v4678 = vshrl.u32 %v4677, 7
        %4680 = vset.pattern.permute.xlu0 %v4678
        %4681 = vperm.xlu0 %4680, %v4676
        %v4682 = vpop.permute.xlu0 %4681
        %v4683 = vperm.slane %v3372, 4
        %v4684 = vlaneseq
        %v4685 = vshrl.u32 %v4684, 7
        %4687 = vset.pattern.permute.xlu0 %v4685
        %4688 = vperm.xlu0 %4687, %v4683
        %v4689 = vpop.permute.xlu0 %4688
        %v4690 = vperm.slane %v3372, 5
        %v4691 = vlaneseq
        %v4692 = vshrl.u32 %v4691, 7
        %4694 = vset.pattern.permute.xlu0 %v4692
        %4695 = vperm.xlu0 %4694, %v4690
        %v4696 = vpop.permute.xlu0 %4695
        %v4697 = vperm.slane %v3372, 6
        %v4698 = vlaneseq
        %v4699 = vshrl.u32 %v4698, 7
        %4701 = vset.pattern.permute.xlu0 %v4699
        %4702 = vperm.xlu0 %4701, %v4697
        %v4703 = vpop.permute.xlu0 %4702
        %v4704 = vperm.slane %v3372, 7
        %v4705 = vlaneseq
        %v4706 = vshrl.u32 %v4705, 7
        %4708 = vset.pattern.permute.xlu0 %v4706
        %4709 = vperm.xlu0 %4708, %v4704
        %v4710 = vpop.permute.xlu0 %4709
        %v4711 = vperm.slane %v3373, 0
        %v4712 = vlaneseq
        %v4713 = vshrl.u32 %v4712, 7
        %4715 = vset.pattern.permute.xlu0 %v4713
        %4716 = vperm.xlu0 %4715, %v4711
        %v4717 = vpop.permute.xlu0 %4716
        %v4718 = vperm.slane %v3373, 1
        %v4719 = vlaneseq
        %v4720 = vshrl.u32 %v4719, 7
        %4722 = vset.pattern.permute.xlu0 %v4720
        %4723 = vperm.xlu0 %4722, %v4718
        %v4724 = vpop.permute.xlu0 %4723
        %v4725 = vperm.slane %v3373, 2
        %v4726 = vlaneseq
        %v4727 = vshrl.u32 %v4726, 7
        %4729 = vset.pattern.permute.xlu0 %v4727
        %4730 = vperm.xlu0 %4729, %v4725
        %v4731 = vpop.permute.xlu0 %4730
        %v4732 = vperm.slane %v3373, 3
        %v4733 = vlaneseq
        %v4734 = vshrl.u32 %v4733, 7
        %4736 = vset.pattern.permute.xlu0 %v4734
        %4737 = vperm.xlu0 %4736, %v4732
        %v4738 = vpop.permute.xlu0 %4737
        %v4739 = vperm.slane %v3373, 4
        %v4740 = vlaneseq
        %v4741 = vshrl.u32 %v4740, 7
        %4743 = vset.pattern.permute.xlu0 %v4741
        %4744 = vperm.xlu0 %4743, %v4739
        %v4745 = vpop.permute.xlu0 %4744
        %v4746 = vperm.slane %v3373, 5
        %v4747 = vlaneseq
        %v4748 = vshrl.u32 %v4747, 7
        %4750 = vset.pattern.permute.xlu0 %v4748
        %4751 = vperm.xlu0 %4750, %v4746
        %v4752 = vpop.permute.xlu0 %4751
        %v4753 = vperm.slane %v3373, 6
        %v4754 = vlaneseq
        %v4755 = vshrl.u32 %v4754, 7
        %4757 = vset.pattern.permute.xlu0 %v4755
        %4758 = vperm.xlu0 %4757, %v4753
        %v4759 = vpop.permute.xlu0 %4758
        %v4760 = vperm.slane %v3373, 7
        %v4761 = vlaneseq
        %v4762 = vshrl.u32 %v4761, 7
        %4764 = vset.pattern.permute.xlu0 %v4762
        %4765 = vperm.xlu0 %4764, %v4760
        %v4766 = vpop.permute.xlu0 %4765
        %v4767 = vperm.slane %v3374, 0
        %v4768 = vlaneseq
        %v4769 = vshrl.u32 %v4768, 7
        %4771 = vset.pattern.permute.xlu0 %v4769
        %4772 = vperm.xlu0 %4771, %v4767
        %v4773 = vpop.permute.xlu0 %4772
        %v4774 = vperm.slane %v3374, 1
        %v4775 = vlaneseq
        %v4776 = vshrl.u32 %v4775, 7
        %4778 = vset.pattern.permute.xlu0 %v4776
        %4779 = vperm.xlu0 %4778, %v4774
        %v4780 = vpop.permute.xlu0 %4779
        %v4781 = vperm.slane %v3374, 2
        %v4782 = vlaneseq
        %v4783 = vshrl.u32 %v4782, 7
        %4785 = vset.pattern.permute.xlu0 %v4783
        %4786 = vperm.xlu0 %4785, %v4781
        %v4787 = vpop.permute.xlu0 %4786
        %v4788 = vperm.slane %v3374, 3
        %v4789 = vlaneseq
        %v4790 = vshrl.u32 %v4789, 7
        %4792 = vset.pattern.permute.xlu0 %v4790
        %4793 = vperm.xlu0 %4792, %v4788
        %v4794 = vpop.permute.xlu0 %4793
        %v4795 = vperm.slane %v3374, 4
        %v4796 = vlaneseq
        %v4797 = vshrl.u32 %v4796, 7
        %4799 = vset.pattern.permute.xlu0 %v4797
        %4800 = vperm.xlu0 %4799, %v4795
        %v4801 = vpop.permute.xlu0 %4800
        %v4802 = vperm.slane %v3374, 5
        %v4803 = vlaneseq
        %v4804 = vshrl.u32 %v4803, 7
        %4806 = vset.pattern.permute.xlu0 %v4804
        %4807 = vperm.xlu0 %4806, %v4802
        %v4808 = vpop.permute.xlu0 %4807
        %v4809 = vperm.slane %v3374, 6
        %v4810 = vlaneseq
        %v4811 = vshrl.u32 %v4810, 7
        %4813 = vset.pattern.permute.xlu0 %v4811
        %4814 = vperm.xlu0 %4813, %v4809
        %v4815 = vpop.permute.xlu0 %4814
        %v4816 = vperm.slane %v3374, 7
        %v4817 = vlaneseq
        %v4818 = vshrl.u32 %v4817, 7
        %4820 = vset.pattern.permute.xlu0 %v4818
        %4821 = vperm.xlu0 %4820, %v4816
        %v4822 = vpop.permute.xlu0 %4821
        %v4823 = vperm.slane %v3375, 0
        %v4824 = vlaneseq
        %v4825 = vshrl.u32 %v4824, 7
        %4827 = vset.pattern.permute.xlu0 %v4825
        %4828 = vperm.xlu0 %4827, %v4823
        %v4829 = vpop.permute.xlu0 %4828
        %v4830 = vperm.slane %v3375, 1
        %v4831 = vlaneseq
        %v4832 = vshrl.u32 %v4831, 7
        %4834 = vset.pattern.permute.xlu0 %v4832
        %4835 = vperm.xlu0 %4834, %v4830
        %v4836 = vpop.permute.xlu0 %4835
        %v4837 = vperm.slane %v3375, 2
        %v4838 = vlaneseq
        %v4839 = vshrl.u32 %v4838, 7
        %4841 = vset.pattern.permute.xlu0 %v4839
        %4842 = vperm.xlu0 %4841, %v4837
        %v4843 = vpop.permute.xlu0 %4842
        %v4844 = vperm.slane %v3375, 3
        %v4845 = vlaneseq
        %v4846 = vshrl.u32 %v4845, 7
        %4848 = vset.pattern.permute.xlu0 %v4846
        %4849 = vperm.xlu0 %4848, %v4844
        %v4850 = vpop.permute.xlu0 %4849
        %v4851 = vperm.slane %v3375, 4
        %v4852 = vlaneseq
        %v4853 = vshrl.u32 %v4852, 7
        %4855 = vset.pattern.permute.xlu0 %v4853
        %4856 = vperm.xlu0 %4855, %v4851
        %v4857 = vpop.permute.xlu0 %4856
        %v4858 = vperm.slane %v3375, 5
        %v4859 = vlaneseq
        %v4860 = vshrl.u32 %v4859, 7
        %4862 = vset.pattern.permute.xlu0 %v4860
        %4863 = vperm.xlu0 %4862, %v4858
        %v4864 = vpop.permute.xlu0 %4863
        %v4865 = vperm.slane %v3375, 6
        %v4866 = vlaneseq
        %v4867 = vshrl.u32 %v4866, 7
        %4869 = vset.pattern.permute.xlu0 %v4867
        %4870 = vperm.xlu0 %4869, %v4865
        %v4871 = vpop.permute.xlu0 %4870
        %v4872 = vperm.slane %v3375, 7
        %v4873 = vlaneseq
        %v4874 = vshrl.u32 %v4873, 7
        %4876 = vset.pattern.permute.xlu0 %v4874
        %4877 = vperm.xlu0 %4876, %v4872
        %v4878 = vpop.permute.xlu0 %4877
        %v4879 = vperm.slane %v3376, 0
        %v4880 = vlaneseq
        %v4881 = vshrl.u32 %v4880, 7
        %4883 = vset.pattern.permute.xlu0 %v4881
        %4884 = vperm.xlu0 %4883, %v4879
        %v4885 = vpop.permute.xlu0 %4884
        %v4886 = vperm.slane %v3376, 1
        %v4887 = vlaneseq
        %v4888 = vshrl.u32 %v4887, 7
        %4890 = vset.pattern.permute.xlu0 %v4888
        %4891 = vperm.xlu0 %4890, %v4886
        %v4892 = vpop.permute.xlu0 %4891
        %v4893 = vperm.slane %v3376, 2
        %v4894 = vlaneseq
        %v4895 = vshrl.u32 %v4894, 7
        %4897 = vset.pattern.permute.xlu0 %v4895
        %4898 = vperm.xlu0 %4897, %v4893
        %v4899 = vpop.permute.xlu0 %4898
        %v4900 = vperm.slane %v3376, 3
        %v4901 = vlaneseq
        %v4902 = vshrl.u32 %v4901, 7
        %4904 = vset.pattern.permute.xlu0 %v4902
        %4905 = vperm.xlu0 %4904, %v4900
        %v4906 = vpop.permute.xlu0 %4905
        %v4907 = vperm.slane %v3376, 4
        %v4908 = vlaneseq
        %v4909 = vshrl.u32 %v4908, 7
        %4911 = vset.pattern.permute.xlu0 %v4909
        %4912 = vperm.xlu0 %4911, %v4907
        %v4913 = vpop.permute.xlu0 %4912
        %v4914 = vperm.slane %v3376, 5
        %v4915 = vlaneseq
        %v4916 = vshrl.u32 %v4915, 7
        %4918 = vset.pattern.permute.xlu0 %v4916
        %4919 = vperm.xlu0 %4918, %v4914
        %v4920 = vpop.permute.xlu0 %4919
        %v4921 = vperm.slane %v3376, 6
        %v4922 = vlaneseq
        %v4923 = vshrl.u32 %v4922, 7
        %4925 = vset.pattern.permute.xlu0 %v4923
        %4926 = vperm.xlu0 %4925, %v4921
        %v4927 = vpop.permute.xlu0 %4926
        %v4928 = vperm.slane %v3376, 7
        %v4929 = vlaneseq
        %v4930 = vshrl.u32 %v4929, 7
        %4932 = vset.pattern.permute.xlu0 %v4930
        %4933 = vperm.xlu0 %4932, %v4928
        %v4934 = vpop.permute.xlu0 %4933
        %v4935 = vperm.slane %v3377, 0
        %v4936 = vlaneseq
        %v4937 = vshrl.u32 %v4936, 7
        %4939 = vset.pattern.permute.xlu0 %v4937
        %4940 = vperm.xlu0 %4939, %v4935
        %v4941 = vpop.permute.xlu0 %4940
        %v4942 = vperm.slane %v3377, 1
        %v4943 = vlaneseq
        %v4944 = vshrl.u32 %v4943, 7
        %4946 = vset.pattern.permute.xlu0 %v4944
        %4947 = vperm.xlu0 %4946, %v4942
        %v4948 = vpop.permute.xlu0 %4947
        %v4949 = vperm.slane %v3377, 2
        %v4950 = vlaneseq
        %v4951 = vshrl.u32 %v4950, 7
        %4953 = vset.pattern.permute.xlu0 %v4951
        %4954 = vperm.xlu0 %4953, %v4949
        %v4955 = vpop.permute.xlu0 %4954
        %v4956 = vperm.slane %v3377, 3
        %v4957 = vlaneseq
        %v4958 = vshrl.u32 %v4957, 7
        %4960 = vset.pattern.permute.xlu0 %v4958
        %4961 = vperm.xlu0 %4960, %v4956
        %v4962 = vpop.permute.xlu0 %4961
        %v4963 = vperm.slane %v3377, 4
        %v4964 = vlaneseq
        %v4965 = vshrl.u32 %v4964, 7
        %4967 = vset.pattern.permute.xlu0 %v4965
        %4968 = vperm.xlu0 %4967, %v4963
        %v4969 = vpop.permute.xlu0 %4968
        %v4970 = vperm.slane %v3377, 5
        %v4971 = vlaneseq
        %v4972 = vshrl.u32 %v4971, 7
        %4974 = vset.pattern.permute.xlu0 %v4972
        %4975 = vperm.xlu0 %4974, %v4970
        %v4976 = vpop.permute.xlu0 %4975
        %v4977 = vperm.slane %v3377, 6
        %v4978 = vlaneseq
        %v4979 = vshrl.u32 %v4978, 7
        %4981 = vset.pattern.permute.xlu0 %v4979
        %4982 = vperm.xlu0 %4981, %v4977
        %v4983 = vpop.permute.xlu0 %4982
        %v4984 = vperm.slane %v3377, 7
        %v4985 = vlaneseq
        %v4986 = vshrl.u32 %v4985, 7
        %4988 = vset.pattern.permute.xlu0 %v4986
        %4989 = vperm.xlu0 %4988, %v4984
        %v4990 = vpop.permute.xlu0 %4989
        %v4991 = vperm.slane %v3378, 0
        %v4992 = vlaneseq
        %v4993 = vshrl.u32 %v4992, 7
        %4995 = vset.pattern.permute.xlu0 %v4993
        %4996 = vperm.xlu0 %4995, %v4991
        %v4997 = vpop.permute.xlu0 %4996
        %v4998 = vperm.slane %v3378, 1
        %v4999 = vlaneseq
        %v5000 = vshrl.u32 %v4999, 7
        %5002 = vset.pattern.permute.xlu0 %v5000
        %5003 = vperm.xlu0 %5002, %v4998
        %v5004 = vpop.permute.xlu0 %5003
        %v5005 = vperm.slane %v3378, 2
        %v5006 = vlaneseq
        %v5007 = vshrl.u32 %v5006, 7
        %5009 = vset.pattern.permute.xlu0 %v5007
        %5010 = vperm.xlu0 %5009, %v5005
        %v5011 = vpop.permute.xlu0 %5010
        %v5012 = vperm.slane %v3378, 3
        %v5013 = vlaneseq
        %v5014 = vshrl.u32 %v5013, 7
        %5016 = vset.pattern.permute.xlu0 %v5014
        %5017 = vperm.xlu0 %5016, %v5012
        %v5018 = vpop.permute.xlu0 %5017
        %v5019 = vperm.slane %v3378, 4
        %v5020 = vlaneseq
        %v5021 = vshrl.u32 %v5020, 7
        %5023 = vset.pattern.permute.xlu0 %v5021
        %5024 = vperm.xlu0 %5023, %v5019
        %v5025 = vpop.permute.xlu0 %5024
        %v5026 = vperm.slane %v3378, 5
        %v5027 = vlaneseq
        %v5028 = vshrl.u32 %v5027, 7
        %5030 = vset.pattern.permute.xlu0 %v5028
        %5031 = vperm.xlu0 %5030, %v5026
        %v5032 = vpop.permute.xlu0 %5031
        %v5033 = vperm.slane %v3378, 6
        %v5034 = vlaneseq
        %v5035 = vshrl.u32 %v5034, 7
        %5037 = vset.pattern.permute.xlu0 %v5035
        %5038 = vperm.xlu0 %5037, %v5033
        %v5039 = vpop.permute.xlu0 %5038
        %v5040 = vperm.slane %v3378, 7
        %v5041 = vlaneseq
        %v5042 = vshrl.u32 %v5041, 7
        %5044 = vset.pattern.permute.xlu0 %v5042
        %5045 = vperm.xlu0 %5044, %v5040
        %v5046 = vpop.permute.xlu0 %5045
        %v5047 = vperm.slane %v3379, 0
        %v5048 = vlaneseq
        %v5049 = vshrl.u32 %v5048, 7
        %5051 = vset.pattern.permute.xlu0 %v5049
        %5052 = vperm.xlu0 %5051, %v5047
        %v5053 = vpop.permute.xlu0 %5052
        %v5054 = vperm.slane %v3379, 1
        %v5055 = vlaneseq
        %v5056 = vshrl.u32 %v5055, 7
        %5058 = vset.pattern.permute.xlu0 %v5056
        %5059 = vperm.xlu0 %5058, %v5054
        %v5060 = vpop.permute.xlu0 %5059
        %v5061 = vperm.slane %v3379, 2
        %v5062 = vlaneseq
        %v5063 = vshrl.u32 %v5062, 7
        %5065 = vset.pattern.permute.xlu0 %v5063
        %5066 = vperm.xlu0 %5065, %v5061
        %v5067 = vpop.permute.xlu0 %5066
        %v5068 = vperm.slane %v3379, 3
        %v5069 = vlaneseq
        %v5070 = vshrl.u32 %v5069, 7
        %5072 = vset.pattern.permute.xlu0 %v5070
        %5073 = vperm.xlu0 %5072, %v5068
        %v5074 = vpop.permute.xlu0 %5073
        %v5075 = vperm.slane %v3379, 4
        %v5076 = vlaneseq
        %v5077 = vshrl.u32 %v5076, 7
        %5079 = vset.pattern.permute.xlu0 %v5077
        %5080 = vperm.xlu0 %5079, %v5075
        %v5081 = vpop.permute.xlu0 %5080
        %v5082 = vperm.slane %v3379, 5
        %v5083 = vlaneseq
        %v5084 = vshrl.u32 %v5083, 7
        %5086 = vset.pattern.permute.xlu0 %v5084
        %5087 = vperm.xlu0 %5086, %v5082
        %v5088 = vpop.permute.xlu0 %5087
        %v5089 = vperm.slane %v3379, 6
        %v5090 = vlaneseq
        %v5091 = vshrl.u32 %v5090, 7
        %5093 = vset.pattern.permute.xlu0 %v5091
        %5094 = vperm.xlu0 %5093, %v5089
        %v5095 = vpop.permute.xlu0 %5094
        %v5096 = vperm.slane %v3379, 7
        %v5097 = vlaneseq
        %v5098 = vshrl.u32 %v5097, 7
        %5100 = vset.pattern.permute.xlu0 %v5098
        %5101 = vperm.xlu0 %5100, %v5096
        %v5102 = vpop.permute.xlu0 %5101
        %v5103 = vperm.slane %v3380, 0
        %v5104 = vlaneseq
        %v5105 = vshrl.u32 %v5104, 7
        %5107 = vset.pattern.permute.xlu0 %v5105
        %5108 = vperm.xlu0 %5107, %v5103
        %v5109 = vpop.permute.xlu0 %5108
        %v5110 = vperm.slane %v3380, 1
        %v5111 = vlaneseq
        %v5112 = vshrl.u32 %v5111, 7
        %5114 = vset.pattern.permute.xlu0 %v5112
        %5115 = vperm.xlu0 %5114, %v5110
        %v5116 = vpop.permute.xlu0 %5115
        %v5117 = vperm.slane %v3380, 2
        %v5118 = vlaneseq
        %v5119 = vshrl.u32 %v5118, 7
        %5121 = vset.pattern.permute.xlu0 %v5119
        %5122 = vperm.xlu0 %5121, %v5117
        %v5123 = vpop.permute.xlu0 %5122
        %v5124 = vperm.slane %v3380, 3
        %v5125 = vlaneseq
        %v5126 = vshrl.u32 %v5125, 7
        %5128 = vset.pattern.permute.xlu0 %v5126
        %5129 = vperm.xlu0 %5128, %v5124
        %v5130 = vpop.permute.xlu0 %5129
        %v5131 = vperm.slane %v3380, 4
        %v5132 = vlaneseq
        %v5133 = vshrl.u32 %v5132, 7
        %5135 = vset.pattern.permute.xlu0 %v5133
        %5136 = vperm.xlu0 %5135, %v5131
        %v5137 = vpop.permute.xlu0 %5136
        %v5138 = vperm.slane %v3380, 5
        %v5139 = vlaneseq
        %v5140 = vshrl.u32 %v5139, 7
        %5142 = vset.pattern.permute.xlu0 %v5140
        %5143 = vperm.xlu0 %5142, %v5138
        %v5144 = vpop.permute.xlu0 %5143
        %v5145 = vperm.slane %v3380, 6
        %v5146 = vlaneseq
        %v5147 = vshrl.u32 %v5146, 7
        %5149 = vset.pattern.permute.xlu0 %v5147
        %5150 = vperm.xlu0 %5149, %v5145
        %v5151 = vpop.permute.xlu0 %5150
        %v5152 = vperm.slane %v3380, 7
        %v5153 = vlaneseq
        %v5154 = vshrl.u32 %v5153, 7
        %5156 = vset.pattern.permute.xlu0 %v5154
        %5157 = vperm.xlu0 %5156, %v5152
        %v5158 = vpop.permute.xlu0 %5157
        %v5159 = vperm.slane %v3381, 0
        %v5160 = vlaneseq
        %v5161 = vshrl.u32 %v5160, 7
        %5163 = vset.pattern.permute.xlu0 %v5161
        %5164 = vperm.xlu0 %5163, %v5159
        %v5165 = vpop.permute.xlu0 %5164
        %v5166 = vperm.slane %v3381, 1
        %v5167 = vlaneseq
        %v5168 = vshrl.u32 %v5167, 7
        %5170 = vset.pattern.permute.xlu0 %v5168
        %5171 = vperm.xlu0 %5170, %v5166
        %v5172 = vpop.permute.xlu0 %5171
        %v5173 = vperm.slane %v3381, 2
        %v5174 = vlaneseq
        %v5175 = vshrl.u32 %v5174, 7
        %5177 = vset.pattern.permute.xlu0 %v5175
        %5178 = vperm.xlu0 %5177, %v5173
        %v5179 = vpop.permute.xlu0 %5178
        %v5180 = vperm.slane %v3381, 3
        %v5181 = vlaneseq
        %v5182 = vshrl.u32 %v5181, 7
        %5184 = vset.pattern.permute.xlu0 %v5182
        %5185 = vperm.xlu0 %5184, %v5180
        %v5186 = vpop.permute.xlu0 %5185
        %v5187 = vperm.slane %v3381, 4
        %v5188 = vlaneseq
        %v5189 = vshrl.u32 %v5188, 7
        %5191 = vset.pattern.permute.xlu0 %v5189
        %5192 = vperm.xlu0 %5191, %v5187
        %v5193 = vpop.permute.xlu0 %5192
        %v5194 = vperm.slane %v3381, 5
        %v5195 = vlaneseq
        %v5196 = vshrl.u32 %v5195, 7
        %5198 = vset.pattern.permute.xlu0 %v5196
        %5199 = vperm.xlu0 %5198, %v5194
        %v5200 = vpop.permute.xlu0 %5199
        %v5201 = vperm.slane %v3381, 6
        %v5202 = vlaneseq
        %v5203 = vshrl.u32 %v5202, 7
        %5205 = vset.pattern.permute.xlu0 %v5203
        %5206 = vperm.xlu0 %5205, %v5201
        %v5207 = vpop.permute.xlu0 %5206
        %v5208 = vperm.slane %v3381, 7
        %v5209 = vlaneseq
        %v5210 = vshrl.u32 %v5209, 7
        %5212 = vset.pattern.permute.xlu0 %v5210
        %5213 = vperm.xlu0 %5212, %v5208
        %v5214 = vpop.permute.xlu0 %5213
        %v5215 = vperm.slane %v3382, 0
        %v5216 = vlaneseq
        %v5217 = vshrl.u32 %v5216, 7
        %5219 = vset.pattern.permute.xlu0 %v5217
        %5220 = vperm.xlu0 %5219, %v5215
        %v5221 = vpop.permute.xlu0 %5220
        %v5222 = vperm.slane %v3382, 1
        %v5223 = vlaneseq
        %v5224 = vshrl.u32 %v5223, 7
        %5226 = vset.pattern.permute.xlu0 %v5224
        %5227 = vperm.xlu0 %5226, %v5222
        %v5228 = vpop.permute.xlu0 %5227
        %v5229 = vperm.slane %v3382, 2
        %v5230 = vlaneseq
        %v5231 = vshrl.u32 %v5230, 7
        %5233 = vset.pattern.permute.xlu0 %v5231
        %5234 = vperm.xlu0 %5233, %v5229
        %v5235 = vpop.permute.xlu0 %5234
        %v5236 = vperm.slane %v3382, 3
        %v5237 = vlaneseq
        %v5238 = vshrl.u32 %v5237, 7
        %5240 = vset.pattern.permute.xlu0 %v5238
        %5241 = vperm.xlu0 %5240, %v5236
        %v5242 = vpop.permute.xlu0 %5241
        %v5243 = vperm.slane %v3382, 4
        %v5244 = vlaneseq
        %v5245 = vshrl.u32 %v5244, 7
        %5247 = vset.pattern.permute.xlu0 %v5245
        %5248 = vperm.xlu0 %5247, %v5243
        %v5249 = vpop.permute.xlu0 %5248
        %v5250 = vperm.slane %v3382, 5
        %v5251 = vlaneseq
        %v5252 = vshrl.u32 %v5251, 7
        %5254 = vset.pattern.permute.xlu0 %v5252
        %5255 = vperm.xlu0 %5254, %v5250
        %v5256 = vpop.permute.xlu0 %5255
        %v5257 = vperm.slane %v3382, 6
        %v5258 = vlaneseq
        %v5259 = vshrl.u32 %v5258, 7
        %5261 = vset.pattern.permute.xlu0 %v5259
        %5262 = vperm.xlu0 %5261, %v5257
        %v5263 = vpop.permute.xlu0 %5262
        %v5264 = vperm.slane %v3382, 7
        %v5265 = vlaneseq
        %v5266 = vshrl.u32 %v5265, 7
        %5268 = vset.pattern.permute.xlu0 %v5266
        %5269 = vperm.xlu0 %5268, %v5264
        %v5270 = vpop.permute.xlu0 %5269
        %v5271 = vmul.f32 %v3485, %v578
        %v5272 = vmul.f32 %v3492, %v579
        %v5273 = vmul.f32 %v3499, %v580
        %v5274 = vmul.f32 %v3506, %v581
        %v5275 = vmul.f32 %v3513, %v582
        %v5276 = vmul.f32 %v3520, %v583
        %v5277 = vmul.f32 %v3527, %v584
        %v5278 = vmul.f32 %v3534, %v585
        %v5279 = vmul.f32 %v3541, %v586
        %v5280 = vmul.f32 %v3548, %v587
        %v5281 = vmul.f32 %v3555, %v588
        %v5282 = vmul.f32 %v3562, %v589
        %v5283 = vmul.f32 %v3569, %v590
        %v5284 = vmul.f32 %v3576, %v591
        %v5285 = vmul.f32 %v3583, %v592
        %v5286 = vmul.f32 %v3590, %v593
        %v5287 = vmul.f32 %v3597, %v594
        %v5288 = vmul.f32 %v3604, %v595
        %v5289 = vmul.f32 %v3611, %v596
        %v5290 = vmul.f32 %v3618, %v597
        %v5291 = vmul.f32 %v3625, %v598
        %v5292 = vmul.f32 %v3632, %v599
        %v5293 = vmul.f32 %v3639, %v600
        %v5294 = vmul.f32 %v3646, %v601
        %v5295 = vmul.f32 %v3653, %v602
        %v5296 = vmul.f32 %v3660, %v603
        %v5297 = vmul.f32 %v3667, %v604
        %v5298 = vmul.f32 %v3674, %v605
        %v5299 = vmul.f32 %v3681, %v606
        %v5300 = vmul.f32 %v3688, %v607
        %v5301 = vmul.f32 %v3695, %v608
        %v5302 = vmul.f32 %v3702, %v609
        %v5303 = vmul.f32 %v3709, %v610
        %v5304 = vmul.f32 %v3716, %v611
        %v5305 = vmul.f32 %v3723, %v612
        %v5306 = vmul.f32 %v3730, %v613
        %v5307 = vmul.f32 %v3737, %v614
        %v5308 = vmul.f32 %v3744, %v615
        %v5309 = vmul.f32 %v3751, %v616
        %v5310 = vmul.f32 %v3758, %v617
        %v5311 = vmul.f32 %v3765, %v618
        %v5312 = vmul.f32 %v3772, %v619
        %v5313 = vmul.f32 %v3779, %v620
        %v5314 = vmul.f32 %v3786, %v621
        %v5315 = vmul.f32 %v3793, %v622
        %v5316 = vmul.f32 %v3800, %v623
        %v5317 = vmul.f32 %v3807, %v624
        %v5318 = vmul.f32 %v3814, %v625
        %v5319 = vmul.f32 %v3821, %v626
        %v5320 = vmul.f32 %v3828, %v627
        %v5321 = vmul.f32 %v3835, %v628
        %v5322 = vmul.f32 %v3842, %v629
        %v5323 = vmul.f32 %v3849, %v630
        %v5324 = vmul.f32 %v3856, %v631
        %v5325 = vmul.f32 %v3863, %v632
        %v5326 = vmul.f32 %v3870, %v633
        %v5327 = vmul.f32 %v3877, %v634
        %v5328 = vmul.f32 %v3884, %v635
        %v5329 = vmul.f32 %v3891, %v636
        %v5330 = vmul.f32 %v3898, %v637
        %v5331 = vmul.f32 %v3905, %v638
        %v5332 = vmul.f32 %v3912, %v639
        %v5333 = vmul.f32 %v3919, %v640
        %v5334 = vmul.f32 %v3926, %v641
        %v5335 = vmul.f32 %v3933, %v642
        %v5336 = vmul.f32 %v3940, %v643
        %v5337 = vmul.f32 %v3947, %v644
        %v5338 = vmul.f32 %v3954, %v645
        %v5339 = vmul.f32 %v3961, %v646
        %v5340 = vmul.f32 %v3968, %v647
        %v5341 = vmul.f32 %v3975, %v648
        %v5342 = vmul.f32 %v3982, %v649
        %v5343 = vmul.f32 %v3989, %v650
        %v5344 = vmul.f32 %v3996, %v651
        %v5345 = vmul.f32 %v4003, %v652
        %v5346 = vmul.f32 %v4010, %v653
        %v5347 = vmul.f32 %v4017, %v654
        %v5348 = vmul.f32 %v4024, %v655
        %v5349 = vmul.f32 %v4031, %v656
        %v5350 = vmul.f32 %v4038, %v657
        %v5351 = vmul.f32 %v4045, %v658
        %v5352 = vmul.f32 %v4052, %v659
        %v5353 = vmul.f32 %v4059, %v660
        %v5354 = vmul.f32 %v4066, %v661
        %v5355 = vmul.f32 %v4073, %v662
        %v5356 = vmul.f32 %v4080, %v663
        %v5357 = vmul.f32 %v4087, %v664
        %v5358 = vmul.f32 %v4094, %v665
        %v5359 = vmul.f32 %v4101, %v666
        %v5360 = vmul.f32 %v4108, %v667
        %v5361 = vmul.f32 %v4115, %v668
        %v5362 = vmul.f32 %v4122, %v669
        %v5363 = vmul.f32 %v4129, %v670
        %v5364 = vmul.f32 %v4136, %v671
        %v5365 = vmul.f32 %v4143, %v672
        %v5366 = vmul.f32 %v4150, %v673
        %v5367 = vmul.f32 %v4157, %v674
        %v5368 = vmul.f32 %v4164, %v675
        %v5369 = vmul.f32 %v4171, %v676
        %v5370 = vmul.f32 %v4178, %v677
        %v5371 = vmul.f32 %v4185, %v678
        %v5372 = vmul.f32 %v4192, %v679
        %v5373 = vmul.f32 %v4199, %v680
        %v5374 = vmul.f32 %v4206, %v681
        %v5375 = vmul.f32 %v4213, %v682
        %v5376 = vmul.f32 %v4220, %v683
        %v5377 = vmul.f32 %v4227, %v684
        %v5378 = vmul.f32 %v4234, %v685
        %v5379 = vmul.f32 %v4241, %v686
        %v5380 = vmul.f32 %v4248, %v687
        %v5381 = vmul.f32 %v4255, %v688
        %v5382 = vmul.f32 %v4262, %v689
        %v5383 = vmul.f32 %v4269, %v690
        %v5384 = vmul.f32 %v4276, %v691
        %v5385 = vmul.f32 %v4283, %v692
        %v5386 = vmul.f32 %v4290, %v693
        %v5387 = vmul.f32 %v4297, %v694
        %v5388 = vmul.f32 %v4304, %v695
        %v5389 = vmul.f32 %v4311, %v696
        %v5390 = vmul.f32 %v4318, %v697
        %v5391 = vmul.f32 %v4325, %v698
        %v5392 = vmul.f32 %v4332, %v699
        %v5393 = vmul.f32 %v4339, %v700
        %v5394 = vmul.f32 %v4346, %v701
        %v5395 = vmul.f32 %v4353, %v702
        %v5396 = vmul.f32 %v4360, %v703
        %v5397 = vmul.f32 %v4367, %v704
        %v5398 = vmul.f32 %v4374, %v705
        %v5399 = vmul.f32 %v4381, %v706
        %v5400 = vmul.f32 %v4388, %v707
        %v5401 = vmul.f32 %v4395, %v708
        %v5402 = vmul.f32 %v4402, %v709
        %v5403 = vmul.f32 %v4409, %v710
        %v5404 = vmul.f32 %v4416, %v711
        %v5405 = vmul.f32 %v4423, %v712
        %v5406 = vmul.f32 %v4430, %v713
        %v5407 = vmul.f32 %v4437, %v714
        %v5408 = vmul.f32 %v4444, %v715
        %v5409 = vmul.f32 %v4451, %v716
        %v5410 = vmul.f32 %v4458, %v717
        %v5411 = vmul.f32 %v4465, %v718
        %v5412 = vmul.f32 %v4472, %v719
        %v5413 = vmul.f32 %v4479, %v720
        %v5414 = vmul.f32 %v4486, %v721
        %v5415 = vmul.f32 %v4493, %v722
        %v5416 = vmul.f32 %v4500, %v723
        %v5417 = vmul.f32 %v4507, %v724
        %v5418 = vmul.f32 %v4514, %v725
        %v5419 = vmul.f32 %v4521, %v726
        %v5420 = vmul.f32 %v4528, %v727
        %v5421 = vmul.f32 %v4535, %v728
        %v5422 = vmul.f32 %v4542, %v729
        %v5423 = vmul.f32 %v4549, %v730
        %v5424 = vmul.f32 %v4556, %v731
        %v5425 = vmul.f32 %v4563, %v732
        %v5426 = vmul.f32 %v4570, %v733
        %v5427 = vmul.f32 %v4577, %v734
        %v5428 = vmul.f32 %v4584, %v735
        %v5429 = vmul.f32 %v4591, %v736
        %v5430 = vmul.f32 %v4598, %v737
        %v5431 = vmul.f32 %v4605, %v738
        %v5432 = vmul.f32 %v4612, %v739
        %v5433 = vmul.f32 %v4619, %v740
        %v5434 = vmul.f32 %v4626, %v741
        %v5435 = vmul.f32 %v4633, %v742
        %v5436 = vmul.f32 %v4640, %v743
        %v5437 = vmul.f32 %v4647, %v744
        %v5438 = vmul.f32 %v4654, %v745
        %v5439 = vmul.f32 %v4661, %v746
        %v5440 = vmul.f32 %v4668, %v747
        %v5441 = vmul.f32 %v4675, %v748
        %v5442 = vmul.f32 %v4682, %v749
        %v5443 = vmul.f32 %v4689, %v750
        %v5444 = vmul.f32 %v4696, %v751
        %v5445 = vmul.f32 %v4703, %v752
        %v5446 = vmul.f32 %v4710, %v753
        %v5447 = vmul.f32 %v4717, %v754
        %v5448 = vmul.f32 %v4724, %v755
        %v5449 = vmul.f32 %v4731, %v756
        %v5450 = vmul.f32 %v4738, %v757
        %v5451 = vmul.f32 %v4745, %v758
        %v5452 = vmul.f32 %v4752, %v759
        %v5453 = vmul.f32 %v4759, %v760
        %v5454 = vmul.f32 %v4766, %v761
        %v5455 = vmul.f32 %v4773, %v762
        %v5456 = vmul.f32 %v4780, %v763
        %v5457 = vmul.f32 %v4787, %v764
        %v5458 = vmul.f32 %v4794, %v765
        %v5459 = vmul.f32 %v4801, %v766
        %v5460 = vmul.f32 %v4808, %v767
        %v5461 = vmul.f32 %v4815, %v768
        %v5462 = vmul.f32 %v4822, %v769
        %v5463 = vmul.f32 %v4829, %v770
        %v5464 = vmul.f32 %v4836, %v771
        %v5465 = vmul.f32 %v4843, %v772
        %v5466 = vmul.f32 %v4850, %v773
        %v5467 = vmul.f32 %v4857, %v774
        %v5468 = vmul.f32 %v4864, %v775
        %v5469 = vmul.f32 %v4871, %v776
        %v5470 = vmul.f32 %v4878, %v777
        %v5471 = vmul.f32 %v4885, %v778
        %v5472 = vmul.f32 %v4892, %v779
        %v5473 = vmul.f32 %v4899, %v780
        %v5474 = vmul.f32 %v4906, %v781
        %v5475 = vmul.f32 %v4913, %v782
        %v5476 = vmul.f32 %v4920, %v783
        %v5477 = vmul.f32 %v4927, %v784
        %v5478 = vmul.f32 %v4934, %v785
        %v5479 = vmul.f32 %v4941, %v786
        %v5480 = vmul.f32 %v4948, %v787
        %v5481 = vmul.f32 %v4955, %v788
        %v5482 = vmul.f32 %v4962, %v789
        %v5483 = vmul.f32 %v4969, %v790
        %v5484 = vmul.f32 %v4976, %v791
        %v5485 = vmul.f32 %v4983, %v792
        %v5486 = vmul.f32 %v4990, %v793
        %v5487 = vmul.f32 %v4997, %v794
        %v5488 = vmul.f32 %v5004, %v795
        %v5489 = vmul.f32 %v5011, %v796
        %v5490 = vmul.f32 %v5018, %v797
        %v5491 = vmul.f32 %v5025, %v798
        %v5492 = vmul.f32 %v5032, %v799
        %v5493 = vmul.f32 %v5039, %v800
        %v5494 = vmul.f32 %v5046, %v801
        %v5495 = vmul.f32 %v5053, %v802
        %v5496 = vmul.f32 %v5060, %v803
        %v5497 = vmul.f32 %v5067, %v804
        %v5498 = vmul.f32 %v5074, %v805
        %v5499 = vmul.f32 %v5081, %v806
        %v5500 = vmul.f32 %v5088, %v807
        %v5501 = vmul.f32 %v5095, %v808
        %v5502 = vmul.f32 %v5102, %v809
        %v5503 = vmul.f32 %v5109, %v810
        %v5504 = vmul.f32 %v5116, %v811
        %v5505 = vmul.f32 %v5123, %v812
        %v5506 = vmul.f32 %v5130, %v813
        %v5507 = vmul.f32 %v5137, %v814
        %v5508 = vmul.f32 %v5144, %v815
        %v5509 = vmul.f32 %v5151, %v816
        %v5510 = vmul.f32 %v5158, %v817
        %v5511 = vmul.f32 %v5165, %v818
        %v5512 = vmul.f32 %v5172, %v819
        %v5513 = vmul.f32 %v5179, %v820
        %v5514 = vmul.f32 %v5186, %v821
        %v5515 = vmul.f32 %v5193, %v822
        %v5516 = vmul.f32 %v5200, %v823
        %v5517 = vmul.f32 %v5207, %v824
        %v5518 = vmul.f32 %v5214, %v825
        %v5519 = vmul.f32 %v5221, %v826
        %v5520 = vmul.f32 %v5228, %v827
        %v5521 = vmul.f32 %v5235, %v828
        %v5522 = vmul.f32 %v5242, %v829
        %v5523 = vmul.f32 %v5249, %v830
        %v5524 = vmul.f32 %v5256, %v831
        %v5525 = vmul.f32 %v5263, %v832
        %v5526 = vmul.f32 %v5270, %v833
        %v5527 = vrot.slane %v5271, 4
        %v5528 = vadd.f32 %v5271, %v5527
        %v5529 = vrot.slane %v5528, 2
        %v5530 = vadd.f32 %v5528, %v5529
        %v5531 = vrot.slane %v5530, 1
        %v5532 = vadd.f32 %v5530, %v5531
        %v5533 = vrot.slane %v5272, 4
        %v5534 = vadd.f32 %v5272, %v5533
        %v5535 = vrot.slane %v5534, 2
        %v5536 = vadd.f32 %v5534, %v5535
        %v5537 = vrot.slane %v5536, 1
        %v5538 = vadd.f32 %v5536, %v5537
        %v5539 = vrot.slane %v5273, 4
        %v5540 = vadd.f32 %v5273, %v5539
        %v5541 = vrot.slane %v5540, 2
        %v5542 = vadd.f32 %v5540, %v5541
        %v5543 = vrot.slane %v5542, 1
        %v5544 = vadd.f32 %v5542, %v5543
        %v5545 = vrot.slane %v5274, 4
        %v5546 = vadd.f32 %v5274, %v5545
        %v5547 = vrot.slane %v5546, 2
        %v5548 = vadd.f32 %v5546, %v5547
        %v5549 = vrot.slane %v5548, 1
        %v5550 = vadd.f32 %v5548, %v5549
        %v5551 = vrot.slane %v5275, 4
        %v5552 = vadd.f32 %v5275, %v5551
        %v5553 = vrot.slane %v5552, 2
        %v5554 = vadd.f32 %v5552, %v5553
        %v5555 = vrot.slane %v5554, 1
        %v5556 = vadd.f32 %v5554, %v5555
        %v5557 = vrot.slane %v5276, 4
        %v5558 = vadd.f32 %v5276, %v5557
        %v5559 = vrot.slane %v5558, 2
        %v5560 = vadd.f32 %v5558, %v5559
        %v5561 = vrot.slane %v5560, 1
        %v5562 = vadd.f32 %v5560, %v5561
        %v5563 = vrot.slane %v5277, 4
        %v5564 = vadd.f32 %v5277, %v5563
        %v5565 = vrot.slane %v5564, 2
        %v5566 = vadd.f32 %v5564, %v5565
        %v5567 = vrot.slane %v5566, 1
        %v5568 = vadd.f32 %v5566, %v5567
        %v5569 = vrot.slane %v5278, 4
        %v5570 = vadd.f32 %v5278, %v5569
        %v5571 = vrot.slane %v5570, 2
        %v5572 = vadd.f32 %v5570, %v5571
        %v5573 = vrot.slane %v5572, 1
        %v5574 = vadd.f32 %v5572, %v5573
        %v5575 = vrot.slane %v5279, 4
        %v5576 = vadd.f32 %v5279, %v5575
        %v5577 = vrot.slane %v5576, 2
        %v5578 = vadd.f32 %v5576, %v5577
        %v5579 = vrot.slane %v5578, 1
        %v5580 = vadd.f32 %v5578, %v5579
        %v5581 = vrot.slane %v5280, 4
        %v5582 = vadd.f32 %v5280, %v5581
        %v5583 = vrot.slane %v5582, 2
        %v5584 = vadd.f32 %v5582, %v5583
        %v5585 = vrot.slane %v5584, 1
        %v5586 = vadd.f32 %v5584, %v5585
        %v5587 = vrot.slane %v5281, 4
        %v5588 = vadd.f32 %v5281, %v5587
        %v5589 = vrot.slane %v5588, 2
        %v5590 = vadd.f32 %v5588, %v5589
        %v5591 = vrot.slane %v5590, 1
        %v5592 = vadd.f32 %v5590, %v5591
        %v5593 = vrot.slane %v5282, 4
        %v5594 = vadd.f32 %v5282, %v5593
        %v5595 = vrot.slane %v5594, 2
        %v5596 = vadd.f32 %v5594, %v5595
        %v5597 = vrot.slane %v5596, 1
        %v5598 = vadd.f32 %v5596, %v5597
        %v5599 = vrot.slane %v5283, 4
        %v5600 = vadd.f32 %v5283, %v5599
        %v5601 = vrot.slane %v5600, 2
        %v5602 = vadd.f32 %v5600, %v5601
        %v5603 = vrot.slane %v5602, 1
        %v5604 = vadd.f32 %v5602, %v5603
        %v5605 = vrot.slane %v5284, 4
        %v5606 = vadd.f32 %v5284, %v5605
        %v5607 = vrot.slane %v5606, 2
        %v5608 = vadd.f32 %v5606, %v5607
        %v5609 = vrot.slane %v5608, 1
        %v5610 = vadd.f32 %v5608, %v5609
        %v5611 = vrot.slane %v5285, 4
        %v5612 = vadd.f32 %v5285, %v5611
        %v5613 = vrot.slane %v5612, 2
        %v5614 = vadd.f32 %v5612, %v5613
        %v5615 = vrot.slane %v5614, 1
        %v5616 = vadd.f32 %v5614, %v5615
        %v5617 = vrot.slane %v5286, 4
        %v5618 = vadd.f32 %v5286, %v5617
        %v5619 = vrot.slane %v5618, 2
        %v5620 = vadd.f32 %v5618, %v5619
        %v5621 = vrot.slane %v5620, 1
        %v5622 = vadd.f32 %v5620, %v5621
        %v5623 = vrot.slane %v5287, 4
        %v5624 = vadd.f32 %v5287, %v5623
        %v5625 = vrot.slane %v5624, 2
        %v5626 = vadd.f32 %v5624, %v5625
        %v5627 = vrot.slane %v5626, 1
        %v5628 = vadd.f32 %v5626, %v5627
        %v5629 = vrot.slane %v5288, 4
        %v5630 = vadd.f32 %v5288, %v5629
        %v5631 = vrot.slane %v5630, 2
        %v5632 = vadd.f32 %v5630, %v5631
        %v5633 = vrot.slane %v5632, 1
        %v5634 = vadd.f32 %v5632, %v5633
        %v5635 = vrot.slane %v5289, 4
        %v5636 = vadd.f32 %v5289, %v5635
        %v5637 = vrot.slane %v5636, 2
        %v5638 = vadd.f32 %v5636, %v5637
        %v5639 = vrot.slane %v5638, 1
        %v5640 = vadd.f32 %v5638, %v5639
        %v5641 = vrot.slane %v5290, 4
        %v5642 = vadd.f32 %v5290, %v5641
        %v5643 = vrot.slane %v5642, 2
        %v5644 = vadd.f32 %v5642, %v5643
        %v5645 = vrot.slane %v5644, 1
        %v5646 = vadd.f32 %v5644, %v5645
        %v5647 = vrot.slane %v5291, 4
        %v5648 = vadd.f32 %v5291, %v5647
        %v5649 = vrot.slane %v5648, 2
        %v5650 = vadd.f32 %v5648, %v5649
        %v5651 = vrot.slane %v5650, 1
        %v5652 = vadd.f32 %v5650, %v5651
        %v5653 = vrot.slane %v5292, 4
        %v5654 = vadd.f32 %v5292, %v5653
        %v5655 = vrot.slane %v5654, 2
        %v5656 = vadd.f32 %v5654, %v5655
        %v5657 = vrot.slane %v5656, 1
        %v5658 = vadd.f32 %v5656, %v5657
        %v5659 = vrot.slane %v5293, 4
        %v5660 = vadd.f32 %v5293, %v5659
        %v5661 = vrot.slane %v5660, 2
        %v5662 = vadd.f32 %v5660, %v5661
        %v5663 = vrot.slane %v5662, 1
        %v5664 = vadd.f32 %v5662, %v5663
        %v5665 = vrot.slane %v5294, 4
        %v5666 = vadd.f32 %v5294, %v5665
        %v5667 = vrot.slane %v5666, 2
        %v5668 = vadd.f32 %v5666, %v5667
        %v5669 = vrot.slane %v5668, 1
        %v5670 = vadd.f32 %v5668, %v5669
        %v5671 = vrot.slane %v5295, 4
        %v5672 = vadd.f32 %v5295, %v5671
        %v5673 = vrot.slane %v5672, 2
        %v5674 = vadd.f32 %v5672, %v5673
        %v5675 = vrot.slane %v5674, 1
        %v5676 = vadd.f32 %v5674, %v5675
        %v5677 = vrot.slane %v5296, 4
        %v5678 = vadd.f32 %v5296, %v5677
        %v5679 = vrot.slane %v5678, 2
        %v5680 = vadd.f32 %v5678, %v5679
        %v5681 = vrot.slane %v5680, 1
        %v5682 = vadd.f32 %v5680, %v5681
        %v5683 = vrot.slane %v5297, 4
        %v5684 = vadd.f32 %v5297, %v5683
        %v5685 = vrot.slane %v5684, 2
        %v5686 = vadd.f32 %v5684, %v5685
        %v5687 = vrot.slane %v5686, 1
        %v5688 = vadd.f32 %v5686, %v5687
        %v5689 = vrot.slane %v5298, 4
        %v5690 = vadd.f32 %v5298, %v5689
        %v5691 = vrot.slane %v5690, 2
        %v5692 = vadd.f32 %v5690, %v5691
        %v5693 = vrot.slane %v5692, 1
        %v5694 = vadd.f32 %v5692, %v5693
        %v5695 = vrot.slane %v5299, 4
        %v5696 = vadd.f32 %v5299, %v5695
        %v5697 = vrot.slane %v5696, 2
        %v5698 = vadd.f32 %v5696, %v5697
        %v5699 = vrot.slane %v5698, 1
        %v5700 = vadd.f32 %v5698, %v5699
        %v5701 = vrot.slane %v5300, 4
        %v5702 = vadd.f32 %v5300, %v5701
        %v5703 = vrot.slane %v5702, 2
        %v5704 = vadd.f32 %v5702, %v5703
        %v5705 = vrot.slane %v5704, 1
        %v5706 = vadd.f32 %v5704, %v5705
        %v5707 = vrot.slane %v5301, 4
        %v5708 = vadd.f32 %v5301, %v5707
        %v5709 = vrot.slane %v5708, 2
        %v5710 = vadd.f32 %v5708, %v5709
        %v5711 = vrot.slane %v5710, 1
        %v5712 = vadd.f32 %v5710, %v5711
        %v5713 = vrot.slane %v5302, 4
        %v5714 = vadd.f32 %v5302, %v5713
        %v5715 = vrot.slane %v5714, 2
        %v5716 = vadd.f32 %v5714, %v5715
        %v5717 = vrot.slane %v5716, 1
        %v5718 = vadd.f32 %v5716, %v5717
        %v5719 = vrot.slane %v5303, 4
        %v5720 = vadd.f32 %v5303, %v5719
        %v5721 = vrot.slane %v5720, 2
        %v5722 = vadd.f32 %v5720, %v5721
        %v5723 = vrot.slane %v5722, 1
        %v5724 = vadd.f32 %v5722, %v5723
        %v5725 = vrot.slane %v5304, 4
        %v5726 = vadd.f32 %v5304, %v5725
        %v5727 = vrot.slane %v5726, 2
        %v5728 = vadd.f32 %v5726, %v5727
        %v5729 = vrot.slane %v5728, 1
        %v5730 = vadd.f32 %v5728, %v5729
        %v5731 = vrot.slane %v5305, 4
        %v5732 = vadd.f32 %v5305, %v5731
        %v5733 = vrot.slane %v5732, 2
        %v5734 = vadd.f32 %v5732, %v5733
        %v5735 = vrot.slane %v5734, 1
        %v5736 = vadd.f32 %v5734, %v5735
        %v5737 = vrot.slane %v5306, 4
        %v5738 = vadd.f32 %v5306, %v5737
        %v5739 = vrot.slane %v5738, 2
        %v5740 = vadd.f32 %v5738, %v5739
        %v5741 = vrot.slane %v5740, 1
        %v5742 = vadd.f32 %v5740, %v5741
        %v5743 = vrot.slane %v5307, 4
        %v5744 = vadd.f32 %v5307, %v5743
        %v5745 = vrot.slane %v5744, 2
        %v5746 = vadd.f32 %v5744, %v5745
        %v5747 = vrot.slane %v5746, 1
        %v5748 = vadd.f32 %v5746, %v5747
        %v5749 = vrot.slane %v5308, 4
        %v5750 = vadd.f32 %v5308, %v5749
        %v5751 = vrot.slane %v5750, 2
        %v5752 = vadd.f32 %v5750, %v5751
        %v5753 = vrot.slane %v5752, 1
        %v5754 = vadd.f32 %v5752, %v5753
        %v5755 = vrot.slane %v5309, 4
        %v5756 = vadd.f32 %v5309, %v5755
        %v5757 = vrot.slane %v5756, 2
        %v5758 = vadd.f32 %v5756, %v5757
        %v5759 = vrot.slane %v5758, 1
        %v5760 = vadd.f32 %v5758, %v5759
        %v5761 = vrot.slane %v5310, 4
        %v5762 = vadd.f32 %v5310, %v5761
        %v5763 = vrot.slane %v5762, 2
        %v5764 = vadd.f32 %v5762, %v5763
        %v5765 = vrot.slane %v5764, 1
        %v5766 = vadd.f32 %v5764, %v5765
        %v5767 = vrot.slane %v5311, 4
        %v5768 = vadd.f32 %v5311, %v5767
        %v5769 = vrot.slane %v5768, 2
        %v5770 = vadd.f32 %v5768, %v5769
        %v5771 = vrot.slane %v5770, 1
        %v5772 = vadd.f32 %v5770, %v5771
        %v5773 = vrot.slane %v5312, 4
        %v5774 = vadd.f32 %v5312, %v5773
        %v5775 = vrot.slane %v5774, 2
        %v5776 = vadd.f32 %v5774, %v5775
        %v5777 = vrot.slane %v5776, 1
        %v5778 = vadd.f32 %v5776, %v5777
        %v5779 = vrot.slane %v5313, 4
        %v5780 = vadd.f32 %v5313, %v5779
        %v5781 = vrot.slane %v5780, 2
        %v5782 = vadd.f32 %v5780, %v5781
        %v5783 = vrot.slane %v5782, 1
        %v5784 = vadd.f32 %v5782, %v5783
        %v5785 = vrot.slane %v5314, 4
        %v5786 = vadd.f32 %v5314, %v5785
        %v5787 = vrot.slane %v5786, 2
        %v5788 = vadd.f32 %v5786, %v5787
        %v5789 = vrot.slane %v5788, 1
        %v5790 = vadd.f32 %v5788, %v5789
        %v5791 = vrot.slane %v5315, 4
        %v5792 = vadd.f32 %v5315, %v5791
        %v5793 = vrot.slane %v5792, 2
        %v5794 = vadd.f32 %v5792, %v5793
        %v5795 = vrot.slane %v5794, 1
        %v5796 = vadd.f32 %v5794, %v5795
        %v5797 = vrot.slane %v5316, 4
        %v5798 = vadd.f32 %v5316, %v5797
        %v5799 = vrot.slane %v5798, 2
        %v5800 = vadd.f32 %v5798, %v5799
        %v5801 = vrot.slane %v5800, 1
        %v5802 = vadd.f32 %v5800, %v5801
        %v5803 = vrot.slane %v5317, 4
        %v5804 = vadd.f32 %v5317, %v5803
        %v5805 = vrot.slane %v5804, 2
        %v5806 = vadd.f32 %v5804, %v5805
        %v5807 = vrot.slane %v5806, 1
        %v5808 = vadd.f32 %v5806, %v5807
        %v5809 = vrot.slane %v5318, 4
        %v5810 = vadd.f32 %v5318, %v5809
        %v5811 = vrot.slane %v5810, 2
        %v5812 = vadd.f32 %v5810, %v5811
        %v5813 = vrot.slane %v5812, 1
        %v5814 = vadd.f32 %v5812, %v5813
        %v5815 = vrot.slane %v5319, 4
        %v5816 = vadd.f32 %v5319, %v5815
        %v5817 = vrot.slane %v5816, 2
        %v5818 = vadd.f32 %v5816, %v5817
        %v5819 = vrot.slane %v5818, 1
        %v5820 = vadd.f32 %v5818, %v5819
        %v5821 = vrot.slane %v5320, 4
        %v5822 = vadd.f32 %v5320, %v5821
        %v5823 = vrot.slane %v5822, 2
        %v5824 = vadd.f32 %v5822, %v5823
        %v5825 = vrot.slane %v5824, 1
        %v5826 = vadd.f32 %v5824, %v5825
        %v5827 = vrot.slane %v5321, 4
        %v5828 = vadd.f32 %v5321, %v5827
        %v5829 = vrot.slane %v5828, 2
        %v5830 = vadd.f32 %v5828, %v5829
        %v5831 = vrot.slane %v5830, 1
        %v5832 = vadd.f32 %v5830, %v5831
        %v5833 = vrot.slane %v5322, 4
        %v5834 = vadd.f32 %v5322, %v5833
        %v5835 = vrot.slane %v5834, 2
        %v5836 = vadd.f32 %v5834, %v5835
        %v5837 = vrot.slane %v5836, 1
        %v5838 = vadd.f32 %v5836, %v5837
        %v5839 = vrot.slane %v5323, 4
        %v5840 = vadd.f32 %v5323, %v5839
        %v5841 = vrot.slane %v5840, 2
        %v5842 = vadd.f32 %v5840, %v5841
        %v5843 = vrot.slane %v5842, 1
        %v5844 = vadd.f32 %v5842, %v5843
        %v5845 = vrot.slane %v5324, 4
        %v5846 = vadd.f32 %v5324, %v5845
        %v5847 = vrot.slane %v5846, 2
        %v5848 = vadd.f32 %v5846, %v5847
        %v5849 = vrot.slane %v5848, 1
        %v5850 = vadd.f32 %v5848, %v5849
        %v5851 = vrot.slane %v5325, 4
        %v5852 = vadd.f32 %v5325, %v5851
        %v5853 = vrot.slane %v5852, 2
        %v5854 = vadd.f32 %v5852, %v5853
        %v5855 = vrot.slane %v5854, 1
        %v5856 = vadd.f32 %v5854, %v5855
        %v5857 = vrot.slane %v5326, 4
        %v5858 = vadd.f32 %v5326, %v5857
        %v5859 = vrot.slane %v5858, 2
        %v5860 = vadd.f32 %v5858, %v5859
        %v5861 = vrot.slane %v5860, 1
        %v5862 = vadd.f32 %v5860, %v5861
        %v5863 = vrot.slane %v5327, 4
        %v5864 = vadd.f32 %v5327, %v5863
        %v5865 = vrot.slane %v5864, 2
        %v5866 = vadd.f32 %v5864, %v5865
        %v5867 = vrot.slane %v5866, 1
        %v5868 = vadd.f32 %v5866, %v5867
        %v5869 = vrot.slane %v5328, 4
        %v5870 = vadd.f32 %v5328, %v5869
        %v5871 = vrot.slane %v5870, 2
        %v5872 = vadd.f32 %v5870, %v5871
        %v5873 = vrot.slane %v5872, 1
        %v5874 = vadd.f32 %v5872, %v5873
        %v5875 = vrot.slane %v5329, 4
        %v5876 = vadd.f32 %v5329, %v5875
        %v5877 = vrot.slane %v5876, 2
        %v5878 = vadd.f32 %v5876, %v5877
        %v5879 = vrot.slane %v5878, 1
        %v5880 = vadd.f32 %v5878, %v5879
        %v5881 = vrot.slane %v5330, 4
        %v5882 = vadd.f32 %v5330, %v5881
        %v5883 = vrot.slane %v5882, 2
        %v5884 = vadd.f32 %v5882, %v5883
        %v5885 = vrot.slane %v5884, 1
        %v5886 = vadd.f32 %v5884, %v5885
        %v5887 = vrot.slane %v5331, 4
        %v5888 = vadd.f32 %v5331, %v5887
        %v5889 = vrot.slane %v5888, 2
        %v5890 = vadd.f32 %v5888, %v5889
        %v5891 = vrot.slane %v5890, 1
        %v5892 = vadd.f32 %v5890, %v5891
        %v5893 = vrot.slane %v5332, 4
        %v5894 = vadd.f32 %v5332, %v5893
        %v5895 = vrot.slane %v5894, 2
        %v5896 = vadd.f32 %v5894, %v5895
        %v5897 = vrot.slane %v5896, 1
        %v5898 = vadd.f32 %v5896, %v5897
        %v5899 = vrot.slane %v5333, 4
        %v5900 = vadd.f32 %v5333, %v5899
        %v5901 = vrot.slane %v5900, 2
        %v5902 = vadd.f32 %v5900, %v5901
        %v5903 = vrot.slane %v5902, 1
        %v5904 = vadd.f32 %v5902, %v5903
        %v5905 = vrot.slane %v5334, 4
        %v5906 = vadd.f32 %v5334, %v5905
        %v5907 = vrot.slane %v5906, 2
        %v5908 = vadd.f32 %v5906, %v5907
        %v5909 = vrot.slane %v5908, 1
        %v5910 = vadd.f32 %v5908, %v5909
        %v5911 = vrot.slane %v5335, 4
        %v5912 = vadd.f32 %v5335, %v5911
        %v5913 = vrot.slane %v5912, 2
        %v5914 = vadd.f32 %v5912, %v5913
        %v5915 = vrot.slane %v5914, 1
        %v5916 = vadd.f32 %v5914, %v5915
        %v5917 = vrot.slane %v5336, 4
        %v5918 = vadd.f32 %v5336, %v5917
        %v5919 = vrot.slane %v5918, 2
        %v5920 = vadd.f32 %v5918, %v5919
        %v5921 = vrot.slane %v5920, 1
        %v5922 = vadd.f32 %v5920, %v5921
        %v5923 = vrot.slane %v5337, 4
        %v5924 = vadd.f32 %v5337, %v5923
        %v5925 = vrot.slane %v5924, 2
        %v5926 = vadd.f32 %v5924, %v5925
        %v5927 = vrot.slane %v5926, 1
        %v5928 = vadd.f32 %v5926, %v5927
        %v5929 = vrot.slane %v5338, 4
        %v5930 = vadd.f32 %v5338, %v5929
        %v5931 = vrot.slane %v5930, 2
        %v5932 = vadd.f32 %v5930, %v5931
        %v5933 = vrot.slane %v5932, 1
        %v5934 = vadd.f32 %v5932, %v5933
        %v5935 = vrot.slane %v5339, 4
        %v5936 = vadd.f32 %v5339, %v5935
        %v5937 = vrot.slane %v5936, 2
        %v5938 = vadd.f32 %v5936, %v5937
        %v5939 = vrot.slane %v5938, 1
        %v5940 = vadd.f32 %v5938, %v5939
        %v5941 = vrot.slane %v5340, 4
        %v5942 = vadd.f32 %v5340, %v5941
        %v5943 = vrot.slane %v5942, 2
        %v5944 = vadd.f32 %v5942, %v5943
        %v5945 = vrot.slane %v5944, 1
        %v5946 = vadd.f32 %v5944, %v5945
        %v5947 = vrot.slane %v5341, 4
        %v5948 = vadd.f32 %v5341, %v5947
        %v5949 = vrot.slane %v5948, 2
        %v5950 = vadd.f32 %v5948, %v5949
        %v5951 = vrot.slane %v5950, 1
        %v5952 = vadd.f32 %v5950, %v5951
        %v5953 = vrot.slane %v5342, 4
        %v5954 = vadd.f32 %v5342, %v5953
        %v5955 = vrot.slane %v5954, 2
        %v5956 = vadd.f32 %v5954, %v5955
        %v5957 = vrot.slane %v5956, 1
        %v5958 = vadd.f32 %v5956, %v5957
        %v5959 = vrot.slane %v5343, 4
        %v5960 = vadd.f32 %v5343, %v5959
        %v5961 = vrot.slane %v5960, 2
        %v5962 = vadd.f32 %v5960, %v5961
        %v5963 = vrot.slane %v5962, 1
        %v5964 = vadd.f32 %v5962, %v5963
        %v5965 = vrot.slane %v5344, 4
        %v5966 = vadd.f32 %v5344, %v5965
        %v5967 = vrot.slane %v5966, 2
        %v5968 = vadd.f32 %v5966, %v5967
        %v5969 = vrot.slane %v5968, 1
        %v5970 = vadd.f32 %v5968, %v5969
        %v5971 = vrot.slane %v5345, 4
        %v5972 = vadd.f32 %v5345, %v5971
        %v5973 = vrot.slane %v5972, 2
        %v5974 = vadd.f32 %v5972, %v5973
        %v5975 = vrot.slane %v5974, 1
        %v5976 = vadd.f32 %v5974, %v5975
        %v5977 = vrot.slane %v5346, 4
        %v5978 = vadd.f32 %v5346, %v5977
        %v5979 = vrot.slane %v5978, 2
        %v5980 = vadd.f32 %v5978, %v5979
        %v5981 = vrot.slane %v5980, 1
        %v5982 = vadd.f32 %v5980, %v5981
        %v5983 = vrot.slane %v5347, 4
        %v5984 = vadd.f32 %v5347, %v5983
        %v5985 = vrot.slane %v5984, 2
        %v5986 = vadd.f32 %v5984, %v5985
        %v5987 = vrot.slane %v5986, 1
        %v5988 = vadd.f32 %v5986, %v5987
        %v5989 = vrot.slane %v5348, 4
        %v5990 = vadd.f32 %v5348, %v5989
        %v5991 = vrot.slane %v5990, 2
        %v5992 = vadd.f32 %v5990, %v5991
        %v5993 = vrot.slane %v5992, 1
        %v5994 = vadd.f32 %v5992, %v5993
        %v5995 = vrot.slane %v5349, 4
        %v5996 = vadd.f32 %v5349, %v5995
        %v5997 = vrot.slane %v5996, 2
        %v5998 = vadd.f32 %v5996, %v5997
        %v5999 = vrot.slane %v5998, 1
        %v6000 = vadd.f32 %v5998, %v5999
        %v6001 = vrot.slane %v5350, 4
        %v6002 = vadd.f32 %v5350, %v6001
        %v6003 = vrot.slane %v6002, 2
        %v6004 = vadd.f32 %v6002, %v6003
        %v6005 = vrot.slane %v6004, 1
        %v6006 = vadd.f32 %v6004, %v6005
        %v6007 = vrot.slane %v5351, 4
        %v6008 = vadd.f32 %v5351, %v6007
        %v6009 = vrot.slane %v6008, 2
        %v6010 = vadd.f32 %v6008, %v6009
        %v6011 = vrot.slane %v6010, 1
        %v6012 = vadd.f32 %v6010, %v6011
        %v6013 = vrot.slane %v5352, 4
        %v6014 = vadd.f32 %v5352, %v6013
        %v6015 = vrot.slane %v6014, 2
        %v6016 = vadd.f32 %v6014, %v6015
        %v6017 = vrot.slane %v6016, 1
        %v6018 = vadd.f32 %v6016, %v6017
        %v6019 = vrot.slane %v5353, 4
        %v6020 = vadd.f32 %v5353, %v6019
        %v6021 = vrot.slane %v6020, 2
        %v6022 = vadd.f32 %v6020, %v6021
        %v6023 = vrot.slane %v6022, 1
        %v6024 = vadd.f32 %v6022, %v6023
        %v6025 = vrot.slane %v5354, 4
        %v6026 = vadd.f32 %v5354, %v6025
        %v6027 = vrot.slane %v6026, 2
        %v6028 = vadd.f32 %v6026, %v6027
        %v6029 = vrot.slane %v6028, 1
        %v6030 = vadd.f32 %v6028, %v6029
        %v6031 = vrot.slane %v5355, 4
        %v6032 = vadd.f32 %v5355, %v6031
        %v6033 = vrot.slane %v6032, 2
        %v6034 = vadd.f32 %v6032, %v6033
        %v6035 = vrot.slane %v6034, 1
        %v6036 = vadd.f32 %v6034, %v6035
        %v6037 = vrot.slane %v5356, 4
        %v6038 = vadd.f32 %v5356, %v6037
        %v6039 = vrot.slane %v6038, 2
        %v6040 = vadd.f32 %v6038, %v6039
        %v6041 = vrot.slane %v6040, 1
        %v6042 = vadd.f32 %v6040, %v6041
        %v6043 = vrot.slane %v5357, 4
        %v6044 = vadd.f32 %v5357, %v6043
        %v6045 = vrot.slane %v6044, 2
        %v6046 = vadd.f32 %v6044, %v6045
        %v6047 = vrot.slane %v6046, 1
        %v6048 = vadd.f32 %v6046, %v6047
        %v6049 = vrot.slane %v5358, 4
        %v6050 = vadd.f32 %v5358, %v6049
        %v6051 = vrot.slane %v6050, 2
        %v6052 = vadd.f32 %v6050, %v6051
        %v6053 = vrot.slane %v6052, 1
        %v6054 = vadd.f32 %v6052, %v6053
        %v6055 = vrot.slane %v5359, 4
        %v6056 = vadd.f32 %v5359, %v6055
        %v6057 = vrot.slane %v6056, 2
        %v6058 = vadd.f32 %v6056, %v6057
        %v6059 = vrot.slane %v6058, 1
        %v6060 = vadd.f32 %v6058, %v6059
        %v6061 = vrot.slane %v5360, 4
        %v6062 = vadd.f32 %v5360, %v6061
        %v6063 = vrot.slane %v6062, 2
        %v6064 = vadd.f32 %v6062, %v6063
        %v6065 = vrot.slane %v6064, 1
        %v6066 = vadd.f32 %v6064, %v6065
        %v6067 = vrot.slane %v5361, 4
        %v6068 = vadd.f32 %v5361, %v6067
        %v6069 = vrot.slane %v6068, 2
        %v6070 = vadd.f32 %v6068, %v6069
        %v6071 = vrot.slane %v6070, 1
        %v6072 = vadd.f32 %v6070, %v6071
        %v6073 = vrot.slane %v5362, 4
        %v6074 = vadd.f32 %v5362, %v6073
        %v6075 = vrot.slane %v6074, 2
        %v6076 = vadd.f32 %v6074, %v6075
        %v6077 = vrot.slane %v6076, 1
        %v6078 = vadd.f32 %v6076, %v6077
        %v6079 = vrot.slane %v5363, 4
        %v6080 = vadd.f32 %v5363, %v6079
        %v6081 = vrot.slane %v6080, 2
        %v6082 = vadd.f32 %v6080, %v6081
        %v6083 = vrot.slane %v6082, 1
        %v6084 = vadd.f32 %v6082, %v6083
        %v6085 = vrot.slane %v5364, 4
        %v6086 = vadd.f32 %v5364, %v6085
        %v6087 = vrot.slane %v6086, 2
        %v6088 = vadd.f32 %v6086, %v6087
        %v6089 = vrot.slane %v6088, 1
        %v6090 = vadd.f32 %v6088, %v6089
        %v6091 = vrot.slane %v5365, 4
        %v6092 = vadd.f32 %v5365, %v6091
        %v6093 = vrot.slane %v6092, 2
        %v6094 = vadd.f32 %v6092, %v6093
        %v6095 = vrot.slane %v6094, 1
        %v6096 = vadd.f32 %v6094, %v6095
        %v6097 = vrot.slane %v5366, 4
        %v6098 = vadd.f32 %v5366, %v6097
        %v6099 = vrot.slane %v6098, 2
        %v6100 = vadd.f32 %v6098, %v6099
        %v6101 = vrot.slane %v6100, 1
        %v6102 = vadd.f32 %v6100, %v6101
        %v6103 = vrot.slane %v5367, 4
        %v6104 = vadd.f32 %v5367, %v6103
        %v6105 = vrot.slane %v6104, 2
        %v6106 = vadd.f32 %v6104, %v6105
        %v6107 = vrot.slane %v6106, 1
        %v6108 = vadd.f32 %v6106, %v6107
        %v6109 = vrot.slane %v5368, 4
        %v6110 = vadd.f32 %v5368, %v6109
        %v6111 = vrot.slane %v6110, 2
        %v6112 = vadd.f32 %v6110, %v6111
        %v6113 = vrot.slane %v6112, 1
        %v6114 = vadd.f32 %v6112, %v6113
        %v6115 = vrot.slane %v5369, 4
        %v6116 = vadd.f32 %v5369, %v6115
        %v6117 = vrot.slane %v6116, 2
        %v6118 = vadd.f32 %v6116, %v6117
        %v6119 = vrot.slane %v6118, 1
        %v6120 = vadd.f32 %v6118, %v6119
        %v6121 = vrot.slane %v5370, 4
        %v6122 = vadd.f32 %v5370, %v6121
        %v6123 = vrot.slane %v6122, 2
        %v6124 = vadd.f32 %v6122, %v6123
        %v6125 = vrot.slane %v6124, 1
        %v6126 = vadd.f32 %v6124, %v6125
        %v6127 = vrot.slane %v5371, 4
        %v6128 = vadd.f32 %v5371, %v6127
        %v6129 = vrot.slane %v6128, 2
        %v6130 = vadd.f32 %v6128, %v6129
        %v6131 = vrot.slane %v6130, 1
        %v6132 = vadd.f32 %v6130, %v6131
        %v6133 = vrot.slane %v5372, 4
        %v6134 = vadd.f32 %v5372, %v6133
        %v6135 = vrot.slane %v6134, 2
        %v6136 = vadd.f32 %v6134, %v6135
        %v6137 = vrot.slane %v6136, 1
        %v6138 = vadd.f32 %v6136, %v6137
        %v6139 = vrot.slane %v5373, 4
        %v6140 = vadd.f32 %v5373, %v6139
        %v6141 = vrot.slane %v6140, 2
        %v6142 = vadd.f32 %v6140, %v6141
        %v6143 = vrot.slane %v6142, 1
        %v6144 = vadd.f32 %v6142, %v6143
        %v6145 = vrot.slane %v5374, 4
        %v6146 = vadd.f32 %v5374, %v6145
        %v6147 = vrot.slane %v6146, 2
        %v6148 = vadd.f32 %v6146, %v6147
        %v6149 = vrot.slane %v6148, 1
        %v6150 = vadd.f32 %v6148, %v6149
        %v6151 = vrot.slane %v5375, 4
        %v6152 = vadd.f32 %v5375, %v6151
        %v6153 = vrot.slane %v6152, 2
        %v6154 = vadd.f32 %v6152, %v6153
        %v6155 = vrot.slane %v6154, 1
        %v6156 = vadd.f32 %v6154, %v6155
        %v6157 = vrot.slane %v5376, 4
        %v6158 = vadd.f32 %v5376, %v6157
        %v6159 = vrot.slane %v6158, 2
        %v6160 = vadd.f32 %v6158, %v6159
        %v6161 = vrot.slane %v6160, 1
        %v6162 = vadd.f32 %v6160, %v6161
        %v6163 = vrot.slane %v5377, 4
        %v6164 = vadd.f32 %v5377, %v6163
        %v6165 = vrot.slane %v6164, 2
        %v6166 = vadd.f32 %v6164, %v6165
        %v6167 = vrot.slane %v6166, 1
        %v6168 = vadd.f32 %v6166, %v6167
        %v6169 = vrot.slane %v5378, 4
        %v6170 = vadd.f32 %v5378, %v6169
        %v6171 = vrot.slane %v6170, 2
        %v6172 = vadd.f32 %v6170, %v6171
        %v6173 = vrot.slane %v6172, 1
        %v6174 = vadd.f32 %v6172, %v6173
        %v6175 = vrot.slane %v5379, 4
        %v6176 = vadd.f32 %v5379, %v6175
        %v6177 = vrot.slane %v6176, 2
        %v6178 = vadd.f32 %v6176, %v6177
        %v6179 = vrot.slane %v6178, 1
        %v6180 = vadd.f32 %v6178, %v6179
        %v6181 = vrot.slane %v5380, 4
        %v6182 = vadd.f32 %v5380, %v6181
        %v6183 = vrot.slane %v6182, 2
        %v6184 = vadd.f32 %v6182, %v6183
        %v6185 = vrot.slane %v6184, 1
        %v6186 = vadd.f32 %v6184, %v6185
        %v6187 = vrot.slane %v5381, 4
        %v6188 = vadd.f32 %v5381, %v6187
        %v6189 = vrot.slane %v6188, 2
        %v6190 = vadd.f32 %v6188, %v6189
        %v6191 = vrot.slane %v6190, 1
        %v6192 = vadd.f32 %v6190, %v6191
        %v6193 = vrot.slane %v5382, 4
        %v6194 = vadd.f32 %v5382, %v6193
        %v6195 = vrot.slane %v6194, 2
        %v6196 = vadd.f32 %v6194, %v6195
        %v6197 = vrot.slane %v6196, 1
        %v6198 = vadd.f32 %v6196, %v6197
        %v6199 = vrot.slane %v5383, 4
        %v6200 = vadd.f32 %v5383, %v6199
        %v6201 = vrot.slane %v6200, 2
        %v6202 = vadd.f32 %v6200, %v6201
        %v6203 = vrot.slane %v6202, 1
        %v6204 = vadd.f32 %v6202, %v6203
        %v6205 = vrot.slane %v5384, 4
        %v6206 = vadd.f32 %v5384, %v6205
        %v6207 = vrot.slane %v6206, 2
        %v6208 = vadd.f32 %v6206, %v6207
        %v6209 = vrot.slane %v6208, 1
        %v6210 = vadd.f32 %v6208, %v6209
        %v6211 = vrot.slane %v5385, 4
        %v6212 = vadd.f32 %v5385, %v6211
        %v6213 = vrot.slane %v6212, 2
        %v6214 = vadd.f32 %v6212, %v6213
        %v6215 = vrot.slane %v6214, 1
        %v6216 = vadd.f32 %v6214, %v6215
        %v6217 = vrot.slane %v5386, 4
        %v6218 = vadd.f32 %v5386, %v6217
        %v6219 = vrot.slane %v6218, 2
        %v6220 = vadd.f32 %v6218, %v6219
        %v6221 = vrot.slane %v6220, 1
        %v6222 = vadd.f32 %v6220, %v6221
        %v6223 = vrot.slane %v5387, 4
        %v6224 = vadd.f32 %v5387, %v6223
        %v6225 = vrot.slane %v6224, 2
        %v6226 = vadd.f32 %v6224, %v6225
        %v6227 = vrot.slane %v6226, 1
        %v6228 = vadd.f32 %v6226, %v6227
        %v6229 = vrot.slane %v5388, 4
        %v6230 = vadd.f32 %v5388, %v6229
        %v6231 = vrot.slane %v6230, 2
        %v6232 = vadd.f32 %v6230, %v6231
        %v6233 = vrot.slane %v6232, 1
        %v6234 = vadd.f32 %v6232, %v6233
        %v6235 = vrot.slane %v5389, 4
        %v6236 = vadd.f32 %v5389, %v6235
        %v6237 = vrot.slane %v6236, 2
        %v6238 = vadd.f32 %v6236, %v6237
        %v6239 = vrot.slane %v6238, 1
        %v6240 = vadd.f32 %v6238, %v6239
        %v6241 = vrot.slane %v5390, 4
        %v6242 = vadd.f32 %v5390, %v6241
        %v6243 = vrot.slane %v6242, 2
        %v6244 = vadd.f32 %v6242, %v6243
        %v6245 = vrot.slane %v6244, 1
        %v6246 = vadd.f32 %v6244, %v6245
        %v6247 = vrot.slane %v5391, 4
        %v6248 = vadd.f32 %v5391, %v6247
        %v6249 = vrot.slane %v6248, 2
        %v6250 = vadd.f32 %v6248, %v6249
        %v6251 = vrot.slane %v6250, 1
        %v6252 = vadd.f32 %v6250, %v6251
        %v6253 = vrot.slane %v5392, 4
        %v6254 = vadd.f32 %v5392, %v6253
        %v6255 = vrot.slane %v6254, 2
        %v6256 = vadd.f32 %v6254, %v6255
        %v6257 = vrot.slane %v6256, 1
        %v6258 = vadd.f32 %v6256, %v6257
        %v6259 = vrot.slane %v5393, 4
        %v6260 = vadd.f32 %v5393, %v6259
        %v6261 = vrot.slane %v6260, 2
        %v6262 = vadd.f32 %v6260, %v6261
        %v6263 = vrot.slane %v6262, 1
        %v6264 = vadd.f32 %v6262, %v6263
        %v6265 = vrot.slane %v5394, 4
        %v6266 = vadd.f32 %v5394, %v6265
        %v6267 = vrot.slane %v6266, 2
        %v6268 = vadd.f32 %v6266, %v6267
        %v6269 = vrot.slane %v6268, 1
        %v6270 = vadd.f32 %v6268, %v6269
        %v6271 = vrot.slane %v5395, 4
        %v6272 = vadd.f32 %v5395, %v6271
        %v6273 = vrot.slane %v6272, 2
        %v6274 = vadd.f32 %v6272, %v6273
        %v6275 = vrot.slane %v6274, 1
        %v6276 = vadd.f32 %v6274, %v6275
        %v6277 = vrot.slane %v5396, 4
        %v6278 = vadd.f32 %v5396, %v6277
        %v6279 = vrot.slane %v6278, 2
        %v6280 = vadd.f32 %v6278, %v6279
        %v6281 = vrot.slane %v6280, 1
        %v6282 = vadd.f32 %v6280, %v6281
        %v6283 = vrot.slane %v5397, 4
        %v6284 = vadd.f32 %v5397, %v6283
        %v6285 = vrot.slane %v6284, 2
        %v6286 = vadd.f32 %v6284, %v6285
        %v6287 = vrot.slane %v6286, 1
        %v6288 = vadd.f32 %v6286, %v6287
        %v6289 = vrot.slane %v5398, 4
        %v6290 = vadd.f32 %v5398, %v6289
        %v6291 = vrot.slane %v6290, 2
        %v6292 = vadd.f32 %v6290, %v6291
        %v6293 = vrot.slane %v6292, 1
        %v6294 = vadd.f32 %v6292, %v6293
        %v6295 = vrot.slane %v5399, 4
        %v6296 = vadd.f32 %v5399, %v6295
        %v6297 = vrot.slane %v6296, 2
        %v6298 = vadd.f32 %v6296, %v6297
        %v6299 = vrot.slane %v6298, 1
        %v6300 = vadd.f32 %v6298, %v6299
        %v6301 = vrot.slane %v5400, 4
        %v6302 = vadd.f32 %v5400, %v6301
        %v6303 = vrot.slane %v6302, 2
        %v6304 = vadd.f32 %v6302, %v6303
        %v6305 = vrot.slane %v6304, 1
        %v6306 = vadd.f32 %v6304, %v6305
        %v6307 = vrot.slane %v5401, 4
        %v6308 = vadd.f32 %v5401, %v6307
        %v6309 = vrot.slane %v6308, 2
        %v6310 = vadd.f32 %v6308, %v6309
        %v6311 = vrot.slane %v6310, 1
        %v6312 = vadd.f32 %v6310, %v6311
        %v6313 = vrot.slane %v5402, 4
        %v6314 = vadd.f32 %v5402, %v6313
        %v6315 = vrot.slane %v6314, 2
        %v6316 = vadd.f32 %v6314, %v6315
        %v6317 = vrot.slane %v6316, 1
        %v6318 = vadd.f32 %v6316, %v6317
        %v6319 = vrot.slane %v5403, 4
        %v6320 = vadd.f32 %v5403, %v6319
        %v6321 = vrot.slane %v6320, 2
        %v6322 = vadd.f32 %v6320, %v6321
        %v6323 = vrot.slane %v6322, 1
        %v6324 = vadd.f32 %v6322, %v6323
        %v6325 = vrot.slane %v5404, 4
        %v6326 = vadd.f32 %v5404, %v6325
        %v6327 = vrot.slane %v6326, 2
        %v6328 = vadd.f32 %v6326, %v6327
        %v6329 = vrot.slane %v6328, 1
        %v6330 = vadd.f32 %v6328, %v6329
        %v6331 = vrot.slane %v5405, 4
        %v6332 = vadd.f32 %v5405, %v6331
        %v6333 = vrot.slane %v6332, 2
        %v6334 = vadd.f32 %v6332, %v6333
        %v6335 = vrot.slane %v6334, 1
        %v6336 = vadd.f32 %v6334, %v6335
        %v6337 = vrot.slane %v5406, 4
        %v6338 = vadd.f32 %v5406, %v6337
        %v6339 = vrot.slane %v6338, 2
        %v6340 = vadd.f32 %v6338, %v6339
        %v6341 = vrot.slane %v6340, 1
        %v6342 = vadd.f32 %v6340, %v6341
        %v6343 = vrot.slane %v5407, 4
        %v6344 = vadd.f32 %v5407, %v6343
        %v6345 = vrot.slane %v6344, 2
        %v6346 = vadd.f32 %v6344, %v6345
        %v6347 = vrot.slane %v6346, 1
        %v6348 = vadd.f32 %v6346, %v6347
        %v6349 = vrot.slane %v5408, 4
        %v6350 = vadd.f32 %v5408, %v6349
        %v6351 = vrot.slane %v6350, 2
        %v6352 = vadd.f32 %v6350, %v6351
        %v6353 = vrot.slane %v6352, 1
        %v6354 = vadd.f32 %v6352, %v6353
        %v6355 = vrot.slane %v5409, 4
        %v6356 = vadd.f32 %v5409, %v6355
        %v6357 = vrot.slane %v6356, 2
        %v6358 = vadd.f32 %v6356, %v6357
        %v6359 = vrot.slane %v6358, 1
        %v6360 = vadd.f32 %v6358, %v6359
        %v6361 = vrot.slane %v5410, 4
        %v6362 = vadd.f32 %v5410, %v6361
        %v6363 = vrot.slane %v6362, 2
        %v6364 = vadd.f32 %v6362, %v6363
        %v6365 = vrot.slane %v6364, 1
        %v6366 = vadd.f32 %v6364, %v6365
        %v6367 = vrot.slane %v5411, 4
        %v6368 = vadd.f32 %v5411, %v6367
        %v6369 = vrot.slane %v6368, 2
        %v6370 = vadd.f32 %v6368, %v6369
        %v6371 = vrot.slane %v6370, 1
        %v6372 = vadd.f32 %v6370, %v6371
        %v6373 = vrot.slane %v5412, 4
        %v6374 = vadd.f32 %v5412, %v6373
        %v6375 = vrot.slane %v6374, 2
        %v6376 = vadd.f32 %v6374, %v6375
        %v6377 = vrot.slane %v6376, 1
        %v6378 = vadd.f32 %v6376, %v6377
        %v6379 = vrot.slane %v5413, 4
        %v6380 = vadd.f32 %v5413, %v6379
        %v6381 = vrot.slane %v6380, 2
        %v6382 = vadd.f32 %v6380, %v6381
        %v6383 = vrot.slane %v6382, 1
        %v6384 = vadd.f32 %v6382, %v6383
        %v6385 = vrot.slane %v5414, 4
        %v6386 = vadd.f32 %v5414, %v6385
        %v6387 = vrot.slane %v6386, 2
        %v6388 = vadd.f32 %v6386, %v6387
        %v6389 = vrot.slane %v6388, 1
        %v6390 = vadd.f32 %v6388, %v6389
        %v6391 = vrot.slane %v5415, 4
        %v6392 = vadd.f32 %v5415, %v6391
        %v6393 = vrot.slane %v6392, 2
        %v6394 = vadd.f32 %v6392, %v6393
        %v6395 = vrot.slane %v6394, 1
        %v6396 = vadd.f32 %v6394, %v6395
        %v6397 = vrot.slane %v5416, 4
        %v6398 = vadd.f32 %v5416, %v6397
        %v6399 = vrot.slane %v6398, 2
        %v6400 = vadd.f32 %v6398, %v6399
        %v6401 = vrot.slane %v6400, 1
        %v6402 = vadd.f32 %v6400, %v6401
        %v6403 = vrot.slane %v5417, 4
        %v6404 = vadd.f32 %v5417, %v6403
        %v6405 = vrot.slane %v6404, 2
        %v6406 = vadd.f32 %v6404, %v6405
        %v6407 = vrot.slane %v6406, 1
        %v6408 = vadd.f32 %v6406, %v6407
        %v6409 = vrot.slane %v5418, 4
        %v6410 = vadd.f32 %v5418, %v6409
        %v6411 = vrot.slane %v6410, 2
        %v6412 = vadd.f32 %v6410, %v6411
        %v6413 = vrot.slane %v6412, 1
        %v6414 = vadd.f32 %v6412, %v6413
        %v6415 = vrot.slane %v5419, 4
        %v6416 = vadd.f32 %v5419, %v6415
        %v6417 = vrot.slane %v6416, 2
        %v6418 = vadd.f32 %v6416, %v6417
        %v6419 = vrot.slane %v6418, 1
        %v6420 = vadd.f32 %v6418, %v6419
        %v6421 = vrot.slane %v5420, 4
        %v6422 = vadd.f32 %v5420, %v6421
        %v6423 = vrot.slane %v6422, 2
        %v6424 = vadd.f32 %v6422, %v6423
        %v6425 = vrot.slane %v6424, 1
        %v6426 = vadd.f32 %v6424, %v6425
        %v6427 = vrot.slane %v5421, 4
        %v6428 = vadd.f32 %v5421, %v6427
        %v6429 = vrot.slane %v6428, 2
        %v6430 = vadd.f32 %v6428, %v6429
        %v6431 = vrot.slane %v6430, 1
        %v6432 = vadd.f32 %v6430, %v6431
        %v6433 = vrot.slane %v5422, 4
        %v6434 = vadd.f32 %v5422, %v6433
        %v6435 = vrot.slane %v6434, 2
        %v6436 = vadd.f32 %v6434, %v6435
        %v6437 = vrot.slane %v6436, 1
        %v6438 = vadd.f32 %v6436, %v6437
        %v6439 = vrot.slane %v5423, 4
        %v6440 = vadd.f32 %v5423, %v6439
        %v6441 = vrot.slane %v6440, 2
        %v6442 = vadd.f32 %v6440, %v6441
        %v6443 = vrot.slane %v6442, 1
        %v6444 = vadd.f32 %v6442, %v6443
        %v6445 = vrot.slane %v5424, 4
        %v6446 = vadd.f32 %v5424, %v6445
        %v6447 = vrot.slane %v6446, 2
        %v6448 = vadd.f32 %v6446, %v6447
        %v6449 = vrot.slane %v6448, 1
        %v6450 = vadd.f32 %v6448, %v6449
        %v6451 = vrot.slane %v5425, 4
        %v6452 = vadd.f32 %v5425, %v6451
        %v6453 = vrot.slane %v6452, 2
        %v6454 = vadd.f32 %v6452, %v6453
        %v6455 = vrot.slane %v6454, 1
        %v6456 = vadd.f32 %v6454, %v6455
        %v6457 = vrot.slane %v5426, 4
        %v6458 = vadd.f32 %v5426, %v6457
        %v6459 = vrot.slane %v6458, 2
        %v6460 = vadd.f32 %v6458, %v6459
        %v6461 = vrot.slane %v6460, 1
        %v6462 = vadd.f32 %v6460, %v6461
        %v6463 = vrot.slane %v5427, 4
        %v6464 = vadd.f32 %v5427, %v6463
        %v6465 = vrot.slane %v6464, 2
        %v6466 = vadd.f32 %v6464, %v6465
        %v6467 = vrot.slane %v6466, 1
        %v6468 = vadd.f32 %v6466, %v6467
        %v6469 = vrot.slane %v5428, 4
        %v6470 = vadd.f32 %v5428, %v6469
        %v6471 = vrot.slane %v6470, 2
        %v6472 = vadd.f32 %v6470, %v6471
        %v6473 = vrot.slane %v6472, 1
        %v6474 = vadd.f32 %v6472, %v6473
        %v6475 = vrot.slane %v5429, 4
        %v6476 = vadd.f32 %v5429, %v6475
        %v6477 = vrot.slane %v6476, 2
        %v6478 = vadd.f32 %v6476, %v6477
        %v6479 = vrot.slane %v6478, 1
        %v6480 = vadd.f32 %v6478, %v6479
        %v6481 = vrot.slane %v5430, 4
        %v6482 = vadd.f32 %v5430, %v6481
        %v6483 = vrot.slane %v6482, 2
        %v6484 = vadd.f32 %v6482, %v6483
        %v6485 = vrot.slane %v6484, 1
        %v6486 = vadd.f32 %v6484, %v6485
        %v6487 = vrot.slane %v5431, 4
        %v6488 = vadd.f32 %v5431, %v6487
        %v6489 = vrot.slane %v6488, 2
        %v6490 = vadd.f32 %v6488, %v6489
        %v6491 = vrot.slane %v6490, 1
        %v6492 = vadd.f32 %v6490, %v6491
        %v6493 = vrot.slane %v5432, 4
        %v6494 = vadd.f32 %v5432, %v6493
        %v6495 = vrot.slane %v6494, 2
        %v6496 = vadd.f32 %v6494, %v6495
        %v6497 = vrot.slane %v6496, 1
        %v6498 = vadd.f32 %v6496, %v6497
        %v6499 = vrot.slane %v5433, 4
        %v6500 = vadd.f32 %v5433, %v6499
        %v6501 = vrot.slane %v6500, 2
        %v6502 = vadd.f32 %v6500, %v6501
        %v6503 = vrot.slane %v6502, 1
        %v6504 = vadd.f32 %v6502, %v6503
        %v6505 = vrot.slane %v5434, 4
        %v6506 = vadd.f32 %v5434, %v6505
        %v6507 = vrot.slane %v6506, 2
        %v6508 = vadd.f32 %v6506, %v6507
        %v6509 = vrot.slane %v6508, 1
        %v6510 = vadd.f32 %v6508, %v6509
        %v6511 = vrot.slane %v5435, 4
        %v6512 = vadd.f32 %v5435, %v6511
        %v6513 = vrot.slane %v6512, 2
        %v6514 = vadd.f32 %v6512, %v6513
        %v6515 = vrot.slane %v6514, 1
        %v6516 = vadd.f32 %v6514, %v6515
        %v6517 = vrot.slane %v5436, 4
        %v6518 = vadd.f32 %v5436, %v6517
        %v6519 = vrot.slane %v6518, 2
        %v6520 = vadd.f32 %v6518, %v6519
        %v6521 = vrot.slane %v6520, 1
        %v6522 = vadd.f32 %v6520, %v6521
        %v6523 = vrot.slane %v5437, 4
        %v6524 = vadd.f32 %v5437, %v6523
        %v6525 = vrot.slane %v6524, 2
        %v6526 = vadd.f32 %v6524, %v6525
        %v6527 = vrot.slane %v6526, 1
        %v6528 = vadd.f32 %v6526, %v6527
        %v6529 = vrot.slane %v5438, 4
        %v6530 = vadd.f32 %v5438, %v6529
        %v6531 = vrot.slane %v6530, 2
        %v6532 = vadd.f32 %v6530, %v6531
        %v6533 = vrot.slane %v6532, 1
        %v6534 = vadd.f32 %v6532, %v6533
        %v6535 = vrot.slane %v5439, 4
        %v6536 = vadd.f32 %v5439, %v6535
        %v6537 = vrot.slane %v6536, 2
        %v6538 = vadd.f32 %v6536, %v6537
        %v6539 = vrot.slane %v6538, 1
        %v6540 = vadd.f32 %v6538, %v6539
        %v6541 = vrot.slane %v5440, 4
        %v6542 = vadd.f32 %v5440, %v6541
        %v6543 = vrot.slane %v6542, 2
        %v6544 = vadd.f32 %v6542, %v6543
        %v6545 = vrot.slane %v6544, 1
        %v6546 = vadd.f32 %v6544, %v6545
        %v6547 = vrot.slane %v5441, 4
        %v6548 = vadd.f32 %v5441, %v6547
        %v6549 = vrot.slane %v6548, 2
        %v6550 = vadd.f32 %v6548, %v6549
        %v6551 = vrot.slane %v6550, 1
        %v6552 = vadd.f32 %v6550, %v6551
        %v6553 = vrot.slane %v5442, 4
        %v6554 = vadd.f32 %v5442, %v6553
        %v6555 = vrot.slane %v6554, 2
        %v6556 = vadd.f32 %v6554, %v6555
        %v6557 = vrot.slane %v6556, 1
        %v6558 = vadd.f32 %v6556, %v6557
        %v6559 = vrot.slane %v5443, 4
        %v6560 = vadd.f32 %v5443, %v6559
        %v6561 = vrot.slane %v6560, 2
        %v6562 = vadd.f32 %v6560, %v6561
        %v6563 = vrot.slane %v6562, 1
        %v6564 = vadd.f32 %v6562, %v6563
        %v6565 = vrot.slane %v5444, 4
        %v6566 = vadd.f32 %v5444, %v6565
        %v6567 = vrot.slane %v6566, 2
        %v6568 = vadd.f32 %v6566, %v6567
        %v6569 = vrot.slane %v6568, 1
        %v6570 = vadd.f32 %v6568, %v6569
        %v6571 = vrot.slane %v5445, 4
        %v6572 = vadd.f32 %v5445, %v6571
        %v6573 = vrot.slane %v6572, 2
        %v6574 = vadd.f32 %v6572, %v6573
        %v6575 = vrot.slane %v6574, 1
        %v6576 = vadd.f32 %v6574, %v6575
        %v6577 = vrot.slane %v5446, 4
        %v6578 = vadd.f32 %v5446, %v6577
        %v6579 = vrot.slane %v6578, 2
        %v6580 = vadd.f32 %v6578, %v6579
        %v6581 = vrot.slane %v6580, 1
        %v6582 = vadd.f32 %v6580, %v6581
        %v6583 = vrot.slane %v5447, 4
        %v6584 = vadd.f32 %v5447, %v6583
        %v6585 = vrot.slane %v6584, 2
        %v6586 = vadd.f32 %v6584, %v6585
        %v6587 = vrot.slane %v6586, 1
        %v6588 = vadd.f32 %v6586, %v6587
        %v6589 = vrot.slane %v5448, 4
        %v6590 = vadd.f32 %v5448, %v6589
        %v6591 = vrot.slane %v6590, 2
        %v6592 = vadd.f32 %v6590, %v6591
        %v6593 = vrot.slane %v6592, 1
        %v6594 = vadd.f32 %v6592, %v6593
        %v6595 = vrot.slane %v5449, 4
        %v6596 = vadd.f32 %v5449, %v6595
        %v6597 = vrot.slane %v6596, 2
        %v6598 = vadd.f32 %v6596, %v6597
        %v6599 = vrot.slane %v6598, 1
        %v6600 = vadd.f32 %v6598, %v6599
        %v6601 = vrot.slane %v5450, 4
        %v6602 = vadd.f32 %v5450, %v6601
        %v6603 = vrot.slane %v6602, 2
        %v6604 = vadd.f32 %v6602, %v6603
        %v6605 = vrot.slane %v6604, 1
        %v6606 = vadd.f32 %v6604, %v6605
        %v6607 = vrot.slane %v5451, 4
        %v6608 = vadd.f32 %v5451, %v6607
        %v6609 = vrot.slane %v6608, 2
        %v6610 = vadd.f32 %v6608, %v6609
        %v6611 = vrot.slane %v6610, 1
        %v6612 = vadd.f32 %v6610, %v6611
        %v6613 = vrot.slane %v5452, 4
        %v6614 = vadd.f32 %v5452, %v6613
        %v6615 = vrot.slane %v6614, 2
        %v6616 = vadd.f32 %v6614, %v6615
        %v6617 = vrot.slane %v6616, 1
        %v6618 = vadd.f32 %v6616, %v6617
        %v6619 = vrot.slane %v5453, 4
        %v6620 = vadd.f32 %v5453, %v6619
        %v6621 = vrot.slane %v6620, 2
        %v6622 = vadd.f32 %v6620, %v6621
        %v6623 = vrot.slane %v6622, 1
        %v6624 = vadd.f32 %v6622, %v6623
        %v6625 = vrot.slane %v5454, 4
        %v6626 = vadd.f32 %v5454, %v6625
        %v6627 = vrot.slane %v6626, 2
        %v6628 = vadd.f32 %v6626, %v6627
        %v6629 = vrot.slane %v6628, 1
        %v6630 = vadd.f32 %v6628, %v6629
        %v6631 = vrot.slane %v5455, 4
        %v6632 = vadd.f32 %v5455, %v6631
        %v6633 = vrot.slane %v6632, 2
        %v6634 = vadd.f32 %v6632, %v6633
        %v6635 = vrot.slane %v6634, 1
        %v6636 = vadd.f32 %v6634, %v6635
        %v6637 = vrot.slane %v5456, 4
        %v6638 = vadd.f32 %v5456, %v6637
        %v6639 = vrot.slane %v6638, 2
        %v6640 = vadd.f32 %v6638, %v6639
        %v6641 = vrot.slane %v6640, 1
        %v6642 = vadd.f32 %v6640, %v6641
        %v6643 = vrot.slane %v5457, 4
        %v6644 = vadd.f32 %v5457, %v6643
        %v6645 = vrot.slane %v6644, 2
        %v6646 = vadd.f32 %v6644, %v6645
        %v6647 = vrot.slane %v6646, 1
        %v6648 = vadd.f32 %v6646, %v6647
        %v6649 = vrot.slane %v5458, 4
        %v6650 = vadd.f32 %v5458, %v6649
        %v6651 = vrot.slane %v6650, 2
        %v6652 = vadd.f32 %v6650, %v6651
        %v6653 = vrot.slane %v6652, 1
        %v6654 = vadd.f32 %v6652, %v6653
        %v6655 = vrot.slane %v5459, 4
        %v6656 = vadd.f32 %v5459, %v6655
        %v6657 = vrot.slane %v6656, 2
        %v6658 = vadd.f32 %v6656, %v6657
        %v6659 = vrot.slane %v6658, 1
        %v6660 = vadd.f32 %v6658, %v6659
        %v6661 = vrot.slane %v5460, 4
        %v6662 = vadd.f32 %v5460, %v6661
        %v6663 = vrot.slane %v6662, 2
        %v6664 = vadd.f32 %v6662, %v6663
        %v6665 = vrot.slane %v6664, 1
        %v6666 = vadd.f32 %v6664, %v6665
        %v6667 = vrot.slane %v5461, 4
        %v6668 = vadd.f32 %v5461, %v6667
        %v6669 = vrot.slane %v6668, 2
        %v6670 = vadd.f32 %v6668, %v6669
        %v6671 = vrot.slane %v6670, 1
        %v6672 = vadd.f32 %v6670, %v6671
        %v6673 = vrot.slane %v5462, 4
        %v6674 = vadd.f32 %v5462, %v6673
        %v6675 = vrot.slane %v6674, 2
        %v6676 = vadd.f32 %v6674, %v6675
        %v6677 = vrot.slane %v6676, 1
        %v6678 = vadd.f32 %v6676, %v6677
        %v6679 = vrot.slane %v5463, 4
        %v6680 = vadd.f32 %v5463, %v6679
        %v6681 = vrot.slane %v6680, 2
        %v6682 = vadd.f32 %v6680, %v6681
        %v6683 = vrot.slane %v6682, 1
        %v6684 = vadd.f32 %v6682, %v6683
        %v6685 = vrot.slane %v5464, 4
        %v6686 = vadd.f32 %v5464, %v6685
        %v6687 = vrot.slane %v6686, 2
        %v6688 = vadd.f32 %v6686, %v6687
        %v6689 = vrot.slane %v6688, 1
        %v6690 = vadd.f32 %v6688, %v6689
        %v6691 = vrot.slane %v5465, 4
        %v6692 = vadd.f32 %v5465, %v6691
        %v6693 = vrot.slane %v6692, 2
        %v6694 = vadd.f32 %v6692, %v6693
        %v6695 = vrot.slane %v6694, 1
        %v6696 = vadd.f32 %v6694, %v6695
        %v6697 = vrot.slane %v5466, 4
        %v6698 = vadd.f32 %v5466, %v6697
        %v6699 = vrot.slane %v6698, 2
        %v6700 = vadd.f32 %v6698, %v6699
        %v6701 = vrot.slane %v6700, 1
        %v6702 = vadd.f32 %v6700, %v6701
        %v6703 = vrot.slane %v5467, 4
        %v6704 = vadd.f32 %v5467, %v6703
        %v6705 = vrot.slane %v6704, 2
        %v6706 = vadd.f32 %v6704, %v6705
        %v6707 = vrot.slane %v6706, 1
        %v6708 = vadd.f32 %v6706, %v6707
        %v6709 = vrot.slane %v5468, 4
        %v6710 = vadd.f32 %v5468, %v6709
        %v6711 = vrot.slane %v6710, 2
        %v6712 = vadd.f32 %v6710, %v6711
        %v6713 = vrot.slane %v6712, 1
        %v6714 = vadd.f32 %v6712, %v6713
        %v6715 = vrot.slane %v5469, 4
        %v6716 = vadd.f32 %v5469, %v6715
        %v6717 = vrot.slane %v6716, 2
        %v6718 = vadd.f32 %v6716, %v6717
        %v6719 = vrot.slane %v6718, 1
        %v6720 = vadd.f32 %v6718, %v6719
        %v6721 = vrot.slane %v5470, 4
        %v6722 = vadd.f32 %v5470, %v6721
        %v6723 = vrot.slane %v6722, 2
        %v6724 = vadd.f32 %v6722, %v6723
        %v6725 = vrot.slane %v6724, 1
        %v6726 = vadd.f32 %v6724, %v6725
        %v6727 = vrot.slane %v5471, 4
        %v6728 = vadd.f32 %v5471, %v6727
        %v6729 = vrot.slane %v6728, 2
        %v6730 = vadd.f32 %v6728, %v6729
        %v6731 = vrot.slane %v6730, 1
        %v6732 = vadd.f32 %v6730, %v6731
        %v6733 = vrot.slane %v5472, 4
        %v6734 = vadd.f32 %v5472, %v6733
        %v6735 = vrot.slane %v6734, 2
        %v6736 = vadd.f32 %v6734, %v6735
        %v6737 = vrot.slane %v6736, 1
        %v6738 = vadd.f32 %v6736, %v6737
        %v6739 = vrot.slane %v5473, 4
        %v6740 = vadd.f32 %v5473, %v6739
        %v6741 = vrot.slane %v6740, 2
        %v6742 = vadd.f32 %v6740, %v6741
        %v6743 = vrot.slane %v6742, 1
        %v6744 = vadd.f32 %v6742, %v6743
        %v6745 = vrot.slane %v5474, 4
        %v6746 = vadd.f32 %v5474, %v6745
        %v6747 = vrot.slane %v6746, 2
        %v6748 = vadd.f32 %v6746, %v6747
        %v6749 = vrot.slane %v6748, 1
        %v6750 = vadd.f32 %v6748, %v6749
        %v6751 = vrot.slane %v5475, 4
        %v6752 = vadd.f32 %v5475, %v6751
        %v6753 = vrot.slane %v6752, 2
        %v6754 = vadd.f32 %v6752, %v6753
        %v6755 = vrot.slane %v6754, 1
        %v6756 = vadd.f32 %v6754, %v6755
        %v6757 = vrot.slane %v5476, 4
        %v6758 = vadd.f32 %v5476, %v6757
        %v6759 = vrot.slane %v6758, 2
        %v6760 = vadd.f32 %v6758, %v6759
        %v6761 = vrot.slane %v6760, 1
        %v6762 = vadd.f32 %v6760, %v6761
        %v6763 = vrot.slane %v5477, 4
        %v6764 = vadd.f32 %v5477, %v6763
        %v6765 = vrot.slane %v6764, 2
        %v6766 = vadd.f32 %v6764, %v6765
        %v6767 = vrot.slane %v6766, 1
        %v6768 = vadd.f32 %v6766, %v6767
        %v6769 = vrot.slane %v5478, 4
        %v6770 = vadd.f32 %v5478, %v6769
        %v6771 = vrot.slane %v6770, 2
        %v6772 = vadd.f32 %v6770, %v6771
        %v6773 = vrot.slane %v6772, 1
        %v6774 = vadd.f32 %v6772, %v6773
        %v6775 = vrot.slane %v5479, 4
        %v6776 = vadd.f32 %v5479, %v6775
        %v6777 = vrot.slane %v6776, 2
        %v6778 = vadd.f32 %v6776, %v6777
        %v6779 = vrot.slane %v6778, 1
        %v6780 = vadd.f32 %v6778, %v6779
        %v6781 = vrot.slane %v5480, 4
        %v6782 = vadd.f32 %v5480, %v6781
        %v6783 = vrot.slane %v6782, 2
        %v6784 = vadd.f32 %v6782, %v6783
        %v6785 = vrot.slane %v6784, 1
        %v6786 = vadd.f32 %v6784, %v6785
        %v6787 = vrot.slane %v5481, 4
        %v6788 = vadd.f32 %v5481, %v6787
        %v6789 = vrot.slane %v6788, 2
        %v6790 = vadd.f32 %v6788, %v6789
        %v6791 = vrot.slane %v6790, 1
        %v6792 = vadd.f32 %v6790, %v6791
        %v6793 = vrot.slane %v5482, 4
        %v6794 = vadd.f32 %v5482, %v6793
        %v6795 = vrot.slane %v6794, 2
        %v6796 = vadd.f32 %v6794, %v6795
        %v6797 = vrot.slane %v6796, 1
        %v6798 = vadd.f32 %v6796, %v6797
        %v6799 = vrot.slane %v5483, 4
        %v6800 = vadd.f32 %v5483, %v6799
        %v6801 = vrot.slane %v6800, 2
        %v6802 = vadd.f32 %v6800, %v6801
        %v6803 = vrot.slane %v6802, 1
        %v6804 = vadd.f32 %v6802, %v6803
        %v6805 = vrot.slane %v5484, 4
        %v6806 = vadd.f32 %v5484, %v6805
        %v6807 = vrot.slane %v6806, 2
        %v6808 = vadd.f32 %v6806, %v6807
        %v6809 = vrot.slane %v6808, 1
        %v6810 = vadd.f32 %v6808, %v6809
        %v6811 = vrot.slane %v5485, 4
        %v6812 = vadd.f32 %v5485, %v6811
        %v6813 = vrot.slane %v6812, 2
        %v6814 = vadd.f32 %v6812, %v6813
        %v6815 = vrot.slane %v6814, 1
        %v6816 = vadd.f32 %v6814, %v6815
        %v6817 = vrot.slane %v5486, 4
        %v6818 = vadd.f32 %v5486, %v6817
        %v6819 = vrot.slane %v6818, 2
        %v6820 = vadd.f32 %v6818, %v6819
        %v6821 = vrot.slane %v6820, 1
        %v6822 = vadd.f32 %v6820, %v6821
        %v6823 = vrot.slane %v5487, 4
        %v6824 = vadd.f32 %v5487, %v6823
        %v6825 = vrot.slane %v6824, 2
        %v6826 = vadd.f32 %v6824, %v6825
        %v6827 = vrot.slane %v6826, 1
        %v6828 = vadd.f32 %v6826, %v6827
        %v6829 = vrot.slane %v5488, 4
        %v6830 = vadd.f32 %v5488, %v6829
        %v6831 = vrot.slane %v6830, 2
        %v6832 = vadd.f32 %v6830, %v6831
        %v6833 = vrot.slane %v6832, 1
        %v6834 = vadd.f32 %v6832, %v6833
        %v6835 = vrot.slane %v5489, 4
        %v6836 = vadd.f32 %v5489, %v6835
        %v6837 = vrot.slane %v6836, 2
        %v6838 = vadd.f32 %v6836, %v6837
        %v6839 = vrot.slane %v6838, 1
        %v6840 = vadd.f32 %v6838, %v6839
        %v6841 = vrot.slane %v5490, 4
        %v6842 = vadd.f32 %v5490, %v6841
        %v6843 = vrot.slane %v6842, 2
        %v6844 = vadd.f32 %v6842, %v6843
        %v6845 = vrot.slane %v6844, 1
        %v6846 = vadd.f32 %v6844, %v6845
        %v6847 = vrot.slane %v5491, 4
        %v6848 = vadd.f32 %v5491, %v6847
        %v6849 = vrot.slane %v6848, 2
        %v6850 = vadd.f32 %v6848, %v6849
        %v6851 = vrot.slane %v6850, 1
        %v6852 = vadd.f32 %v6850, %v6851
        %v6853 = vrot.slane %v5492, 4
        %v6854 = vadd.f32 %v5492, %v6853
        %v6855 = vrot.slane %v6854, 2
        %v6856 = vadd.f32 %v6854, %v6855
        %v6857 = vrot.slane %v6856, 1
        %v6858 = vadd.f32 %v6856, %v6857
        %v6859 = vrot.slane %v5493, 4
        %v6860 = vadd.f32 %v5493, %v6859
        %v6861 = vrot.slane %v6860, 2
        %v6862 = vadd.f32 %v6860, %v6861
        %v6863 = vrot.slane %v6862, 1
        %v6864 = vadd.f32 %v6862, %v6863
        %v6865 = vrot.slane %v5494, 4
        %v6866 = vadd.f32 %v5494, %v6865
        %v6867 = vrot.slane %v6866, 2
        %v6868 = vadd.f32 %v6866, %v6867
        %v6869 = vrot.slane %v6868, 1
        %v6870 = vadd.f32 %v6868, %v6869
        %v6871 = vrot.slane %v5495, 4
        %v6872 = vadd.f32 %v5495, %v6871
        %v6873 = vrot.slane %v6872, 2
        %v6874 = vadd.f32 %v6872, %v6873
        %v6875 = vrot.slane %v6874, 1
        %v6876 = vadd.f32 %v6874, %v6875
        %v6877 = vrot.slane %v5496, 4
        %v6878 = vadd.f32 %v5496, %v6877
        %v6879 = vrot.slane %v6878, 2
        %v6880 = vadd.f32 %v6878, %v6879
        %v6881 = vrot.slane %v6880, 1
        %v6882 = vadd.f32 %v6880, %v6881
        %v6883 = vrot.slane %v5497, 4
        %v6884 = vadd.f32 %v5497, %v6883
        %v6885 = vrot.slane %v6884, 2
        %v6886 = vadd.f32 %v6884, %v6885
        %v6887 = vrot.slane %v6886, 1
        %v6888 = vadd.f32 %v6886, %v6887
        %v6889 = vrot.slane %v5498, 4
        %v6890 = vadd.f32 %v5498, %v6889
        %v6891 = vrot.slane %v6890, 2
        %v6892 = vadd.f32 %v6890, %v6891
        %v6893 = vrot.slane %v6892, 1
        %v6894 = vadd.f32 %v6892, %v6893
        %v6895 = vrot.slane %v5499, 4
        %v6896 = vadd.f32 %v5499, %v6895
        %v6897 = vrot.slane %v6896, 2
        %v6898 = vadd.f32 %v6896, %v6897
        %v6899 = vrot.slane %v6898, 1
        %v6900 = vadd.f32 %v6898, %v6899
        %v6901 = vrot.slane %v5500, 4
        %v6902 = vadd.f32 %v5500, %v6901
        %v6903 = vrot.slane %v6902, 2
        %v6904 = vadd.f32 %v6902, %v6903
        %v6905 = vrot.slane %v6904, 1
        %v6906 = vadd.f32 %v6904, %v6905
        %v6907 = vrot.slane %v5501, 4
        %v6908 = vadd.f32 %v5501, %v6907
        %v6909 = vrot.slane %v6908, 2
        %v6910 = vadd.f32 %v6908, %v6909
        %v6911 = vrot.slane %v6910, 1
        %v6912 = vadd.f32 %v6910, %v6911
        %v6913 = vrot.slane %v5502, 4
        %v6914 = vadd.f32 %v5502, %v6913
        %v6915 = vrot.slane %v6914, 2
        %v6916 = vadd.f32 %v6914, %v6915
        %v6917 = vrot.slane %v6916, 1
        %v6918 = vadd.f32 %v6916, %v6917
        %v6919 = vrot.slane %v5503, 4
        %v6920 = vadd.f32 %v5503, %v6919
        %v6921 = vrot.slane %v6920, 2
        %v6922 = vadd.f32 %v6920, %v6921
        %v6923 = vrot.slane %v6922, 1
        %v6924 = vadd.f32 %v6922, %v6923
        %v6925 = vrot.slane %v5504, 4
        %v6926 = vadd.f32 %v5504, %v6925
        %v6927 = vrot.slane %v6926, 2
        %v6928 = vadd.f32 %v6926, %v6927
        %v6929 = vrot.slane %v6928, 1
        %v6930 = vadd.f32 %v6928, %v6929
        %v6931 = vrot.slane %v5505, 4
        %v6932 = vadd.f32 %v5505, %v6931
        %v6933 = vrot.slane %v6932, 2
        %v6934 = vadd.f32 %v6932, %v6933
        %v6935 = vrot.slane %v6934, 1
        %v6936 = vadd.f32 %v6934, %v6935
        %v6937 = vrot.slane %v5506, 4
        %v6938 = vadd.f32 %v5506, %v6937
        %v6939 = vrot.slane %v6938, 2
        %v6940 = vadd.f32 %v6938, %v6939
        %v6941 = vrot.slane %v6940, 1
        %v6942 = vadd.f32 %v6940, %v6941
        %v6943 = vrot.slane %v5507, 4
        %v6944 = vadd.f32 %v5507, %v6943
        %v6945 = vrot.slane %v6944, 2
        %v6946 = vadd.f32 %v6944, %v6945
        %v6947 = vrot.slane %v6946, 1
        %v6948 = vadd.f32 %v6946, %v6947
        %v6949 = vrot.slane %v5508, 4
        %v6950 = vadd.f32 %v5508, %v6949
        %v6951 = vrot.slane %v6950, 2
        %v6952 = vadd.f32 %v6950, %v6951
        %v6953 = vrot.slane %v6952, 1
        %v6954 = vadd.f32 %v6952, %v6953
        %v6955 = vrot.slane %v5509, 4
        %v6956 = vadd.f32 %v5509, %v6955
        %v6957 = vrot.slane %v6956, 2
        %v6958 = vadd.f32 %v6956, %v6957
        %v6959 = vrot.slane %v6958, 1
        %v6960 = vadd.f32 %v6958, %v6959
        %v6961 = vrot.slane %v5510, 4
        %v6962 = vadd.f32 %v5510, %v6961
        %v6963 = vrot.slane %v6962, 2
        %v6964 = vadd.f32 %v6962, %v6963
        %v6965 = vrot.slane %v6964, 1
        %v6966 = vadd.f32 %v6964, %v6965
        %v6967 = vrot.slane %v5511, 4
        %v6968 = vadd.f32 %v5511, %v6967
        %v6969 = vrot.slane %v6968, 2
        %v6970 = vadd.f32 %v6968, %v6969
        %v6971 = vrot.slane %v6970, 1
        %v6972 = vadd.f32 %v6970, %v6971
        %v6973 = vrot.slane %v5512, 4
        %v6974 = vadd.f32 %v5512, %v6973
        %v6975 = vrot.slane %v6974, 2
        %v6976 = vadd.f32 %v6974, %v6975
        %v6977 = vrot.slane %v6976, 1
        %v6978 = vadd.f32 %v6976, %v6977
        %v6979 = vrot.slane %v5513, 4
        %v6980 = vadd.f32 %v5513, %v6979
        %v6981 = vrot.slane %v6980, 2
        %v6982 = vadd.f32 %v6980, %v6981
        %v6983 = vrot.slane %v6982, 1
        %v6984 = vadd.f32 %v6982, %v6983
        %v6985 = vrot.slane %v5514, 4
        %v6986 = vadd.f32 %v5514, %v6985
        %v6987 = vrot.slane %v6986, 2
        %v6988 = vadd.f32 %v6986, %v6987
        %v6989 = vrot.slane %v6988, 1
        %v6990 = vadd.f32 %v6988, %v6989
        %v6991 = vrot.slane %v5515, 4
        %v6992 = vadd.f32 %v5515, %v6991
        %v6993 = vrot.slane %v6992, 2
        %v6994 = vadd.f32 %v6992, %v6993
        %v6995 = vrot.slane %v6994, 1
        %v6996 = vadd.f32 %v6994, %v6995
        %v6997 = vrot.slane %v5516, 4
        %v6998 = vadd.f32 %v5516, %v6997
        %v6999 = vrot.slane %v6998, 2
        %v7000 = vadd.f32 %v6998, %v6999
        %v7001 = vrot.slane %v7000, 1
        %v7002 = vadd.f32 %v7000, %v7001
        %v7003 = vrot.slane %v5517, 4
        %v7004 = vadd.f32 %v5517, %v7003
        %v7005 = vrot.slane %v7004, 2
        %v7006 = vadd.f32 %v7004, %v7005
        %v7007 = vrot.slane %v7006, 1
        %v7008 = vadd.f32 %v7006, %v7007
        %v7009 = vrot.slane %v5518, 4
        %v7010 = vadd.f32 %v5518, %v7009
        %v7011 = vrot.slane %v7010, 2
        %v7012 = vadd.f32 %v7010, %v7011
        %v7013 = vrot.slane %v7012, 1
        %v7014 = vadd.f32 %v7012, %v7013
        %v7015 = vrot.slane %v5519, 4
        %v7016 = vadd.f32 %v5519, %v7015
        %v7017 = vrot.slane %v7016, 2
        %v7018 = vadd.f32 %v7016, %v7017
        %v7019 = vrot.slane %v7018, 1
        %v7020 = vadd.f32 %v7018, %v7019
        %v7021 = vrot.slane %v5520, 4
        %v7022 = vadd.f32 %v5520, %v7021
        %v7023 = vrot.slane %v7022, 2
        %v7024 = vadd.f32 %v7022, %v7023
        %v7025 = vrot.slane %v7024, 1
        %v7026 = vadd.f32 %v7024, %v7025
        %v7027 = vrot.slane %v5521, 4
        %v7028 = vadd.f32 %v5521, %v7027
        %v7029 = vrot.slane %v7028, 2
        %v7030 = vadd.f32 %v7028, %v7029
        %v7031 = vrot.slane %v7030, 1
        %v7032 = vadd.f32 %v7030, %v7031
        %v7033 = vrot.slane %v5522, 4
        %v7034 = vadd.f32 %v5522, %v7033
        %v7035 = vrot.slane %v7034, 2
        %v7036 = vadd.f32 %v7034, %v7035
        %v7037 = vrot.slane %v7036, 1
        %v7038 = vadd.f32 %v7036, %v7037
        %v7039 = vrot.slane %v5523, 4
        %v7040 = vadd.f32 %v5523, %v7039
        %v7041 = vrot.slane %v7040, 2
        %v7042 = vadd.f32 %v7040, %v7041
        %v7043 = vrot.slane %v7042, 1
        %v7044 = vadd.f32 %v7042, %v7043
        %v7045 = vrot.slane %v5524, 4
        %v7046 = vadd.f32 %v5524, %v7045
        %v7047 = vrot.slane %v7046, 2
        %v7048 = vadd.f32 %v7046, %v7047
        %v7049 = vrot.slane %v7048, 1
        %v7050 = vadd.f32 %v7048, %v7049
        %v7051 = vrot.slane %v5525, 4
        %v7052 = vadd.f32 %v5525, %v7051
        %v7053 = vrot.slane %v7052, 2
        %v7054 = vadd.f32 %v7052, %v7053
        %v7055 = vrot.slane %v7054, 1
        %v7056 = vadd.f32 %v7054, %v7055
        %v7057 = vrot.slane %v5526, 4
        %v7058 = vadd.f32 %v5526, %v7057
        %v7059 = vrot.slane %v7058, 2
        %v7060 = vadd.f32 %v7058, %v7059
        %v7061 = vrot.slane %v7060, 1
        %v7062 = vadd.f32 %v7060, %v7061
        %v7319 = vsel %vm2506, %v5538, %v5532
        %v7320 = vsel %vm2508, %v5544, %v7319
        %v7321 = vsel %vm2510, %v5550, %v7320
        %v7322 = vsel %vm2512, %v5556, %v7321
        %v7323 = vsel %vm2514, %v5562, %v7322
        %v7324 = vsel %vm2516, %v5568, %v7323
        %v7325 = vsel %vm2518, %v5574, %v7324
        %v7326 = vsel %vm2506, %v5586, %v5580
        %v7327 = vsel %vm2508, %v5592, %v7326
        %v7328 = vsel %vm2510, %v5598, %v7327
        %v7329 = vsel %vm2512, %v5604, %v7328
        %v7330 = vsel %vm2514, %v5610, %v7329
        %v7331 = vsel %vm2516, %v5616, %v7330
        %v7332 = vsel %vm2518, %v5622, %v7331
        %v7333 = vsel %vm2506, %v5634, %v5628
        %v7334 = vsel %vm2508, %v5640, %v7333
        %v7335 = vsel %vm2510, %v5646, %v7334
        %v7336 = vsel %vm2512, %v5652, %v7335
        %v7337 = vsel %vm2514, %v5658, %v7336
        %v7338 = vsel %vm2516, %v5664, %v7337
        %v7339 = vsel %vm2518, %v5670, %v7338
        %v7340 = vsel %vm2506, %v5682, %v5676
        %v7341 = vsel %vm2508, %v5688, %v7340
        %v7342 = vsel %vm2510, %v5694, %v7341
        %v7343 = vsel %vm2512, %v5700, %v7342
        %v7344 = vsel %vm2514, %v5706, %v7343
        %v7345 = vsel %vm2516, %v5712, %v7344
        %v7346 = vsel %vm2518, %v5718, %v7345
        %v7347 = vsel %vm2506, %v5730, %v5724
        %v7348 = vsel %vm2508, %v5736, %v7347
        %v7349 = vsel %vm2510, %v5742, %v7348
        %v7350 = vsel %vm2512, %v5748, %v7349
        %v7351 = vsel %vm2514, %v5754, %v7350
        %v7352 = vsel %vm2516, %v5760, %v7351
        %v7353 = vsel %vm2518, %v5766, %v7352
        %v7354 = vsel %vm2506, %v5778, %v5772
        %v7355 = vsel %vm2508, %v5784, %v7354
        %v7356 = vsel %vm2510, %v5790, %v7355
        %v7357 = vsel %vm2512, %v5796, %v7356
        %v7358 = vsel %vm2514, %v5802, %v7357
        %v7359 = vsel %vm2516, %v5808, %v7358
        %v7360 = vsel %vm2518, %v5814, %v7359
        %v7361 = vsel %vm2506, %v5826, %v5820
        %v7362 = vsel %vm2508, %v5832, %v7361
        %v7363 = vsel %vm2510, %v5838, %v7362
        %v7364 = vsel %vm2512, %v5844, %v7363
        %v7365 = vsel %vm2514, %v5850, %v7364
        %v7366 = vsel %vm2516, %v5856, %v7365
        %v7367 = vsel %vm2518, %v5862, %v7366
        %v7368 = vsel %vm2506, %v5874, %v5868
        %v7369 = vsel %vm2508, %v5880, %v7368
        %v7370 = vsel %vm2510, %v5886, %v7369
        %v7371 = vsel %vm2512, %v5892, %v7370
        %v7372 = vsel %vm2514, %v5898, %v7371
        %v7373 = vsel %vm2516, %v5904, %v7372
        %v7374 = vsel %vm2518, %v5910, %v7373
        %v7375 = vsel %vm2506, %v5922, %v5916
        %v7376 = vsel %vm2508, %v5928, %v7375
        %v7377 = vsel %vm2510, %v5934, %v7376
        %v7378 = vsel %vm2512, %v5940, %v7377
        %v7379 = vsel %vm2514, %v5946, %v7378
        %v7380 = vsel %vm2516, %v5952, %v7379
        %v7381 = vsel %vm2518, %v5958, %v7380
        %v7382 = vsel %vm2506, %v5970, %v5964
        %v7383 = vsel %vm2508, %v5976, %v7382
        %v7384 = vsel %vm2510, %v5982, %v7383
        %v7385 = vsel %vm2512, %v5988, %v7384
        %v7386 = vsel %vm2514, %v5994, %v7385
        %v7387 = vsel %vm2516, %v6000, %v7386
        %v7388 = vsel %vm2518, %v6006, %v7387
        %v7389 = vsel %vm2506, %v6018, %v6012
        %v7390 = vsel %vm2508, %v6024, %v7389
        %v7391 = vsel %vm2510, %v6030, %v7390
        %v7392 = vsel %vm2512, %v6036, %v7391
        %v7393 = vsel %vm2514, %v6042, %v7392
        %v7394 = vsel %vm2516, %v6048, %v7393
        %v7395 = vsel %vm2518, %v6054, %v7394
        %v7396 = vsel %vm2506, %v6066, %v6060
        %v7397 = vsel %vm2508, %v6072, %v7396
        %v7398 = vsel %vm2510, %v6078, %v7397
        %v7399 = vsel %vm2512, %v6084, %v7398
        %v7400 = vsel %vm2514, %v6090, %v7399
        %v7401 = vsel %vm2516, %v6096, %v7400
        %v7402 = vsel %vm2518, %v6102, %v7401
        %v7403 = vsel %vm2506, %v6114, %v6108
        %v7404 = vsel %vm2508, %v6120, %v7403
        %v7405 = vsel %vm2510, %v6126, %v7404
        %v7406 = vsel %vm2512, %v6132, %v7405
        %v7407 = vsel %vm2514, %v6138, %v7406
        %v7408 = vsel %vm2516, %v6144, %v7407
        %v7409 = vsel %vm2518, %v6150, %v7408
        %v7410 = vsel %vm2506, %v6162, %v6156
        %v7411 = vsel %vm2508, %v6168, %v7410
        %v7412 = vsel %vm2510, %v6174, %v7411
        %v7413 = vsel %vm2512, %v6180, %v7412
        %v7414 = vsel %vm2514, %v6186, %v7413
        %v7415 = vsel %vm2516, %v6192, %v7414
        %v7416 = vsel %vm2518, %v6198, %v7415
        %v7417 = vsel %vm2506, %v6210, %v6204
        %v7418 = vsel %vm2508, %v6216, %v7417
        %v7419 = vsel %vm2510, %v6222, %v7418
        %v7420 = vsel %vm2512, %v6228, %v7419
        %v7421 = vsel %vm2514, %v6234, %v7420
        %v7422 = vsel %vm2516, %v6240, %v7421
        %v7423 = vsel %vm2518, %v6246, %v7422
        %v7424 = vsel %vm2506, %v6258, %v6252
        %v7425 = vsel %vm2508, %v6264, %v7424
        %v7426 = vsel %vm2510, %v6270, %v7425
        %v7427 = vsel %vm2512, %v6276, %v7426
        %v7428 = vsel %vm2514, %v6282, %v7427
        %v7429 = vsel %vm2516, %v6288, %v7428
        %v7430 = vsel %vm2518, %v6294, %v7429
        %v7431 = vsel %vm2506, %v6306, %v6300
        %v7432 = vsel %vm2508, %v6312, %v7431
        %v7433 = vsel %vm2510, %v6318, %v7432
        %v7434 = vsel %vm2512, %v6324, %v7433
        %v7435 = vsel %vm2514, %v6330, %v7434
        %v7436 = vsel %vm2516, %v6336, %v7435
        %v7437 = vsel %vm2518, %v6342, %v7436
        %v7438 = vsel %vm2506, %v6354, %v6348
        %v7439 = vsel %vm2508, %v6360, %v7438
        %v7440 = vsel %vm2510, %v6366, %v7439
        %v7441 = vsel %vm2512, %v6372, %v7440
        %v7442 = vsel %vm2514, %v6378, %v7441
        %v7443 = vsel %vm2516, %v6384, %v7442
        %v7444 = vsel %vm2518, %v6390, %v7443
        %v7445 = vsel %vm2506, %v6402, %v6396
        %v7446 = vsel %vm2508, %v6408, %v7445
        %v7447 = vsel %vm2510, %v6414, %v7446
        %v7448 = vsel %vm2512, %v6420, %v7447
        %v7449 = vsel %vm2514, %v6426, %v7448
        %v7450 = vsel %vm2516, %v6432, %v7449
        %v7451 = vsel %vm2518, %v6438, %v7450
        %v7452 = vsel %vm2506, %v6450, %v6444
        %v7453 = vsel %vm2508, %v6456, %v7452
        %v7454 = vsel %vm2510, %v6462, %v7453
        %v7455 = vsel %vm2512, %v6468, %v7454
        %v7456 = vsel %vm2514, %v6474, %v7455
        %v7457 = vsel %vm2516, %v6480, %v7456
        %v7458 = vsel %vm2518, %v6486, %v7457
        %v7459 = vsel %vm2506, %v6498, %v6492
        %v7460 = vsel %vm2508, %v6504, %v7459
        %v7461 = vsel %vm2510, %v6510, %v7460
        %v7462 = vsel %vm2512, %v6516, %v7461
        %v7463 = vsel %vm2514, %v6522, %v7462
        %v7464 = vsel %vm2516, %v6528, %v7463
        %v7465 = vsel %vm2518, %v6534, %v7464
        %v7466 = vsel %vm2506, %v6546, %v6540
        %v7467 = vsel %vm2508, %v6552, %v7466
        %v7468 = vsel %vm2510, %v6558, %v7467
        %v7469 = vsel %vm2512, %v6564, %v7468
        %v7470 = vsel %vm2514, %v6570, %v7469
        %v7471 = vsel %vm2516, %v6576, %v7470
        %v7472 = vsel %vm2518, %v6582, %v7471
        %v7473 = vsel %vm2506, %v6594, %v6588
        %v7474 = vsel %vm2508, %v6600, %v7473
        %v7475 = vsel %vm2510, %v6606, %v7474
        %v7476 = vsel %vm2512, %v6612, %v7475
        %v7477 = vsel %vm2514, %v6618, %v7476
        %v7478 = vsel %vm2516, %v6624, %v7477
        %v7479 = vsel %vm2518, %v6630, %v7478
        %v7480 = vsel %vm2506, %v6642, %v6636
        %v7481 = vsel %vm2508, %v6648, %v7480
        %v7482 = vsel %vm2510, %v6654, %v7481
        %v7483 = vsel %vm2512, %v6660, %v7482
        %v7484 = vsel %vm2514, %v6666, %v7483
        %v7485 = vsel %vm2516, %v6672, %v7484
        %v7486 = vsel %vm2518, %v6678, %v7485
        %v7487 = vsel %vm2506, %v6690, %v6684
        %v7488 = vsel %vm2508, %v6696, %v7487
        %v7489 = vsel %vm2510, %v6702, %v7488
        %v7490 = vsel %vm2512, %v6708, %v7489
        %v7491 = vsel %vm2514, %v6714, %v7490
        %v7492 = vsel %vm2516, %v6720, %v7491
        %v7493 = vsel %vm2518, %v6726, %v7492
        %v7494 = vsel %vm2506, %v6738, %v6732
        %v7495 = vsel %vm2508, %v6744, %v7494
        %v7496 = vsel %vm2510, %v6750, %v7495
        %v7497 = vsel %vm2512, %v6756, %v7496
        %v7498 = vsel %vm2514, %v6762, %v7497
        %v7499 = vsel %vm2516, %v6768, %v7498
        %v7500 = vsel %vm2518, %v6774, %v7499
        %v7501 = vsel %vm2506, %v6786, %v6780
        %v7502 = vsel %vm2508, %v6792, %v7501
        %v7503 = vsel %vm2510, %v6798, %v7502
        %v7504 = vsel %vm2512, %v6804, %v7503
        %v7505 = vsel %vm2514, %v6810, %v7504
        %v7506 = vsel %vm2516, %v6816, %v7505
        %v7507 = vsel %vm2518, %v6822, %v7506
        %v7508 = vsel %vm2506, %v6834, %v6828
        %v7509 = vsel %vm2508, %v6840, %v7508
        %v7510 = vsel %vm2510, %v6846, %v7509
        %v7511 = vsel %vm2512, %v6852, %v7510
        %v7512 = vsel %vm2514, %v6858, %v7511
        %v7513 = vsel %vm2516, %v6864, %v7512
        %v7514 = vsel %vm2518, %v6870, %v7513
        %v7515 = vsel %vm2506, %v6882, %v6876
        %v7516 = vsel %vm2508, %v6888, %v7515
        %v7517 = vsel %vm2510, %v6894, %v7516
        %v7518 = vsel %vm2512, %v6900, %v7517
        %v7519 = vsel %vm2514, %v6906, %v7518
        %v7520 = vsel %vm2516, %v6912, %v7519
        %v7521 = vsel %vm2518, %v6918, %v7520
        %v7522 = vsel %vm2506, %v6930, %v6924
        %v7523 = vsel %vm2508, %v6936, %v7522
        %v7524 = vsel %vm2510, %v6942, %v7523
        %v7525 = vsel %vm2512, %v6948, %v7524
        %v7526 = vsel %vm2514, %v6954, %v7525
        %v7527 = vsel %vm2516, %v6960, %v7526
        %v7528 = vsel %vm2518, %v6966, %v7527
        %v7529 = vsel %vm2506, %v6978, %v6972
        %v7530 = vsel %vm2508, %v6984, %v7529
        %v7531 = vsel %vm2510, %v6990, %v7530
        %v7532 = vsel %vm2512, %v6996, %v7531
        %v7533 = vsel %vm2514, %v7002, %v7532
        %v7534 = vsel %vm2516, %v7008, %v7533
        %v7535 = vsel %vm2518, %v7014, %v7534
        %v7536 = vsel %vm2506, %v7026, %v7020
        %v7537 = vsel %vm2508, %v7032, %v7536
        %v7538 = vsel %vm2510, %v7038, %v7537
        %v7539 = vsel %vm2512, %v7044, %v7538
        %v7540 = vsel %vm2514, %v7050, %v7539
        %v7541 = vsel %vm2516, %v7056, %v7540
        %v7542 = vsel %vm2518, %v7062, %v7541
        %v7575 = vpack.c.bf16 %v7332, %v7325
        %v7576 = vpack.c.bf16 %v835, %v834
        %v7577 = vpack.c.bf16 %v7346, %v7339
        %v7578 = vpack.c.bf16 %v837, %v836
        %v7579 = vpack.c.bf16 %v7360, %v7353
        %v7580 = vpack.c.bf16 %v839, %v838
        %v7581 = vpack.c.bf16 %v7374, %v7367
        %v7582 = vpack.c.bf16 %v841, %v840
        %v7583 = vpack.c.bf16 %v7388, %v7381
        %v7584 = vpack.c.bf16 %v843, %v842
        %v7585 = vpack.c.bf16 %v7402, %v7395
        %v7586 = vpack.c.bf16 %v845, %v844
        %v7587 = vpack.c.bf16 %v7416, %v7409
        %v7588 = vpack.c.bf16 %v847, %v846
        %v7589 = vpack.c.bf16 %v7430, %v7423
        %v7590 = vpack.c.bf16 %v849, %v848
        %v7591 = vpack.c.bf16 %v7444, %v7437
        %v7592 = vpack.c.bf16 %v851, %v850
        %v7593 = vpack.c.bf16 %v7458, %v7451
        %v7594 = vpack.c.bf16 %v853, %v852
        %v7595 = vpack.c.bf16 %v7472, %v7465
        %v7596 = vpack.c.bf16 %v855, %v854
        %v7597 = vpack.c.bf16 %v7486, %v7479
        %v7598 = vpack.c.bf16 %v857, %v856
        %v7599 = vpack.c.bf16 %v7500, %v7493
        %v7600 = vpack.c.bf16 %v859, %v858
        %v7601 = vpack.c.bf16 %v7514, %v7507
        %v7602 = vpack.c.bf16 %v861, %v860
        %v7603 = vpack.c.bf16 %v7528, %v7521
        %v7604 = vpack.c.bf16 %v863, %v862
        %v7605 = vpack.c.bf16 %v7542, %v7535
        %v7606 = vpack.c.bf16 %v865, %v864
        %v7607 = vld [vmem:[#allocation5] sm:$0xff]
        %v7608 = vld [vmem:[#allocation5 + $0x8] sm:$0xff]
        %v7609 = vld [vmem:[#allocation5 + $0x1c] sm:$0xff]
        %v7610 = vld [vmem:[#allocation5 + $0x24] sm:$0xff]
        %v7611 = vld [vmem:[#allocation5 + $0x38] sm:$0xff]
        %v7612 = vld [vmem:[#allocation5 + $0x40] sm:$0xff]
        %v7613 = vld [vmem:[#allocation5 + $0x54] sm:$0xff]
        %v7614 = vld [vmem:[#allocation5 + $0x5c] sm:$0xff]
        %v7615 = vld [vmem:[#allocation5 + $0x70] sm:$0xff]
        %v7616 = vld [vmem:[#allocation5 + $0x78] sm:$0xff]
        %v7617 = vld [vmem:[#allocation5 + $0x8c] sm:$0xff]
        %v7618 = vld [vmem:[#allocation5 + $0x94] sm:$0xff]
        %v7619 = vld [vmem:[#allocation5 + $0xa8] sm:$0xff]
        %v7620 = vld [vmem:[#allocation5 + $0xb0] sm:$0xff]
        %v7621 = vld [vmem:[#allocation5 + $0xc4] sm:$0xff]
        %v7622 = vld [vmem:[#allocation5 + $0xcc] sm:$0xff]
        %v7623 = vld [vmem:[#allocation5 + $0xe0] sm:$0xff]
        %v7624 = vld [vmem:[#allocation5 + $0xe8] sm:$0xff]
        %v7625 = vld [vmem:[#allocation5 + $0xfc] sm:$0xff]
        %v7626 = vld [vmem:[#allocation5 + $0x104] sm:$0xff]
        %v7627 = vld [vmem:[#allocation5 + $0x118] sm:$0xff]
        %v7628 = vld [vmem:[#allocation5 + $0x120] sm:$0xff]
        %v7629 = vld [vmem:[#allocation5 + $0x134] sm:$0xff]
        %v7630 = vld [vmem:[#allocation5 + $0x13c] sm:$0xff]
        %v7631 = vld [vmem:[#allocation5 + $0x150] sm:$0xff]
        %v7632 = vld [vmem:[#allocation5 + $0x158] sm:$0xff]
        %v7633 = vld [vmem:[#allocation5 + $0x16c] sm:$0xff]
        %v7634 = vld [vmem:[#allocation5 + $0x174] sm:$0xff]
        %v7635 = vld [vmem:[#allocation5 + $0x188] sm:$0xff]
        %v7636 = vld [vmem:[#allocation5 + $0x190] sm:$0xff]
        %v7637 = vld [vmem:[#allocation5 + $0x1a4] sm:$0xff]
        %v7638 = vld [vmem:[#allocation5 + $0x1ac] sm:$0xff]
        %v7639 = vld [vmem:[#allocation5 + $0x1c0] sm:$0xff]
        %v7640 = vld [vmem:[#allocation5 + $0x1c8] sm:$0xff]
        %v7641 = vld [vmem:[#allocation5 + $0x1dc] sm:$0xff]
        %v7642 = vld [vmem:[#allocation5 + $0x1e4] sm:$0xff]
        %v7643 = vld [vmem:[#allocation5 + $0x1f8] sm:$0xff]
        %v7644 = vld [vmem:[#allocation5 + $0x200] sm:$0xff]
        %v7645 = vld [vmem:[#allocation5 + $0x214] sm:$0xff]
        %v7646 = vld [vmem:[#allocation5 + $0x21c] sm:$0xff]
        %v7647 = vld [vmem:[#allocation5 + $0x230] sm:$0xff]
        %v7648 = vld [vmem:[#allocation5 + $0x238] sm:$0xff]
        %v7649 = vld [vmem:[#allocation5 + $0x24c] sm:$0xff]
        %v7650 = vld [vmem:[#allocation5 + $0x254] sm:$0xff]
        %v7651 = vld [vmem:[#allocation5 + $0x268] sm:$0xff]
        %v7652 = vld [vmem:[#allocation5 + $0x270] sm:$0xff]
        %v7653 = vld [vmem:[#allocation5 + $0x284] sm:$0xff]
        %v7654 = vld [vmem:[#allocation5 + $0x28c] sm:$0xff]
        %v7655 = vld [vmem:[#allocation5 + $0x2a0] sm:$0xff]
        %v7656 = vld [vmem:[#allocation5 + $0x2a8] sm:$0xff]
        %v7657 = vld [vmem:[#allocation5 + $0x2bc] sm:$0xff]
        %v7658 = vld [vmem:[#allocation5 + $0x2c4] sm:$0xff]
        %v7659 = vld [vmem:[#allocation5 + $0x2d8] sm:$0xff]
        %v7660 = vld [vmem:[#allocation5 + $0x2e0] sm:$0xff]
        %v7661 = vld [vmem:[#allocation5 + $0x2f4] sm:$0xff]
        %v7662 = vld [vmem:[#allocation5 + $0x2fc] sm:$0xff]
        %v7663 = vld [vmem:[#allocation5 + $0x310] sm:$0xff]
        %v7664 = vld [vmem:[#allocation5 + $0x318] sm:$0xff]
        %v7665 = vld [vmem:[#allocation5 + $0x32c] sm:$0xff]
        %v7666 = vld [vmem:[#allocation5 + $0x334] sm:$0xff]
        %v7667 = vld [vmem:[#allocation5 + $0x348] sm:$0xff]
        %v7668 = vld [vmem:[#allocation5 + $0x350] sm:$0xff]
        %v7669 = vld [vmem:[#allocation5 + $0x364] sm:$0xff]
        %v7670 = vld [vmem:[#allocation5 + $0x36c] sm:$0xff]
        %v7735 = vunpack.c.l.b16 %v7607
        %v7736 = vunpack.c.h.b16 %v7607
        %v7737 = vunpack.c.l.b16 %v7608
        %v7738 = vunpack.c.h.b16 %v7608
        %v7739 = vunpack.c.l.b16 %v7609
        %v7740 = vunpack.c.h.b16 %v7609
        %v7741 = vunpack.c.l.b16 %v7610
        %v7742 = vunpack.c.h.b16 %v7610
        %v7743 = vunpack.c.l.b16 %v7611
        %v7744 = vunpack.c.h.b16 %v7611
        %v7745 = vunpack.c.l.b16 %v7612
        %v7746 = vunpack.c.h.b16 %v7612
        %v7747 = vunpack.c.l.b16 %v7613
        %v7748 = vunpack.c.h.b16 %v7613
        %v7749 = vunpack.c.l.b16 %v7614
        %v7750 = vunpack.c.h.b16 %v7614
        %v7751 = vunpack.c.l.b16 %v7615
        %v7752 = vunpack.c.h.b16 %v7615
        %v7753 = vunpack.c.l.b16 %v7616
        %v7754 = vunpack.c.h.b16 %v7616
        %v7755 = vunpack.c.l.b16 %v7617
        %v7756 = vunpack.c.h.b16 %v7617
        %v7757 = vunpack.c.l.b16 %v7618
        %v7758 = vunpack.c.h.b16 %v7618
        %v7759 = vunpack.c.l.b16 %v7619
        %v7760 = vunpack.c.h.b16 %v7619
        %v7761 = vunpack.c.l.b16 %v7620
        %v7762 = vunpack.c.h.b16 %v7620
        %v7763 = vunpack.c.l.b16 %v7621
        %v7764 = vunpack.c.h.b16 %v7621
        %v7765 = vunpack.c.l.b16 %v7622
        %v7766 = vunpack.c.h.b16 %v7622
        %v7767 = vunpack.c.l.b16 %v7623
        %v7768 = vunpack.c.h.b16 %v7623
        %v7769 = vunpack.c.l.b16 %v7624
        %v7770 = vunpack.c.h.b16 %v7624
        %v7771 = vunpack.c.l.b16 %v7625
        %v7772 = vunpack.c.h.b16 %v7625
        %v7773 = vunpack.c.l.b16 %v7626
        %v7774 = vunpack.c.h.b16 %v7626
        %v7775 = vunpack.c.l.b16 %v7627
        %v7776 = vunpack.c.h.b16 %v7627
        %v7777 = vunpack.c.l.b16 %v7628
        %v7778 = vunpack.c.h.b16 %v7628
        %v7779 = vunpack.c.l.b16 %v7629
        %v7780 = vunpack.c.h.b16 %v7629
        %v7781 = vunpack.c.l.b16 %v7630
        %v7782 = vunpack.c.h.b16 %v7630
        %v7783 = vunpack.c.l.b16 %v7631
        %v7784 = vunpack.c.h.b16 %v7631
        %v7785 = vunpack.c.l.b16 %v7632
        %v7786 = vunpack.c.h.b16 %v7632
        %v7787 = vunpack.c.l.b16 %v7633
        %v7788 = vunpack.c.h.b16 %v7633
        %v7789 = vunpack.c.l.b16 %v7634
        %v7790 = vunpack.c.h.b16 %v7634
        %v7791 = vunpack.c.l.b16 %v7635
        %v7792 = vunpack.c.h.b16 %v7635
        %v7793 = vunpack.c.l.b16 %v7636
        %v7794 = vunpack.c.h.b16 %v7636
        %v7795 = vunpack.c.l.b16 %v7637
        %v7796 = vunpack.c.h.b16 %v7637
        %v7797 = vunpack.c.l.b16 %v7638
        %v7798 = vunpack.c.h.b16 %v7638
        %v7799 = vunpack.c.l.b16 %v7639
        %v7800 = vunpack.c.h.b16 %v7639
        %v7801 = vunpack.c.l.b16 %v7640
        %v7802 = vunpack.c.h.b16 %v7640
        %v7803 = vunpack.c.l.b16 %v7641
        %v7804 = vunpack.c.h.b16 %v7641
        %v7805 = vunpack.c.l.b16 %v7642
        %v7806 = vunpack.c.h.b16 %v7642
        %v7807 = vunpack.c.l.b16 %v7643
        %v7808 = vunpack.c.h.b16 %v7643
        %v7809 = vunpack.c.l.b16 %v7644
        %v7810 = vunpack.c.h.b16 %v7644
        %v7811 = vunpack.c.l.b16 %v7645
        %v7812 = vunpack.c.h.b16 %v7645
        %v7813 = vunpack.c.l.b16 %v7646
        %v7814 = vunpack.c.h.b16 %v7646
        %v7815 = vunpack.c.l.b16 %v7647
        %v7816 = vunpack.c.h.b16 %v7647
        %v7817 = vunpack.c.l.b16 %v7648
        %v7818 = vunpack.c.h.b16 %v7648
        %v7819 = vunpack.c.l.b16 %v7649
        %v7820 = vunpack.c.h.b16 %v7649
        %v7821 = vunpack.c.l.b16 %v7650
        %v7822 = vunpack.c.h.b16 %v7650
        %v7823 = vunpack.c.l.b16 %v7651
        %v7824 = vunpack.c.h.b16 %v7651
        %v7825 = vunpack.c.l.b16 %v7652
        %v7826 = vunpack.c.h.b16 %v7652
        %v7827 = vunpack.c.l.b16 %v7653
        %v7828 = vunpack.c.h.b16 %v7653
        %v7829 = vunpack.c.l.b16 %v7654
        %v7830 = vunpack.c.h.b16 %v7654
        %v7831 = vunpack.c.l.b16 %v7655
        %v7832 = vunpack.c.h.b16 %v7655
        %v7833 = vunpack.c.l.b16 %v7656
        %v7834 = vunpack.c.h.b16 %v7656
        %v7835 = vunpack.c.l.b16 %v7657
        %v7836 = vunpack.c.h.b16 %v7657
        %v7837 = vunpack.c.l.b16 %v7658
        %v7838 = vunpack.c.h.b16 %v7658
        %v7839 = vunpack.c.l.b16 %v7659
        %v7840 = vunpack.c.h.b16 %v7659
        %v7841 = vunpack.c.l.b16 %v7660
        %v7842 = vunpack.c.h.b16 %v7660
        %v7843 = vunpack.c.l.b16 %v7661
        %v7844 = vunpack.c.h.b16 %v7661
        %v7845 = vunpack.c.l.b16 %v7662
        %v7846 = vunpack.c.h.b16 %v7662
        %v7847 = vunpack.c.l.b16 %v7663
        %v7848 = vunpack.c.h.b16 %v7663
        %v7849 = vunpack.c.l.b16 %v7664
        %v7850 = vunpack.c.h.b16 %v7664
        %v7851 = vunpack.c.l.b16 %v7665
        %v7852 = vunpack.c.h.b16 %v7665
        %v7853 = vunpack.c.l.b16 %v7666
        %v7854 = vunpack.c.h.b16 %v7666
        %v7855 = vunpack.c.l.b16 %v7667
        %v7856 = vunpack.c.h.b16 %v7667
        %v7857 = vunpack.c.l.b16 %v7668
        %v7858 = vunpack.c.h.b16 %v7668
        %v7859 = vunpack.c.l.b16 %v7669
        %v7860 = vunpack.c.h.b16 %v7669
        %v7861 = vunpack.c.l.b16 %v7670
        %v7862 = vunpack.c.h.b16 %v7670
        %v7863 = vpack.c.b16 %v7739, %v7735
        %v7864 = vpack.c.b16 %v7740, %v7736
        %v7865 = vpack.c.b16 %v7741, %v7737
        %v7866 = vpack.c.b16 %v7742, %v7738
        %v7867 = vpack.c.b16 %v7747, %v7743
        %v7868 = vpack.c.b16 %v7748, %v7744
        %v7869 = vpack.c.b16 %v7749, %v7745
        %v7870 = vpack.c.b16 %v7750, %v7746
        %v7871 = vpack.c.b16 %v7755, %v7751
        %v7872 = vpack.c.b16 %v7756, %v7752
        %v7873 = vpack.c.b16 %v7757, %v7753
        %v7874 = vpack.c.b16 %v7758, %v7754
        %v7875 = vpack.c.b16 %v7763, %v7759
        %v7876 = vpack.c.b16 %v7764, %v7760
        %v7877 = vpack.c.b16 %v7765, %v7761
        %v7878 = vpack.c.b16 %v7766, %v7762
        %v7879 = vpack.c.b16 %v7771, %v7767
        %v7880 = vpack.c.b16 %v7772, %v7768
        %v7881 = vpack.c.b16 %v7773, %v7769
        %v7882 = vpack.c.b16 %v7774, %v7770
        %v7883 = vpack.c.b16 %v7779, %v7775
        %v7884 = vpack.c.b16 %v7780, %v7776
        %v7885 = vpack.c.b16 %v7781, %v7777
        %v7886 = vpack.c.b16 %v7782, %v7778
        %v7887 = vpack.c.b16 %v7787, %v7783
        %v7888 = vpack.c.b16 %v7788, %v7784
        %v7889 = vpack.c.b16 %v7789, %v7785
        %v7890 = vpack.c.b16 %v7790, %v7786
        %v7891 = vpack.c.b16 %v7795, %v7791
        %v7892 = vpack.c.b16 %v7796, %v7792
        %v7893 = vpack.c.b16 %v7797, %v7793
        %v7894 = vpack.c.b16 %v7798, %v7794
        %v7895 = vpack.c.b16 %v7803, %v7799
        %v7896 = vpack.c.b16 %v7804, %v7800
        %v7897 = vpack.c.b16 %v7805, %v7801
        %v7898 = vpack.c.b16 %v7806, %v7802
        %v7899 = vpack.c.b16 %v7811, %v7807
        %v7900 = vpack.c.b16 %v7812, %v7808
        %v7901 = vpack.c.b16 %v7813, %v7809
        %v7902 = vpack.c.b16 %v7814, %v7810
        %v7903 = vpack.c.b16 %v7819, %v7815
        %v7904 = vpack.c.b16 %v7820, %v7816
        %v7905 = vpack.c.b16 %v7821, %v7817
        %v7906 = vpack.c.b16 %v7822, %v7818
        %v7907 = vpack.c.b16 %v7827, %v7823
        %v7908 = vpack.c.b16 %v7828, %v7824
        %v7909 = vpack.c.b16 %v7829, %v7825
        %v7910 = vpack.c.b16 %v7830, %v7826
        %v7911 = vpack.c.b16 %v7835, %v7831
        %v7912 = vpack.c.b16 %v7836, %v7832
        %v7913 = vpack.c.b16 %v7837, %v7833
        %v7914 = vpack.c.b16 %v7838, %v7834
        %v7915 = vpack.c.b16 %v7843, %v7839
        %v7916 = vpack.c.b16 %v7844, %v7840
        %v7917 = vpack.c.b16 %v7845, %v7841
        %v7918 = vpack.c.b16 %v7846, %v7842
        %v7919 = vpack.c.b16 %v7851, %v7847
        %v7920 = vpack.c.b16 %v7852, %v7848
        %v7921 = vpack.c.b16 %v7853, %v7849
        %v7922 = vpack.c.b16 %v7854, %v7850
        %v7923 = vpack.c.b16 %v7859, %v7855
        %v7924 = vpack.c.b16 %v7860, %v7856
        %v7925 = vpack.c.b16 %v7861, %v7857
        %v7926 = vpack.c.b16 %v7862, %v7858
        %7991 = vmatpush.bf16.msra.mxu0 %v7891
        %7992 = vmatpush.bf16.msra.mxu0 %v7887
        %7993 = vmatpush.bf16.msra.mxu0 %v7883
        %7994 = vmatpush.bf16.msra.mxu0 %v7879
        %7995 = vmatpush.bf16.msra.mxu0 %v7875
        %7996 = vmatpush.bf16.msra.mxu0 %v7871
        %7997 = vmatpush.bf16.msra.mxu0 %v7867
        %7998 = vmatpush.bf16.msra.mxu0 %v7863
        %7999 = vmatmul.bf16.gmra.mxu0 %v7575
        %v8000 = vpop.f32.mrf.mxu0
        %v8001 = vadd.f32 0.0, %v8000
        %v8002 = vpop.f32.mrf.mxu0
        %v8003 = vadd.f32 0.0, %v8002
        %8004 = vmatmul.bf16.gmra.mxu0 %v7577
        %v8005 = vpop.f32.mrf.mxu0
        %v8006 = vadd.f32 0.0, %v8005
        %v8007 = vpop.f32.mrf.mxu0
        %v8008 = vadd.f32 0.0, %v8007
        %8009 = vmatmul.bf16.gmra.mxu0 %v7579
        %v8010 = vpop.f32.mrf.mxu0
        %v8011 = vadd.f32 0.0, %v8010
        %v8012 = vpop.f32.mrf.mxu0
        %v8013 = vadd.f32 0.0, %v8012
        %8014 = vmatmul.bf16.gmra.mxu0 %v7581
        %v8015 = vpop.f32.mrf.mxu0
        %v8016 = vadd.f32 0.0, %v8015
        %v8017 = vpop.f32.mrf.mxu0
        %v8018 = vadd.f32 0.0, %v8017
        %8019 = vmatmul.bf16.gmra.mxu0 %v7583
        %v8020 = vpop.f32.mrf.mxu0
        %v8021 = vadd.f32 0.0, %v8020
        %v8022 = vpop.f32.mrf.mxu0
        %v8023 = vadd.f32 0.0, %v8022
        %8024 = vmatmul.bf16.gmra.mxu0 %v7585
        %v8025 = vpop.f32.mrf.mxu0
        %v8026 = vadd.f32 0.0, %v8025
        %v8027 = vpop.f32.mrf.mxu0
        %v8028 = vadd.f32 0.0, %v8027
        %8029 = vmatmul.bf16.gmra.mxu0 %v7587
        %v8030 = vpop.f32.mrf.mxu0
        %v8031 = vadd.f32 0.0, %v8030
        %v8032 = vpop.f32.mrf.mxu0
        %v8033 = vadd.f32 0.0, %v8032
        %8034 = vmatmul.bf16.gmra.mxu0 %v7589
        %v8035 = vpop.f32.mrf.mxu0
        %v8036 = vadd.f32 0.0, %v8035
        %v8037 = vpop.f32.mrf.mxu0
        %v8038 = vadd.f32 0.0, %v8037
        %8039 = vmatmul.bf16.gmra.mxu0 %v7591
        %v8040 = vpop.f32.mrf.mxu0
        %v8041 = vadd.f32 0.0, %v8040
        %v8042 = vpop.f32.mrf.mxu0
        %v8043 = vadd.f32 0.0, %v8042
        %8044 = vmatmul.bf16.gmra.mxu0 %v7593
        %v8045 = vpop.f32.mrf.mxu0
        %v8046 = vadd.f32 0.0, %v8045
        %v8047 = vpop.f32.mrf.mxu0
        %v8048 = vadd.f32 0.0, %v8047
        %8049 = vmatmul.bf16.gmra.mxu0 %v7595
        %v8050 = vpop.f32.mrf.mxu0
        %v8051 = vadd.f32 0.0, %v8050
        %v8052 = vpop.f32.mrf.mxu0
        %v8053 = vadd.f32 0.0, %v8052
        %8054 = vmatmul.bf16.gmra.mxu0 %v7597
        %v8055 = vpop.f32.mrf.mxu0
        %v8056 = vadd.f32 0.0, %v8055
        %v8057 = vpop.f32.mrf.mxu0
        %v8058 = vadd.f32 0.0, %v8057
        %8059 = vmatmul.bf16.gmra.mxu0 %v7599
        %v8060 = vpop.f32.mrf.mxu0
        %v8061 = vadd.f32 0.0, %v8060
        %v8062 = vpop.f32.mrf.mxu0
        %v8063 = vadd.f32 0.0, %v8062
        %8064 = vmatmul.bf16.gmra.mxu0 %v7601
        %v8065 = vpop.f32.mrf.mxu0
        %v8066 = vadd.f32 0.0, %v8065
        %v8067 = vpop.f32.mrf.mxu0
        %v8068 = vadd.f32 0.0, %v8067
        %8069 = vmatmul.bf16.gmra.mxu0 %v7603
        %v8070 = vpop.f32.mrf.mxu0
        %v8071 = vadd.f32 0.0, %v8070
        %v8072 = vpop.f32.mrf.mxu0
        %v8073 = vadd.f32 0.0, %v8072
        %8074 = vmatmul.bf16.gmra.mxu0 %v7605
        %v8075 = vpop.f32.mrf.mxu0
        %v8076 = vadd.f32 0.0, %v8075
        %v8077 = vpop.f32.mrf.mxu0
        %v8078 = vadd.f32 0.0, %v8077
        %8079 = vdwg.mxu0
        %8080 = vmatpush.bf16.msra.mxu0 %v7923
        %8081 = vmatpush.bf16.msra.mxu0 %v7919
        %8082 = vmatpush.bf16.msra.mxu0 %v7915
        %8083 = vmatpush.bf16.msra.mxu0 %v7911
        %8084 = vmatpush.bf16.msra.mxu0 %v7907
        %8085 = vmatpush.bf16.msra.mxu0 %v7903
        %8086 = vmatpush.bf16.msra.mxu0 %v7899
        %8087 = vmatpush.bf16.msra.mxu0 %v7895
        %8088 = vmatmul.bf16.gmra.mxu0 %v7576
        %v8089 = vpop.f32.mrf.mxu0
        %v8090 = vadd.f32 %v8001, %v8089
        %v8091 = vpop.f32.mrf.mxu0
        %v8092 = vadd.f32 %v8003, %v8091
        %8093 = vmatmul.bf16.gmra.mxu0 %v7578
        %v8094 = vpop.f32.mrf.mxu0
        %v8095 = vadd.f32 %v8006, %v8094
        %v8096 = vpop.f32.mrf.mxu0
        %v8097 = vadd.f32 %v8008, %v8096
        %8098 = vmatmul.bf16.gmra.mxu0 %v7580
        %v8099 = vpop.f32.mrf.mxu0
        %v8100 = vadd.f32 %v8011, %v8099
        %v8101 = vpop.f32.mrf.mxu0
        %v8102 = vadd.f32 %v8013, %v8101
        %8103 = vmatmul.bf16.gmra.mxu0 %v7582
        %v8104 = vpop.f32.mrf.mxu0
        %v8105 = vadd.f32 %v8016, %v8104
        %v8106 = vpop.f32.mrf.mxu0
        %v8107 = vadd.f32 %v8018, %v8106
        %8108 = vmatmul.bf16.gmra.mxu0 %v7584
        %v8109 = vpop.f32.mrf.mxu0
        %v8110 = vadd.f32 %v8021, %v8109
        %v8111 = vpop.f32.mrf.mxu0
        %v8112 = vadd.f32 %v8023, %v8111
        %8113 = vmatmul.bf16.gmra.mxu0 %v7586
        %v8114 = vpop.f32.mrf.mxu0
        %v8115 = vadd.f32 %v8026, %v8114
        %v8116 = vpop.f32.mrf.mxu0
        %v8117 = vadd.f32 %v8028, %v8116
        %8118 = vmatmul.bf16.gmra.mxu0 %v7588
        %v8119 = vpop.f32.mrf.mxu0
        %v8120 = vadd.f32 %v8031, %v8119
        %v8121 = vpop.f32.mrf.mxu0
        %v8122 = vadd.f32 %v8033, %v8121
        %8123 = vmatmul.bf16.gmra.mxu0 %v7590
        %v8124 = vpop.f32.mrf.mxu0
        %v8125 = vadd.f32 %v8036, %v8124
        %v8126 = vpop.f32.mrf.mxu0
        %v8127 = vadd.f32 %v8038, %v8126
        %8128 = vmatmul.bf16.gmra.mxu0 %v7592
        %v8129 = vpop.f32.mrf.mxu0
        %v8130 = vadd.f32 %v8041, %v8129
        %v8131 = vpop.f32.mrf.mxu0
        %v8132 = vadd.f32 %v8043, %v8131
        %8133 = vmatmul.bf16.gmra.mxu0 %v7594
        %v8134 = vpop.f32.mrf.mxu0
        %v8135 = vadd.f32 %v8046, %v8134
        %v8136 = vpop.f32.mrf.mxu0
        %v8137 = vadd.f32 %v8048, %v8136
        %8138 = vmatmul.bf16.gmra.mxu0 %v7596
        %v8139 = vpop.f32.mrf.mxu0
        %v8140 = vadd.f32 %v8051, %v8139
        %v8141 = vpop.f32.mrf.mxu0
        %v8142 = vadd.f32 %v8053, %v8141
        %8143 = vmatmul.bf16.gmra.mxu0 %v7598
        %v8144 = vpop.f32.mrf.mxu0
        %v8145 = vadd.f32 %v8056, %v8144
        %v8146 = vpop.f32.mrf.mxu0
        %v8147 = vadd.f32 %v8058, %v8146
        %8148 = vmatmul.bf16.gmra.mxu0 %v7600
        %v8149 = vpop.f32.mrf.mxu0
        %v8150 = vadd.f32 %v8061, %v8149
        %v8151 = vpop.f32.mrf.mxu0
        %v8152 = vadd.f32 %v8063, %v8151
        %8153 = vmatmul.bf16.gmra.mxu0 %v7602
        %v8154 = vpop.f32.mrf.mxu0
        %v8155 = vadd.f32 %v8066, %v8154
        %v8156 = vpop.f32.mrf.mxu0
        %v8157 = vadd.f32 %v8068, %v8156
        %8158 = vmatmul.bf16.gmra.mxu0 %v7604
        %v8159 = vpop.f32.mrf.mxu0
        %v8160 = vadd.f32 %v8071, %v8159
        %v8161 = vpop.f32.mrf.mxu0
        %v8162 = vadd.f32 %v8073, %v8161
        %8163 = vmatmul.bf16.gmra.mxu0 %v7606
        %v8164 = vpop.f32.mrf.mxu0
        %v8165 = vadd.f32 %v8076, %v8164
        %v8166 = vpop.f32.mrf.mxu0
        %v8167 = vadd.f32 %v8078, %v8166
        %8168 = vdwg.mxu0
        %8169 = vmatpush.bf16.msra.mxu0 %v7892
        %8170 = vmatpush.bf16.msra.mxu0 %v7888
        %8171 = vmatpush.bf16.msra.mxu0 %v7884
        %8172 = vmatpush.bf16.msra.mxu0 %v7880
        %8173 = vmatpush.bf16.msra.mxu0 %v7876
        %8174 = vmatpush.bf16.msra.mxu0 %v7872
        %8175 = vmatpush.bf16.msra.mxu0 %v7868
        %8176 = vmatpush.bf16.msra.mxu0 %v7864
        %8177 = vmatmul.bf16.gmra.mxu0 %v7575
        %v8178 = vpop.f32.mrf.mxu0
        %v8179 = vadd.f32 0.0, %v8178
        %v8180 = vpop.f32.mrf.mxu0
        %v8181 = vadd.f32 0.0, %v8180
        %8182 = vmatmul.bf16.gmra.mxu0 %v7577
        %v8183 = vpop.f32.mrf.mxu0
        %v8184 = vadd.f32 0.0, %v8183
        %v8185 = vpop.f32.mrf.mxu0
        %v8186 = vadd.f32 0.0, %v8185
        %8187 = vmatmul.bf16.gmra.mxu0 %v7579
        %v8188 = vpop.f32.mrf.mxu0
        %v8189 = vadd.f32 0.0, %v8188
        %v8190 = vpop.f32.mrf.mxu0
        %v8191 = vadd.f32 0.0, %v8190
        %8192 = vmatmul.bf16.gmra.mxu0 %v7581
        %v8193 = vpop.f32.mrf.mxu0
        %v8194 = vadd.f32 0.0, %v8193
        %v8195 = vpop.f32.mrf.mxu0
        %v8196 = vadd.f32 0.0, %v8195
        %8197 = vmatmul.bf16.gmra.mxu0 %v7583
        %v8198 = vpop.f32.mrf.mxu0
        %v8199 = vadd.f32 0.0, %v8198
        %v8200 = vpop.f32.mrf.mxu0
        %v8201 = vadd.f32 0.0, %v8200
        %8202 = vmatmul.bf16.gmra.mxu0 %v7585
        %v8203 = vpop.f32.mrf.mxu0
        %v8204 = vadd.f32 0.0, %v8203
        %v8205 = vpop.f32.mrf.mxu0
        %v8206 = vadd.f32 0.0, %v8205
        %8207 = vmatmul.bf16.gmra.mxu0 %v7587
        %v8208 = vpop.f32.mrf.mxu0
        %v8209 = vadd.f32 0.0, %v8208
        %v8210 = vpop.f32.mrf.mxu0
        %v8211 = vadd.f32 0.0, %v8210
        %8212 = vmatmul.bf16.gmra.mxu0 %v7589
        %v8213 = vpop.f32.mrf.mxu0
        %v8214 = vadd.f32 0.0, %v8213
        %v8215 = vpop.f32.mrf.mxu0
        %v8216 = vadd.f32 0.0, %v8215
        %8217 = vmatmul.bf16.gmra.mxu0 %v7591
        %v8218 = vpop.f32.mrf.mxu0
        %v8219 = vadd.f32 0.0, %v8218
        %v8220 = vpop.f32.mrf.mxu0
        %v8221 = vadd.f32 0.0, %v8220
        %8222 = vmatmul.bf16.gmra.mxu0 %v7593
        %v8223 = vpop.f32.mrf.mxu0
        %v8224 = vadd.f32 0.0, %v8223
        %v8225 = vpop.f32.mrf.mxu0
        %v8226 = vadd.f32 0.0, %v8225
        %8227 = vmatmul.bf16.gmra.mxu0 %v7595
        %v8228 = vpop.f32.mrf.mxu0
        %v8229 = vadd.f32 0.0, %v8228
        %v8230 = vpop.f32.mrf.mxu0
        %v8231 = vadd.f32 0.0, %v8230
        %8232 = vmatmul.bf16.gmra.mxu0 %v7597
        %v8233 = vpop.f32.mrf.mxu0
        %v8234 = vadd.f32 0.0, %v8233
        %v8235 = vpop.f32.mrf.mxu0
        %v8236 = vadd.f32 0.0, %v8235
        %8237 = vmatmul.bf16.gmra.mxu0 %v7599
        %v8238 = vpop.f32.mrf.mxu0
        %v8239 = vadd.f32 0.0, %v8238
        %v8240 = vpop.f32.mrf.mxu0
        %v8241 = vadd.f32 0.0, %v8240
        %8242 = vmatmul.bf16.gmra.mxu0 %v7601
        %v8243 = vpop.f32.mrf.mxu0
        %v8244 = vadd.f32 0.0, %v8243
        %v8245 = vpop.f32.mrf.mxu0
        %v8246 = vadd.f32 0.0, %v8245
        %8247 = vmatmul.bf16.gmra.mxu0 %v7603
        %v8248 = vpop.f32.mrf.mxu0
        %v8249 = vadd.f32 0.0, %v8248
        %v8250 = vpop.f32.mrf.mxu0
        %v8251 = vadd.f32 0.0, %v8250
        %8252 = vmatmul.bf16.gmra.mxu0 %v7605
        %v8253 = vpop.f32.mrf.mxu0
        %v8254 = vadd.f32 0.0, %v8253
        %v8255 = vpop.f32.mrf.mxu0
        %v8256 = vadd.f32 0.0, %v8255
        %8257 = vdwg.mxu0
        %8258 = vmatpush.bf16.msra.mxu0 %v7924
        %8259 = vmatpush.bf16.msra.mxu0 %v7920
        %8260 = vmatpush.bf16.msra.mxu0 %v7916
        %8261 = vmatpush.bf16.msra.mxu0 %v7912
        %8262 = vmatpush.bf16.msra.mxu0 %v7908
        %8263 = vmatpush.bf16.msra.mxu0 %v7904
        %8264 = vmatpush.bf16.msra.mxu0 %v7900
        %8265 = vmatpush.bf16.msra.mxu0 %v7896
        %8266 = vmatmul.bf16.gmra.mxu0 %v7576
        %v8267 = vpop.f32.mrf.mxu0
        %v8268 = vadd.f32 %v8179, %v8267
        %v8269 = vpop.f32.mrf.mxu0
        %v8270 = vadd.f32 %v8181, %v8269
        %8271 = vmatmul.bf16.gmra.mxu0 %v7578
        %v8272 = vpop.f32.mrf.mxu0
        %v8273 = vadd.f32 %v8184, %v8272
        %v8274 = vpop.f32.mrf.mxu0
        %v8275 = vadd.f32 %v8186, %v8274
        %8276 = vmatmul.bf16.gmra.mxu0 %v7580
        %v8277 = vpop.f32.mrf.mxu0
        %v8278 = vadd.f32 %v8189, %v8277
        %v8279 = vpop.f32.mrf.mxu0
        %v8280 = vadd.f32 %v8191, %v8279
        %8281 = vmatmul.bf16.gmra.mxu0 %v7582
        %v8282 = vpop.f32.mrf.mxu0
        %v8283 = vadd.f32 %v8194, %v8282
        %v8284 = vpop.f32.mrf.mxu0
        %v8285 = vadd.f32 %v8196, %v8284
        %8286 = vmatmul.bf16.gmra.mxu0 %v7584
        %v8287 = vpop.f32.mrf.mxu0
        %v8288 = vadd.f32 %v8199, %v8287
        %v8289 = vpop.f32.mrf.mxu0
        %v8290 = vadd.f32 %v8201, %v8289
        %8291 = vmatmul.bf16.gmra.mxu0 %v7586
        %v8292 = vpop.f32.mrf.mxu0
        %v8293 = vadd.f32 %v8204, %v8292
        %v8294 = vpop.f32.mrf.mxu0
        %v8295 = vadd.f32 %v8206, %v8294
        %8296 = vmatmul.bf16.gmra.mxu0 %v7588
        %v8297 = vpop.f32.mrf.mxu0
        %v8298 = vadd.f32 %v8209, %v8297
        %v8299 = vpop.f32.mrf.mxu0
        %v8300 = vadd.f32 %v8211, %v8299
        %8301 = vmatmul.bf16.gmra.mxu0 %v7590
        %v8302 = vpop.f32.mrf.mxu0
        %v8303 = vadd.f32 %v8214, %v8302
        %v8304 = vpop.f32.mrf.mxu0
        %v8305 = vadd.f32 %v8216, %v8304
        %8306 = vmatmul.bf16.gmra.mxu0 %v7592
        %v8307 = vpop.f32.mrf.mxu0
        %v8308 = vadd.f32 %v8219, %v8307
        %v8309 = vpop.f32.mrf.mxu0
        %v8310 = vadd.f32 %v8221, %v8309
        %8311 = vmatmul.bf16.gmra.mxu0 %v7594
        %v8312 = vpop.f32.mrf.mxu0
        %v8313 = vadd.f32 %v8224, %v8312
        %v8314 = vpop.f32.mrf.mxu0
        %v8315 = vadd.f32 %v8226, %v8314
        %8316 = vmatmul.bf16.gmra.mxu0 %v7596
        %v8317 = vpop.f32.mrf.mxu0
        %v8318 = vadd.f32 %v8229, %v8317
        %v8319 = vpop.f32.mrf.mxu0
        %v8320 = vadd.f32 %v8231, %v8319
        %8321 = vmatmul.bf16.gmra.mxu0 %v7598
        %v8322 = vpop.f32.mrf.mxu0
        %v8323 = vadd.f32 %v8234, %v8322
        %v8324 = vpop.f32.mrf.mxu0
        %v8325 = vadd.f32 %v8236, %v8324
        %8326 = vmatmul.bf16.gmra.mxu0 %v7600
        %v8327 = vpop.f32.mrf.mxu0
        %v8328 = vadd.f32 %v8239, %v8327
        %v8329 = vpop.f32.mrf.mxu0
        %v8330 = vadd.f32 %v8241, %v8329
        %8331 = vmatmul.bf16.gmra.mxu0 %v7602
        %v8332 = vpop.f32.mrf.mxu0
        %v8333 = vadd.f32 %v8244, %v8332
        %v8334 = vpop.f32.mrf.mxu0
        %v8335 = vadd.f32 %v8246, %v8334
        %8336 = vmatmul.bf16.gmra.mxu0 %v7604
        %v8337 = vpop.f32.mrf.mxu0
        %v8338 = vadd.f32 %v8249, %v8337
        %v8339 = vpop.f32.mrf.mxu0
        %v8340 = vadd.f32 %v8251, %v8339
        %8341 = vmatmul.bf16.gmra.mxu0 %v7606
        %v8342 = vpop.f32.mrf.mxu0
        %v8343 = vadd.f32 %v8254, %v8342
        %v8344 = vpop.f32.mrf.mxu0
        %v8345 = vadd.f32 %v8256, %v8344
        %8346 = vdwg.mxu0
        %8347 = vmatpush.bf16.msra.mxu0 %v7893
        %8348 = vmatpush.bf16.msra.mxu0 %v7889
        %8349 = vmatpush.bf16.msra.mxu0 %v7885
        %8350 = vmatpush.bf16.msra.mxu0 %v7881
        %8351 = vmatpush.bf16.msra.mxu0 %v7877
        %8352 = vmatpush.bf16.msra.mxu0 %v7873
        %8353 = vmatpush.bf16.msra.mxu0 %v7869
        %8354 = vmatpush.bf16.msra.mxu0 %v7865
        %8355 = vmatmul.bf16.gmra.mxu0 %v7575
        %v8356 = vpop.f32.mrf.mxu0
        %v8357 = vadd.f32 0.0, %v8356
        %v8358 = vpop.f32.mrf.mxu0
        %v8359 = vadd.f32 0.0, %v8358
        %8360 = vmatmul.bf16.gmra.mxu0 %v7577
        %v8361 = vpop.f32.mrf.mxu0
        %v8362 = vadd.f32 0.0, %v8361
        %v8363 = vpop.f32.mrf.mxu0
        %v8364 = vadd.f32 0.0, %v8363
        %8365 = vmatmul.bf16.gmra.mxu0 %v7579
        %v8366 = vpop.f32.mrf.mxu0
        %v8367 = vadd.f32 0.0, %v8366
        %v8368 = vpop.f32.mrf.mxu0
        %v8369 = vadd.f32 0.0, %v8368
        %8370 = vmatmul.bf16.gmra.mxu0 %v7581
        %v8371 = vpop.f32.mrf.mxu0
        %v8372 = vadd.f32 0.0, %v8371
        %v8373 = vpop.f32.mrf.mxu0
        %v8374 = vadd.f32 0.0, %v8373
        %8375 = vmatmul.bf16.gmra.mxu0 %v7583
        %v8376 = vpop.f32.mrf.mxu0
        %v8377 = vadd.f32 0.0, %v8376
        %v8378 = vpop.f32.mrf.mxu0
        %v8379 = vadd.f32 0.0, %v8378
        %8380 = vmatmul.bf16.gmra.mxu0 %v7585
        %v8381 = vpop.f32.mrf.mxu0
        %v8382 = vadd.f32 0.0, %v8381
        %v8383 = vpop.f32.mrf.mxu0
        %v8384 = vadd.f32 0.0, %v8383
        %8385 = vmatmul.bf16.gmra.mxu0 %v7587
        %v8386 = vpop.f32.mrf.mxu0
        %v8387 = vadd.f32 0.0, %v8386
        %v8388 = vpop.f32.mrf.mxu0
        %v8389 = vadd.f32 0.0, %v8388
        %8390 = vmatmul.bf16.gmra.mxu0 %v7589
        %v8391 = vpop.f32.mrf.mxu0
        %v8392 = vadd.f32 0.0, %v8391
        %v8393 = vpop.f32.mrf.mxu0
        %v8394 = vadd.f32 0.0, %v8393
        %8395 = vmatmul.bf16.gmra.mxu0 %v7591
        %v8396 = vpop.f32.mrf.mxu0
        %v8397 = vadd.f32 0.0, %v8396
        %v8398 = vpop.f32.mrf.mxu0
        %v8399 = vadd.f32 0.0, %v8398
        %8400 = vmatmul.bf16.gmra.mxu0 %v7593
        %v8401 = vpop.f32.mrf.mxu0
        %v8402 = vadd.f32 0.0, %v8401
        %v8403 = vpop.f32.mrf.mxu0
        %v8404 = vadd.f32 0.0, %v8403
        %8405 = vmatmul.bf16.gmra.mxu0 %v7595
        %v8406 = vpop.f32.mrf.mxu0
        %v8407 = vadd.f32 0.0, %v8406
        %v8408 = vpop.f32.mrf.mxu0
        %v8409 = vadd.f32 0.0, %v8408
        %8410 = vmatmul.bf16.gmra.mxu0 %v7597
        %v8411 = vpop.f32.mrf.mxu0
        %v8412 = vadd.f32 0.0, %v8411
        %v8413 = vpop.f32.mrf.mxu0
        %v8414 = vadd.f32 0.0, %v8413
        %8415 = vmatmul.bf16.gmra.mxu0 %v7599
        %v8416 = vpop.f32.mrf.mxu0
        %v8417 = vadd.f32 0.0, %v8416
        %v8418 = vpop.f32.mrf.mxu0
        %v8419 = vadd.f32 0.0, %v8418
        %8420 = vmatmul.bf16.gmra.mxu0 %v7601
        %v8421 = vpop.f32.mrf.mxu0
        %v8422 = vadd.f32 0.0, %v8421
        %v8423 = vpop.f32.mrf.mxu0
        %v8424 = vadd.f32 0.0, %v8423
        %8425 = vmatmul.bf16.gmra.mxu0 %v7603
        %v8426 = vpop.f32.mrf.mxu0
        %v8427 = vadd.f32 0.0, %v8426
        %v8428 = vpop.f32.mrf.mxu0
        %v8429 = vadd.f32 0.0, %v8428
        %8430 = vmatmul.bf16.gmra.mxu0 %v7605
        %v8431 = vpop.f32.mrf.mxu0
        %v8432 = vadd.f32 0.0, %v8431
        %v8433 = vpop.f32.mrf.mxu0
        %v8434 = vadd.f32 0.0, %v8433
        %8435 = vdwg.mxu0
        %8436 = vmatpush.bf16.msra.mxu0 %v7925
        %8437 = vmatpush.bf16.msra.mxu0 %v7921
        %8438 = vmatpush.bf16.msra.mxu0 %v7917
        %8439 = vmatpush.bf16.msra.mxu0 %v7913
        %8440 = vmatpush.bf16.msra.mxu0 %v7909
        %8441 = vmatpush.bf16.msra.mxu0 %v7905
        %8442 = vmatpush.bf16.msra.mxu0 %v7901
        %8443 = vmatpush.bf16.msra.mxu0 %v7897
        %8444 = vmatmul.bf16.gmra.mxu0 %v7576
        %v8445 = vpop.f32.mrf.mxu0
        %v8446 = vadd.f32 %v8357, %v8445
        %v8447 = vpop.f32.mrf.mxu0
        %v8448 = vadd.f32 %v8359, %v8447
        %8449 = vmatmul.bf16.gmra.mxu0 %v7578
        %v8450 = vpop.f32.mrf.mxu0
        %v8451 = vadd.f32 %v8362, %v8450
        %v8452 = vpop.f32.mrf.mxu0
        %v8453 = vadd.f32 %v8364, %v8452
        %8454 = vmatmul.bf16.gmra.mxu0 %v7580
        %v8455 = vpop.f32.mrf.mxu0
        %v8456 = vadd.f32 %v8367, %v8455
        %v8457 = vpop.f32.mrf.mxu0
        %v8458 = vadd.f32 %v8369, %v8457
        %8459 = vmatmul.bf16.gmra.mxu0 %v7582
        %v8460 = vpop.f32.mrf.mxu0
        %v8461 = vadd.f32 %v8372, %v8460
        %v8462 = vpop.f32.mrf.mxu0
        %v8463 = vadd.f32 %v8374, %v8462
        %8464 = vmatmul.bf16.gmra.mxu0 %v7584
        %v8465 = vpop.f32.mrf.mxu0
        %v8466 = vadd.f32 %v8377, %v8465
        %v8467 = vpop.f32.mrf.mxu0
        %v8468 = vadd.f32 %v8379, %v8467
        %8469 = vmatmul.bf16.gmra.mxu0 %v7586
        %v8470 = vpop.f32.mrf.mxu0
        %v8471 = vadd.f32 %v8382, %v8470
        %v8472 = vpop.f32.mrf.mxu0
        %v8473 = vadd.f32 %v8384, %v8472
        %8474 = vmatmul.bf16.gmra.mxu0 %v7588
        %v8475 = vpop.f32.mrf.mxu0
        %v8476 = vadd.f32 %v8387, %v8475
        %v8477 = vpop.f32.mrf.mxu0
        %v8478 = vadd.f32 %v8389, %v8477
        %8479 = vmatmul.bf16.gmra.mxu0 %v7590
        %v8480 = vpop.f32.mrf.mxu0
        %v8481 = vadd.f32 %v8392, %v8480
        %v8482 = vpop.f32.mrf.mxu0
        %v8483 = vadd.f32 %v8394, %v8482
        %8484 = vmatmul.bf16.gmra.mxu0 %v7592
        %v8485 = vpop.f32.mrf.mxu0
        %v8486 = vadd.f32 %v8397, %v8485
        %v8487 = vpop.f32.mrf.mxu0
        %v8488 = vadd.f32 %v8399, %v8487
        %8489 = vmatmul.bf16.gmra.mxu0 %v7594
        %v8490 = vpop.f32.mrf.mxu0
        %v8491 = vadd.f32 %v8402, %v8490
        %v8492 = vpop.f32.mrf.mxu0
        %v8493 = vadd.f32 %v8404, %v8492
        %8494 = vmatmul.bf16.gmra.mxu0 %v7596
        %v8495 = vpop.f32.mrf.mxu0
        %v8496 = vadd.f32 %v8407, %v8495
        %v8497 = vpop.f32.mrf.mxu0
        %v8498 = vadd.f32 %v8409, %v8497
        %8499 = vmatmul.bf16.gmra.mxu0 %v7598
        %v8500 = vpop.f32.mrf.mxu0
        %v8501 = vadd.f32 %v8412, %v8500
        %v8502 = vpop.f32.mrf.mxu0
        %v8503 = vadd.f32 %v8414, %v8502
        %8504 = vmatmul.bf16.gmra.mxu0 %v7600
        %v8505 = vpop.f32.mrf.mxu0
        %v8506 = vadd.f32 %v8417, %v8505
        %v8507 = vpop.f32.mrf.mxu0
        %v8508 = vadd.f32 %v8419, %v8507
        %8509 = vmatmul.bf16.gmra.mxu0 %v7602
        %v8510 = vpop.f32.mrf.mxu0
        %v8511 = vadd.f32 %v8422, %v8510
        %v8512 = vpop.f32.mrf.mxu0
        %v8513 = vadd.f32 %v8424, %v8512
        %8514 = vmatmul.bf16.gmra.mxu0 %v7604
        %v8515 = vpop.f32.mrf.mxu0
        %v8516 = vadd.f32 %v8427, %v8515
        %v8517 = vpop.f32.mrf.mxu0
        %v8518 = vadd.f32 %v8429, %v8517
        %8519 = vmatmul.bf16.gmra.mxu0 %v7606
        %v8520 = vpop.f32.mrf.mxu0
        %v8521 = vadd.f32 %v8432, %v8520
        %v8522 = vpop.f32.mrf.mxu0
        %v8523 = vadd.f32 %v8434, %v8522
        %8524 = vdwg.mxu0
        %8525 = vmatpush.bf16.msra.mxu0 %v7894
        %8526 = vmatpush.bf16.msra.mxu0 %v7890
        %8527 = vmatpush.bf16.msra.mxu0 %v7886
        %8528 = vmatpush.bf16.msra.mxu0 %v7882
        %8529 = vmatpush.bf16.msra.mxu0 %v7878
        %8530 = vmatpush.bf16.msra.mxu0 %v7874
        %8531 = vmatpush.bf16.msra.mxu0 %v7870
        %8532 = vmatpush.bf16.msra.mxu0 %v7866
        %8533 = vmatmul.bf16.gmra.mxu0 %v7575
        %v8534 = vpop.f32.mrf.mxu0
        %v8535 = vadd.f32 0.0, %v8534
        %v8536 = vpop.f32.mrf.mxu0
        %v8537 = vadd.f32 0.0, %v8536
        %8538 = vmatmul.bf16.gmra.mxu0 %v7577
        %v8539 = vpop.f32.mrf.mxu0
        %v8540 = vadd.f32 0.0, %v8539
        %v8541 = vpop.f32.mrf.mxu0
        %v8542 = vadd.f32 0.0, %v8541
        %8543 = vmatmul.bf16.gmra.mxu0 %v7579
        %v8544 = vpop.f32.mrf.mxu0
        %v8545 = vadd.f32 0.0, %v8544
        %v8546 = vpop.f32.mrf.mxu0
        %v8547 = vadd.f32 0.0, %v8546
        %8548 = vmatmul.bf16.gmra.mxu0 %v7581
        %v8549 = vpop.f32.mrf.mxu0
        %v8550 = vadd.f32 0.0, %v8549
        %v8551 = vpop.f32.mrf.mxu0
        %v8552 = vadd.f32 0.0, %v8551
        %8553 = vmatmul.bf16.gmra.mxu0 %v7583
        %v8554 = vpop.f32.mrf.mxu0
        %v8555 = vadd.f32 0.0, %v8554
        %v8556 = vpop.f32.mrf.mxu0
        %v8557 = vadd.f32 0.0, %v8556
        %8558 = vmatmul.bf16.gmra.mxu0 %v7585
        %v8559 = vpop.f32.mrf.mxu0
        %v8560 = vadd.f32 0.0, %v8559
        %v8561 = vpop.f32.mrf.mxu0
        %v8562 = vadd.f32 0.0, %v8561
        %8563 = vmatmul.bf16.gmra.mxu0 %v7587
        %v8564 = vpop.f32.mrf.mxu0
        %v8565 = vadd.f32 0.0, %v8564
        %v8566 = vpop.f32.mrf.mxu0
        %v8567 = vadd.f32 0.0, %v8566
        %8568 = vmatmul.bf16.gmra.mxu0 %v7589
        %v8569 = vpop.f32.mrf.mxu0
        %v8570 = vadd.f32 0.0, %v8569
        %v8571 = vpop.f32.mrf.mxu0
        %v8572 = vadd.f32 0.0, %v8571
        %8573 = vmatmul.bf16.gmra.mxu0 %v7591
        %v8574 = vpop.f32.mrf.mxu0
        %v8575 = vadd.f32 0.0, %v8574
        %v8576 = vpop.f32.mrf.mxu0
        %v8577 = vadd.f32 0.0, %v8576
        %8578 = vmatmul.bf16.gmra.mxu0 %v7593
        %v8579 = vpop.f32.mrf.mxu0
        %v8580 = vadd.f32 0.0, %v8579
        %v8581 = vpop.f32.mrf.mxu0
        %v8582 = vadd.f32 0.0, %v8581
        %8583 = vmatmul.bf16.gmra.mxu0 %v7595
        %v8584 = vpop.f32.mrf.mxu0
        %v8585 = vadd.f32 0.0, %v8584
        %v8586 = vpop.f32.mrf.mxu0
        %v8587 = vadd.f32 0.0, %v8586
        %8588 = vmatmul.bf16.gmra.mxu0 %v7597
        %v8589 = vpop.f32.mrf.mxu0
        %v8590 = vadd.f32 0.0, %v8589
        %v8591 = vpop.f32.mrf.mxu0
        %v8592 = vadd.f32 0.0, %v8591
        %8593 = vmatmul.bf16.gmra.mxu0 %v7599
        %v8594 = vpop.f32.mrf.mxu0
        %v8595 = vadd.f32 0.0, %v8594
        %v8596 = vpop.f32.mrf.mxu0
        %v8597 = vadd.f32 0.0, %v8596
        %8598 = vmatmul.bf16.gmra.mxu0 %v7601
        %v8599 = vpop.f32.mrf.mxu0
        %v8600 = vadd.f32 0.0, %v8599
        %v8601 = vpop.f32.mrf.mxu0
        %v8602 = vadd.f32 0.0, %v8601
        %8603 = vmatmul.bf16.gmra.mxu0 %v7603
        %v8604 = vpop.f32.mrf.mxu0
        %v8605 = vadd.f32 0.0, %v8604
        %v8606 = vpop.f32.mrf.mxu0
        %v8607 = vadd.f32 0.0, %v8606
        %8608 = vmatmul.bf16.gmra.mxu0 %v7605
        %v8609 = vpop.f32.mrf.mxu0
        %v8610 = vadd.f32 0.0, %v8609
        %v8611 = vpop.f32.mrf.mxu0
        %v8612 = vadd.f32 0.0, %v8611
        %8613 = vdwg.mxu0
        %8614 = vmatpush.bf16.msra.mxu0 %v7926
        %8615 = vmatpush.bf16.msra.mxu0 %v7922
        %8616 = vmatpush.bf16.msra.mxu0 %v7918
        %8617 = vmatpush.bf16.msra.mxu0 %v7914
        %8618 = vmatpush.bf16.msra.mxu0 %v7910
        %8619 = vmatpush.bf16.msra.mxu0 %v7906
        %8620 = vmatpush.bf16.msra.mxu0 %v7902
        %8621 = vmatpush.bf16.msra.mxu0 %v7898
        %8622 = vmatmul.bf16.gmra.mxu0 %v7576
        %v8623 = vpop.f32.mrf.mxu0
        %v8624 = vadd.f32 %v8535, %v8623
        %v8625 = vpop.f32.mrf.mxu0
        %v8626 = vadd.f32 %v8537, %v8625
        %8627 = vmatmul.bf16.gmra.mxu0 %v7578
        %v8628 = vpop.f32.mrf.mxu0
        %v8629 = vadd.f32 %v8540, %v8628
        %v8630 = vpop.f32.mrf.mxu0
        %v8631 = vadd.f32 %v8542, %v8630
        %8632 = vmatmul.bf16.gmra.mxu0 %v7580
        %v8633 = vpop.f32.mrf.mxu0
        %v8634 = vadd.f32 %v8545, %v8633
        %v8635 = vpop.f32.mrf.mxu0
        %v8636 = vadd.f32 %v8547, %v8635
        %8637 = vmatmul.bf16.gmra.mxu0 %v7582
        %v8638 = vpop.f32.mrf.mxu0
        %v8639 = vadd.f32 %v8550, %v8638
        %v8640 = vpop.f32.mrf.mxu0
        %v8641 = vadd.f32 %v8552, %v8640
        %8642 = vmatmul.bf16.gmra.mxu0 %v7584
        %v8643 = vpop.f32.mrf.mxu0
        %v8644 = vadd.f32 %v8555, %v8643
        %v8645 = vpop.f32.mrf.mxu0
        %v8646 = vadd.f32 %v8557, %v8645
        %8647 = vmatmul.bf16.gmra.mxu0 %v7586
        %v8648 = vpop.f32.mrf.mxu0
        %v8649 = vadd.f32 %v8560, %v8648
        %v8650 = vpop.f32.mrf.mxu0
        %v8651 = vadd.f32 %v8562, %v8650
        %8652 = vmatmul.bf16.gmra.mxu0 %v7588
        %v8653 = vpop.f32.mrf.mxu0
        %v8654 = vadd.f32 %v8565, %v8653
        %v8655 = vpop.f32.mrf.mxu0
        %v8656 = vadd.f32 %v8567, %v8655
        %8657 = vmatmul.bf16.gmra.mxu0 %v7590
        %v8658 = vpop.f32.mrf.mxu0
        %v8659 = vadd.f32 %v8570, %v8658
        %v8660 = vpop.f32.mrf.mxu0
        %v8661 = vadd.f32 %v8572, %v8660
        %8662 = vmatmul.bf16.gmra.mxu0 %v7592
        %v8663 = vpop.f32.mrf.mxu0
        %v8664 = vadd.f32 %v8575, %v8663
        %v8665 = vpop.f32.mrf.mxu0
        %v8666 = vadd.f32 %v8577, %v8665
        %8667 = vmatmul.bf16.gmra.mxu0 %v7594
        %v8668 = vpop.f32.mrf.mxu0
        %v8669 = vadd.f32 %v8580, %v8668
        %v8670 = vpop.f32.mrf.mxu0
        %v8671 = vadd.f32 %v8582, %v8670
        %8672 = vmatmul.bf16.gmra.mxu0 %v7596
        %v8673 = vpop.f32.mrf.mxu0
        %v8674 = vadd.f32 %v8585, %v8673
        %v8675 = vpop.f32.mrf.mxu0
        %v8676 = vadd.f32 %v8587, %v8675
        %8677 = vmatmul.bf16.gmra.mxu0 %v7598
        %v8678 = vpop.f32.mrf.mxu0
        %v8679 = vadd.f32 %v8590, %v8678
        %v8680 = vpop.f32.mrf.mxu0
        %v8681 = vadd.f32 %v8592, %v8680
        %8682 = vmatmul.bf16.gmra.mxu0 %v7600
        %v8683 = vpop.f32.mrf.mxu0
        %v8684 = vadd.f32 %v8595, %v8683
        %v8685 = vpop.f32.mrf.mxu0
        %v8686 = vadd.f32 %v8597, %v8685
        %8687 = vmatmul.bf16.gmra.mxu0 %v7602
        %v8688 = vpop.f32.mrf.mxu0
        %v8689 = vadd.f32 %v8600, %v8688
        %v8690 = vpop.f32.mrf.mxu0
        %v8691 = vadd.f32 %v8602, %v8690
        %8692 = vmatmul.bf16.gmra.mxu0 %v7604
        %v8693 = vpop.f32.mrf.mxu0
        %v8694 = vadd.f32 %v8605, %v8693
        %v8695 = vpop.f32.mrf.mxu0
        %v8696 = vadd.f32 %v8607, %v8695
        %8697 = vmatmul.bf16.gmra.mxu0 %v7606
        %v8698 = vpop.f32.mrf.mxu0
        %v8699 = vadd.f32 %v8610, %v8698
        %v8700 = vpop.f32.mrf.mxu0
        %v8701 = vadd.f32 %v8612, %v8700
        %8702 = vdwg.mxu0
        %v8703 = vperm.slane %v898, 2
        %v8704 = vmul.f32 %v3385, %v8703
        %v8705 = vmul.f32 %v3388, %v8703
        %v8706 = vmul.f32 %v3391, %v8703
        %v8707 = vmul.f32 %v3394, %v8703
        %v8708 = vmul.f32 %v3397, %v8703
        %v8709 = vmul.f32 %v3400, %v8703
        %v8710 = vmul.f32 %v3403, %v8703
        %v8711 = vmul.f32 %v3406, %v8703
        %v8712 = vmul.f32 %v3409, %v8703
        %v8713 = vmul.f32 %v3412, %v8703
        %v8714 = vmul.f32 %v3415, %v8703
        %v8715 = vmul.f32 %v3418, %v8703
        %v8716 = vmul.f32 %v3421, %v8703
        %v8717 = vmul.f32 %v3424, %v8703
        %v8718 = vmul.f32 %v3427, %v8703
        %v8719 = vmul.f32 %v3430, %v8703
        %v8720 = vmul.f32 %v3433, %v8703
        %v8721 = vmul.f32 %v3436, %v8703
        %v8722 = vmul.f32 %v3439, %v8703
        %v8723 = vmul.f32 %v3442, %v8703
        %v8724 = vmul.f32 %v3445, %v8703
        %v8725 = vmul.f32 %v3448, %v8703
        %v8726 = vmul.f32 %v3451, %v8703
        %v8727 = vmul.f32 %v3454, %v8703
        %v8728 = vmul.f32 %v3457, %v8703
        %v8729 = vmul.f32 %v3460, %v8703
        %v8730 = vmul.f32 %v3463, %v8703
        %v8731 = vmul.f32 %v3466, %v8703
        %v8732 = vmul.f32 %v3469, %v8703
        %v8733 = vmul.f32 %v3472, %v8703
        %v8734 = vmul.f32 %v3475, %v8703
        %v8735 = vmul.f32 %v3478, %v8703
        %v8736 = vadd.f32 %v8090, %v8704
        %v8737 = vadd.f32 %v8092, %v8705
        %v8738 = vadd.f32 %v8095, %v8706
        %v8739 = vadd.f32 %v8097, %v8707
        %v8740 = vadd.f32 %v8100, %v8708
        %v8741 = vadd.f32 %v8102, %v8709
        %v8742 = vadd.f32 %v8105, %v8710
        %v8743 = vadd.f32 %v8107, %v8711
        %v8744 = vadd.f32 %v8110, %v8712
        %v8745 = vadd.f32 %v8112, %v8713
        %v8746 = vadd.f32 %v8115, %v8714
        %v8747 = vadd.f32 %v8117, %v8715
        %v8748 = vadd.f32 %v8120, %v8716
        %v8749 = vadd.f32 %v8122, %v8717
        %v8750 = vadd.f32 %v8125, %v8718
        %v8751 = vadd.f32 %v8127, %v8719
        %v8752 = vadd.f32 %v8130, %v8720
        %v8753 = vadd.f32 %v8132, %v8721
        %v8754 = vadd.f32 %v8135, %v8722
        %v8755 = vadd.f32 %v8137, %v8723
        %v8756 = vadd.f32 %v8140, %v8724
        %v8757 = vadd.f32 %v8142, %v8725
        %v8758 = vadd.f32 %v8145, %v8726
        %v8759 = vadd.f32 %v8147, %v8727
        %v8760 = vadd.f32 %v8150, %v8728
        %v8761 = vadd.f32 %v8152, %v8729
        %v8762 = vadd.f32 %v8155, %v8730
        %v8763 = vadd.f32 %v8157, %v8731
        %v8764 = vadd.f32 %v8160, %v8732
        %v8765 = vadd.f32 %v8162, %v8733
        %v8766 = vadd.f32 %v8165, %v8734
        %v8767 = vadd.f32 %v8167, %v8735
        %v8768 = vperm.slane %v899, 2
        %v8769 = vperm.slane %v900, 2
        %v8770 = vperm.slane %v901, 2
        %v8771 = vadd.f32 %v8268, %v8768
        %v8772 = vadd.f32 %v8446, %v8769
        %v8773 = vadd.f32 %v8624, %v8770
        %v8774 = vadd.f32 %v8270, %v8768
        %v8775 = vadd.f32 %v8448, %v8769
        %v8776 = vadd.f32 %v8626, %v8770
        %v8777 = vadd.f32 %v8273, %v8768
        %v8778 = vadd.f32 %v8451, %v8769
        %v8779 = vadd.f32 %v8629, %v8770
        %v8780 = vadd.f32 %v8275, %v8768
        %v8781 = vadd.f32 %v8453, %v8769
        %v8782 = vadd.f32 %v8631, %v8770
        %v8783 = vadd.f32 %v8278, %v8768
        %v8784 = vadd.f32 %v8456, %v8769
        %v8785 = vadd.f32 %v8634, %v8770
        %v8786 = vadd.f32 %v8280, %v8768
        %v8787 = vadd.f32 %v8458, %v8769
        %v8788 = vadd.f32 %v8636, %v8770
        %v8789 = vadd.f32 %v8283, %v8768
        %v8790 = vadd.f32 %v8461, %v8769
        %v8791 = vadd.f32 %v8639, %v8770
        %v8792 = vadd.f32 %v8285, %v8768
        %v8793 = vadd.f32 %v8463, %v8769
        %v8794 = vadd.f32 %v8641, %v8770
        %v8795 = vadd.f32 %v8288, %v8768
        %v8796 = vadd.f32 %v8466, %v8769
        %v8797 = vadd.f32 %v8644, %v8770
        %v8798 = vadd.f32 %v8290, %v8768
        %v8799 = vadd.f32 %v8468, %v8769
        %v8800 = vadd.f32 %v8646, %v8770
        %v8801 = vadd.f32 %v8293, %v8768
        %v8802 = vadd.f32 %v8471, %v8769
        %v8803 = vadd.f32 %v8649, %v8770
        %v8804 = vadd.f32 %v8295, %v8768
        %v8805 = vadd.f32 %v8473, %v8769
        %v8806 = vadd.f32 %v8651, %v8770
        %v8807 = vadd.f32 %v8298, %v8768
        %v8808 = vadd.f32 %v8476, %v8769
        %v8809 = vadd.f32 %v8654, %v8770
        %v8810 = vadd.f32 %v8300, %v8768
        %v8811 = vadd.f32 %v8478, %v8769
        %v8812 = vadd.f32 %v8656, %v8770
        %v8813 = vadd.f32 %v8303, %v8768
        %v8814 = vadd.f32 %v8481, %v8769
        %v8815 = vadd.f32 %v8659, %v8770
        %v8816 = vadd.f32 %v8305, %v8768
        %v8817 = vadd.f32 %v8483, %v8769
        %v8818 = vadd.f32 %v8661, %v8770
        %v8819 = vadd.f32 %v8308, %v8768
        %v8820 = vadd.f32 %v8486, %v8769
        %v8821 = vadd.f32 %v8664, %v8770
        %v8822 = vadd.f32 %v8310, %v8768
        %v8823 = vadd.f32 %v8488, %v8769
        %v8824 = vadd.f32 %v8666, %v8770
        %v8825 = vadd.f32 %v8313, %v8768
        %v8826 = vadd.f32 %v8491, %v8769
        %v8827 = vadd.f32 %v8669, %v8770
        %v8828 = vadd.f32 %v8315, %v8768
        %v8829 = vadd.f32 %v8493, %v8769
        %v8830 = vadd.f32 %v8671, %v8770
        %v8831 = vadd.f32 %v8318, %v8768
        %v8832 = vadd.f32 %v8496, %v8769
        %v8833 = vadd.f32 %v8674, %v8770
        %v8834 = vadd.f32 %v8320, %v8768
        %v8835 = vadd.f32 %v8498, %v8769
        %v8836 = vadd.f32 %v8676, %v8770
        %v8837 = vadd.f32 %v8323, %v8768
        %v8838 = vadd.f32 %v8501, %v8769
        %v8839 = vadd.f32 %v8679, %v8770
        %v8840 = vadd.f32 %v8325, %v8768
        %v8841 = vadd.f32 %v8503, %v8769
        %v8842 = vadd.f32 %v8681, %v8770
        %v8843 = vadd.f32 %v8328, %v8768
        %v8844 = vadd.f32 %v8506, %v8769
        %v8845 = vadd.f32 %v8684, %v8770
        %v8846 = vadd.f32 %v8330, %v8768
        %v8847 = vadd.f32 %v8508, %v8769
        %v8848 = vadd.f32 %v8686, %v8770
        %v8849 = vadd.f32 %v8333, %v8768
        %v8850 = vadd.f32 %v8511, %v8769
        %v8851 = vadd.f32 %v8689, %v8770
        %v8852 = vadd.f32 %v8335, %v8768
        %v8853 = vadd.f32 %v8513, %v8769
        %v8854 = vadd.f32 %v8691, %v8770
        %v8855 = vadd.f32 %v8338, %v8768
        %v8856 = vadd.f32 %v8516, %v8769
        %v8857 = vadd.f32 %v8694, %v8770
        %v8858 = vadd.f32 %v8340, %v8768
        %v8859 = vadd.f32 %v8518, %v8769
        %v8860 = vadd.f32 %v8696, %v8770
        %v8861 = vadd.f32 %v8343, %v8768
        %v8862 = vadd.f32 %v8521, %v8769
        %v8863 = vadd.f32 %v8699, %v8770
        %v8864 = vadd.f32 %v8345, %v8768
        %v8865 = vadd.f32 %v8523, %v8769
        %v8866 = vadd.f32 %v8701, %v8770
        %vm8867 = vcmp.gt.f32.partialorder %v8736, 0.0
        %vm8868 = vcmp.gt.f32.partialorder %v8737, 0.0
        %vm8869 = vcmp.gt.f32.partialorder %v8738, 0.0
        %vm8870 = vcmp.gt.f32.partialorder %v8739, 0.0
        %vm8871 = vcmp.gt.f32.partialorder %v8740, 0.0
        %vm8872 = vcmp.gt.f32.partialorder %v8741, 0.0
        %vm8873 = vcmp.gt.f32.partialorder %v8742, 0.0
        %vm8874 = vcmp.gt.f32.partialorder %v8743, 0.0
        %vm8875 = vcmp.gt.f32.partialorder %v8744, 0.0
        %vm8876 = vcmp.gt.f32.partialorder %v8745, 0.0
        %vm8877 = vcmp.gt.f32.partialorder %v8746, 0.0
        %vm8878 = vcmp.gt.f32.partialorder %v8747, 0.0
        %vm8879 = vcmp.gt.f32.partialorder %v8748, 0.0
        %vm8880 = vcmp.gt.f32.partialorder %v8749, 0.0
        %vm8881 = vcmp.gt.f32.partialorder %v8750, 0.0
        %vm8882 = vcmp.gt.f32.partialorder %v8751, 0.0
        %vm8883 = vcmp.gt.f32.partialorder %v8752, 0.0
        %vm8884 = vcmp.gt.f32.partialorder %v8753, 0.0
        %vm8885 = vcmp.gt.f32.partialorder %v8754, 0.0
        %vm8886 = vcmp.gt.f32.partialorder %v8755, 0.0
        %vm8887 = vcmp.gt.f32.partialorder %v8756, 0.0
        %vm8888 = vcmp.gt.f32.partialorder %v8757, 0.0
        %vm8889 = vcmp.gt.f32.partialorder %v8758, 0.0
        %vm8890 = vcmp.gt.f32.partialorder %v8759, 0.0
        %vm8891 = vcmp.gt.f32.partialorder %v8760, 0.0
        %vm8892 = vcmp.gt.f32.partialorder %v8761, 0.0
        %vm8893 = vcmp.gt.f32.partialorder %v8762, 0.0
        %vm8894 = vcmp.gt.f32.partialorder %v8763, 0.0
        %vm8895 = vcmp.gt.f32.partialorder %v8764, 0.0
        %vm8896 = vcmp.gt.f32.partialorder %v8765, 0.0
        %vm8897 = vcmp.gt.f32.partialorder %v8766, 0.0
        %vm8898 = vcmp.gt.f32.partialorder %v8767, 0.0
        %v8899 = vmin.f32 %v8736, 0.0
        %v8900 = vmin.f32 %v8737, 0.0
        %v8901 = vmin.f32 %v8738, 0.0
        %v8902 = vmin.f32 %v8739, 0.0
        %v8903 = vmin.f32 %v8740, 0.0
        %v8904 = vmin.f32 %v8741, 0.0
        %v8905 = vmin.f32 %v8742, 0.0
        %v8906 = vmin.f32 %v8743, 0.0
        %v8907 = vmin.f32 %v8744, 0.0
        %v8908 = vmin.f32 %v8745, 0.0
        %v8909 = vmin.f32 %v8746, 0.0
        %v8910 = vmin.f32 %v8747, 0.0
        %v8911 = vmin.f32 %v8748, 0.0
        %v8912 = vmin.f32 %v8749, 0.0
        %v8913 = vmin.f32 %v8750, 0.0
        %v8914 = vmin.f32 %v8751, 0.0
        %v8915 = vmin.f32 %v8752, 0.0
        %v8916 = vmin.f32 %v8753, 0.0
        %v8917 = vmin.f32 %v8754, 0.0
        %v8918 = vmin.f32 %v8755, 0.0
        %v8919 = vmin.f32 %v8756, 0.0
        %v8920 = vmin.f32 %v8757, 0.0
        %v8921 = vmin.f32 %v8758, 0.0
        %v8922 = vmin.f32 %v8759, 0.0
        %v8923 = vmin.f32 %v8760, 0.0
        %v8924 = vmin.f32 %v8761, 0.0
        %v8925 = vmin.f32 %v8762, 0.0
        %v8926 = vmin.f32 %v8763, 0.0
        %v8927 = vmin.f32 %v8764, 0.0
        %v8928 = vmin.f32 %v8765, 0.0
        %v8929 = vmin.f32 %v8766, 0.0
        %v8930 = vmin.f32 %v8767, 0.0
        %v8931 = vmul.f32 %v8899, 1.442695
        %v8932 = vpow.pop %v8931
        %v8933 = vmul.f32 %v8900, 1.442695
        %v8934 = vpow.pop %v8933
        %v8935 = vmul.f32 %v8901, 1.442695
        %v8936 = vpow.pop %v8935
        %v8937 = vmul.f32 %v8902, 1.442695
        %v8938 = vpow.pop %v8937
        %v8939 = vmul.f32 %v8903, 1.442695
        %v8940 = vpow.pop %v8939
        %v8941 = vmul.f32 %v8904, 1.442695
        %v8942 = vpow.pop %v8941
        %v8943 = vmul.f32 %v8905, 1.442695
        %v8944 = vpow.pop %v8943
        %v8945 = vmul.f32 %v8906, 1.442695
        %v8946 = vpow.pop %v8945
        %v8947 = vmul.f32 %v8907, 1.442695
        %v8948 = vpow.pop %v8947
        %v8949 = vmul.f32 %v8908, 1.442695
        %v8950 = vpow.pop %v8949
        %v8951 = vmul.f32 %v8909, 1.442695
        %v8952 = vpow.pop %v8951
        %v8953 = vmul.f32 %v8910, 1.442695
        %v8954 = vpow.pop %v8953
        %v8955 = vmul.f32 %v8911, 1.442695
        %v8956 = vpow.pop %v8955
        %v8957 = vmul.f32 %v8912, 1.442695
        %v8958 = vpow.pop %v8957
        %v8959 = vmul.f32 %v8913, 1.442695
        %v8960 = vpow.pop %v8959
        %v8961 = vmul.f32 %v8914, 1.442695
        %v8962 = vpow.pop %v8961
        %v8963 = vmul.f32 %v8915, 1.442695
        %v8964 = vpow.pop %v8963
        %v8965 = vmul.f32 %v8916, 1.442695
        %v8966 = vpow.pop %v8965
        %v8967 = vmul.f32 %v8917, 1.442695
        %v8968 = vpow.pop %v8967
        %v8969 = vmul.f32 %v8918, 1.442695
        %v8970 = vpow.pop %v8969
        %v8971 = vmul.f32 %v8919, 1.442695
        %v8972 = vpow.pop %v8971
        %v8973 = vmul.f32 %v8920, 1.442695
        %v8974 = vpow.pop %v8973
        %v8975 = vmul.f32 %v8921, 1.442695
        %v8976 = vpow.pop %v8975
        %v8977 = vmul.f32 %v8922, 1.442695
        %v8978 = vpow.pop %v8977
        %v8979 = vmul.f32 %v8923, 1.442695
        %v8980 = vpow.pop %v8979
        %v8981 = vmul.f32 %v8924, 1.442695
        %v8982 = vpow.pop %v8981
        %v8983 = vmul.f32 %v8925, 1.442695
        %v8984 = vpow.pop %v8983
        %v8985 = vmul.f32 %v8926, 1.442695
        %v8986 = vpow.pop %v8985
        %v8987 = vmul.f32 %v8927, 1.442695
        %v8988 = vpow.pop %v8987
        %v8989 = vmul.f32 %v8928, 1.442695
        %v8990 = vpow.pop %v8989
        %v8991 = vmul.f32 %v8929, 1.442695
        %v8992 = vpow.pop %v8991
        %v8993 = vmul.f32 %v8930, 1.442695
        %v8994 = vpow.pop %v8993
        %v8995 = vsub.f32 %v8932, 1.0
        %v8996 = vsub.f32 %v8934, 1.0
        %v8997 = vsub.f32 %v8936, 1.0
        %v8998 = vsub.f32 %v8938, 1.0
        %v8999 = vsub.f32 %v8940, 1.0
        %v9000 = vsub.f32 %v8942, 1.0
        %v9001 = vsub.f32 %v8944, 1.0
        %v9002 = vsub.f32 %v8946, 1.0
        %v9003 = vsub.f32 %v8948, 1.0
        %v9004 = vsub.f32 %v8950, 1.0
        %v9005 = vsub.f32 %v8952, 1.0
        %v9006 = vsub.f32 %v8954, 1.0
        %v9007 = vsub.f32 %v8956, 1.0
        %v9008 = vsub.f32 %v8958, 1.0
        %v9009 = vsub.f32 %v8960, 1.0
        %v9010 = vsub.f32 %v8962, 1.0
        %v9011 = vsub.f32 %v8964, 1.0
        %v9012 = vsub.f32 %v8966, 1.0
        %v9013 = vsub.f32 %v8968, 1.0
        %v9014 = vsub.f32 %v8970, 1.0
        %v9015 = vsub.f32 %v8972, 1.0
        %v9016 = vsub.f32 %v8974, 1.0
        %v9017 = vsub.f32 %v8976, 1.0
        %v9018 = vsub.f32 %v8978, 1.0
        %v9019 = vsub.f32 %v8980, 1.0
        %v9020 = vsub.f32 %v8982, 1.0
        %v9021 = vsub.f32 %v8984, 1.0
        %v9022 = vsub.f32 %v8986, 1.0
        %v9023 = vsub.f32 %v8988, 1.0
        %v9024 = vsub.f32 %v8990, 1.0
        %v9025 = vsub.f32 %v8992, 1.0
        %v9026 = vsub.f32 %v8994, 1.0
        %v9027 = vsel %vm8867, %v8736, %v8995
        %v9028 = vsel %vm8868, %v8737, %v8996
        %v9029 = vsel %vm8869, %v8738, %v8997
        %v9030 = vsel %vm8870, %v8739, %v8998
        %v9031 = vsel %vm8871, %v8740, %v8999
        %v9032 = vsel %vm8872, %v8741, %v9000
        %v9033 = vsel %vm8873, %v8742, %v9001
        %v9034 = vsel %vm8874, %v8743, %v9002
        %v9035 = vsel %vm8875, %v8744, %v9003
        %v9036 = vsel %vm8876, %v8745, %v9004
        %v9037 = vsel %vm8877, %v8746, %v9005
        %v9038 = vsel %vm8878, %v8747, %v9006
        %v9039 = vsel %vm8879, %v8748, %v9007
        %v9040 = vsel %vm8880, %v8749, %v9008
        %v9041 = vsel %vm8881, %v8750, %v9009
        %v9042 = vsel %vm8882, %v8751, %v9010
        %v9043 = vsel %vm8883, %v8752, %v9011
        %v9044 = vsel %vm8884, %v8753, %v9012
        %v9045 = vsel %vm8885, %v8754, %v9013
        %v9046 = vsel %vm8886, %v8755, %v9014
        %v9047 = vsel %vm8887, %v8756, %v9015
        %v9048 = vsel %vm8888, %v8757, %v9016
        %v9049 = vsel %vm8889, %v8758, %v9017
        %v9050 = vsel %vm8890, %v8759, %v9018
        %v9051 = vsel %vm8891, %v8760, %v9019
        %v9052 = vsel %vm8892, %v8761, %v9020
        %v9053 = vsel %vm8893, %v8762, %v9021
        %v9054 = vsel %vm8894, %v8763, %v9022
        %v9055 = vsel %vm8895, %v8764, %v9023
        %v9056 = vsel %vm8896, %v8765, %v9024
        %v9057 = vsel %vm8897, %v8766, %v9025
        %v9058 = vsel %vm8898, %v8767, %v9026
        %v9059 = vpack.c.bf16 %v9028, %v9027
        %v9060 = vpack.c.bf16 %v9030, %v9029
        %v9061 = vpack.c.bf16 %v9032, %v9031
        %v9062 = vpack.c.bf16 %v9034, %v9033
        %v9063 = vpack.c.bf16 %v9036, %v9035
        %v9064 = vpack.c.bf16 %v9038, %v9037
        %v9065 = vpack.c.bf16 %v9040, %v9039
        %v9066 = vpack.c.bf16 %v9042, %v9041
        %v9067 = vpack.c.bf16 %v9044, %v9043
        %v9068 = vpack.c.bf16 %v9046, %v9045
        %v9069 = vpack.c.bf16 %v9048, %v9047
        %v9070 = vpack.c.bf16 %v9050, %v9049
        %v9071 = vpack.c.bf16 %v9052, %v9051
        %v9072 = vpack.c.bf16 %v9054, %v9053
        %v9073 = vpack.c.bf16 %v9056, %v9055
        %v9074 = vpack.c.bf16 %v9058, %v9057
        %v9075 = vld [vmem:[#allocation5 + $0x10] sm:$0xff]
        %v9076 = vld [vmem:[#allocation5 + $0x18] sm:$0xf]
        %v9077 = vld [vmem:[#allocation5 + $0x2c] sm:$0xff]
        %v9078 = vld [vmem:[#allocation5 + $0x34] sm:$0xf]
        %v9079 = vld [vmem:[#allocation5 + $0x48] sm:$0xff]
        %v9080 = vld [vmem:[#allocation5 + $0x50] sm:$0xf]
        %v9081 = vld [vmem:[#allocation5 + $0x64] sm:$0xff]
        %v9082 = vld [vmem:[#allocation5 + $0x6c] sm:$0xf]
        %v9083 = vld [vmem:[#allocation5 + $0x80] sm:$0xff]
        %v9084 = vld [vmem:[#allocation5 + $0x88] sm:$0xf]
        %v9085 = vld [vmem:[#allocation5 + $0x9c] sm:$0xff]
        %v9086 = vld [vmem:[#allocation5 + $0xa4] sm:$0xf]
        %v9087 = vld [vmem:[#allocation5 + $0xb8] sm:$0xff]
        %v9088 = vld [vmem:[#allocation5 + $0xc0] sm:$0xf]
        %v9089 = vld [vmem:[#allocation5 + $0xd4] sm:$0xff]
        %v9090 = vld [vmem:[#allocation5 + $0xdc] sm:$0xf]
        %v9091 = vld [vmem:[#allocation5 + $0xf0] sm:$0xff]
        %v9092 = vld [vmem:[#allocation5 + $0xf8] sm:$0xf]
        %v9093 = vld [vmem:[#allocation5 + $0x10c] sm:$0xff]
        %v9094 = vld [vmem:[#allocation5 + $0x114] sm:$0xf]
        %v9095 = vld [vmem:[#allocation5 + $0x128] sm:$0xff]
        %v9096 = vld [vmem:[#allocation5 + $0x130] sm:$0xf]
        %v9097 = vld [vmem:[#allocation5 + $0x144] sm:$0xff]
        %v9098 = vld [vmem:[#allocation5 + $0x14c] sm:$0xf]
        %v9099 = vld [vmem:[#allocation5 + $0x160] sm:$0xff]
        %v9100 = vld [vmem:[#allocation5 + $0x168] sm:$0xf]
        %v9101 = vld [vmem:[#allocation5 + $0x17c] sm:$0xff]
        %v9102 = vld [vmem:[#allocation5 + $0x184] sm:$0xf]
        %v9103 = vld [vmem:[#allocation5 + $0x198] sm:$0xff]
        %v9104 = vld [vmem:[#allocation5 + $0x1a0] sm:$0xf]
        %v9105 = vld [vmem:[#allocation5 + $0x1b4] sm:$0xff]
        %v9106 = vld [vmem:[#allocation5 + $0x1bc] sm:$0xf]
        %v9107 = vperm.slane %v899, 3
        %v9108 = vperm.slane %v900, 3
        %v9109 = vperm.slane %v901, 3
        %v9142 = vunpack.c.l.b16 %v9075
        %v9143 = vunpack.c.h.b16 %v9075
        %v9144 = vunpack.c.l.b16 %v9076
        %v9145 = vunpack.c.l.b16 %v9077
        %v9146 = vunpack.c.h.b16 %v9077
        %v9147 = vunpack.c.l.b16 %v9078
        %v9148 = vunpack.c.l.b16 %v9079
        %v9149 = vunpack.c.h.b16 %v9079
        %v9150 = vunpack.c.l.b16 %v9080
        %v9151 = vunpack.c.l.b16 %v9081
        %v9152 = vunpack.c.h.b16 %v9081
        %v9153 = vunpack.c.l.b16 %v9082
        %v9154 = vunpack.c.l.b16 %v9083
        %v9155 = vunpack.c.h.b16 %v9083
        %v9156 = vunpack.c.l.b16 %v9084
        %v9157 = vunpack.c.l.b16 %v9085
        %v9158 = vunpack.c.h.b16 %v9085
        %v9159 = vunpack.c.l.b16 %v9086
        %v9160 = vunpack.c.l.b16 %v9087
        %v9161 = vunpack.c.h.b16 %v9087
        %v9162 = vunpack.c.l.b16 %v9088
        %v9163 = vunpack.c.l.b16 %v9089
        %v9164 = vunpack.c.h.b16 %v9089
        %v9165 = vunpack.c.l.b16 %v9090
        %v9166 = vunpack.c.l.b16 %v9091
        %v9167 = vunpack.c.h.b16 %v9091
        %v9168 = vunpack.c.l.b16 %v9092
        %v9169 = vunpack.c.l.b16 %v9093
        %v9170 = vunpack.c.h.b16 %v9093
        %v9171 = vunpack.c.l.b16 %v9094
        %v9172 = vunpack.c.l.b16 %v9095
        %v9173 = vunpack.c.h.b16 %v9095
        %v9174 = vunpack.c.l.b16 %v9096
        %v9175 = vunpack.c.l.b16 %v9097
        %v9176 = vunpack.c.h.b16 %v9097
        %v9177 = vunpack.c.l.b16 %v9098
        %v9178 = vunpack.c.l.b16 %v9099
        %v9179 = vunpack.c.h.b16 %v9099
        %v9180 = vunpack.c.l.b16 %v9100
        %v9181 = vunpack.c.l.b16 %v9101
        %v9182 = vunpack.c.h.b16 %v9101
        %v9183 = vunpack.c.l.b16 %v9102
        %v9184 = vunpack.c.l.b16 %v9103
        %v9185 = vunpack.c.h.b16 %v9103
        %v9186 = vunpack.c.l.b16 %v9104
        %v9187 = vunpack.c.l.b16 %v9105
        %v9188 = vunpack.c.h.b16 %v9105
        %v9189 = vunpack.c.l.b16 %v9106
        %v9190 = vpack.c.b16 %v9145, %v9142
        %v9191 = vpack.c.b16 %v9146, %v9143
        %v9192 = vpack.c.b16 %v9147, %v9144
        %v9193 = vpack.c.b16 %v9151, %v9148
        %v9194 = vpack.c.b16 %v9152, %v9149
        %v9195 = vpack.c.b16 %v9153, %v9150
        %v9196 = vpack.c.b16 %v9157, %v9154
        %v9197 = vpack.c.b16 %v9158, %v9155
        %v9198 = vpack.c.b16 %v9159, %v9156
        %v9199 = vpack.c.b16 %v9163, %v9160
        %v9200 = vpack.c.b16 %v9164, %v9161
        %v9201 = vpack.c.b16 %v9165, %v9162
        %v9202 = vpack.c.b16 %v9169, %v9166
        %v9203 = vpack.c.b16 %v9170, %v9167
        %v9204 = vpack.c.b16 %v9171, %v9168
        %v9205 = vpack.c.b16 %v9175, %v9172
        %v9206 = vpack.c.b16 %v9176, %v9173
        %v9207 = vpack.c.b16 %v9177, %v9174
        %v9208 = vpack.c.b16 %v9181, %v9178
        %v9209 = vpack.c.b16 %v9182, %v9179
        %v9210 = vpack.c.b16 %v9183, %v9180
        %v9211 = vpack.c.b16 %v9187, %v9184
        %v9212 = vpack.c.b16 %v9188, %v9185
        %v9213 = vpack.c.b16 %v9189, %v9186
        %9238 = vmatpush.bf16.msra.mxu0 %v9211
        %9239 = vmatpush.bf16.msra.mxu0 %v9208
        %9240 = vmatpush.bf16.msra.mxu0 %v9205
        %9241 = vmatpush.bf16.msra.mxu0 %v9202
        %9242 = vmatpush.bf16.msra.mxu0 %v9199
        %9243 = vmatpush.bf16.msra.mxu0 %v9196
        %9244 = vmatpush.bf16.msra.mxu0 %v9193
        %9245 = vmatpush.bf16.msra.mxu0 %v9190
        %9246 = vmatmul.bf16.gmra.mxu0 %v9059
        %v9247 = vpop.f32.mrf.mxu0
        %v9248 = vadd.f32 %v9107, %v9247
        %v9249 = vpop.f32.mrf.mxu0
        %v9250 = vadd.f32 %v9107, %v9249
        %9251 = vmatmul.bf16.gmra.mxu0 %v9060
        %v9252 = vpop.f32.mrf.mxu0
        %v9253 = vadd.f32 %v9107, %v9252
        %v9254 = vpop.f32.mrf.mxu0
        %v9255 = vadd.f32 %v9107, %v9254
        %9256 = vmatmul.bf16.gmra.mxu0 %v9061
        %v9257 = vpop.f32.mrf.mxu0
        %v9258 = vadd.f32 %v9107, %v9257
        %v9259 = vpop.f32.mrf.mxu0
        %v9260 = vadd.f32 %v9107, %v9259
        %9261 = vmatmul.bf16.gmra.mxu0 %v9062
        %v9262 = vpop.f32.mrf.mxu0
        %v9263 = vadd.f32 %v9107, %v9262
        %v9264 = vpop.f32.mrf.mxu0
        %v9265 = vadd.f32 %v9107, %v9264
        %9266 = vmatmul.bf16.gmra.mxu0 %v9063
        %v9267 = vpop.f32.mrf.mxu0
        %v9268 = vadd.f32 %v9107, %v9267
        %v9269 = vpop.f32.mrf.mxu0
        %v9270 = vadd.f32 %v9107, %v9269
        %9271 = vmatmul.bf16.gmra.mxu0 %v9064
        %v9272 = vpop.f32.mrf.mxu0
        %v9273 = vadd.f32 %v9107, %v9272
        %v9274 = vpop.f32.mrf.mxu0
        %v9275 = vadd.f32 %v9107, %v9274
        %9276 = vmatmul.bf16.gmra.mxu0 %v9065
        %v9277 = vpop.f32.mrf.mxu0
        %v9278 = vadd.f32 %v9107, %v9277
        %v9279 = vpop.f32.mrf.mxu0
        %v9280 = vadd.f32 %v9107, %v9279
        %9281 = vmatmul.bf16.gmra.mxu0 %v9066
        %v9282 = vpop.f32.mrf.mxu0
        %v9283 = vadd.f32 %v9107, %v9282
        %v9284 = vpop.f32.mrf.mxu0
        %v9285 = vadd.f32 %v9107, %v9284
        %9286 = vmatmul.bf16.gmra.mxu0 %v9067
        %v9287 = vpop.f32.mrf.mxu0
        %v9288 = vadd.f32 %v9107, %v9287
        %v9289 = vpop.f32.mrf.mxu0
        %v9290 = vadd.f32 %v9107, %v9289
        %9291 = vmatmul.bf16.gmra.mxu0 %v9068
        %v9292 = vpop.f32.mrf.mxu0
        %v9293 = vadd.f32 %v9107, %v9292
        %v9294 = vpop.f32.mrf.mxu0
        %v9295 = vadd.f32 %v9107, %v9294
        %9296 = vmatmul.bf16.gmra.mxu0 %v9069
        %v9297 = vpop.f32.mrf.mxu0
        %v9298 = vadd.f32 %v9107, %v9297
        %v9299 = vpop.f32.mrf.mxu0
        %v9300 = vadd.f32 %v9107, %v9299
        %9301 = vmatmul.bf16.gmra.mxu0 %v9070
        %v9302 = vpop.f32.mrf.mxu0
        %v9303 = vadd.f32 %v9107, %v9302
        %v9304 = vpop.f32.mrf.mxu0
        %v9305 = vadd.f32 %v9107, %v9304
        %9306 = vmatmul.bf16.gmra.mxu0 %v9071
        %v9307 = vpop.f32.mrf.mxu0
        %v9308 = vadd.f32 %v9107, %v9307
        %v9309 = vpop.f32.mrf.mxu0
        %v9310 = vadd.f32 %v9107, %v9309
        %9311 = vmatmul.bf16.gmra.mxu0 %v9072
        %v9312 = vpop.f32.mrf.mxu0
        %v9313 = vadd.f32 %v9107, %v9312
        %v9314 = vpop.f32.mrf.mxu0
        %v9315 = vadd.f32 %v9107, %v9314
        %9316 = vmatmul.bf16.gmra.mxu0 %v9073
        %v9317 = vpop.f32.mrf.mxu0
        %v9318 = vadd.f32 %v9107, %v9317
        %v9319 = vpop.f32.mrf.mxu0
        %v9320 = vadd.f32 %v9107, %v9319
        %9321 = vmatmul.bf16.gmra.mxu0 %v9074
        %v9322 = vpop.f32.mrf.mxu0
        %v9323 = vadd.f32 %v9107, %v9322
        %v9324 = vpop.f32.mrf.mxu0
        %v9325 = vadd.f32 %v9107, %v9324
        %9326 = vdwg.mxu0
        %9327 = vmatpush.bf16.msra.mxu0 %v9212
        %9328 = vmatpush.bf16.msra.mxu0 %v9209
        %9329 = vmatpush.bf16.msra.mxu0 %v9206
        %9330 = vmatpush.bf16.msra.mxu0 %v9203
        %9331 = vmatpush.bf16.msra.mxu0 %v9200
        %9332 = vmatpush.bf16.msra.mxu0 %v9197
        %9333 = vmatpush.bf16.msra.mxu0 %v9194
        %9334 = vmatpush.bf16.msra.mxu0 %v9191
        %9335 = vmatmul.bf16.gmra.mxu0 %v9059
        %v9336 = vpop.f32.mrf.mxu0
        %v9337 = vadd.f32 %v9108, %v9336
        %v9338 = vpop.f32.mrf.mxu0
        %v9339 = vadd.f32 %v9108, %v9338
        %9340 = vmatmul.bf16.gmra.mxu0 %v9060
        %v9341 = vpop.f32.mrf.mxu0
        %v9342 = vadd.f32 %v9108, %v9341
        %v9343 = vpop.f32.mrf.mxu0
        %v9344 = vadd.f32 %v9108, %v9343
        %9345 = vmatmul.bf16.gmra.mxu0 %v9061
        %v9346 = vpop.f32.mrf.mxu0
        %v9347 = vadd.f32 %v9108, %v9346
        %v9348 = vpop.f32.mrf.mxu0
        %v9349 = vadd.f32 %v9108, %v9348
        %9350 = vmatmul.bf16.gmra.mxu0 %v9062
        %v9351 = vpop.f32.mrf.mxu0
        %v9352 = vadd.f32 %v9108, %v9351
        %v9353 = vpop.f32.mrf.mxu0
        %v9354 = vadd.f32 %v9108, %v9353
        %9355 = vmatmul.bf16.gmra.mxu0 %v9063
        %v9356 = vpop.f32.mrf.mxu0
        %v9357 = vadd.f32 %v9108, %v9356
        %v9358 = vpop.f32.mrf.mxu0
        %v9359 = vadd.f32 %v9108, %v9358
        %9360 = vmatmul.bf16.gmra.mxu0 %v9064
        %v9361 = vpop.f32.mrf.mxu0
        %v9362 = vadd.f32 %v9108, %v9361
        %v9363 = vpop.f32.mrf.mxu0
        %v9364 = vadd.f32 %v9108, %v9363
        %9365 = vmatmul.bf16.gmra.mxu0 %v9065
        %v9366 = vpop.f32.mrf.mxu0
        %v9367 = vadd.f32 %v9108, %v9366
        %v9368 = vpop.f32.mrf.mxu0
        %v9369 = vadd.f32 %v9108, %v9368
        %9370 = vmatmul.bf16.gmra.mxu0 %v9066
        %v9371 = vpop.f32.mrf.mxu0
        %v9372 = vadd.f32 %v9108, %v9371
        %v9373 = vpop.f32.mrf.mxu0
        %v9374 = vadd.f32 %v9108, %v9373
        %9375 = vmatmul.bf16.gmra.mxu0 %v9067
        %v9376 = vpop.f32.mrf.mxu0
        %v9377 = vadd.f32 %v9108, %v9376
        %v9378 = vpop.f32.mrf.mxu0
        %v9379 = vadd.f32 %v9108, %v9378
        %9380 = vmatmul.bf16.gmra.mxu0 %v9068
        %v9381 = vpop.f32.mrf.mxu0
        %v9382 = vadd.f32 %v9108, %v9381
        %v9383 = vpop.f32.mrf.mxu0
        %v9384 = vadd.f32 %v9108, %v9383
        %9385 = vmatmul.bf16.gmra.mxu0 %v9069
        %v9386 = vpop.f32.mrf.mxu0
        %v9387 = vadd.f32 %v9108, %v9386
        %v9388 = vpop.f32.mrf.mxu0
        %v9389 = vadd.f32 %v9108, %v9388
        %9390 = vmatmul.bf16.gmra.mxu0 %v9070
        %v9391 = vpop.f32.mrf.mxu0
        %v9392 = vadd.f32 %v9108, %v9391
        %v9393 = vpop.f32.mrf.mxu0
        %v9394 = vadd.f32 %v9108, %v9393
        %9395 = vmatmul.bf16.gmra.mxu0 %v9071
        %v9396 = vpop.f32.mrf.mxu0
        %v9397 = vadd.f32 %v9108, %v9396
        %v9398 = vpop.f32.mrf.mxu0
        %v9399 = vadd.f32 %v9108, %v9398
        %9400 = vmatmul.bf16.gmra.mxu0 %v9072
        %v9401 = vpop.f32.mrf.mxu0
        %v9402 = vadd.f32 %v9108, %v9401
        %v9403 = vpop.f32.mrf.mxu0
        %v9404 = vadd.f32 %v9108, %v9403
        %9405 = vmatmul.bf16.gmra.mxu0 %v9073
        %v9406 = vpop.f32.mrf.mxu0
        %v9407 = vadd.f32 %v9108, %v9406
        %v9408 = vpop.f32.mrf.mxu0
        %v9409 = vadd.f32 %v9108, %v9408
        %9410 = vmatmul.bf16.gmra.mxu0 %v9074
        %v9411 = vpop.f32.mrf.mxu0
        %v9412 = vadd.f32 %v9108, %v9411
        %v9413 = vpop.f32.mrf.mxu0
        %v9414 = vadd.f32 %v9108, %v9413
        %9415 = vdwg.mxu0
        %9416 = vmatpush.bf16.msra.mxu0 %v9213
        %9417 = vmatpush.bf16.msra.mxu0 %v9210
        %9418 = vmatpush.bf16.msra.mxu0 %v9207
        %9419 = vmatpush.bf16.msra.mxu0 %v9204
        %9420 = vmatpush.bf16.msra.mxu0 %v9201
        %9421 = vmatpush.bf16.msra.mxu0 %v9198
        %9422 = vmatpush.bf16.msra.mxu0 %v9195
        %9423 = vmatpush.bf16.msra.mxu0 %v9192
        %9424 = vmatmul.bf16.gmra.mxu0 %v9059
        %v9425 = vpop.f32.mrf.mxu0
        %v9426 = vadd.f32 %v9109, %v9425
        %v9427 = vpop.f32.mrf.mxu0
        %v9428 = vadd.f32 %v9109, %v9427
        %9429 = vmatmul.bf16.gmra.mxu0 %v9060
        %v9430 = vpop.f32.mrf.mxu0
        %v9431 = vadd.f32 %v9109, %v9430
        %v9432 = vpop.f32.mrf.mxu0
        %v9433 = vadd.f32 %v9109, %v9432
        %9434 = vmatmul.bf16.gmra.mxu0 %v9061
        %v9435 = vpop.f32.mrf.mxu0
        %v9436 = vadd.f32 %v9109, %v9435
        %v9437 = vpop.f32.mrf.mxu0
        %v9438 = vadd.f32 %v9109, %v9437
        %9439 = vmatmul.bf16.gmra.mxu0 %v9062
        %v9440 = vpop.f32.mrf.mxu0
        %v9441 = vadd.f32 %v9109, %v9440
        %v9442 = vpop.f32.mrf.mxu0
        %v9443 = vadd.f32 %v9109, %v9442
        %9444 = vmatmul.bf16.gmra.mxu0 %v9063
        %v9445 = vpop.f32.mrf.mxu0
        %v9446 = vadd.f32 %v9109, %v9445
        %v9447 = vpop.f32.mrf.mxu0
        %v9448 = vadd.f32 %v9109, %v9447
        %9449 = vmatmul.bf16.gmra.mxu0 %v9064
        %v9450 = vpop.f32.mrf.mxu0
        %v9451 = vadd.f32 %v9109, %v9450
        %v9452 = vpop.f32.mrf.mxu0
        %v9453 = vadd.f32 %v9109, %v9452
        %9454 = vmatmul.bf16.gmra.mxu0 %v9065
        %v9455 = vpop.f32.mrf.mxu0
        %v9456 = vadd.f32 %v9109, %v9455
        %v9457 = vpop.f32.mrf.mxu0
        %v9458 = vadd.f32 %v9109, %v9457
        %9459 = vmatmul.bf16.gmra.mxu0 %v9066
        %v9460 = vpop.f32.mrf.mxu0
        %v9461 = vadd.f32 %v9109, %v9460
        %v9462 = vpop.f32.mrf.mxu0
        %v9463 = vadd.f32 %v9109, %v9462
        %9464 = vmatmul.bf16.gmra.mxu0 %v9067
        %v9465 = vpop.f32.mrf.mxu0
        %v9466 = vadd.f32 %v9109, %v9465
        %v9467 = vpop.f32.mrf.mxu0
        %v9468 = vadd.f32 %v9109, %v9467
        %9469 = vmatmul.bf16.gmra.mxu0 %v9068
        %v9470 = vpop.f32.mrf.mxu0
        %v9471 = vadd.f32 %v9109, %v9470
        %v9472 = vpop.f32.mrf.mxu0
        %v9473 = vadd.f32 %v9109, %v9472
        %9474 = vmatmul.bf16.gmra.mxu0 %v9069
        %v9475 = vpop.f32.mrf.mxu0
        %v9476 = vadd.f32 %v9109, %v9475
        %v9477 = vpop.f32.mrf.mxu0
        %v9478 = vadd.f32 %v9109, %v9477
        %9479 = vmatmul.bf16.gmra.mxu0 %v9070
        %v9480 = vpop.f32.mrf.mxu0
        %v9481 = vadd.f32 %v9109, %v9480
        %v9482 = vpop.f32.mrf.mxu0
        %v9483 = vadd.f32 %v9109, %v9482
        %9484 = vmatmul.bf16.gmra.mxu0 %v9071
        %v9485 = vpop.f32.mrf.mxu0
        %v9486 = vadd.f32 %v9109, %v9485
        %v9487 = vpop.f32.mrf.mxu0
        %v9488 = vadd.f32 %v9109, %v9487
        %9489 = vmatmul.bf16.gmra.mxu0 %v9072
        %v9490 = vpop.f32.mrf.mxu0
        %v9491 = vadd.f32 %v9109, %v9490
        %v9492 = vpop.f32.mrf.mxu0
        %v9493 = vadd.f32 %v9109, %v9492
        %9494 = vmatmul.bf16.gmra.mxu0 %v9073
        %v9495 = vpop.f32.mrf.mxu0
        %v9496 = vadd.f32 %v9109, %v9495
        %v9497 = vpop.f32.mrf.mxu0
        %v9498 = vadd.f32 %v9109, %v9497
        %9499 = vmatmul.bf16.gmra.mxu0 %v9074
        %v9500 = vpop.f32.mrf.mxu0
        %v9501 = vadd.f32 %v9109, %v9500
        %v9502 = vpop.f32.mrf.mxu0
        %v9503 = vadd.f32 %v9109, %v9502
        %9504 = vdwg.mxu0
        %v9505 = vadd.f32 %v9248, %v8771
        %v9506 = vadd.f32 %v9250, %v8774
        %v9507 = vadd.f32 %v9253, %v8777
        %v9508 = vadd.f32 %v9255, %v8780
        %v9509 = vadd.f32 %v9258, %v8783
        %v9510 = vadd.f32 %v9260, %v8786
        %v9511 = vadd.f32 %v9263, %v8789
        %v9512 = vadd.f32 %v9265, %v8792
        %v9513 = vadd.f32 %v9268, %v8795
        %v9514 = vadd.f32 %v9270, %v8798
        %v9515 = vadd.f32 %v9273, %v8801
        %v9516 = vadd.f32 %v9275, %v8804
        %v9517 = vadd.f32 %v9278, %v8807
        %v9518 = vadd.f32 %v9280, %v8810
        %v9519 = vadd.f32 %v9283, %v8813
        %v9520 = vadd.f32 %v9285, %v8816
        %v9521 = vadd.f32 %v9288, %v8819
        %v9522 = vadd.f32 %v9290, %v8822
        %v9523 = vadd.f32 %v9293, %v8825
        %v9524 = vadd.f32 %v9295, %v8828
        %v9525 = vadd.f32 %v9298, %v8831
        %v9526 = vadd.f32 %v9300, %v8834
        %v9527 = vadd.f32 %v9303, %v8837
        %v9528 = vadd.f32 %v9305, %v8840
        %v9529 = vadd.f32 %v9308, %v8843
        %v9530 = vadd.f32 %v9310, %v8846
        %v9531 = vadd.f32 %v9313, %v8849
        %v9532 = vadd.f32 %v9315, %v8852
        %v9533 = vadd.f32 %v9318, %v8855
        %v9534 = vadd.f32 %v9320, %v8858
        %v9535 = vadd.f32 %v9323, %v8861
        %v9536 = vadd.f32 %v9325, %v8864
        %v9537 = vxor.u32 %v9505, 2147483648
        %v9538 = vxor.u32 %v9506, 2147483648
        %v9539 = vxor.u32 %v9507, 2147483648
        %v9540 = vxor.u32 %v9508, 2147483648
        %v9541 = vxor.u32 %v9509, 2147483648
        %v9542 = vxor.u32 %v9510, 2147483648
        %v9543 = vxor.u32 %v9511, 2147483648
        %v9544 = vxor.u32 %v9512, 2147483648
        %v9545 = vxor.u32 %v9513, 2147483648
        %v9546 = vxor.u32 %v9514, 2147483648
        %v9547 = vxor.u32 %v9515, 2147483648
        %v9548 = vxor.u32 %v9516, 2147483648
        %v9549 = vxor.u32 %v9517, 2147483648
        %v9550 = vxor.u32 %v9518, 2147483648
        %v9551 = vxor.u32 %v9519, 2147483648
        %v9552 = vxor.u32 %v9520, 2147483648
        %v9553 = vxor.u32 %v9521, 2147483648
        %v9554 = vxor.u32 %v9522, 2147483648
        %v9555 = vxor.u32 %v9523, 2147483648
        %v9556 = vxor.u32 %v9524, 2147483648
        %v9557 = vxor.u32 %v9525, 2147483648
        %v9558 = vxor.u32 %v9526, 2147483648
        %v9559 = vxor.u32 %v9527, 2147483648
        %v9560 = vxor.u32 %v9528, 2147483648
        %v9561 = vxor.u32 %v9529, 2147483648
        %v9562 = vxor.u32 %v9530, 2147483648
        %v9563 = vxor.u32 %v9531, 2147483648
        %v9564 = vxor.u32 %v9532, 2147483648
        %v9565 = vxor.u32 %v9533, 2147483648
        %v9566 = vxor.u32 %v9534, 2147483648
        %v9567 = vxor.u32 %v9535, 2147483648
        %v9568 = vxor.u32 %v9536, 2147483648
        %v9569 = vmul.f32 %v9537, 1.442695
        %v9570 = vpow.pop %v9569
        %v9571 = vmul.f32 %v9538, 1.442695
        %v9572 = vpow.pop %v9571
        %v9573 = vmul.f32 %v9539, 1.442695
        %v9574 = vpow.pop %v9573
        %v9575 = vmul.f32 %v9540, 1.442695
        %v9576 = vpow.pop %v9575
        %v9577 = vmul.f32 %v9541, 1.442695
        %v9578 = vpow.pop %v9577
        %v9579 = vmul.f32 %v9542, 1.442695
        %v9580 = vpow.pop %v9579
        %v9581 = vmul.f32 %v9543, 1.442695
        %v9582 = vpow.pop %v9581
        %v9583 = vmul.f32 %v9544, 1.442695
        %v9584 = vpow.pop %v9583
        %v9585 = vmul.f32 %v9545, 1.442695
        %v9586 = vpow.pop %v9585
        %v9587 = vmul.f32 %v9546, 1.442695
        %v9588 = vpow.pop %v9587
        %v9589 = vmul.f32 %v9547, 1.442695
        %v9590 = vpow.pop %v9589
        %v9591 = vmul.f32 %v9548, 1.442695
        %v9592 = vpow.pop %v9591
        %v9593 = vmul.f32 %v9549, 1.442695
        %v9594 = vpow.pop %v9593
        %v9595 = vmul.f32 %v9550, 1.442695
        %v9596 = vpow.pop %v9595
        %v9597 = vmul.f32 %v9551, 1.442695
        %v9598 = vpow.pop %v9597
        %v9599 = vmul.f32 %v9552, 1.442695
        %v9600 = vpow.pop %v9599
        %v9601 = vmul.f32 %v9553, 1.442695
        %v9602 = vpow.pop %v9601
        %v9603 = vmul.f32 %v9554, 1.442695
        %v9604 = vpow.pop %v9603
        %v9605 = vmul.f32 %v9555, 1.442695
        %v9606 = vpow.pop %v9605
        %v9607 = vmul.f32 %v9556, 1.442695
        %v9608 = vpow.pop %v9607
        %v9609 = vmul.f32 %v9557, 1.442695
        %v9610 = vpow.pop %v9609
        %v9611 = vmul.f32 %v9558, 1.442695
        %v9612 = vpow.pop %v9611
        %v9613 = vmul.f32 %v9559, 1.442695
        %v9614 = vpow.pop %v9613
        %v9615 = vmul.f32 %v9560, 1.442695
        %v9616 = vpow.pop %v9615
        %v9617 = vmul.f32 %v9561, 1.442695
        %v9618 = vpow.pop %v9617
        %v9619 = vmul.f32 %v9562, 1.442695
        %v9620 = vpow.pop %v9619
        %v9621 = vmul.f32 %v9563, 1.442695
        %v9622 = vpow.pop %v9621
        %v9623 = vmul.f32 %v9564, 1.442695
        %v9624 = vpow.pop %v9623
        %v9625 = vmul.f32 %v9565, 1.442695
        %v9626 = vpow.pop %v9625
        %v9627 = vmul.f32 %v9566, 1.442695
        %v9628 = vpow.pop %v9627
        %v9629 = vmul.f32 %v9567, 1.442695
        %v9630 = vpow.pop %v9629
        %v9631 = vmul.f32 %v9568, 1.442695
        %v9632 = vpow.pop %v9631
        %v9633 = vadd.f32 %v9570, 1.0
        %v9634 = vadd.f32 %v9572, 1.0
        %v9635 = vadd.f32 %v9574, 1.0
        %v9636 = vadd.f32 %v9576, 1.0
        %v9637 = vadd.f32 %v9578, 1.0
        %v9638 = vadd.f32 %v9580, 1.0
        %v9639 = vadd.f32 %v9582, 1.0
        %v9640 = vadd.f32 %v9584, 1.0
        %v9641 = vadd.f32 %v9586, 1.0
        %v9642 = vadd.f32 %v9588, 1.0
        %v9643 = vadd.f32 %v9590, 1.0
        %v9644 = vadd.f32 %v9592, 1.0
        %v9645 = vadd.f32 %v9594, 1.0
        %v9646 = vadd.f32 %v9596, 1.0
        %v9647 = vadd.f32 %v9598, 1.0
        %v9648 = vadd.f32 %v9600, 1.0
        %v9649 = vadd.f32 %v9602, 1.0
        %v9650 = vadd.f32 %v9604, 1.0
        %v9651 = vadd.f32 %v9606, 1.0
        %v9652 = vadd.f32 %v9608, 1.0
        %v9653 = vadd.f32 %v9610, 1.0
        %v9654 = vadd.f32 %v9612, 1.0
        %v9655 = vadd.f32 %v9614, 1.0
        %v9656 = vadd.f32 %v9616, 1.0
        %v9657 = vadd.f32 %v9618, 1.0
        %v9658 = vadd.f32 %v9620, 1.0
        %v9659 = vadd.f32 %v9622, 1.0
        %v9660 = vadd.f32 %v9624, 1.0
        %v9661 = vadd.f32 %v9626, 1.0
        %v9662 = vadd.f32 %v9628, 1.0
        %v9663 = vadd.f32 %v9630, 1.0
        %v9664 = vadd.f32 %v9632, 1.0
        %v9665 = vrcp.pop %v9633
        %v9666 = vmul.f32 %v9633, %v9665
        %v9667 = vsub.f32 1.0, %v9666
        %v9668 = vmul.f32 %v9665, %v9667
        %v9669 = vadd.f32 %v9665, %v9668
        %vm9670 = vweird.f32 %v9633
        %vm9671 = vweird.f32 %v9665
        %vm9672 = vmor %vm9670, %vm9671
        %v9673 = vsel %vm9672, %v9665, %v9669
        %v9674 = vand.u32 2147483647, %v9633
        %vm9675 = vcmp.eq.f32.partialorder %v9674, 8.507059e+37
        %v9676 = vand.u32 %v9633, 2147483648
        %v9677 = vor.u32 1.1754944e-38, %v9676
        %v9678 = vsel %vm9675, %v9677, %v9673
        %v9679 = vmul.f32 1.0, %v9678
        %v9680 = vrcp.pop %v9634
        %v9681 = vmul.f32 %v9634, %v9680
        %v9682 = vsub.f32 1.0, %v9681
        %v9683 = vmul.f32 %v9680, %v9682
        %v9684 = vadd.f32 %v9680, %v9683
        %vm9685 = vweird.f32 %v9634
        %vm9686 = vweird.f32 %v9680
        %vm9687 = vmor %vm9685, %vm9686
        %v9688 = vsel %vm9687, %v9680, %v9684
        %v9689 = vand.u32 2147483647, %v9634
        %vm9690 = vcmp.eq.f32.partialorder %v9689, 8.507059e+37
        %v9691 = vand.u32 %v9634, 2147483648
        %v9692 = vor.u32 1.1754944e-38, %v9691
        %v9693 = vsel %vm9690, %v9692, %v9688
        %v9694 = vmul.f32 1.0, %v9693
        %v9695 = vrcp.pop %v9635
        %v9696 = vmul.f32 %v9635, %v9695
        %v9697 = vsub.f32 1.0, %v9696
        %v9698 = vmul.f32 %v9695, %v9697
        %v9699 = vadd.f32 %v9695, %v9698
        %vm9700 = vweird.f32 %v9635
        %vm9701 = vweird.f32 %v9695
        %vm9702 = vmor %vm9700, %vm9701
        %v9703 = vsel %vm9702, %v9695, %v9699
        %v9704 = vand.u32 2147483647, %v9635
        %vm9705 = vcmp.eq.f32.partialorder %v9704, 8.507059e+37
        %v9706 = vand.u32 %v9635, 2147483648
        %v9707 = vor.u32 1.1754944e-38, %v9706
        %v9708 = vsel %vm9705, %v9707, %v9703
        %v9709 = vmul.f32 1.0, %v9708
        %v9710 = vrcp.pop %v9636
        %v9711 = vmul.f32 %v9636, %v9710
        %v9712 = vsub.f32 1.0, %v9711
        %v9713 = vmul.f32 %v9710, %v9712
        %v9714 = vadd.f32 %v9710, %v9713
        %vm9715 = vweird.f32 %v9636
        %vm9716 = vweird.f32 %v9710
        %vm9717 = vmor %vm9715, %vm9716
        %v9718 = vsel %vm9717, %v9710, %v9714
        %v9719 = vand.u32 2147483647, %v9636
        %vm9720 = vcmp.eq.f32.partialorder %v9719, 8.507059e+37
        %v9721 = vand.u32 %v9636, 2147483648
        %v9722 = vor.u32 1.1754944e-38, %v9721
        %v9723 = vsel %vm9720, %v9722, %v9718
        %v9724 = vmul.f32 1.0, %v9723
        %v9725 = vrcp.pop %v9637
        %v9726 = vmul.f32 %v9637, %v9725
        %v9727 = vsub.f32 1.0, %v9726
        %v9728 = vmul.f32 %v9725, %v9727
        %v9729 = vadd.f32 %v9725, %v9728
        %vm9730 = vweird.f32 %v9637
        %vm9731 = vweird.f32 %v9725
        %vm9732 = vmor %vm9730, %vm9731
        %v9733 = vsel %vm9732, %v9725, %v9729
        %v9734 = vand.u32 2147483647, %v9637
        %vm9735 = vcmp.eq.f32.partialorder %v9734, 8.507059e+37
        %v9736 = vand.u32 %v9637, 2147483648
        %v9737 = vor.u32 1.1754944e-38, %v9736
        %v9738 = vsel %vm9735, %v9737, %v9733
        %v9739 = vmul.f32 1.0, %v9738
        %v9740 = vrcp.pop %v9638
        %v9741 = vmul.f32 %v9638, %v9740
        %v9742 = vsub.f32 1.0, %v9741
        %v9743 = vmul.f32 %v9740, %v9742
        %v9744 = vadd.f32 %v9740, %v9743
        %vm9745 = vweird.f32 %v9638
        %vm9746 = vweird.f32 %v9740
        %vm9747 = vmor %vm9745, %vm9746
        %v9748 = vsel %vm9747, %v9740, %v9744
        %v9749 = vand.u32 2147483647, %v9638
        %vm9750 = vcmp.eq.f32.partialorder %v9749, 8.507059e+37
        %v9751 = vand.u32 %v9638, 2147483648
        %v9752 = vor.u32 1.1754944e-38, %v9751
        %v9753 = vsel %vm9750, %v9752, %v9748
        %v9754 = vmul.f32 1.0, %v9753
        %v9755 = vrcp.pop %v9639
        %v9756 = vmul.f32 %v9639, %v9755
        %v9757 = vsub.f32 1.0, %v9756
        %v9758 = vmul.f32 %v9755, %v9757
        %v9759 = vadd.f32 %v9755, %v9758
        %vm9760 = vweird.f32 %v9639
        %vm9761 = vweird.f32 %v9755
        %vm9762 = vmor %vm9760, %vm9761
        %v9763 = vsel %vm9762, %v9755, %v9759
        %v9764 = vand.u32 2147483647, %v9639
        %vm9765 = vcmp.eq.f32.partialorder %v9764, 8.507059e+37
        %v9766 = vand.u32 %v9639, 2147483648
        %v9767 = vor.u32 1.1754944e-38, %v9766
        %v9768 = vsel %vm9765, %v9767, %v9763
        %v9769 = vmul.f32 1.0, %v9768
        %v9770 = vrcp.pop %v9640
        %v9771 = vmul.f32 %v9640, %v9770
        %v9772 = vsub.f32 1.0, %v9771
        %v9773 = vmul.f32 %v9770, %v9772
        %v9774 = vadd.f32 %v9770, %v9773
        %vm9775 = vweird.f32 %v9640
        %vm9776 = vweird.f32 %v9770
        %vm9777 = vmor %vm9775, %vm9776
        %v9778 = vsel %vm9777, %v9770, %v9774
        %v9779 = vand.u32 2147483647, %v9640
        %vm9780 = vcmp.eq.f32.partialorder %v9779, 8.507059e+37
        %v9781 = vand.u32 %v9640, 2147483648
        %v9782 = vor.u32 1.1754944e-38, %v9781
        %v9783 = vsel %vm9780, %v9782, %v9778
        %v9784 = vmul.f32 1.0, %v9783
        %v9785 = vrcp.pop %v9641
        %v9786 = vmul.f32 %v9641, %v9785
        %v9787 = vsub.f32 1.0, %v9786
        %v9788 = vmul.f32 %v9785, %v9787
        %v9789 = vadd.f32 %v9785, %v9788
        %vm9790 = vweird.f32 %v9641
        %vm9791 = vweird.f32 %v9785
        %vm9792 = vmor %vm9790, %vm9791
        %v9793 = vsel %vm9792, %v9785, %v9789
        %v9794 = vand.u32 2147483647, %v9641
        %vm9795 = vcmp.eq.f32.partialorder %v9794, 8.507059e+37
        %v9796 = vand.u32 %v9641, 2147483648
        %v9797 = vor.u32 1.1754944e-38, %v9796
        %v9798 = vsel %vm9795, %v9797, %v9793
        %v9799 = vmul.f32 1.0, %v9798
        %v9800 = vrcp.pop %v9642
        %v9801 = vmul.f32 %v9642, %v9800
        %v9802 = vsub.f32 1.0, %v9801
        %v9803 = vmul.f32 %v9800, %v9802
        %v9804 = vadd.f32 %v9800, %v9803
        %vm9805 = vweird.f32 %v9642
        %vm9806 = vweird.f32 %v9800
        %vm9807 = vmor %vm9805, %vm9806
        %v9808 = vsel %vm9807, %v9800, %v9804
        %v9809 = vand.u32 2147483647, %v9642
        %vm9810 = vcmp.eq.f32.partialorder %v9809, 8.507059e+37
        %v9811 = vand.u32 %v9642, 2147483648
        %v9812 = vor.u32 1.1754944e-38, %v9811
        %v9813 = vsel %vm9810, %v9812, %v9808
        %v9814 = vmul.f32 1.0, %v9813
        %v9815 = vrcp.pop %v9643
        %v9816 = vmul.f32 %v9643, %v9815
        %v9817 = vsub.f32 1.0, %v9816
        %v9818 = vmul.f32 %v9815, %v9817
        %v9819 = vadd.f32 %v9815, %v9818
        %vm9820 = vweird.f32 %v9643
        %vm9821 = vweird.f32 %v9815
        %vm9822 = vmor %vm9820, %vm9821
        %v9823 = vsel %vm9822, %v9815, %v9819
        %v9824 = vand.u32 2147483647, %v9643
        %vm9825 = vcmp.eq.f32.partialorder %v9824, 8.507059e+37
        %v9826 = vand.u32 %v9643, 2147483648
        %v9827 = vor.u32 1.1754944e-38, %v9826
        %v9828 = vsel %vm9825, %v9827, %v9823
        %v9829 = vmul.f32 1.0, %v9828
        %v9830 = vrcp.pop %v9644
        %v9831 = vmul.f32 %v9644, %v9830
        %v9832 = vsub.f32 1.0, %v9831
        %v9833 = vmul.f32 %v9830, %v9832
        %v9834 = vadd.f32 %v9830, %v9833
        %vm9835 = vweird.f32 %v9644
        %vm9836 = vweird.f32 %v9830
        %vm9837 = vmor %vm9835, %vm9836
        %v9838 = vsel %vm9837, %v9830, %v9834
        %v9839 = vand.u32 2147483647, %v9644
        %vm9840 = vcmp.eq.f32.partialorder %v9839, 8.507059e+37
        %v9841 = vand.u32 %v9644, 2147483648
        %v9842 = vor.u32 1.1754944e-38, %v9841
        %v9843 = vsel %vm9840, %v9842, %v9838
        %v9844 = vmul.f32 1.0, %v9843
        %v9845 = vrcp.pop %v9645
        %v9846 = vmul.f32 %v9645, %v9845
        %v9847 = vsub.f32 1.0, %v9846
        %v9848 = vmul.f32 %v9845, %v9847
        %v9849 = vadd.f32 %v9845, %v9848
        %vm9850 = vweird.f32 %v9645
        %vm9851 = vweird.f32 %v9845
        %vm9852 = vmor %vm9850, %vm9851
        %v9853 = vsel %vm9852, %v9845, %v9849
        %v9854 = vand.u32 2147483647, %v9645
        %vm9855 = vcmp.eq.f32.partialorder %v9854, 8.507059e+37
        %v9856 = vand.u32 %v9645, 2147483648
        %v9857 = vor.u32 1.1754944e-38, %v9856
        %v9858 = vsel %vm9855, %v9857, %v9853
        %v9859 = vmul.f32 1.0, %v9858
        %v9860 = vrcp.pop %v9646
        %v9861 = vmul.f32 %v9646, %v9860
        %v9862 = vsub.f32 1.0, %v9861
        %v9863 = vmul.f32 %v9860, %v9862
        %v9864 = vadd.f32 %v9860, %v9863
        %vm9865 = vweird.f32 %v9646
        %vm9866 = vweird.f32 %v9860
        %vm9867 = vmor %vm9865, %vm9866
        %v9868 = vsel %vm9867, %v9860, %v9864
        %v9869 = vand.u32 2147483647, %v9646
        %vm9870 = vcmp.eq.f32.partialorder %v9869, 8.507059e+37
        %v9871 = vand.u32 %v9646, 2147483648
        %v9872 = vor.u32 1.1754944e-38, %v9871
        %v9873 = vsel %vm9870, %v9872, %v9868
        %v9874 = vmul.f32 1.0, %v9873
        %v9875 = vrcp.pop %v9647
        %v9876 = vmul.f32 %v9647, %v9875
        %v9877 = vsub.f32 1.0, %v9876
        %v9878 = vmul.f32 %v9875, %v9877
        %v9879 = vadd.f32 %v9875, %v9878
        %vm9880 = vweird.f32 %v9647
        %vm9881 = vweird.f32 %v9875
        %vm9882 = vmor %vm9880, %vm9881
        %v9883 = vsel %vm9882, %v9875, %v9879
        %v9884 = vand.u32 2147483647, %v9647
        %vm9885 = vcmp.eq.f32.partialorder %v9884, 8.507059e+37
        %v9886 = vand.u32 %v9647, 2147483648
        %v9887 = vor.u32 1.1754944e-38, %v9886
        %v9888 = vsel %vm9885, %v9887, %v9883
        %v9889 = vmul.f32 1.0, %v9888
        %v9890 = vrcp.pop %v9648
        %v9891 = vmul.f32 %v9648, %v9890
        %v9892 = vsub.f32 1.0, %v9891
        %v9893 = vmul.f32 %v9890, %v9892
        %v9894 = vadd.f32 %v9890, %v9893
        %vm9895 = vweird.f32 %v9648
        %vm9896 = vweird.f32 %v9890
        %vm9897 = vmor %vm9895, %vm9896
        %v9898 = vsel %vm9897, %v9890, %v9894
        %v9899 = vand.u32 2147483647, %v9648
        %vm9900 = vcmp.eq.f32.partialorder %v9899, 8.507059e+37
        %v9901 = vand.u32 %v9648, 2147483648
        %v9902 = vor.u32 1.1754944e-38, %v9901
        %v9903 = vsel %vm9900, %v9902, %v9898
        %v9904 = vmul.f32 1.0, %v9903
        %v9905 = vrcp.pop %v9649
        %v9906 = vmul.f32 %v9649, %v9905
        %v9907 = vsub.f32 1.0, %v9906
        %v9908 = vmul.f32 %v9905, %v9907
        %v9909 = vadd.f32 %v9905, %v9908
        %vm9910 = vweird.f32 %v9649
        %vm9911 = vweird.f32 %v9905
        %vm9912 = vmor %vm9910, %vm9911
        %v9913 = vsel %vm9912, %v9905, %v9909
        %v9914 = vand.u32 2147483647, %v9649
        %vm9915 = vcmp.eq.f32.partialorder %v9914, 8.507059e+37
        %v9916 = vand.u32 %v9649, 2147483648
        %v9917 = vor.u32 1.1754944e-38, %v9916
        %v9918 = vsel %vm9915, %v9917, %v9913
        %v9919 = vmul.f32 1.0, %v9918
        %v9920 = vrcp.pop %v9650
        %v9921 = vmul.f32 %v9650, %v9920
        %v9922 = vsub.f32 1.0, %v9921
        %v9923 = vmul.f32 %v9920, %v9922
        %v9924 = vadd.f32 %v9920, %v9923
        %vm9925 = vweird.f32 %v9650
        %vm9926 = vweird.f32 %v9920
        %vm9927 = vmor %vm9925, %vm9926
        %v9928 = vsel %vm9927, %v9920, %v9924
        %v9929 = vand.u32 2147483647, %v9650
        %vm9930 = vcmp.eq.f32.partialorder %v9929, 8.507059e+37
        %v9931 = vand.u32 %v9650, 2147483648
        %v9932 = vor.u32 1.1754944e-38, %v9931
        %v9933 = vsel %vm9930, %v9932, %v9928
        %v9934 = vmul.f32 1.0, %v9933
        %v9935 = vrcp.pop %v9651
        %v9936 = vmul.f32 %v9651, %v9935
        %v9937 = vsub.f32 1.0, %v9936
        %v9938 = vmul.f32 %v9935, %v9937
        %v9939 = vadd.f32 %v9935, %v9938
        %vm9940 = vweird.f32 %v9651
        %vm9941 = vweird.f32 %v9935
        %vm9942 = vmor %vm9940, %vm9941
        %v9943 = vsel %vm9942, %v9935, %v9939
        %v9944 = vand.u32 2147483647, %v9651
        %vm9945 = vcmp.eq.f32.partialorder %v9944, 8.507059e+37
        %v9946 = vand.u32 %v9651, 2147483648
        %v9947 = vor.u32 1.1754944e-38, %v9946
        %v9948 = vsel %vm9945, %v9947, %v9943
        %v9949 = vmul.f32 1.0, %v9948
        %v9950 = vrcp.pop %v9652
        %v9951 = vmul.f32 %v9652, %v9950
        %v9952 = vsub.f32 1.0, %v9951
        %v9953 = vmul.f32 %v9950, %v9952
        %v9954 = vadd.f32 %v9950, %v9953
        %vm9955 = vweird.f32 %v9652
        %vm9956 = vweird.f32 %v9950
        %vm9957 = vmor %vm9955, %vm9956
        %v9958 = vsel %vm9957, %v9950, %v9954
        %v9959 = vand.u32 2147483647, %v9652
        %vm9960 = vcmp.eq.f32.partialorder %v9959, 8.507059e+37
        %v9961 = vand.u32 %v9652, 2147483648
        %v9962 = vor.u32 1.1754944e-38, %v9961
        %v9963 = vsel %vm9960, %v9962, %v9958
        %v9964 = vmul.f32 1.0, %v9963
        %v9965 = vrcp.pop %v9653
        %v9966 = vmul.f32 %v9653, %v9965
        %v9967 = vsub.f32 1.0, %v9966
        %v9968 = vmul.f32 %v9965, %v9967
        %v9969 = vadd.f32 %v9965, %v9968
        %vm9970 = vweird.f32 %v9653
        %vm9971 = vweird.f32 %v9965
        %vm9972 = vmor %vm9970, %vm9971
        %v9973 = vsel %vm9972, %v9965, %v9969
        %v9974 = vand.u32 2147483647, %v9653
        %vm9975 = vcmp.eq.f32.partialorder %v9974, 8.507059e+37
        %v9976 = vand.u32 %v9653, 2147483648
        %v9977 = vor.u32 1.1754944e-38, %v9976
        %v9978 = vsel %vm9975, %v9977, %v9973
        %v9979 = vmul.f32 1.0, %v9978
        %v9980 = vrcp.pop %v9654
        %v9981 = vmul.f32 %v9654, %v9980
        %v9982 = vsub.f32 1.0, %v9981
        %v9983 = vmul.f32 %v9980, %v9982
        %v9984 = vadd.f32 %v9980, %v9983
        %vm9985 = vweird.f32 %v9654
        %vm9986 = vweird.f32 %v9980
        %vm9987 = vmor %vm9985, %vm9986
        %v9988 = vsel %vm9987, %v9980, %v9984
        %v9989 = vand.u32 2147483647, %v9654
        %vm9990 = vcmp.eq.f32.partialorder %v9989, 8.507059e+37
        %v9991 = vand.u32 %v9654, 2147483648
        %v9992 = vor.u32 1.1754944e-38, %v9991
        %v9993 = vsel %vm9990, %v9992, %v9988
        %v9994 = vmul.f32 1.0, %v9993
        %v9995 = vrcp.pop %v9655
        %v9996 = vmul.f32 %v9655, %v9995
        %v9997 = vsub.f32 1.0, %v9996
        %v9998 = vmul.f32 %v9995, %v9997
        %v9999 = vadd.f32 %v9995, %v9998
        %vm10000 = vweird.f32 %v9655
        %vm10001 = vweird.f32 %v9995
        %vm10002 = vmor %vm10000, %vm10001
        %v10003 = vsel %vm10002, %v9995, %v9999
        %v10004 = vand.u32 2147483647, %v9655
        %vm10005 = vcmp.eq.f32.partialorder %v10004, 8.507059e+37
        %v10006 = vand.u32 %v9655, 2147483648
        %v10007 = vor.u32 1.1754944e-38, %v10006
        %v10008 = vsel %vm10005, %v10007, %v10003
        %v10009 = vmul.f32 1.0, %v10008
        %v10010 = vrcp.pop %v9656
        %v10011 = vmul.f32 %v9656, %v10010
        %v10012 = vsub.f32 1.0, %v10011
        %v10013 = vmul.f32 %v10010, %v10012
        %v10014 = vadd.f32 %v10010, %v10013
        %vm10015 = vweird.f32 %v9656
        %vm10016 = vweird.f32 %v10010
        %vm10017 = vmor %vm10015, %vm10016
        %v10018 = vsel %vm10017, %v10010, %v10014
        %v10019 = vand.u32 2147483647, %v9656
        %vm10020 = vcmp.eq.f32.partialorder %v10019, 8.507059e+37
        %v10021 = vand.u32 %v9656, 2147483648
        %v10022 = vor.u32 1.1754944e-38, %v10021
        %v10023 = vsel %vm10020, %v10022, %v10018
        %v10024 = vmul.f32 1.0, %v10023
        %v10025 = vrcp.pop %v9657
        %v10026 = vmul.f32 %v9657, %v10025
        %v10027 = vsub.f32 1.0, %v10026
        %v10028 = vmul.f32 %v10025, %v10027
        %v10029 = vadd.f32 %v10025, %v10028
        %vm10030 = vweird.f32 %v9657
        %vm10031 = vweird.f32 %v10025
        %vm10032 = vmor %vm10030, %vm10031
        %v10033 = vsel %vm10032, %v10025, %v10029
        %v10034 = vand.u32 2147483647, %v9657
        %vm10035 = vcmp.eq.f32.partialorder %v10034, 8.507059e+37
        %v10036 = vand.u32 %v9657, 2147483648
        %v10037 = vor.u32 1.1754944e-38, %v10036
        %v10038 = vsel %vm10035, %v10037, %v10033
        %v10039 = vmul.f32 1.0, %v10038
        %v10040 = vrcp.pop %v9658
        %v10041 = vmul.f32 %v9658, %v10040
        %v10042 = vsub.f32 1.0, %v10041
        %v10043 = vmul.f32 %v10040, %v10042
        %v10044 = vadd.f32 %v10040, %v10043
        %vm10045 = vweird.f32 %v9658
        %vm10046 = vweird.f32 %v10040
        %vm10047 = vmor %vm10045, %vm10046
        %v10048 = vsel %vm10047, %v10040, %v10044
        %v10049 = vand.u32 2147483647, %v9658
        %vm10050 = vcmp.eq.f32.partialorder %v10049, 8.507059e+37
        %v10051 = vand.u32 %v9658, 2147483648
        %v10052 = vor.u32 1.1754944e-38, %v10051
        %v10053 = vsel %vm10050, %v10052, %v10048
        %v10054 = vmul.f32 1.0, %v10053
        %v10055 = vrcp.pop %v9659
        %v10056 = vmul.f32 %v9659, %v10055
        %v10057 = vsub.f32 1.0, %v10056
        %v10058 = vmul.f32 %v10055, %v10057
        %v10059 = vadd.f32 %v10055, %v10058
        %vm10060 = vweird.f32 %v9659
        %vm10061 = vweird.f32 %v10055
        %vm10062 = vmor %vm10060, %vm10061
        %v10063 = vsel %vm10062, %v10055, %v10059
        %v10064 = vand.u32 2147483647, %v9659
        %vm10065 = vcmp.eq.f32.partialorder %v10064, 8.507059e+37
        %v10066 = vand.u32 %v9659, 2147483648
        %v10067 = vor.u32 1.1754944e-38, %v10066
        %v10068 = vsel %vm10065, %v10067, %v10063
        %v10069 = vmul.f32 1.0, %v10068
        %v10070 = vrcp.pop %v9660
        %v10071 = vmul.f32 %v9660, %v10070
        %v10072 = vsub.f32 1.0, %v10071
        %v10073 = vmul.f32 %v10070, %v10072
        %v10074 = vadd.f32 %v10070, %v10073
        %vm10075 = vweird.f32 %v9660
        %vm10076 = vweird.f32 %v10070
        %vm10077 = vmor %vm10075, %vm10076
        %v10078 = vsel %vm10077, %v10070, %v10074
        %v10079 = vand.u32 2147483647, %v9660
        %vm10080 = vcmp.eq.f32.partialorder %v10079, 8.507059e+37
        %v10081 = vand.u32 %v9660, 2147483648
        %v10082 = vor.u32 1.1754944e-38, %v10081
        %v10083 = vsel %vm10080, %v10082, %v10078
        %v10084 = vmul.f32 1.0, %v10083
        %v10085 = vrcp.pop %v9661
        %v10086 = vmul.f32 %v9661, %v10085
        %v10087 = vsub.f32 1.0, %v10086
        %v10088 = vmul.f32 %v10085, %v10087
        %v10089 = vadd.f32 %v10085, %v10088
        %vm10090 = vweird.f32 %v9661
        %vm10091 = vweird.f32 %v10085
        %vm10092 = vmor %vm10090, %vm10091
        %v10093 = vsel %vm10092, %v10085, %v10089
        %v10094 = vand.u32 2147483647, %v9661
        %vm10095 = vcmp.eq.f32.partialorder %v10094, 8.507059e+37
        %v10096 = vand.u32 %v9661, 2147483648
        %v10097 = vor.u32 1.1754944e-38, %v10096
        %v10098 = vsel %vm10095, %v10097, %v10093
        %v10099 = vmul.f32 1.0, %v10098
        %v10100 = vrcp.pop %v9662
        %v10101 = vmul.f32 %v9662, %v10100
        %v10102 = vsub.f32 1.0, %v10101
        %v10103 = vmul.f32 %v10100, %v10102
        %v10104 = vadd.f32 %v10100, %v10103
        %vm10105 = vweird.f32 %v9662
        %vm10106 = vweird.f32 %v10100
        %vm10107 = vmor %vm10105, %vm10106
        %v10108 = vsel %vm10107, %v10100, %v10104
        %v10109 = vand.u32 2147483647, %v9662
        %vm10110 = vcmp.eq.f32.partialorder %v10109, 8.507059e+37
        %v10111 = vand.u32 %v9662, 2147483648
        %v10112 = vor.u32 1.1754944e-38, %v10111
        %v10113 = vsel %vm10110, %v10112, %v10108
        %v10114 = vmul.f32 1.0, %v10113
        %v10115 = vrcp.pop %v9663
        %v10116 = vmul.f32 %v9663, %v10115
        %v10117 = vsub.f32 1.0, %v10116
        %v10118 = vmul.f32 %v10115, %v10117
        %v10119 = vadd.f32 %v10115, %v10118
        %vm10120 = vweird.f32 %v9663
        %vm10121 = vweird.f32 %v10115
        %vm10122 = vmor %vm10120, %vm10121
        %v10123 = vsel %vm10122, %v10115, %v10119
        %v10124 = vand.u32 2147483647, %v9663
        %vm10125 = vcmp.eq.f32.partialorder %v10124, 8.507059e+37
        %v10126 = vand.u32 %v9663, 2147483648
        %v10127 = vor.u32 1.1754944e-38, %v10126
        %v10128 = vsel %vm10125, %v10127, %v10123
        %v10129 = vmul.f32 1.0, %v10128
        %v10130 = vrcp.pop %v9664
        %v10131 = vmul.f32 %v9664, %v10130
        %v10132 = vsub.f32 1.0, %v10131
        %v10133 = vmul.f32 %v10130, %v10132
        %v10134 = vadd.f32 %v10130, %v10133
        %vm10135 = vweird.f32 %v9664
        %vm10136 = vweird.f32 %v10130
        %vm10137 = vmor %vm10135, %vm10136
        %v10138 = vsel %vm10137, %v10130, %v10134
        %v10139 = vand.u32 2147483647, %v9664
        %vm10140 = vcmp.eq.f32.partialorder %v10139, 8.507059e+37
        %v10141 = vand.u32 %v9664, 2147483648
        %v10142 = vor.u32 1.1754944e-38, %v10141
        %v10143 = vsel %vm10140, %v10142, %v10138
        %v10144 = vmul.f32 1.0, %v10143
        %v10145 = vadd.f32 %v9337, %v8772
        %v10146 = vadd.f32 %v9339, %v8775
        %v10147 = vadd.f32 %v9342, %v8778
        %v10148 = vadd.f32 %v9344, %v8781
        %v10149 = vadd.f32 %v9347, %v8784
        %v10150 = vadd.f32 %v9349, %v8787
        %v10151 = vadd.f32 %v9352, %v8790
        %v10152 = vadd.f32 %v9354, %v8793
        %v10153 = vadd.f32 %v9357, %v8796
        %v10154 = vadd.f32 %v9359, %v8799
        %v10155 = vadd.f32 %v9362, %v8802
        %v10156 = vadd.f32 %v9364, %v8805
        %v10157 = vadd.f32 %v9367, %v8808
        %v10158 = vadd.f32 %v9369, %v8811
        %v10159 = vadd.f32 %v9372, %v8814
        %v10160 = vadd.f32 %v9374, %v8817
        %v10161 = vadd.f32 %v9377, %v8820
        %v10162 = vadd.f32 %v9379, %v8823
        %v10163 = vadd.f32 %v9382, %v8826
        %v10164 = vadd.f32 %v9384, %v8829
        %v10165 = vadd.f32 %v9387, %v8832
        %v10166 = vadd.f32 %v9389, %v8835
        %v10167 = vadd.f32 %v9392, %v8838
        %v10168 = vadd.f32 %v9394, %v8841
        %v10169 = vadd.f32 %v9397, %v8844
        %v10170 = vadd.f32 %v9399, %v8847
        %v10171 = vadd.f32 %v9402, %v8850
        %v10172 = vadd.f32 %v9404, %v8853
        %v10173 = vadd.f32 %v9407, %v8856
        %v10174 = vadd.f32 %v9409, %v8859
        %v10175 = vadd.f32 %v9412, %v8862
        %v10176 = vadd.f32 %v9414, %v8865
        %v10177 = vxor.u32 %v10145, 2147483648
        %v10178 = vxor.u32 %v10146, 2147483648
        %v10179 = vxor.u32 %v10147, 2147483648
        %v10180 = vxor.u32 %v10148, 2147483648
        %v10181 = vxor.u32 %v10149, 2147483648
        %v10182 = vxor.u32 %v10150, 2147483648
        %v10183 = vxor.u32 %v10151, 2147483648
        %v10184 = vxor.u32 %v10152, 2147483648
        %v10185 = vxor.u32 %v10153, 2147483648
        %v10186 = vxor.u32 %v10154, 2147483648
        %v10187 = vxor.u32 %v10155, 2147483648
        %v10188 = vxor.u32 %v10156, 2147483648
        %v10189 = vxor.u32 %v10157, 2147483648
        %v10190 = vxor.u32 %v10158, 2147483648
        %v10191 = vxor.u32 %v10159, 2147483648
        %v10192 = vxor.u32 %v10160, 2147483648
        %v10193 = vxor.u32 %v10161, 2147483648
        %v10194 = vxor.u32 %v10162, 2147483648
        %v10195 = vxor.u32 %v10163, 2147483648
        %v10196 = vxor.u32 %v10164, 2147483648
        %v10197 = vxor.u32 %v10165, 2147483648
        %v10198 = vxor.u32 %v10166, 2147483648
        %v10199 = vxor.u32 %v10167, 2147483648
        %v10200 = vxor.u32 %v10168, 2147483648
        %v10201 = vxor.u32 %v10169, 2147483648
        %v10202 = vxor.u32 %v10170, 2147483648
        %v10203 = vxor.u32 %v10171, 2147483648
        %v10204 = vxor.u32 %v10172, 2147483648
        %v10205 = vxor.u32 %v10173, 2147483648
        %v10206 = vxor.u32 %v10174, 2147483648
        %v10207 = vxor.u32 %v10175, 2147483648
        %v10208 = vxor.u32 %v10176, 2147483648
        %v10209 = vmul.f32 %v10177, 1.442695
        %v10210 = vpow.pop %v10209
        %v10211 = vmul.f32 %v10178, 1.442695
        %v10212 = vpow.pop %v10211
        %v10213 = vmul.f32 %v10179, 1.442695
        %v10214 = vpow.pop %v10213
        %v10215 = vmul.f32 %v10180, 1.442695
        %v10216 = vpow.pop %v10215
        %v10217 = vmul.f32 %v10181, 1.442695
        %v10218 = vpow.pop %v10217
        %v10219 = vmul.f32 %v10182, 1.442695
        %v10220 = vpow.pop %v10219
        %v10221 = vmul.f32 %v10183, 1.442695
        %v10222 = vpow.pop %v10221
        %v10223 = vmul.f32 %v10184, 1.442695
        %v10224 = vpow.pop %v10223
        %v10225 = vmul.f32 %v10185, 1.442695
        %v10226 = vpow.pop %v10225
        %v10227 = vmul.f32 %v10186, 1.442695
        %v10228 = vpow.pop %v10227
        %v10229 = vmul.f32 %v10187, 1.442695
        %v10230 = vpow.pop %v10229
        %v10231 = vmul.f32 %v10188, 1.442695
        %v10232 = vpow.pop %v10231
        %v10233 = vmul.f32 %v10189, 1.442695
        %v10234 = vpow.pop %v10233
        %v10235 = vmul.f32 %v10190, 1.442695
        %v10236 = vpow.pop %v10235
        %v10237 = vmul.f32 %v10191, 1.442695
        %v10238 = vpow.pop %v10237
        %v10239 = vmul.f32 %v10192, 1.442695
        %v10240 = vpow.pop %v10239
        %v10241 = vmul.f32 %v10193, 1.442695
        %v10242 = vpow.pop %v10241
        %v10243 = vmul.f32 %v10194, 1.442695
        %v10244 = vpow.pop %v10243
        %v10245 = vmul.f32 %v10195, 1.442695
        %v10246 = vpow.pop %v10245
        %v10247 = vmul.f32 %v10196, 1.442695
        %v10248 = vpow.pop %v10247
        %v10249 = vmul.f32 %v10197, 1.442695
        %v10250 = vpow.pop %v10249
        %v10251 = vmul.f32 %v10198, 1.442695
        %v10252 = vpow.pop %v10251
        %v10253 = vmul.f32 %v10199, 1.442695
        %v10254 = vpow.pop %v10253
        %v10255 = vmul.f32 %v10200, 1.442695
        %v10256 = vpow.pop %v10255
        %v10257 = vmul.f32 %v10201, 1.442695
        %v10258 = vpow.pop %v10257
        %v10259 = vmul.f32 %v10202, 1.442695
        %v10260 = vpow.pop %v10259
        %v10261 = vmul.f32 %v10203, 1.442695
        %v10262 = vpow.pop %v10261
        %v10263 = vmul.f32 %v10204, 1.442695
        %v10264 = vpow.pop %v10263
        %v10265 = vmul.f32 %v10205, 1.442695
        %v10266 = vpow.pop %v10265
        %v10267 = vmul.f32 %v10206, 1.442695
        %v10268 = vpow.pop %v10267
        %v10269 = vmul.f32 %v10207, 1.442695
        %v10270 = vpow.pop %v10269
        %v10271 = vmul.f32 %v10208, 1.442695
        %v10272 = vpow.pop %v10271
        %v10273 = vadd.f32 %v10210, 1.0
        %v10274 = vadd.f32 %v10212, 1.0
        %v10275 = vadd.f32 %v10214, 1.0
        %v10276 = vadd.f32 %v10216, 1.0
        %v10277 = vadd.f32 %v10218, 1.0
        %v10278 = vadd.f32 %v10220, 1.0
        %v10279 = vadd.f32 %v10222, 1.0
        %v10280 = vadd.f32 %v10224, 1.0
        %v10281 = vadd.f32 %v10226, 1.0
        %v10282 = vadd.f32 %v10228, 1.0
        %v10283 = vadd.f32 %v10230, 1.0
        %v10284 = vadd.f32 %v10232, 1.0
        %v10285 = vadd.f32 %v10234, 1.0
        %v10286 = vadd.f32 %v10236, 1.0
        %v10287 = vadd.f32 %v10238, 1.0
        %v10288 = vadd.f32 %v10240, 1.0
        %v10289 = vadd.f32 %v10242, 1.0
        %v10290 = vadd.f32 %v10244, 1.0
        %v10291 = vadd.f32 %v10246, 1.0
        %v10292 = vadd.f32 %v10248, 1.0
        %v10293 = vadd.f32 %v10250, 1.0
        %v10294 = vadd.f32 %v10252, 1.0
        %v10295 = vadd.f32 %v10254, 1.0
        %v10296 = vadd.f32 %v10256, 1.0
        %v10297 = vadd.f32 %v10258, 1.0
        %v10298 = vadd.f32 %v10260, 1.0
        %v10299 = vadd.f32 %v10262, 1.0
        %v10300 = vadd.f32 %v10264, 1.0
        %v10301 = vadd.f32 %v10266, 1.0
        %v10302 = vadd.f32 %v10268, 1.0
        %v10303 = vadd.f32 %v10270, 1.0
        %v10304 = vadd.f32 %v10272, 1.0
        %v10305 = vrcp.pop %v10273
        %v10306 = vmul.f32 %v10273, %v10305
        %v10307 = vsub.f32 1.0, %v10306
        %v10308 = vmul.f32 %v10305, %v10307
        %v10309 = vadd.f32 %v10305, %v10308
        %vm10310 = vweird.f32 %v10273
        %vm10311 = vweird.f32 %v10305
        %vm10312 = vmor %vm10310, %vm10311
        %v10313 = vsel %vm10312, %v10305, %v10309
        %v10314 = vand.u32 2147483647, %v10273
        %vm10315 = vcmp.eq.f32.partialorder %v10314, 8.507059e+37
        %v10316 = vand.u32 %v10273, 2147483648
        %v10317 = vor.u32 1.1754944e-38, %v10316
        %v10318 = vsel %vm10315, %v10317, %v10313
        %v10319 = vmul.f32 1.0, %v10318
        %v10320 = vrcp.pop %v10274
        %v10321 = vmul.f32 %v10274, %v10320
        %v10322 = vsub.f32 1.0, %v10321
        %v10323 = vmul.f32 %v10320, %v10322
        %v10324 = vadd.f32 %v10320, %v10323
        %vm10325 = vweird.f32 %v10274
        %vm10326 = vweird.f32 %v10320
        %vm10327 = vmor %vm10325, %vm10326
        %v10328 = vsel %vm10327, %v10320, %v10324
        %v10329 = vand.u32 2147483647, %v10274
        %vm10330 = vcmp.eq.f32.partialorder %v10329, 8.507059e+37
        %v10331 = vand.u32 %v10274, 2147483648
        %v10332 = vor.u32 1.1754944e-38, %v10331
        %v10333 = vsel %vm10330, %v10332, %v10328
        %v10334 = vmul.f32 1.0, %v10333
        %v10335 = vrcp.pop %v10275
        %v10336 = vmul.f32 %v10275, %v10335
        %v10337 = vsub.f32 1.0, %v10336
        %v10338 = vmul.f32 %v10335, %v10337
        %v10339 = vadd.f32 %v10335, %v10338
        %vm10340 = vweird.f32 %v10275
        %vm10341 = vweird.f32 %v10335
        %vm10342 = vmor %vm10340, %vm10341
        %v10343 = vsel %vm10342, %v10335, %v10339
        %v10344 = vand.u32 2147483647, %v10275
        %vm10345 = vcmp.eq.f32.partialorder %v10344, 8.507059e+37
        %v10346 = vand.u32 %v10275, 2147483648
        %v10347 = vor.u32 1.1754944e-38, %v10346
        %v10348 = vsel %vm10345, %v10347, %v10343
        %v10349 = vmul.f32 1.0, %v10348
        %v10350 = vrcp.pop %v10276
        %v10351 = vmul.f32 %v10276, %v10350
        %v10352 = vsub.f32 1.0, %v10351
        %v10353 = vmul.f32 %v10350, %v10352
        %v10354 = vadd.f32 %v10350, %v10353
        %vm10355 = vweird.f32 %v10276
        %vm10356 = vweird.f32 %v10350
        %vm10357 = vmor %vm10355, %vm10356
        %v10358 = vsel %vm10357, %v10350, %v10354
        %v10359 = vand.u32 2147483647, %v10276
        %vm10360 = vcmp.eq.f32.partialorder %v10359, 8.507059e+37
        %v10361 = vand.u32 %v10276, 2147483648
        %v10362 = vor.u32 1.1754944e-38, %v10361
        %v10363 = vsel %vm10360, %v10362, %v10358
        %v10364 = vmul.f32 1.0, %v10363
        %v10365 = vrcp.pop %v10277
        %v10366 = vmul.f32 %v10277, %v10365
        %v10367 = vsub.f32 1.0, %v10366
        %v10368 = vmul.f32 %v10365, %v10367
        %v10369 = vadd.f32 %v10365, %v10368
        %vm10370 = vweird.f32 %v10277
        %vm10371 = vweird.f32 %v10365
        %vm10372 = vmor %vm10370, %vm10371
        %v10373 = vsel %vm10372, %v10365, %v10369
        %v10374 = vand.u32 2147483647, %v10277
        %vm10375 = vcmp.eq.f32.partialorder %v10374, 8.507059e+37
        %v10376 = vand.u32 %v10277, 2147483648
        %v10377 = vor.u32 1.1754944e-38, %v10376
        %v10378 = vsel %vm10375, %v10377, %v10373
        %v10379 = vmul.f32 1.0, %v10378
        %v10380 = vrcp.pop %v10278
        %v10381 = vmul.f32 %v10278, %v10380
        %v10382 = vsub.f32 1.0, %v10381
        %v10383 = vmul.f32 %v10380, %v10382
        %v10384 = vadd.f32 %v10380, %v10383
        %vm10385 = vweird.f32 %v10278
        %vm10386 = vweird.f32 %v10380
        %vm10387 = vmor %vm10385, %vm10386
        %v10388 = vsel %vm10387, %v10380, %v10384
        %v10389 = vand.u32 2147483647, %v10278
        %vm10390 = vcmp.eq.f32.partialorder %v10389, 8.507059e+37
        %v10391 = vand.u32 %v10278, 2147483648
        %v10392 = vor.u32 1.1754944e-38, %v10391
        %v10393 = vsel %vm10390, %v10392, %v10388
        %v10394 = vmul.f32 1.0, %v10393
        %v10395 = vrcp.pop %v10279
        %v10396 = vmul.f32 %v10279, %v10395
        %v10397 = vsub.f32 1.0, %v10396
        %v10398 = vmul.f32 %v10395, %v10397
        %v10399 = vadd.f32 %v10395, %v10398
        %vm10400 = vweird.f32 %v10279
        %vm10401 = vweird.f32 %v10395
        %vm10402 = vmor %vm10400, %vm10401
        %v10403 = vsel %vm10402, %v10395, %v10399
        %v10404 = vand.u32 2147483647, %v10279
        %vm10405 = vcmp.eq.f32.partialorder %v10404, 8.507059e+37
        %v10406 = vand.u32 %v10279, 2147483648
        %v10407 = vor.u32 1.1754944e-38, %v10406
        %v10408 = vsel %vm10405, %v10407, %v10403
        %v10409 = vmul.f32 1.0, %v10408
        %v10410 = vrcp.pop %v10280
        %v10411 = vmul.f32 %v10280, %v10410
        %v10412 = vsub.f32 1.0, %v10411
        %v10413 = vmul.f32 %v10410, %v10412
        %v10414 = vadd.f32 %v10410, %v10413
        %vm10415 = vweird.f32 %v10280
        %vm10416 = vweird.f32 %v10410
        %vm10417 = vmor %vm10415, %vm10416
        %v10418 = vsel %vm10417, %v10410, %v10414
        %v10419 = vand.u32 2147483647, %v10280
        %vm10420 = vcmp.eq.f32.partialorder %v10419, 8.507059e+37
        %v10421 = vand.u32 %v10280, 2147483648
        %v10422 = vor.u32 1.1754944e-38, %v10421
        %v10423 = vsel %vm10420, %v10422, %v10418
        %v10424 = vmul.f32 1.0, %v10423
        %v10425 = vrcp.pop %v10281
        %v10426 = vmul.f32 %v10281, %v10425
        %v10427 = vsub.f32 1.0, %v10426
        %v10428 = vmul.f32 %v10425, %v10427
        %v10429 = vadd.f32 %v10425, %v10428
        %vm10430 = vweird.f32 %v10281
        %vm10431 = vweird.f32 %v10425
        %vm10432 = vmor %vm10430, %vm10431
        %v10433 = vsel %vm10432, %v10425, %v10429
        %v10434 = vand.u32 2147483647, %v10281
        %vm10435 = vcmp.eq.f32.partialorder %v10434, 8.507059e+37
        %v10436 = vand.u32 %v10281, 2147483648
        %v10437 = vor.u32 1.1754944e-38, %v10436
        %v10438 = vsel %vm10435, %v10437, %v10433
        %v10439 = vmul.f32 1.0, %v10438
        %v10440 = vrcp.pop %v10282
        %v10441 = vmul.f32 %v10282, %v10440
        %v10442 = vsub.f32 1.0, %v10441
        %v10443 = vmul.f32 %v10440, %v10442
        %v10444 = vadd.f32 %v10440, %v10443
        %vm10445 = vweird.f32 %v10282
        %vm10446 = vweird.f32 %v10440
        %vm10447 = vmor %vm10445, %vm10446
        %v10448 = vsel %vm10447, %v10440, %v10444
        %v10449 = vand.u32 2147483647, %v10282
        %vm10450 = vcmp.eq.f32.partialorder %v10449, 8.507059e+37
        %v10451 = vand.u32 %v10282, 2147483648
        %v10452 = vor.u32 1.1754944e-38, %v10451
        %v10453 = vsel %vm10450, %v10452, %v10448
        %v10454 = vmul.f32 1.0, %v10453
        %v10455 = vrcp.pop %v10283
        %v10456 = vmul.f32 %v10283, %v10455
        %v10457 = vsub.f32 1.0, %v10456
        %v10458 = vmul.f32 %v10455, %v10457
        %v10459 = vadd.f32 %v10455, %v10458
        %vm10460 = vweird.f32 %v10283
        %vm10461 = vweird.f32 %v10455
        %vm10462 = vmor %vm10460, %vm10461
        %v10463 = vsel %vm10462, %v10455, %v10459
        %v10464 = vand.u32 2147483647, %v10283
        %vm10465 = vcmp.eq.f32.partialorder %v10464, 8.507059e+37
        %v10466 = vand.u32 %v10283, 2147483648
        %v10467 = vor.u32 1.1754944e-38, %v10466
        %v10468 = vsel %vm10465, %v10467, %v10463
        %v10469 = vmul.f32 1.0, %v10468
        %v10470 = vrcp.pop %v10284
        %v10471 = vmul.f32 %v10284, %v10470
        %v10472 = vsub.f32 1.0, %v10471
        %v10473 = vmul.f32 %v10470, %v10472
        %v10474 = vadd.f32 %v10470, %v10473
        %vm10475 = vweird.f32 %v10284
        %vm10476 = vweird.f32 %v10470
        %vm10477 = vmor %vm10475, %vm10476
        %v10478 = vsel %vm10477, %v10470, %v10474
        %v10479 = vand.u32 2147483647, %v10284
        %vm10480 = vcmp.eq.f32.partialorder %v10479, 8.507059e+37
        %v10481 = vand.u32 %v10284, 2147483648
        %v10482 = vor.u32 1.1754944e-38, %v10481
        %v10483 = vsel %vm10480, %v10482, %v10478
        %v10484 = vmul.f32 1.0, %v10483
        %v10485 = vrcp.pop %v10285
        %v10486 = vmul.f32 %v10285, %v10485
        %v10487 = vsub.f32 1.0, %v10486
        %v10488 = vmul.f32 %v10485, %v10487
        %v10489 = vadd.f32 %v10485, %v10488
        %vm10490 = vweird.f32 %v10285
        %vm10491 = vweird.f32 %v10485
        %vm10492 = vmor %vm10490, %vm10491
        %v10493 = vsel %vm10492, %v10485, %v10489
        %v10494 = vand.u32 2147483647, %v10285
        %vm10495 = vcmp.eq.f32.partialorder %v10494, 8.507059e+37
        %v10496 = vand.u32 %v10285, 2147483648
        %v10497 = vor.u32 1.1754944e-38, %v10496
        %v10498 = vsel %vm10495, %v10497, %v10493
        %v10499 = vmul.f32 1.0, %v10498
        %v10500 = vrcp.pop %v10286
        %v10501 = vmul.f32 %v10286, %v10500
        %v10502 = vsub.f32 1.0, %v10501
        %v10503 = vmul.f32 %v10500, %v10502
        %v10504 = vadd.f32 %v10500, %v10503
        %vm10505 = vweird.f32 %v10286
        %vm10506 = vweird.f32 %v10500
        %vm10507 = vmor %vm10505, %vm10506
        %v10508 = vsel %vm10507, %v10500, %v10504
        %v10509 = vand.u32 2147483647, %v10286
        %vm10510 = vcmp.eq.f32.partialorder %v10509, 8.507059e+37
        %v10511 = vand.u32 %v10286, 2147483648
        %v10512 = vor.u32 1.1754944e-38, %v10511
        %v10513 = vsel %vm10510, %v10512, %v10508
        %v10514 = vmul.f32 1.0, %v10513
        %v10515 = vrcp.pop %v10287
        %v10516 = vmul.f32 %v10287, %v10515
        %v10517 = vsub.f32 1.0, %v10516
        %v10518 = vmul.f32 %v10515, %v10517
        %v10519 = vadd.f32 %v10515, %v10518
        %vm10520 = vweird.f32 %v10287
        %vm10521 = vweird.f32 %v10515
        %vm10522 = vmor %vm10520, %vm10521
        %v10523 = vsel %vm10522, %v10515, %v10519
        %v10524 = vand.u32 2147483647, %v10287
        %vm10525 = vcmp.eq.f32.partialorder %v10524, 8.507059e+37
        %v10526 = vand.u32 %v10287, 2147483648
        %v10527 = vor.u32 1.1754944e-38, %v10526
        %v10528 = vsel %vm10525, %v10527, %v10523
        %v10529 = vmul.f32 1.0, %v10528
        %v10530 = vrcp.pop %v10288
        %v10531 = vmul.f32 %v10288, %v10530
        %v10532 = vsub.f32 1.0, %v10531
        %v10533 = vmul.f32 %v10530, %v10532
        %v10534 = vadd.f32 %v10530, %v10533
        %vm10535 = vweird.f32 %v10288
        %vm10536 = vweird.f32 %v10530
        %vm10537 = vmor %vm10535, %vm10536
        %v10538 = vsel %vm10537, %v10530, %v10534
        %v10539 = vand.u32 2147483647, %v10288
        %vm10540 = vcmp.eq.f32.partialorder %v10539, 8.507059e+37
        %v10541 = vand.u32 %v10288, 2147483648
        %v10542 = vor.u32 1.1754944e-38, %v10541
        %v10543 = vsel %vm10540, %v10542, %v10538
        %v10544 = vmul.f32 1.0, %v10543
        %v10545 = vrcp.pop %v10289
        %v10546 = vmul.f32 %v10289, %v10545
        %v10547 = vsub.f32 1.0, %v10546
        %v10548 = vmul.f32 %v10545, %v10547
        %v10549 = vadd.f32 %v10545, %v10548
        %vm10550 = vweird.f32 %v10289
        %vm10551 = vweird.f32 %v10545
        %vm10552 = vmor %vm10550, %vm10551
        %v10553 = vsel %vm10552, %v10545, %v10549
        %v10554 = vand.u32 2147483647, %v10289
        %vm10555 = vcmp.eq.f32.partialorder %v10554, 8.507059e+37
        %v10556 = vand.u32 %v10289, 2147483648
        %v10557 = vor.u32 1.1754944e-38, %v10556
        %v10558 = vsel %vm10555, %v10557, %v10553
        %v10559 = vmul.f32 1.0, %v10558
        %v10560 = vrcp.pop %v10290
        %v10561 = vmul.f32 %v10290, %v10560
        %v10562 = vsub.f32 1.0, %v10561
        %v10563 = vmul.f32 %v10560, %v10562
        %v10564 = vadd.f32 %v10560, %v10563
        %vm10565 = vweird.f32 %v10290
        %vm10566 = vweird.f32 %v10560
        %vm10567 = vmor %vm10565, %vm10566
        %v10568 = vsel %vm10567, %v10560, %v10564
        %v10569 = vand.u32 2147483647, %v10290
        %vm10570 = vcmp.eq.f32.partialorder %v10569, 8.507059e+37
        %v10571 = vand.u32 %v10290, 2147483648
        %v10572 = vor.u32 1.1754944e-38, %v10571
        %v10573 = vsel %vm10570, %v10572, %v10568
        %v10574 = vmul.f32 1.0, %v10573
        %v10575 = vrcp.pop %v10291
        %v10576 = vmul.f32 %v10291, %v10575
        %v10577 = vsub.f32 1.0, %v10576
        %v10578 = vmul.f32 %v10575, %v10577
        %v10579 = vadd.f32 %v10575, %v10578
        %vm10580 = vweird.f32 %v10291
        %vm10581 = vweird.f32 %v10575
        %vm10582 = vmor %vm10580, %vm10581
        %v10583 = vsel %vm10582, %v10575, %v10579
        %v10584 = vand.u32 2147483647, %v10291
        %vm10585 = vcmp.eq.f32.partialorder %v10584, 8.507059e+37
        %v10586 = vand.u32 %v10291, 2147483648
        %v10587 = vor.u32 1.1754944e-38, %v10586
        %v10588 = vsel %vm10585, %v10587, %v10583
        %v10589 = vmul.f32 1.0, %v10588
        %v10590 = vrcp.pop %v10292
        %v10591 = vmul.f32 %v10292, %v10590
        %v10592 = vsub.f32 1.0, %v10591
        %v10593 = vmul.f32 %v10590, %v10592
        %v10594 = vadd.f32 %v10590, %v10593
        %vm10595 = vweird.f32 %v10292
        %vm10596 = vweird.f32 %v10590
        %vm10597 = vmor %vm10595, %vm10596
        %v10598 = vsel %vm10597, %v10590, %v10594
        %v10599 = vand.u32 2147483647, %v10292
        %vm10600 = vcmp.eq.f32.partialorder %v10599, 8.507059e+37
        %v10601 = vand.u32 %v10292, 2147483648
        %v10602 = vor.u32 1.1754944e-38, %v10601
        %v10603 = vsel %vm10600, %v10602, %v10598
        %v10604 = vmul.f32 1.0, %v10603
        %v10605 = vrcp.pop %v10293
        %v10606 = vmul.f32 %v10293, %v10605
        %v10607 = vsub.f32 1.0, %v10606
        %v10608 = vmul.f32 %v10605, %v10607
        %v10609 = vadd.f32 %v10605, %v10608
        %vm10610 = vweird.f32 %v10293
        %vm10611 = vweird.f32 %v10605
        %vm10612 = vmor %vm10610, %vm10611
        %v10613 = vsel %vm10612, %v10605, %v10609
        %v10614 = vand.u32 2147483647, %v10293
        %vm10615 = vcmp.eq.f32.partialorder %v10614, 8.507059e+37
        %v10616 = vand.u32 %v10293, 2147483648
        %v10617 = vor.u32 1.1754944e-38, %v10616
        %v10618 = vsel %vm10615, %v10617, %v10613
        %v10619 = vmul.f32 1.0, %v10618
        %v10620 = vrcp.pop %v10294
        %v10621 = vmul.f32 %v10294, %v10620
        %v10622 = vsub.f32 1.0, %v10621
        %v10623 = vmul.f32 %v10620, %v10622
        %v10624 = vadd.f32 %v10620, %v10623
        %vm10625 = vweird.f32 %v10294
        %vm10626 = vweird.f32 %v10620
        %vm10627 = vmor %vm10625, %vm10626
        %v10628 = vsel %vm10627, %v10620, %v10624
        %v10629 = vand.u32 2147483647, %v10294
        %vm10630 = vcmp.eq.f32.partialorder %v10629, 8.507059e+37
        %v10631 = vand.u32 %v10294, 2147483648
        %v10632 = vor.u32 1.1754944e-38, %v10631
        %v10633 = vsel %vm10630, %v10632, %v10628
        %v10634 = vmul.f32 1.0, %v10633
        %v10635 = vrcp.pop %v10295
        %v10636 = vmul.f32 %v10295, %v10635
        %v10637 = vsub.f32 1.0, %v10636
        %v10638 = vmul.f32 %v10635, %v10637
        %v10639 = vadd.f32 %v10635, %v10638
        %vm10640 = vweird.f32 %v10295
        %vm10641 = vweird.f32 %v10635
        %vm10642 = vmor %vm10640, %vm10641
        %v10643 = vsel %vm10642, %v10635, %v10639
        %v10644 = vand.u32 2147483647, %v10295
        %vm10645 = vcmp.eq.f32.partialorder %v10644, 8.507059e+37
        %v10646 = vand.u32 %v10295, 2147483648
        %v10647 = vor.u32 1.1754944e-38, %v10646
        %v10648 = vsel %vm10645, %v10647, %v10643
        %v10649 = vmul.f32 1.0, %v10648
        %v10650 = vrcp.pop %v10296
        %v10651 = vmul.f32 %v10296, %v10650
        %v10652 = vsub.f32 1.0, %v10651
        %v10653 = vmul.f32 %v10650, %v10652
        %v10654 = vadd.f32 %v10650, %v10653
        %vm10655 = vweird.f32 %v10296
        %vm10656 = vweird.f32 %v10650
        %vm10657 = vmor %vm10655, %vm10656
        %v10658 = vsel %vm10657, %v10650, %v10654
        %v10659 = vand.u32 2147483647, %v10296
        %vm10660 = vcmp.eq.f32.partialorder %v10659, 8.507059e+37
        %v10661 = vand.u32 %v10296, 2147483648
        %v10662 = vor.u32 1.1754944e-38, %v10661
        %v10663 = vsel %vm10660, %v10662, %v10658
        %v10664 = vmul.f32 1.0, %v10663
        %v10665 = vrcp.pop %v10297
        %v10666 = vmul.f32 %v10297, %v10665
        %v10667 = vsub.f32 1.0, %v10666
        %v10668 = vmul.f32 %v10665, %v10667
        %v10669 = vadd.f32 %v10665, %v10668
        %vm10670 = vweird.f32 %v10297
        %vm10671 = vweird.f32 %v10665
        %vm10672 = vmor %vm10670, %vm10671
        %v10673 = vsel %vm10672, %v10665, %v10669
        %v10674 = vand.u32 2147483647, %v10297
        %vm10675 = vcmp.eq.f32.partialorder %v10674, 8.507059e+37
        %v10676 = vand.u32 %v10297, 2147483648
        %v10677 = vor.u32 1.1754944e-38, %v10676
        %v10678 = vsel %vm10675, %v10677, %v10673
        %v10679 = vmul.f32 1.0, %v10678
        %v10680 = vrcp.pop %v10298
        %v10681 = vmul.f32 %v10298, %v10680
        %v10682 = vsub.f32 1.0, %v10681
        %v10683 = vmul.f32 %v10680, %v10682
        %v10684 = vadd.f32 %v10680, %v10683
        %vm10685 = vweird.f32 %v10298
        %vm10686 = vweird.f32 %v10680
        %vm10687 = vmor %vm10685, %vm10686
        %v10688 = vsel %vm10687, %v10680, %v10684
        %v10689 = vand.u32 2147483647, %v10298
        %vm10690 = vcmp.eq.f32.partialorder %v10689, 8.507059e+37
        %v10691 = vand.u32 %v10298, 2147483648
        %v10692 = vor.u32 1.1754944e-38, %v10691
        %v10693 = vsel %vm10690, %v10692, %v10688
        %v10694 = vmul.f32 1.0, %v10693
        %v10695 = vrcp.pop %v10299
        %v10696 = vmul.f32 %v10299, %v10695
        %v10697 = vsub.f32 1.0, %v10696
        %v10698 = vmul.f32 %v10695, %v10697
        %v10699 = vadd.f32 %v10695, %v10698
        %vm10700 = vweird.f32 %v10299
        %vm10701 = vweird.f32 %v10695
        %vm10702 = vmor %vm10700, %vm10701
        %v10703 = vsel %vm10702, %v10695, %v10699
        %v10704 = vand.u32 2147483647, %v10299
        %vm10705 = vcmp.eq.f32.partialorder %v10704, 8.507059e+37
        %v10706 = vand.u32 %v10299, 2147483648
        %v10707 = vor.u32 1.1754944e-38, %v10706
        %v10708 = vsel %vm10705, %v10707, %v10703
        %v10709 = vmul.f32 1.0, %v10708
        %v10710 = vrcp.pop %v10300
        %v10711 = vmul.f32 %v10300, %v10710
        %v10712 = vsub.f32 1.0, %v10711
        %v10713 = vmul.f32 %v10710, %v10712
        %v10714 = vadd.f32 %v10710, %v10713
        %vm10715 = vweird.f32 %v10300
        %vm10716 = vweird.f32 %v10710
        %vm10717 = vmor %vm10715, %vm10716
        %v10718 = vsel %vm10717, %v10710, %v10714
        %v10719 = vand.u32 2147483647, %v10300
        %vm10720 = vcmp.eq.f32.partialorder %v10719, 8.507059e+37
        %v10721 = vand.u32 %v10300, 2147483648
        %v10722 = vor.u32 1.1754944e-38, %v10721
        %v10723 = vsel %vm10720, %v10722, %v10718
        %v10724 = vmul.f32 1.0, %v10723
        %v10725 = vrcp.pop %v10301
        %v10726 = vmul.f32 %v10301, %v10725
        %v10727 = vsub.f32 1.0, %v10726
        %v10728 = vmul.f32 %v10725, %v10727
        %v10729 = vadd.f32 %v10725, %v10728
        %vm10730 = vweird.f32 %v10301
        %vm10731 = vweird.f32 %v10725
        %vm10732 = vmor %vm10730, %vm10731
        %v10733 = vsel %vm10732, %v10725, %v10729
        %v10734 = vand.u32 2147483647, %v10301
        %vm10735 = vcmp.eq.f32.partialorder %v10734, 8.507059e+37
        %v10736 = vand.u32 %v10301, 2147483648
        %v10737 = vor.u32 1.1754944e-38, %v10736
        %v10738 = vsel %vm10735, %v10737, %v10733
        %v10739 = vmul.f32 1.0, %v10738
        %v10740 = vrcp.pop %v10302
        %v10741 = vmul.f32 %v10302, %v10740
        %v10742 = vsub.f32 1.0, %v10741
        %v10743 = vmul.f32 %v10740, %v10742
        %v10744 = vadd.f32 %v10740, %v10743
        %vm10745 = vweird.f32 %v10302
        %vm10746 = vweird.f32 %v10740
        %vm10747 = vmor %vm10745, %vm10746
        %v10748 = vsel %vm10747, %v10740, %v10744
        %v10749 = vand.u32 2147483647, %v10302
        %vm10750 = vcmp.eq.f32.partialorder %v10749, 8.507059e+37
        %v10751 = vand.u32 %v10302, 2147483648
        %v10752 = vor.u32 1.1754944e-38, %v10751
        %v10753 = vsel %vm10750, %v10752, %v10748
        %v10754 = vmul.f32 1.0, %v10753
        %v10755 = vrcp.pop %v10303
        %v10756 = vmul.f32 %v10303, %v10755
        %v10757 = vsub.f32 1.0, %v10756
        %v10758 = vmul.f32 %v10755, %v10757
        %v10759 = vadd.f32 %v10755, %v10758
        %vm10760 = vweird.f32 %v10303
        %vm10761 = vweird.f32 %v10755
        %vm10762 = vmor %vm10760, %vm10761
        %v10763 = vsel %vm10762, %v10755, %v10759
        %v10764 = vand.u32 2147483647, %v10303
        %vm10765 = vcmp.eq.f32.partialorder %v10764, 8.507059e+37
        %v10766 = vand.u32 %v10303, 2147483648
        %v10767 = vor.u32 1.1754944e-38, %v10766
        %v10768 = vsel %vm10765, %v10767, %v10763
        %v10769 = vmul.f32 1.0, %v10768
        %v10770 = vrcp.pop %v10304
        %v10771 = vmul.f32 %v10304, %v10770
        %v10772 = vsub.f32 1.0, %v10771
        %v10773 = vmul.f32 %v10770, %v10772
        %v10774 = vadd.f32 %v10770, %v10773
        %vm10775 = vweird.f32 %v10304
        %vm10776 = vweird.f32 %v10770
        %vm10777 = vmor %vm10775, %vm10776
        %v10778 = vsel %vm10777, %v10770, %v10774
        %v10779 = vand.u32 2147483647, %v10304
        %vm10780 = vcmp.eq.f32.partialorder %v10779, 8.507059e+37
        %v10781 = vand.u32 %v10304, 2147483648
        %v10782 = vor.u32 1.1754944e-38, %v10781
        %v10783 = vsel %vm10780, %v10782, %v10778
        %v10784 = vmul.f32 1.0, %v10783
        %v10785 = vmul.f32 %v9679, %v8773
        %v10786 = vmul.f32 %v9694, %v8776
        %v10787 = vmul.f32 %v9709, %v8779
        %v10788 = vmul.f32 %v9724, %v8782
        %v10789 = vmul.f32 %v9739, %v8785
        %v10790 = vmul.f32 %v9754, %v8788
        %v10791 = vmul.f32 %v9769, %v8791
        %v10792 = vmul.f32 %v9784, %v8794
        %v10793 = vmul.f32 %v9799, %v8797
        %v10794 = vmul.f32 %v9814, %v8800
        %v10795 = vmul.f32 %v9829, %v8803
        %v10796 = vmul.f32 %v9844, %v8806
        %v10797 = vmul.f32 %v9859, %v8809
        %v10798 = vmul.f32 %v9874, %v8812
        %v10799 = vmul.f32 %v9889, %v8815
        %v10800 = vmul.f32 %v9904, %v8818
        %v10801 = vmul.f32 %v9919, %v8821
        %v10802 = vmul.f32 %v9934, %v8824
        %v10803 = vmul.f32 %v9949, %v8827
        %v10804 = vmul.f32 %v9964, %v8830
        %v10805 = vmul.f32 %v9979, %v8833
        %v10806 = vmul.f32 %v9994, %v8836
        %v10807 = vmul.f32 %v10009, %v8839
        %v10808 = vmul.f32 %v10024, %v8842
        %v10809 = vmul.f32 %v10039, %v8845
        %v10810 = vmul.f32 %v10054, %v8848
        %v10811 = vmul.f32 %v10069, %v8851
        %v10812 = vmul.f32 %v10084, %v8854
        %v10813 = vmul.f32 %v10099, %v8857
        %v10814 = vmul.f32 %v10114, %v8860
        %v10815 = vmul.f32 %v10129, %v8863
        %v10816 = vmul.f32 %v10144, %v8866
        %v10817 = vadd.f32 %v9426, %v10785
        %v10818 = vadd.f32 %v9428, %v10786
        %v10819 = vadd.f32 %v9431, %v10787
        %v10820 = vadd.f32 %v9433, %v10788
        %v10821 = vadd.f32 %v9436, %v10789
        %v10822 = vadd.f32 %v9438, %v10790
        %v10823 = vadd.f32 %v9441, %v10791
        %v10824 = vadd.f32 %v9443, %v10792
        %v10825 = vadd.f32 %v9446, %v10793
        %v10826 = vadd.f32 %v9448, %v10794
        %v10827 = vadd.f32 %v9451, %v10795
        %v10828 = vadd.f32 %v9453, %v10796
        %v10829 = vadd.f32 %v9456, %v10797
        %v10830 = vadd.f32 %v9458, %v10798
        %v10831 = vadd.f32 %v9461, %v10799
        %v10832 = vadd.f32 %v9463, %v10800
        %v10833 = vadd.f32 %v9466, %v10801
        %v10834 = vadd.f32 %v9468, %v10802
        %v10835 = vadd.f32 %v9471, %v10803
        %v10836 = vadd.f32 %v9473, %v10804
        %v10837 = vadd.f32 %v9476, %v10805
        %v10838 = vadd.f32 %v9478, %v10806
        %v10839 = vadd.f32 %v9481, %v10807
        %v10840 = vadd.f32 %v9483, %v10808
        %v10841 = vadd.f32 %v9486, %v10809
        %v10842 = vadd.f32 %v9488, %v10810
        %v10843 = vadd.f32 %v9491, %v10811
        %v10844 = vadd.f32 %v9493, %v10812
        %v10845 = vadd.f32 %v9496, %v10813
        %v10846 = vadd.f32 %v9498, %v10814
        %v10847 = vadd.f32 %v9501, %v10815
        %v10848 = vadd.f32 %v9503, %v10816
        %v10849 = vtanh.pop %v10817
        %v10850 = vtanh.pop %v10818
        %v10851 = vtanh.pop %v10819
        %v10852 = vtanh.pop %v10820
        %v10853 = vtanh.pop %v10821
        %v10854 = vtanh.pop %v10822
        %v10855 = vtanh.pop %v10823
        %v10856 = vtanh.pop %v10824
        %v10857 = vtanh.pop %v10825
        %v10858 = vtanh.pop %v10826
        %v10859 = vtanh.pop %v10827
        %v10860 = vtanh.pop %v10828
        %v10861 = vtanh.pop %v10829
        %v10862 = vtanh.pop %v10830
        %v10863 = vtanh.pop %v10831
        %v10864 = vtanh.pop %v10832
        %v10865 = vtanh.pop %v10833
        %v10866 = vtanh.pop %v10834
        %v10867 = vtanh.pop %v10835
        %v10868 = vtanh.pop %v10836
        %v10869 = vtanh.pop %v10837
        %v10870 = vtanh.pop %v10838
        %v10871 = vtanh.pop %v10839
        %v10872 = vtanh.pop %v10840
        %v10873 = vtanh.pop %v10841
        %v10874 = vtanh.pop %v10842
        %v10875 = vtanh.pop %v10843
        %v10876 = vtanh.pop %v10844
        %v10877 = vtanh.pop %v10845
        %v10878 = vtanh.pop %v10846
        %v10879 = vtanh.pop %v10847
        %v10880 = vtanh.pop %v10848
        %v10881 = vsub.f32 1.0, %v10319
        %v10882 = vsub.f32 1.0, %v10334
        %v10883 = vsub.f32 1.0, %v10349
        %v10884 = vsub.f32 1.0, %v10364
        %v10885 = vsub.f32 1.0, %v10379
        %v10886 = vsub.f32 1.0, %v10394
        %v10887 = vsub.f32 1.0, %v10409
        %v10888 = vsub.f32 1.0, %v10424
        %v10889 = vsub.f32 1.0, %v10439
        %v10890 = vsub.f32 1.0, %v10454
        %v10891 = vsub.f32 1.0, %v10469
        %v10892 = vsub.f32 1.0, %v10484
        %v10893 = vsub.f32 1.0, %v10499
        %v10894 = vsub.f32 1.0, %v10514
        %v10895 = vsub.f32 1.0, %v10529
        %v10896 = vsub.f32 1.0, %v10544
        %v10897 = vsub.f32 1.0, %v10559
        %v10898 = vsub.f32 1.0, %v10574
        %v10899 = vsub.f32 1.0, %v10589
        %v10900 = vsub.f32 1.0, %v10604
        %v10901 = vsub.f32 1.0, %v10619
        %v10902 = vsub.f32 1.0, %v10634
        %v10903 = vsub.f32 1.0, %v10649
        %v10904 = vsub.f32 1.0, %v10664
        %v10905 = vsub.f32 1.0, %v10679
        %v10906 = vsub.f32 1.0, %v10694
        %v10907 = vsub.f32 1.0, %v10709
        %v10908 = vsub.f32 1.0, %v10724
        %v10909 = vsub.f32 1.0, %v10739
        %v10910 = vsub.f32 1.0, %v10754
        %v10911 = vsub.f32 1.0, %v10769
        %v10912 = vsub.f32 1.0, %v10784
        %v10913 = vmul.f32 %v10881, %v10849
        %v10914 = vmul.f32 %v10882, %v10850
        %v10915 = vmul.f32 %v10883, %v10851
        %v10916 = vmul.f32 %v10884, %v10852
        %v10917 = vmul.f32 %v10885, %v10853
        %v10918 = vmul.f32 %v10886, %v10854
        %v10919 = vmul.f32 %v10887, %v10855
        %v10920 = vmul.f32 %v10888, %v10856
        %v10921 = vmul.f32 %v10889, %v10857
        %v10922 = vmul.f32 %v10890, %v10858
        %v10923 = vmul.f32 %v10891, %v10859
        %v10924 = vmul.f32 %v10892, %v10860
        %v10925 = vmul.f32 %v10893, %v10861
        %v10926 = vmul.f32 %v10894, %v10862
        %v10927 = vmul.f32 %v10895, %v10863
        %v10928 = vmul.f32 %v10896, %v10864
        %v10929 = vmul.f32 %v10897, %v10865
        %v10930 = vmul.f32 %v10898, %v10866
        %v10931 = vmul.f32 %v10899, %v10867
        %v10932 = vmul.f32 %v10900, %v10868
        %v10933 = vmul.f32 %v10901, %v10869
        %v10934 = vmul.f32 %v10902, %v10870
        %v10935 = vmul.f32 %v10903, %v10871
        %v10936 = vmul.f32 %v10904, %v10872
        %v10937 = vmul.f32 %v10905, %v10873
        %v10938 = vmul.f32 %v10906, %v10874
        %v10939 = vmul.f32 %v10907, %v10875
        %v10940 = vmul.f32 %v10908, %v10876
        %v10941 = vmul.f32 %v10909, %v10877
        %v10942 = vmul.f32 %v10910, %v10878
        %v10943 = vmul.f32 %v10911, %v10879
        %v10944 = vmul.f32 %v10912, %v10880
        %v10945 = vmul.f32 %v10319, %v834
        %v10946 = vmul.f32 %v10334, %v835
        %v10947 = vmul.f32 %v10349, %v836
        %v10948 = vmul.f32 %v10364, %v837
        %v10949 = vmul.f32 %v10379, %v838
        %v10950 = vmul.f32 %v10394, %v839
        %v10951 = vmul.f32 %v10409, %v840
        %v10952 = vmul.f32 %v10424, %v841
        %v10953 = vmul.f32 %v10439, %v842
        %v10954 = vmul.f32 %v10454, %v843
        %v10955 = vmul.f32 %v10469, %v844
        %v10956 = vmul.f32 %v10484, %v845
        %v10957 = vmul.f32 %v10499, %v846
        %v10958 = vmul.f32 %v10514, %v847
        %v10959 = vmul.f32 %v10529, %v848
        %v10960 = vmul.f32 %v10544, %v849
        %v10961 = vmul.f32 %v10559, %v850
        %v10962 = vmul.f32 %v10574, %v851
        %v10963 = vmul.f32 %v10589, %v852
        %v10964 = vmul.f32 %v10604, %v853
        %v10965 = vmul.f32 %v10619, %v854
        %v10966 = vmul.f32 %v10634, %v855
        %v10967 = vmul.f32 %v10649, %v856
        %v10968 = vmul.f32 %v10664, %v857
        %v10969 = vmul.f32 %v10679, %v858
        %v10970 = vmul.f32 %v10694, %v859
        %v10971 = vmul.f32 %v10709, %v860
        %v10972 = vmul.f32 %v10724, %v861
        %v10973 = vmul.f32 %v10739, %v862
        %v10974 = vmul.f32 %v10754, %v863
        %v10975 = vmul.f32 %v10769, %v864
        %v10976 = vmul.f32 %v10784, %v865
        %v10977 = vadd.f32 %v10913, %v10945
        %v10978 = vadd.f32 %v10914, %v10946
        %v10979 = vadd.f32 %v10915, %v10947
        %v10980 = vadd.f32 %v10916, %v10948
        %v10981 = vadd.f32 %v10917, %v10949
        %v10982 = vadd.f32 %v10918, %v10950
        %v10983 = vadd.f32 %v10919, %v10951
        %v10984 = vadd.f32 %v10920, %v10952
        %v10985 = vadd.f32 %v10921, %v10953
        %v10986 = vadd.f32 %v10922, %v10954
        %v10987 = vadd.f32 %v10923, %v10955
        %v10988 = vadd.f32 %v10924, %v10956
        %v10989 = vadd.f32 %v10925, %v10957
        %v10990 = vadd.f32 %v10926, %v10958
        %v10991 = vadd.f32 %v10927, %v10959
        %v10992 = vadd.f32 %v10928, %v10960
        %v10993 = vadd.f32 %v10929, %v10961
        %v10994 = vadd.f32 %v10930, %v10962
        %v10995 = vadd.f32 %v10931, %v10963
        %v10996 = vadd.f32 %v10932, %v10964
        %v10997 = vadd.f32 %v10933, %v10965
        %v10998 = vadd.f32 %v10934, %v10966
        %v10999 = vadd.f32 %v10935, %v10967
        %v11000 = vadd.f32 %v10936, %v10968
        %v11001 = vadd.f32 %v10937, %v10969
        %v11002 = vadd.f32 %v10938, %v10970
        %v11003 = vadd.f32 %v10939, %v10971
        %v11004 = vadd.f32 %v10940, %v10972
        %v11005 = vadd.f32 %v10941, %v10973
        %v11006 = vadd.f32 %v10942, %v10974
        %v11007 = vadd.f32 %v10943, %v10975
        %v11008 = vadd.f32 %v10944, %v10976
        %11009 = vst [vmem:[%s307] sm:$0xff] %v10977
        %11010 = vst [vmem:[%s307 + $0x8] sm:$0xff] %v10978
        %11011 = vst [vmem:[%s307 + $0x10] sm:$0xff] %v10979
        %11012 = vst [vmem:[%s307 + $0x18] sm:$0xff] %v10980
        %11013 = vst [vmem:[%s307 + $0x20] sm:$0xff] %v10981
        %11014 = vst [vmem:[%s307 + $0x28] sm:$0xff] %v10982
        %11015 = vst [vmem:[%s307 + $0x30] sm:$0xff] %v10983
        %11016 = vst [vmem:[%s307 + $0x38] sm:$0xff] %v10984
        %11017 = vst [vmem:[%s307 + $0x40] sm:$0xff] %v10985
        %11018 = vst [vmem:[%s307 + $0x48] sm:$0xff] %v10986
        %11019 = vst [vmem:[%s307 + $0x50] sm:$0xff] %v10987
        %11020 = vst [vmem:[%s307 + $0x58] sm:$0xff] %v10988
        %11021 = vst [vmem:[%s307 + $0x60] sm:$0xff] %v10989
        %11022 = vst [vmem:[%s307 + $0x68] sm:$0xff] %v10990
        %11023 = vst [vmem:[%s307 + $0x70] sm:$0xff] %v10991
        %11024 = vst [vmem:[%s307 + $0x78] sm:$0xff] %v10992
        %11025 = vst [vmem:[%s307 + $0x80] sm:$0xff] %v10993
        %11026 = vst [vmem:[%s307 + $0x88] sm:$0xff] %v10994
        %11027 = vst [vmem:[%s307 + $0x90] sm:$0xff] %v10995
        %11028 = vst [vmem:[%s307 + $0x98] sm:$0xff] %v10996
        %11029 = vst [vmem:[%s307 + $0xa0] sm:$0xff] %v10997
        %11030 = vst [vmem:[%s307 + $0xa8] sm:$0xff] %v10998
        %11031 = vst [vmem:[%s307 + $0xb0] sm:$0xff] %v10999
        %11032 = vst [vmem:[%s307 + $0xb8] sm:$0xff] %v11000
        %11033 = vst [vmem:[%s307 + $0xc0] sm:$0xff] %v11001
        %11034 = vst [vmem:[%s307 + $0xc8] sm:$0xff] %v11002
        %11035 = vst [vmem:[%s307 + $0xd0] sm:$0xff] %v11003
        %11036 = vst [vmem:[%s307 + $0xd8] sm:$0xff] %v11004
        %11037 = vst [vmem:[%s307 + $0xe0] sm:$0xff] %v11005
        %11038 = vst [vmem:[%s307 + $0xe8] sm:$0xff] %v11006
        %11039 = vst [vmem:[%s307 + $0xf0] sm:$0xff] %v11007
        %11040 = vst [vmem:[%s307 + $0xf8] sm:$0xff] %v11008
        %s11041 = sand.u32 %s151, 1
        %s11042 = scalar_lea.sflag [#allocation4], %s11041
        %s11043 = sand.u32 %s151, 1
        %s11044 = smul.addr %s11043, 256
        %s11045 = scalar_lea.vmem [#allocation8], %s11044
        // Predicated region
        $region53: #{tpu_custom_call.1} parent=39 // pred_check
          %p11046 = pneg %p161
        $region54: #{tpu_custom_call.1} parent=39 // pred_check_branch
          %11048 = sbr.rel (%p11046) target = $region56
        $region55: #{tpu_custom_call.1} parent=39 // pred_region
          %s11049 = smul.u32 32, %s23
          %11051 = vsyncadd %s11042, 0
          %s11052 = smul.addr %s11049, 8
          %s11053 = scalar_lea.hbm %s5, %s11052
          %s11054 = sshll.u32 %s11045, 4
          %s11055 = int_to_ptr.vmem [resolvable:$true] %s11054
          %s11056 = sshll.u32 %s11053, 4
          %s11057 = int_to_ptr.hbm [resolvable:$true] %s11056
          %11062 = dma.vmem_to_hbm [thread:$0]  %s11055, 4096, %s11057, %s11042, 128, 128, 8
        $region56: #{tpu_custom_call.1} parent=39 // pred_fallthru
          _
      $region40: #{tpu_custom_call.1} parent=5 // pred_fallthru
        _
      %p11063 = scmp.le.s32.totalorder 2, %s18
      // Predicated region
      $region57: #{tpu_custom_call.1} parent=5 // pred_check
        %p11064 = pneg %p11063
      $region58: #{tpu_custom_call.1} parent=5 // pred_check_branch
        %11066 = sbr.rel (%p11064) target = $region60
      $region59: #{tpu_custom_call.1} parent=5 // pred_region
        %s11067 = ssub.s32 %s18, 2
        // Predicated region
        $region61: #{tpu_custom_call.1} parent=59 // pred_check
          %p11068 = pneg %p167
        $region62: #{tpu_custom_call.1} parent=59 // pred_check_branch
          %11070 = sbr.rel (%p11068) target = $region64
        $region63: #{tpu_custom_call.1} parent=59 // pred_region
          %s11071 = sand.u32 %s152, 1
          %s11072 = scalar_lea.sflag [#allocation4], %s11071
          %s11073 = sand.u32 %s152, 1
          %s11074 = smul.addr %s11073, 256
          %s11075 = scalar_lea.vmem [#allocation8], %s11074
          %11077 = dma.done %s11072, 4096
        $region64: #{tpu_custom_call.1} parent=59 // pred_fallthru
          _
      $region60: #{tpu_custom_call.1} parent=5 // pred_fallthru
        _
    $region6: #{tpu_custom_call.1} parent=1 // loop_footer
      %s22 = sadd.s32 1, %s18
    $region7: #{tpu_custom_call.1} parent=1 // loop_footer_branch
      %17 = sbr.rel target = $region3
    $region8: #{tpu_custom_call.1} parent=1 // loop_exit
      _
    %11078 = vsyncpa [#allocation3], 1
    %s11079 = scalar_lea.sflag [#allocation3], 1
    %11080 = vsyncpa %s11079, 1
    %11081 = vsyncpa [#allocation6], 1
    %11082 = vsyncpa [#allocation4], 1
    %s11083 = scalar_lea.sflag [#allocation4], 1
    %11084 = vsyncpa %s11083, 1

</llo_original>
